<compile_context>
chip_gen: v6e
topology: v6e:2x2x1
jax: 0.10.0
libtpu: 0.0.40
codegen_flags: <defaults>
</compile_context>

<pallas_src>
import math

import jax
import jax.numpy as jnp
from jax.experimental import pallas as pl
from jax.experimental.pallas import tpu as pltpu

# -----------------------------------------------------------------------------
# Module-consistent hyper-parameters (encoding_size scaled down from 512)
# -----------------------------------------------------------------------------
CONTEXT_SIZE = 5
N_CTX = CONTEXT_SIZE + 1          # N = context_size + 1 = 6
D_MODEL = 128                     # encoding_size
F_RGB = 64                        # stand-in for EfficientNet ._fc.in_features
NHEADS = 4                        # mha_num_attention_heads
D_HEAD = D_MODEL // NHEADS
NLAYERS = 2                       # mha_num_attention_layers
FF_DIM = 4 * D_MODEL              # mha_ff_dim_factor * D
LN_EPS = 1e-5


# -----------------------------------------------------------------------------
# In-kernel helpers
# -----------------------------------------------------------------------------
def _layernorm(x, g, b, eps=LN_EPS):
    mu = jnp.mean(x, axis=-1, keepdims=True)
    xc = x - mu
    var = jnp.mean(xc * xc, axis=-1, keepdims=True)
    return xc * jax.lax.rsqrt(var + eps) * g + b


def _dot(a, b):
    return jnp.dot(a, b, preferred_element_type=jnp.float32)


# -----------------------------------------------------------------------------
# Kernel 1: fused RGB proxy encoder + mask-branch conv encoder (grid over B)
# -----------------------------------------------------------------------------
def encoder_kernel(rgb_ref, p12_ref,
                   wf_ref, bf_ref, wc_ref, bc_ref,
                   w1b_ref, bp1_ref, w2m_ref, b2_ref, w3t_ref, b3_ref,
                   rgb_tok_ref, mask_tok_ref):
    # ---------------- RGB branch ----------------
    # TODO(synk): EfficientNet-b0 backbone has no in-script Pallas equivalent;
    # replaced by (per-channel spatial mean) -> Linear(3, F) proxy features.
    rgb = rgb_ref[0]                                       # (N, 3, H*W) f32
    pooled_rgb = jnp.mean(rgb, axis=-1)                    # (N, 3)   lane reduce
    feat = _dot(pooled_rgb, wf_ref[...]) + bf_ref[...]     # (N, F)
    rgb_tok = _dot(feat.astype(jnp.bfloat16), wc_ref[...]) + bc_ref[...]   # (N, D)
    n = rgb_tok_ref.shape[1]
    rgb_tok_ref[...] = rgb_tok.reshape(1, n, rgb_tok.shape[-1])

    # ---------------- Mask branch: conv1 -> conv2 -> pool -> Linear, fully fused ----------
    p12 = p12_ref[0]                                       # (rows=(p,n,p2), 81) bf16
    rows = p12.shape[0]
    np2 = bp1_ref.shape[0]                                 # conv2 output spatial positions
    nimg = rows // np2                                     # P*N mask images in this batch
    # conv1 applied to every conv2-window slot at once: K=81, output width 9*16=144
    pre = _dot(p12, w1b_ref[...])                          # (rows, 144) f32 accumulate
    # conv1 bias where the conv2 window is valid, -1e30 where it is conv2 zero padding
    pre = pre.reshape(nimg, np2, pre.shape[-1]) + bp1_ref[...]
    h = jnp.maximum(pre, 0.0).reshape(rows, pre.shape[-1])  # conv2 im2col rows, stays in vregs
    # conv2: K=144 matmul + bias + ReLU
    z2 = jnp.maximum(_dot(h.astype(jnp.bfloat16), w2m_ref[...]) + b2_ref[...], 0.0)  # (rows,32)
    # adaptive average pool over the 4x4 spatial positions (sublane reduction)
    pooled = jnp.mean(z2.reshape(nimg, np2, z2.shape[-1]), axis=1)                   # (nimg,32)
    mfeat = _dot(pooled.astype(jnp.bfloat16), w3t_ref[...]) + b3_ref[...]            # (nimg, D)
    mask_tok_ref[...] = mfeat.reshape(1, nimg, mfeat.shape[-1])


# -----------------------------------------------------------------------------
# Kernel 2: per-sequence transformer encoder + mean pool + predictor (grid over S)
# -----------------------------------------------------------------------------
def transformer_kernel(tok_ref, pos_ref,
                       wq_ref, wk_ref, wv_ref, wo_ref,
                       bq_ref, bk_ref, bv_ref, bo_ref,
                       ln1g_ref, ln1b_ref, w1f_ref, b1f_ref, w2f_ref, b2f_ref,
                       ln2g_ref, ln2b_ref,
                       lnpg_ref, lnpb_ref, wp_ref, bp_ref, out_ref):
    scale = 1.0 / math.sqrt(D_HEAD)
    # pos-enc + type-emb bias added in-kernel from a single (L, D) slab
    x = tok_ref[0] + pos_ref[...]                          # (L, D) f32
    for l in range(NLAYERS):
        xb = x.astype(jnp.bfloat16)
        attn = bo_ref[l]                                    # (1, D) bias, broadcasts over rows
        for hh in range(NHEADS):
            q = _dot(xb, wq_ref[l, hh]) + bq_ref[l, hh]     # (L, dh)
            k = _dot(xb, wk_ref[l, hh]) + bk_ref[l, hh]
            v = _dot(xb, wv_ref[l, hh]) + bv_ref[l, hh]
            s = jax.lax.dot_general(q.astype(jnp.bfloat16), k.astype(jnp.bfloat16),
                                    (((1,), (1,)), ((), ())),
                                    preferred_element_type=jnp.float32) * scale   # (L, L)
            s = s - jnp.max(s, axis=-1, keepdims=True)
            p = jnp.exp(s)
            p = p * pl.reciprocal(jnp.sum(p, axis=-1, keepdims=True), approx=True)
            head = _dot(p.astype(jnp.bfloat16), v.astype(jnp.bfloat16))            # (L, dh)
            attn = attn + _dot(head.astype(jnp.bfloat16), wo_ref[l, hh])           # (L, D)
        x = _layernorm(x + attn, ln1g_ref[l], ln1b_ref[l])
        xb = x.astype(jnp.bfloat16)
        ff = jnp.maximum(_dot(xb, w1f_ref[l]) + b1f_ref[l], 0.0)
        ff2 = _dot(ff.astype(jnp.bfloat16), w2f_ref[l]) + b2f_ref[l]
        x = _layernorm(x + ff2, ln2g_ref[l], ln2b_ref[l])
    pooled = jnp.mean(x, axis=0, keepdims=True)             # (1, D) per-sequence mean (sublane)
    pn = _layernorm(pooled, lnpg_ref[...], lnpb_ref[...])
    # predictor Linear(D, 1): elementwise mul + lane reduction (no N=1 MXU matmul)
    logit = jnp.sum(pn * wp_ref[...], axis=-1, keepdims=True) + bp_ref[...]   # (1, 1)
    out_ref[...] = logit.reshape(1, 1, 1)


# -----------------------------------------------------------------------------
# BlockSpec helpers
# -----------------------------------------------------------------------------
def _const_spec(shape):
    nd = len(shape)
    return pl.BlockSpec(tuple(shape), lambda *_, _n=nd: (0,) * _n)


# -----------------------------------------------------------------------------
# Wrapper-side data movement: nested im2col for the fused conv chain
# -----------------------------------------------------------------------------
def _conv_geometry(h, w):
    oh1, ow1 = (h + 1) // 2, (w + 1) // 2
    oh2, ow2 = (oh1 + 1) // 2, (ow1 + 1) // 2
    return oh1, ow1, oh2, ow2


def build_nested_patches(x):
    """For every conv2 output position and every conv2 3x3 window slot, the corresponding
    conv1 3x3 input patch (both convs' zero padding folded in as explicit zeros).
    x: (M, H, W) -> (M, OH2*OW2, 81) with columns ordered ((di,dj),(ei,ej))."""
    m, h, w = x.shape
    oh1, ow1, oh2, ow2 = _conv_geometry(h, w)
    d = jnp.arange(3)
    e = jnp.arange(3)
    y1 = 2 * jnp.arange(oh2)[:, None] + d[None, :] - 1           # (oh2, 3) conv1-output row
    x1 = 2 * jnp.arange(ow2)[:, None] + d[None, :] - 1           # (ow2, 3) conv1-output col
    iy = 2 * y1[:, :, None] + e[None, None, :] - 1               # (oh2, 3, 3) input row
    ix = 2 * x1[:, :, None] + e[None, None, :] - 1               # (ow2, 3, 3) input col
    my = (y1 >= 0)[:, :, None] & (y1 < oh1)[:, :, None] & (iy >= 0) & (iy < h)
    mx = (x1 >= 0)[:, :, None] & (x1 < ow1)[:, :, None] & (ix >= 0) & (ix < w)
    iyc = jnp.clip(iy, 0, h - 1)
    ixc = jnp.clip(ix, 0, w - 1)
    vals = x[:, iyc[:, :, :, None, None, None], ixc[None, None, None, :, :, :]]
    mask = my[:, :, :, None, None, None] & mx[None, None, None, :, :, :]
    vals = vals * mask.astype(x.dtype)                           # (m, oy2, di, ei, ox2, dj, ej)
    vals = vals.transpose(0, 1, 4, 2, 5, 3, 6)                   # (m, oy2, ox2, di, dj, ei, ej)
    return vals.reshape(m, oh2 * ow2, 81)


def build_conv2_bias_pattern(b1, h, w):
    """(OH2*OW2, 9*16): conv1 bias where the conv2 window position is in-bounds,
    a large negative where it is conv2 zero padding (so ReLU yields exact 0)."""
    oh1, ow1, oh2, ow2 = _conv_geometry(h, w)
    d = jnp.arange(3)
    y1 = 2 * jnp.arange(oh2)[:, None] + d[None, :] - 1
    x1 = 2 * jnp.arange(ow2)[:, None] + d[None, :] - 1
    vy = (y1 >= 0) & (y1 < oh1)
    vx = (x1 >= 0) & (x1 < ow1)
    valid2 = (vy[:, None, :, None] & vx[None, :, None, :]).reshape(oh2 * ow2, 9)
    bp = jnp.where(valid2[:, :, None], b1.reshape(1, 1, -1), -1e30)
    return bp.reshape(oh2 * ow2, 9 * b1.size).astype(jnp.float32)


# -----------------------------------------------------------------------------
# Parameter initialization (deterministic, synthetic; weights that feed matmuls in bf16)
# -----------------------------------------------------------------------------
def init_params(key):
    D, F, ff, dh = D_MODEL, F_RGB, FF_DIM, D_HEAD
    keys = iter(jax.random.split(key, 64))

    def nrm(shape, scale=0.02):
        return (scale * jax.random.normal(next(keys), shape)).astype(jnp.float32)

    p = {}
    # rgb proxy encoder + compress_rgb Linear(F, D)
    p['wf'] = nrm((3, F)); p['bf'] = jnp.zeros((1, F), jnp.float32)
    p['wc'] = nrm((F, D)).astype(jnp.bfloat16); p['bc'] = jnp.zeros((1, D), jnp.float32)
    # mask encoder: Conv2d(1,16,3,s2,p1) -> Conv2d(16,32,3,s2,p1) -> pool -> Linear(32,D),
    # re-parameterized for the fused kernel (block-diag conv1 weight, conv2 im2col weight)
    w1 = nrm((16, 1, 3, 3)); p['b1'] = jnp.zeros((16,), jnp.float32)
    w2 = nrm((32, 16, 3, 3)); p['b2'] = jnp.zeros((1, 32), jnp.float32)
    w1mat = w1.reshape(16, 9).T                                            # (9, 16)
    p['w1blk'] = jnp.kron(jnp.eye(9, dtype=jnp.float32), w1mat).astype(jnp.bfloat16)  # (81,144)
    p['w2mat'] = w2.transpose(2, 3, 1, 0).reshape(144, 32).astype(jnp.bfloat16)
    w3 = nrm((D, 32)); p['w3t'] = w3.T.astype(jnp.bfloat16)
    p['b3'] = jnp.zeros((1, D), jnp.float32)
    # positional encoding (exact PositionalEncoding formula) + type embedding
    L = 2 * N_CTX
    pos = jnp.arange(L, dtype=jnp.float32)[:, None]
    div = jnp.exp(jnp.arange(0, D, 2, dtype=jnp.float32) * (-math.log(10000.0) / D))
    pe = jnp.zeros((L, D), jnp.float32)
    pe = pe.at[:, 0::2].set(jnp.sin(pos * div))
    pe = pe.at[:, 1::2].set(jnp.cos(pos * div))
    p['pos_enc'] = pe
    p['type_emb'] = nrm((2, D))
    # transformer encoder layers: per-head projection slabs (no in-kernel qkv slicing)
    def stack(fn):
        return jnp.stack([fn() for _ in range(NLAYERS)], axis=0)
    p['wq'] = stack(lambda: nrm((NHEADS, D, dh))).astype(jnp.bfloat16)
    p['wk'] = stack(lambda: nrm((NHEADS, D, dh))).astype(jnp.bfloat16)
    p['wv'] = stack(lambda: nrm((NHEADS, D, dh))).astype(jnp.bfloat16)
    p['wo'] = stack(lambda: nrm((NHEADS, dh, D))).astype(jnp.bfloat16)
    p['bq'] = jnp.zeros((NLAYERS, NHEADS, 1, dh), jnp.float32)
    p['bk'] = jnp.zeros((NLAYERS, NHEADS, 1, dh), jnp.float32)
    p['bv'] = jnp.zeros((NLAYERS, NHEADS, 1, dh), jnp.float32)
    p['bo'] = jnp.zeros((NLAYERS, 1, D), jnp.float32)
    p['ln1g'] = jnp.ones((NLAYERS, 1, D), jnp.float32)
    p['ln1b'] = jnp.zeros((NLAYERS, 1, D), jnp.float32)
    p['w1f'] = stack(lambda: nrm((D, ff))).astype(jnp.bfloat16)
    p['b1f'] = jnp.zeros((NLAYERS, 1, ff), jnp.float32)
    p['w2f'] = stack(lambda: nrm((ff, D))).astype(jnp.bfloat16)
    p['b2f'] = jnp.zeros((NLAYERS, 1, D), jnp.float32)
    p['ln2g'] = jnp.ones((NLAYERS, 1, D), jnp.float32)
    p['ln2b'] = jnp.zeros((NLAYERS, 1, D), jnp.float32)
    # predictor: LayerNorm(D) + Linear(D, 1); weight stored as a (1, D) row
    p['lnpg'] = jnp.ones((1, D), jnp.float32)
    p['lnpb'] = jnp.zeros((1, D), jnp.float32)
    p['wp'] = nrm((1, D))
    p['bp'] = jnp.zeros((1, 1), jnp.float32)
    return p


# -----------------------------------------------------------------------------
# Forward pass (GazeSelector.forward semantics; dropout = identity at inference)
# -----------------------------------------------------------------------------
def gaze_selector_forward(params, rgb_imgs, mask_imgs, invalid):
    B, _, H, W = rgb_imgs.shape
    P = mask_imgs.shape[1]
    N, D, L = N_CTX, D_MODEL, 2 * N_CTX
    S = B * P
    M = B * P * N
    _, _, oh2, ow2 = _conv_geometry(H, W)
    np2 = oh2 * ow2

    # ---- wrapper-side work: pure data movement / tiny constant prep ----
    rgb4 = rgb_imgs.reshape(B, N, 3, H * W).astype(jnp.float32)
    flat_mask = mask_imgs.reshape(M, H, W).astype(jnp.float32)
    p12 = build_nested_patches(flat_mask).reshape(B, P * N * np2, 81).astype(jnp.bfloat16)
    bp1 = build_conv2_bias_pattern(params['b1'], H, W)

    enc_consts = [params['wf'], params['bf'], params['wc'], params['bc'],
                  params['w1blk'], bp1, params['w2mat'], params['b2'],
                  params['w3t'], params['b3']]

    rgb_tok, mask_tok = pl.pallas_call(
        encoder_kernel,
        out_shape=(jax.ShapeDtypeStruct((B, N, D), jnp.float32),
                   jax.ShapeDtypeStruct((B, P * N, D), jnp.float32)),
        grid=(B,),
        in_specs=[pl.BlockSpec((1, N, 3, H * W), lambda b: (b, 0, 0, 0)),
                  pl.BlockSpec((1, P * N * np2, 81), lambda b: (b, 0, 0))]
                 + [_const_spec(a.shape) for a in enc_consts],
        out_specs=(pl.BlockSpec((1, N, D), lambda b: (b, 0, 0)),
                   pl.BlockSpec((1, P * N, D), lambda b: (b, 0, 0))),
        compiler_params=pltpu.CompilerParams(dimension_semantics=("parallel",)),
    )(rgb4, p12, *enc_consts)

    # ---- token assembly: interleave rgb / mask tokens (mirrors torch.stack / reshape) ----
    rgb_e = jnp.broadcast_to(rgb_tok[:, None, :, :], (B, P, N, D))
    mask_e = mask_tok.reshape(B, P, N, D)
    tokens = jnp.stack([rgb_e, mask_e], axis=3).reshape(S, L, D)

    type_ids = jnp.arange(L) % 2
    posbias = params['pos_enc'] + params['type_emb'][type_ids]          # (L, D), not tiled to S*L

    tr_consts = [params[k] for k in
                 ('wq', 'wk', 'wv', 'wo', 'bq', 'bk', 'bv', 'bo',
                  'ln1g', 'ln1b', 'w1f', 'b1f', 'w2f', 'b2f', 'ln2g', 'ln2b',
                  'lnpg', 'lnpb', 'wp', 'bp')]

    logits = pl.pallas_call(
        transformer_kernel,
        out_shape=jax.ShapeDtypeStruct((S, 1, 1), jnp.float32),
        grid=(S,),
        in_specs=[pl.BlockSpec((1, L, D), lambda s: (s, 0, 0)),
                  _const_spec((L, D))]
                 + [_const_spec(a.shape) for a in tr_consts],
        out_specs=pl.BlockSpec((1, 1, 1), lambda s: (s, 0, 0)),
        compiler_params=pltpu.CompilerParams(dimension_semantics=("parallel",)),
    )(tokens, posbias, *tr_consts)

    logits = logits.reshape(B, P)
    # masked_fill(invalid, -inf); NaN if a downstream softmax sees an all-invalid row.
    return jnp.where(invalid, -jnp.inf, logits)


# -----------------------------------------------------------------------------
if __name__ == "__main__":
    B, P, H, W = 2, 3, 16, 16
    key = jax.random.PRNGKey(0)
    k_par, k_rgb, k_msk = jax.random.split(key, 3)

    params = init_params(k_par)
    rgb_imgs = jax.random.normal(k_rgb, (B, 3 * N_CTX, H, W), dtype=jnp.float32)
    mask_imgs = (jax.random.uniform(k_msk, (B, P, N_CTX, H, W)) > 0.5).astype(jnp.float32)
    invalid = jnp.array([[False, False, True],
                         [False, False, False]])

    fwd = jax.jit(gaze_selector_forward)
    logits = fwd(params, rgb_imgs, mask_imgs, invalid)
    jax.block_until_ready(logits)
    assert logits.shape == (B, P)
    print("KERNEL_OK")
</pallas_src>

<mosaic_0001>
module attributes {stable_mosaic.version = 11 : i64} {
  func.func @encoder_kernel(%arg0: i32, %arg1: memref<1x6x3x256xf32, #tpu.memory_space<vmem>>, %arg2: memref<1x288x81xbf16, #tpu.memory_space<vmem>>, %arg3: memref<3x64xf32, #tpu.memory_space<vmem>>, %arg4: memref<1x64xf32, #tpu.memory_space<vmem>>, %arg5: memref<64x128xbf16, #tpu.memory_space<vmem>>, %arg6: memref<1x128xf32, #tpu.memory_space<vmem>>, %arg7: memref<81x144xbf16, #tpu.memory_space<vmem>>, %arg8: memref<16x144xf32, #tpu.memory_space<vmem>>, %arg9: memref<144x32xbf16, #tpu.memory_space<vmem>>, %arg10: memref<1x32xf32, #tpu.memory_space<vmem>>, %arg11: memref<32x128xbf16, #tpu.memory_space<vmem>>, %arg12: memref<1x128xf32, #tpu.memory_space<vmem>>, %arg13: memref<1x6x128xf32, #tpu.memory_space<vmem>>, %arg14: memref<1x18x128xf32, #tpu.memory_space<vmem>>) attributes {dimension_semantics = [#tpu.dimension_semantics<parallel>], iteration_bounds = array<i64: 2>, scalar_prefetch = 0 : i64, scratch_operands = 0 : i64, tpu.core_type = #tpu.core_type<tc>, window_params = [{transform_indices = @transform_0, window_bounds = array<i64: 1, 6, 3, 256>}, {transform_indices = @transform_1, window_bounds = array<i64: 1, 288, 81>}, {pipeline_mode = #tpu.pipeline_mode<synchronous>, transform_indices = @transform_2, window_bounds = array<i64: 3, 64>}, {pipeline_mode = #tpu.pipeline_mode<synchronous>, transform_indices = @transform_3, window_bounds = array<i64: 1, 64>}, {pipeline_mode = #tpu.pipeline_mode<synchronous>, transform_indices = @transform_4, window_bounds = array<i64: 64, 128>}, {pipeline_mode = #tpu.pipeline_mode<synchronous>, transform_indices = @transform_5, window_bounds = array<i64: 1, 128>}, {pipeline_mode = #tpu.pipeline_mode<synchronous>, transform_indices = @transform_6, window_bounds = array<i64: 81, 144>}, {pipeline_mode = #tpu.pipeline_mode<synchronous>, transform_indices = @transform_7, window_bounds = array<i64: 16, 144>}, {pipeline_mode = #tpu.pipeline_mode<synchronous>, transform_indices = @transform_8, window_bounds = array<i64: 144, 32>}, {pipeline_mode = #tpu.pipeline_mode<synchronous>, transform_indices = @transform_9, window_bounds = array<i64: 1, 32>}, {pipeline_mode = #tpu.pipeline_mode<synchronous>, transform_indices = @transform_10, window_bounds = array<i64: 32, 128>}, {pipeline_mode = #tpu.pipeline_mode<synchronous>, transform_indices = @transform_11, window_bounds = array<i64: 1, 128>}, {transform_indices = @transform_12, window_bounds = array<i64: 1, 6, 128>}, {transform_indices = @transform_13, window_bounds = array<i64: 1, 18, 128>}]} {
    %c0 = arith.constant 0 : index
    %c0_0 = arith.constant 0 : index
    %c0_1 = arith.constant 0 : index
    %c0_2 = arith.constant 0 : index
    %0 = vector.load %arg1[%c0, %c0_0, %c0_1, %c0_2] : memref<1x6x3x256xf32, #tpu.memory_space<vmem>>, vector<1x6x3x256xf32>
    %1 = vector.shape_cast %0 : vector<1x6x3x256xf32> to vector<6x3x256xf32>
    %cst = arith.constant dense<0.000000e+00> : vector<6x3xf32>
    %2 = vector.multi_reduction <add>, %1, %cst [2] : vector<6x3x256xf32> to vector<6x3xf32>
    %cst_3 = arith.constant 2.560000e+02 : f32
    %3 = vector.broadcast %cst_3 : f32 to vector<6x3xf32>
    %4 = arith.divf %2, %3 : vector<6x3xf32>
    %c0_4 = arith.constant 0 : index
    %c0_5 = arith.constant 0 : index
    %5 = vector.load %arg3[%c0_4, %c0_5] : memref<3x64xf32, #tpu.memory_space<vmem>>, vector<3x64xf32>
    %cst_6 = arith.constant dense<0.000000e+00> : vector<6x64xf32>
    %6 = tpu.matmul %4, %5, %cst_6 {dimension_numbers = #tpu.dot_dimension_numbers<[1], [0], [0], [1], [0, 0, 1, 1], [], []>} : vector<6x3xf32>, vector<3x64xf32>, vector<6x64xf32> -> vector<6x64xf32>
    %c0_7 = arith.constant 0 : index
    %c0_8 = arith.constant 0 : index
    %7 = vector.load %arg4[%c0_7, %c0_8] : memref<1x64xf32, #tpu.memory_space<vmem>>, vector<1x64xf32>
    %8 = vector.broadcast %7 : vector<1x64xf32> to vector<6x64xf32>
    %9 = arith.addf %6, %8 : vector<6x64xf32>
    %10 = arith.truncf %9 : vector<6x64xf32> to vector<6x64xbf16>
    %c0_9 = arith.constant 0 : index
    %c0_10 = arith.constant 0 : index
    %11 = vector.load %arg5[%c0_9, %c0_10] : memref<64x128xbf16, #tpu.memory_space<vmem>>, vector<64x128xbf16>
    %cst_11 = arith.constant dense<0.000000e+00> : vector<6x128xf32>
    %12 = tpu.matmul %10, %11, %cst_11 {dimension_numbers = #tpu.dot_dimension_numbers<[1], [0], [0], [1], [0, 0, 1, 1], [], []>} : vector<6x64xbf16>, vector<64x128xbf16>, vector<6x128xf32> -> vector<6x128xf32>
    %c0_12 = arith.constant 0 : index
    %c0_13 = arith.constant 0 : index
    %13 = vector.load %arg6[%c0_12, %c0_13] : memref<1x128xf32, #tpu.memory_space<vmem>>, vector<1x128xf32>
    %14 = vector.broadcast %13 : vector<1x128xf32> to vector<6x128xf32>
    %15 = arith.addf %12, %14 : vector<6x128xf32>
    %16 = vector.shape_cast %15 : vector<6x128xf32> to vector<1x6x128xf32>
    %c0_14 = arith.constant 0 : index
    %c0_15 = arith.constant 0 : index
    %c0_16 = arith.constant 0 : index
    %17 = vector.load %arg13[%c0_14, %c0_15, %c0_16] : memref<1x6x128xf32, #tpu.memory_space<vmem>>, vector<1x6x128xf32>
    tpu.vector_store %arg13[%c0_14, %c0_15, %c0_16], %16 {strides = array<i32>} : memref<1x6x128xf32, #tpu.memory_space<vmem>>, vector<1x6x128xf32>,
    %c0_17 = arith.constant 0 : index
    %c0_18 = arith.constant 0 : index
    %c0_19 = arith.constant 0 : index
    %18 = vector.load %arg2[%c0_17, %c0_18, %c0_19] : memref<1x288x81xbf16, #tpu.memory_space<vmem>>, vector<1x288x81xbf16>
    %19 = vector.shape_cast %18 : vector<1x288x81xbf16> to vector<288x81xbf16>
    %c0_20 = arith.constant 0 : index
    %c0_21 = arith.constant 0 : index
    %20 = vector.load %arg7[%c0_20, %c0_21] : memref<81x144xbf16, #tpu.memory_space<vmem>>, vector<81x144xbf16>
    %cst_22 = arith.constant dense<0.000000e+00> : vector<288x144xf32>
    %21 = tpu.matmul %19, %20, %cst_22 {dimension_numbers = #tpu.dot_dimension_numbers<[1], [0], [0], [1], [0, 0, 1, 1], [], []>} : vector<288x81xbf16>, vector<81x144xbf16>, vector<288x144xf32> -> vector<288x144xf32>
    %22 = vector.shape_cast %21 : vector<288x144xf32> to vector<18x16x144xf32>
    %c0_23 = arith.constant 0 : index
    %c0_24 = arith.constant 0 : index
    %23 = vector.load %arg8[%c0_23, %c0_24] : memref<16x144xf32, #tpu.memory_space<vmem>>, vector<16x144xf32>
    %24 = vector.shape_cast %23 : vector<16x144xf32> to vector<1x16x144xf32>
    %25 = vector.broadcast %24 : vector<1x16x144xf32> to vector<18x16x144xf32>
    %26 = arith.addf %22, %25 : vector<18x16x144xf32>
    %cst_25 = arith.constant 0.000000e+00 : f32
    %27 = vector.broadcast %cst_25 : f32 to vector<18x16x144xf32>
    %28 = arith.maximumf %26, %27 : vector<18x16x144xf32>
    %29 = vector.shape_cast %28 : vector<18x16x144xf32> to vector<288x144xf32>
    %30 = arith.truncf %29 : vector<288x144xf32> to vector<288x144xbf16>
    %c0_26 = arith.constant 0 : index
    %c0_27 = arith.constant 0 : index
    %31 = vector.load %arg9[%c0_26, %c0_27] : memref<144x32xbf16, #tpu.memory_space<vmem>>, vector<144x32xbf16>
    %cst_28 = arith.constant dense<0.000000e+00> : vector<288x32xf32>
    %32 = tpu.matmul %30, %31, %cst_28 {dimension_numbers = #tpu.dot_dimension_numbers<[1], [0], [0], [1], [0, 0, 1, 1], [], []>} : vector<288x144xbf16>, vector<144x32xbf16>, vector<288x32xf32> -> vector<288x32xf32>
    %c0_29 = arith.constant 0 : index
    %c0_30 = arith.constant 0 : index
    %33 = vector.load %arg10[%c0_29, %c0_30] : memref<1x32xf32, #tpu.memory_space<vmem>>, vector<1x32xf32>
    %34 = vector.broadcast %33 : vector<1x32xf32> to vector<288x32xf32>
    %35 = arith.addf %32, %34 : vector<288x32xf32>
    %cst_31 = arith.constant 0.000000e+00 : f32
    %36 = vector.broadcast %cst_31 : f32 to vector<288x32xf32>
    %37 = arith.maximumf %35, %36 : vector<288x32xf32>
    %38 = vector.shape_cast %37 : vector<288x32xf32> to vector<18x16x32xf32>
    %cst_32 = arith.constant dense<0.000000e+00> : vector<18x32xf32>
    %39 = vector.multi_reduction <add>, %38, %cst_32 [1] : vector<18x16x32xf32> to vector<18x32xf32>
    %cst_33 = arith.constant 1.600000e+01 : f32
    %40 = vector.broadcast %cst_33 : f32 to vector<18x32xf32>
    %41 = arith.divf %39, %40 : vector<18x32xf32>
    %42 = arith.truncf %41 : vector<18x32xf32> to vector<18x32xbf16>
    %c0_34 = arith.constant 0 : index
    %c0_35 = arith.constant 0 : index
    %43 = vector.load %arg11[%c0_34, %c0_35] : memref<32x128xbf16, #tpu.memory_space<vmem>>, vector<32x128xbf16>
    %cst_36 = arith.constant dense<0.000000e+00> : vector<18x128xf32>
    %44 = tpu.matmul %42, %43, %cst_36 {dimension_numbers = #tpu.dot_dimension_numbers<[1], [0], [0], [1], [0, 0, 1, 1], [], []>} : vector<18x32xbf16>, vector<32x128xbf16>, vector<18x128xf32> -> vector<18x128xf32>
    %c0_37 = arith.constant 0 : index
    %c0_38 = arith.constant 0 : index
    %45 = vector.load %arg12[%c0_37, %c0_38] : memref<1x128xf32, #tpu.memory_space<vmem>>, vector<1x128xf32>
    %46 = vector.broadcast %45 : vector<1x128xf32> to vector<18x128xf32>
    %47 = arith.addf %44, %46 : vector<18x128xf32>
    %48 = vector.shape_cast %47 : vector<18x128xf32> to vector<1x18x128xf32>
    %c0_39 = arith.constant 0 : index
    %c0_40 = arith.constant 0 : index
    %c0_41 = arith.constant 0 : index
    %49 = vector.load %arg14[%c0_39, %c0_40, %c0_41] : memref<1x18x128xf32, #tpu.memory_space<vmem>>, vector<1x18x128xf32>
    tpu.vector_store %arg14[%c0_39, %c0_40, %c0_41], %48 {strides = array<i32>} : memref<1x18x128xf32, #tpu.memory_space<vmem>>, vector<1x18x128xf32>,
    return
  }
  func.func @transform_0(%arg0: i32) -> (i32, i32, i32, i32) {
    %c0_i32 = arith.constant 0 : i32
    %c0_i32_0 = arith.constant 0 : i32
    %c0_i32_1 = arith.constant 0 : i32
    %c0_i32_2 = arith.constant 0 : i32
    return %arg0, %c0_i32, %c0_i32_0, %c0_i32_1 : i32, i32, i32, i32
  }
  func.func @transform_1(%arg0: i32) -> (i32, i32, i32) {
    %c0_i32 = arith.constant 0 : i32
    %c0_i32_0 = arith.constant 0 : i32
    %c0_i32_1 = arith.constant 0 : i32
    return %arg0, %c0_i32, %c0_i32_0 : i32, i32, i32
  }
  func.func @transform_2(%arg0: i32) -> (i32, i32) {
    %c0_i32 = arith.constant 0 : i32
    %c0_i32_0 = arith.constant 0 : i32
    %c0_i32_1 = arith.constant 0 : i32
    return %c0_i32, %c0_i32_0 : i32, i32
  }
  func.func @transform_3(%arg0: i32) -> (i32, i32) {
    %c0_i32 = arith.constant 0 : i32
    %c0_i32_0 = arith.constant 0 : i32
    %c0_i32_1 = arith.constant 0 : i32
    return %c0_i32, %c0_i32_0 : i32, i32
  }
  func.func @transform_4(%arg0: i32) -> (i32, i32) {
    %c0_i32 = arith.constant 0 : i32
    %c0_i32_0 = arith.constant 0 : i32
    %c0_i32_1 = arith.constant 0 : i32
    return %c0_i32, %c0_i32_0 : i32, i32
  }
  func.func @transform_5(%arg0: i32) -> (i32, i32) {
    %c0_i32 = arith.constant 0 : i32
    %c0_i32_0 = arith.constant 0 : i32
    %c0_i32_1 = arith.constant 0 : i32
    return %c0_i32, %c0_i32_0 : i32, i32
  }
  func.func @transform_6(%arg0: i32) -> (i32, i32) {
    %c0_i32 = arith.constant 0 : i32
    %c0_i32_0 = arith.constant 0 : i32
    %c0_i32_1 = arith.constant 0 : i32
    return %c0_i32, %c0_i32_0 : i32, i32
  }
  func.func @transform_7(%arg0: i32) -> (i32, i32) {
    %c0_i32 = arith.constant 0 : i32
    %c0_i32_0 = arith.constant 0 : i32
    %c0_i32_1 = arith.constant 0 : i32
    return %c0_i32, %c0_i32_0 : i32, i32
  }
  func.func @transform_8(%arg0: i32) -> (i32, i32) {
    %c0_i32 = arith.constant 0 : i32
    %c0_i32_0 = arith.constant 0 : i32
    %c0_i32_1 = arith.constant 0 : i32
    return %c0_i32, %c0_i32_0 : i32, i32
  }
  func.func @transform_9(%arg0: i32) -> (i32, i32) {
    %c0_i32 = arith.constant 0 : i32
    %c0_i32_0 = arith.constant 0 : i32
    %c0_i32_1 = arith.constant 0 : i32
    return %c0_i32, %c0_i32_0 : i32, i32
  }
  func.func @transform_10(%arg0: i32) -> (i32, i32) {
    %c0_i32 = arith.constant 0 : i32
    %c0_i32_0 = arith.constant 0 : i32
    %c0_i32_1 = arith.constant 0 : i32
    return %c0_i32, %c0_i32_0 : i32, i32
  }
  func.func @transform_11(%arg0: i32) -> (i32, i32) {
    %c0_i32 = arith.constant 0 : i32
    %c0_i32_0 = arith.constant 0 : i32
    %c0_i32_1 = arith.constant 0 : i32
    return %c0_i32, %c0_i32_0 : i32, i32
  }
  func.func @transform_12(%arg0: i32) -> (i32, i32, i32) {
    %c0_i32 = arith.constant 0 : i32
    %c0_i32_0 = arith.constant 0 : i32
    %c0_i32_1 = arith.constant 0 : i32
    return %arg0, %c0_i32, %c0_i32_0 : i32, i32, i32
  }
  func.func @transform_13(%arg0: i32) -> (i32, i32, i32) {
    %c0_i32 = arith.constant 0 : i32
    %c0_i32_0 = arith.constant 0 : i32
    %c0_i32_1 = arith.constant 0 : i32
    return %arg0, %c0_i32, %c0_i32_0 : i32, i32, i32
  }
}

module attributes {stable_mosaic.version = 11 : i64} {
  func.func @transformer_kernel(%arg0: i32, %arg1: memref<1x12x128xf32, #tpu.memory_space<vmem>>, %arg2: memref<12x128xf32, #tpu.memory_space<vmem>>, %arg3: memref<2x4x128x32xbf16, #tpu.memory_space<vmem>>, %arg4: memref<2x4x128x32xbf16, #tpu.memory_space<vmem>>, %arg5: memref<2x4x128x32xbf16, #tpu.memory_space<vmem>>, %arg6: memref<2x4x32x128xbf16, #tpu.memory_space<vmem>>, %arg7: memref<2x4x1x32xf32, #tpu.memory_space<vmem>>, %arg8: memref<2x4x1x32xf32, #tpu.memory_space<vmem>>, %arg9: memref<2x4x1x32xf32, #tpu.memory_space<vmem>>, %arg10: memref<2x1x128xf32, #tpu.memory_space<vmem>>, %arg11: memref<2x1x128xf32, #tpu.memory_space<vmem>>, %arg12: memref<2x1x128xf32, #tpu.memory_space<vmem>>, %arg13: memref<2x128x512xbf16, #tpu.memory_space<vmem>>, %arg14: memref<2x1x512xf32, #tpu.memory_space<vmem>>, %arg15: memref<2x512x128xbf16, #tpu.memory_space<vmem>>, %arg16: memref<2x1x128xf32, #tpu.memory_space<vmem>>, %arg17: memref<2x1x128xf32, #tpu.memory_space<vmem>>, %arg18: memref<2x1x128xf32, #tpu.memory_space<vmem>>, %arg19: memref<1x128xf32, #tpu.memory_space<vmem>>, %arg20: memref<1x128xf32, #tpu.memory_space<vmem>>, %arg21: memref<1x128xf32, #tpu.memory_space<vmem>>, %arg22: memref<1x1xf32, #tpu.memory_space<vmem>>, %arg23: memref<1x1x1xf32, #tpu.memory_space<vmem>>) attributes {dimension_semantics = [#tpu.dimension_semantics<parallel>], iteration_bounds = array<i64: 6>, scalar_prefetch = 0 : i64, scratch_operands = 0 : i64, tpu.core_type = #tpu.core_type<tc>, window_params = [{transform_indices = @transform_0, window_bounds = array<i64: 1, 12, 128>}, {pipeline_mode = #tpu.pipeline_mode<synchronous>, transform_indices = @transform_1, window_bounds = array<i64: 12, 128>}, {pipeline_mode = #tpu.pipeline_mode<synchronous>, transform_indices = @transform_2, window_bounds = array<i64: 2, 4, 128, 32>}, {pipeline_mode = #tpu.pipeline_mode<synchronous>, transform_indices = @transform_3, window_bounds = array<i64: 2, 4, 128, 32>}, {pipeline_mode = #tpu.pipeline_mode<synchronous>, transform_indices = @transform_4, window_bounds = array<i64: 2, 4, 128, 32>}, {pipeline_mode = #tpu.pipeline_mode<synchronous>, transform_indices = @transform_5, window_bounds = array<i64: 2, 4, 32, 128>}, {pipeline_mode = #tpu.pipeline_mode<synchronous>, transform_indices = @transform_6, window_bounds = array<i64: 2, 4, 1, 32>}, {pipeline_mode = #tpu.pipeline_mode<synchronous>, transform_indices = @transform_7, window_bounds = array<i64: 2, 4, 1, 32>}, {pipeline_mode = #tpu.pipeline_mode<synchronous>, transform_indices = @transform_8, window_bounds = array<i64: 2, 4, 1, 32>}, {pipeline_mode = #tpu.pipeline_mode<synchronous>, transform_indices = @transform_9, window_bounds = array<i64: 2, 1, 128>}, {pipeline_mode = #tpu.pipeline_mode<synchronous>, transform_indices = @transform_10, window_bounds = array<i64: 2, 1, 128>}, {pipeline_mode = #tpu.pipeline_mode<synchronous>, transform_indices = @transform_11, window_bounds = array<i64: 2, 1, 128>}, {pipeline_mode = #tpu.pipeline_mode<synchronous>, transform_indices = @transform_12, window_bounds = array<i64: 2, 128, 512>}, {pipeline_mode = #tpu.pipeline_mode<synchronous>, transform_indices = @transform_13, window_bounds = array<i64: 2, 1, 512>}, {pipeline_mode = #tpu.pipeline_mode<synchronous>, transform_indices = @transform_14, window_bounds = array<i64: 2, 512, 128>}, {pipeline_mode = #tpu.pipeline_mode<synchronous>, transform_indices = @transform_15, window_bounds = array<i64: 2, 1, 128>}, {pipeline_mode = #tpu.pipeline_mode<synchronous>, transform_indices = @transform_16, window_bounds = array<i64: 2, 1, 128>}, {pipeline_mode = #tpu.pipeline_mode<synchronous>, transform_indices = @transform_17, window_bounds = array<i64: 2, 1, 128>}, {pipeline_mode = #tpu.pipeline_mode<synchronous>, transform_indices = @transform_18, window_bounds = array<i64: 1, 128>}, {pipeline_mode = #tpu.pipeline_mode<synchronous>, transform_indices = @transform_19, window_bounds = array<i64: 1, 128>}, {pipeline_mode = #tpu.pipeline_mode<synchronous>, transform_indices = @transform_20, window_bounds = array<i64: 1, 128>}, {pipeline_mode = #tpu.pipeline_mode<synchronous>, transform_indices = @transform_21, window_bounds = array<i64: 1, 1>}, {transform_indices = @transform_22, window_bounds = array<i64: 1, 1, 1>}]} {
    %c0 = arith.constant 0 : index
    %c0_0 = arith.constant 0 : index
    %c0_1 = arith.constant 0 : index
    %0 = vector.load %arg1[%c0, %c0_0, %c0_1] : memref<1x12x128xf32, #tpu.memory_space<vmem>>, vector<1x12x128xf32>
    %1 = vector.shape_cast %0 : vector<1x12x128xf32> to vector<12x128xf32>
    %c0_2 = arith.constant 0 : index
    %c0_3 = arith.constant 0 : index
    %2 = vector.load %arg2[%c0_2, %c0_3] : memref<12x128xf32, #tpu.memory_space<vmem>>, vector<12x128xf32>
    %3 = arith.addf %1, %2 : vector<12x128xf32>
    %4 = arith.truncf %3 : vector<12x128xf32> to vector<12x128xbf16>
    %c0_4 = arith.constant 0 : index
    %c0_5 = arith.constant 0 : index
    %c0_6 = arith.constant 0 : index
    %5 = vector.load %arg10[%c0_4, %c0_5, %c0_6] : memref<2x1x128xf32, #tpu.memory_space<vmem>>, vector<1x1x128xf32>
    %6 = vector.shape_cast %5 : vector<1x1x128xf32> to vector<1x128xf32>
    %c0_7 = arith.constant 0 : index
    %c0_8 = arith.constant 0 : index
    %c0_9 = arith.constant 0 : index
    %c0_10 = arith.constant 0 : index
    %7 = vector.load %arg3[%c0_7, %c0_8, %c0_9, %c0_10] : memref<2x4x128x32xbf16, #tpu.memory_space<vmem>>, vector<1x1x128x32xbf16>
    %8 = vector.shape_cast %7 : vector<1x1x128x32xbf16> to vector<128x32xbf16>
    %cst = arith.constant dense<0.000000e+00> : vector<12x32xf32>
    %9 = tpu.matmul %4, %8, %cst {dimension_numbers = #tpu.dot_dimension_numbers<[1], [0], [0], [1], [0, 0, 1, 1], [], []>} : vector<12x128xbf16>, vector<128x32xbf16>, vector<12x32xf32> -> vector<12x32xf32>
    %c0_11 = arith.constant 0 : index
    %c0_12 = arith.constant 0 : index
    %c0_13 = arith.constant 0 : index
    %c0_14 = arith.constant 0 : index
    %10 = vector.load %arg7[%c0_11, %c0_12, %c0_13, %c0_14] : memref<2x4x1x32xf32, #tpu.memory_space<vmem>>, vector<1x1x1x32xf32>
    %11 = vector.shape_cast %10 : vector<1x1x1x32xf32> to vector<1x32xf32>
    %12 = vector.broadcast %11 : vector<1x32xf32> to vector<12x32xf32>
    %13 = arith.addf %9, %12 : vector<12x32xf32>
    %c0_15 = arith.constant 0 : index
    %c0_16 = arith.constant 0 : index
    %c0_17 = arith.constant 0 : index
    %c0_18 = arith.constant 0 : index
    %14 = vector.load %arg4[%c0_15, %c0_16, %c0_17, %c0_18] : memref<2x4x128x32xbf16, #tpu.memory_space<vmem>>, vector<1x1x128x32xbf16>
    %15 = vector.shape_cast %14 : vector<1x1x128x32xbf16> to vector<128x32xbf16>
    %cst_19 = arith.constant dense<0.000000e+00> : vector<12x32xf32>
    %16 = tpu.matmul %4, %15, %cst_19 {dimension_numbers = #tpu.dot_dimension_numbers<[1], [0], [0], [1], [0, 0, 1, 1], [], []>} : vector<12x128xbf16>, vector<128x32xbf16>, vector<12x32xf32> -> vector<12x32xf32>
    %c0_20 = arith.constant 0 : index
    %c0_21 = arith.constant 0 : index
    %c0_22 = arith.constant 0 : index
    %c0_23 = arith.constant 0 : index
    %17 = vector.load %arg8[%c0_20, %c0_21, %c0_22, %c0_23] : memref<2x4x1x32xf32, #tpu.memory_space<vmem>>, vector<1x1x1x32xf32>
    %18 = vector.shape_cast %17 : vector<1x1x1x32xf32> to vector<1x32xf32>
    %19 = vector.broadcast %18 : vector<1x32xf32> to vector<12x32xf32>
    %20 = arith.addf %16, %19 : vector<12x32xf32>
    %c0_24 = arith.constant 0 : index
    %c0_25 = arith.constant 0 : index
    %c0_26 = arith.constant 0 : index
    %c0_27 = arith.constant 0 : index
    %21 = vector.load %arg5[%c0_24, %c0_25, %c0_26, %c0_27] : memref<2x4x128x32xbf16, #tpu.memory_space<vmem>>, vector<1x1x128x32xbf16>
    %22 = vector.shape_cast %21 : vector<1x1x128x32xbf16> to vector<128x32xbf16>
    %cst_28 = arith.constant dense<0.000000e+00> : vector<12x32xf32>
    %23 = tpu.matmul %4, %22, %cst_28 {dimension_numbers = #tpu.dot_dimension_numbers<[1], [0], [0], [1], [0, 0, 1, 1], [], []>} : vector<12x128xbf16>, vector<128x32xbf16>, vector<12x32xf32> -> vector<12x32xf32>
    %c0_29 = arith.constant 0 : index
    %c0_30 = arith.constant 0 : index
    %c0_31 = arith.constant 0 : index
    %c0_32 = arith.constant 0 : index
    %24 = vector.load %arg9[%c0_29, %c0_30, %c0_31, %c0_32] : memref<2x4x1x32xf32, #tpu.memory_space<vmem>>, vector<1x1x1x32xf32>
    %25 = vector.shape_cast %24 : vector<1x1x1x32xf32> to vector<1x32xf32>
    %26 = vector.broadcast %25 : vector<1x32xf32> to vector<12x32xf32>
    %27 = arith.addf %23, %26 : vector<12x32xf32>
    %28 = arith.truncf %13 : vector<12x32xf32> to vector<12x32xbf16>
    %29 = arith.truncf %20 : vector<12x32xf32> to vector<12x32xbf16>
    %cst_33 = arith.constant dense<0.000000e+00> : vector<12x12xf32>
    %30 = tpu.matmul %28, %29, %cst_33 {dimension_numbers = #tpu.dot_dimension_numbers<[1], [1], [0], [0], [0, 0, 1, 0], [], []>} : vector<12x32xbf16>, vector<12x32xbf16>, vector<12x12xf32> -> vector<12x12xf32>
    %cst_34 = arith.constant 0.176776692 : f32
    %31 = vector.broadcast %cst_34 : f32 to vector<12x12xf32>
    %32 = arith.mulf %30, %31 : vector<12x12xf32>
    %cst_35 = arith.constant dense<0xFF800000> : vector<12xf32>
    %33 = vector.multi_reduction <maximumf>, %32, %cst_35 [1] : vector<12x12xf32> to vector<12xf32>
    %34 = vector.shape_cast %33 : vector<12xf32> to vector<12x1xf32>
    %35 = vector.broadcast %34 : vector<12x1xf32> to vector<12x12xf32>
    %36 = arith.subf %32, %35 : vector<12x12xf32>
    %37 = math.exp %36 : vector<12x12xf32>
    %cst_36 = arith.constant dense<0.000000e+00> : vector<12xf32>
    %38 = vector.multi_reduction <add>, %37, %cst_36 [1] : vector<12x12xf32> to vector<12xf32>
    %39 = vector.shape_cast %38 : vector<12xf32> to vector<12x1xf32>
    %40 = tpu.reciprocal %39 {approx = true} : vector<12x1xf32> -> vector<12x1xf32>
    %41 = vector.broadcast %40 : vector<12x1xf32> to vector<12x12xf32>
    %42 = arith.mulf %37, %41 : vector<12x12xf32>
    %43 = arith.truncf %42 : vector<12x12xf32> to vector<12x12xbf16>
    %44 = arith.truncf %27 : vector<12x32xf32> to vector<12x32xbf16>
    %cst_37 = arith.constant dense<0.000000e+00> : vector<12x32xf32>
    %45 = tpu.matmul %43, %44, %cst_37 {dimension_numbers = #tpu.dot_dimension_numbers<[1], [0], [0], [1], [0, 0, 1, 1], [], []>} : vector<12x12xbf16>, vector<12x32xbf16>, vector<12x32xf32> -> vector<12x32xf32>
    %46 = arith.truncf %45 : vector<12x32xf32> to vector<12x32xbf16>
    %c0_38 = arith.constant 0 : index
    %c0_39 = arith.constant 0 : index
    %c0_40 = arith.constant 0 : index
    %c0_41 = arith.constant 0 : index
    %47 = vector.load %arg6[%c0_38, %c0_39, %c0_40, %c0_41] : memref<2x4x32x128xbf16, #tpu.memory_space<vmem>>, vector<1x1x32x128xbf16>
    %48 = vector.shape_cast %47 : vector<1x1x32x128xbf16> to vector<32x128xbf16>
    %cst_42 = arith.constant dense<0.000000e+00> : vector<12x128xf32>
    %49 = tpu.matmul %46, %48, %cst_42 {dimension_numbers = #tpu.dot_dimension_numbers<[1], [0], [0], [1], [0, 0, 1, 1], [], []>} : vector<12x32xbf16>, vector<32x128xbf16>, vector<12x128xf32> -> vector<12x128xf32>
    %50 = vector.broadcast %6 : vector<1x128xf32> to vector<12x128xf32>
    %51 = arith.addf %50, %49 : vector<12x128xf32>
    %c0_43 = arith.constant 0 : index
    %c1 = arith.constant 1 : index
    %c0_44 = arith.constant 0 : index
    %c0_45 = arith.constant 0 : index
    %52 = vector.load %arg3[%c0_43, %c1, %c0_44, %c0_45] : memref<2x4x128x32xbf16, #tpu.memory_space<vmem>>, vector<1x1x128x32xbf16>
    %53 = vector.shape_cast %52 : vector<1x1x128x32xbf16> to vector<128x32xbf16>
    %cst_46 = arith.constant dense<0.000000e+00> : vector<12x32xf32>
    %54 = tpu.matmul %4, %53, %cst_46 {dimension_numbers = #tpu.dot_dimension_numbers<[1], [0], [0], [1], [0, 0, 1, 1], [], []>} : vector<12x128xbf16>, vector<128x32xbf16>, vector<12x32xf32> -> vector<12x32xf32>
    %c0_47 = arith.constant 0 : index
    %c1_48 = arith.constant 1 : index
    %c0_49 = arith.constant 0 : index
    %c0_50 = arith.constant 0 : index
    %55 = vector.load %arg7[%c0_47, %c1_48, %c0_49, %c0_50] : memref<2x4x1x32xf32, #tpu.memory_space<vmem>>, vector<1x1x1x32xf32>
    %56 = vector.shape_cast %55 : vector<1x1x1x32xf32> to vector<1x32xf32>
    %57 = vector.broadcast %56 : vector<1x32xf32> to vector<12x32xf32>
    %58 = arith.addf %54, %57 : vector<12x32xf32>
    %c0_51 = arith.constant 0 : index
    %c1_52 = arith.constant 1 : index
    %c0_53 = arith.constant 0 : index
    %c0_54 = arith.constant 0 : index
    %59 = vector.load %arg4[%c0_51, %c1_52, %c0_53, %c0_54] : memref<2x4x128x32xbf16, #tpu.memory_space<vmem>>, vector<1x1x128x32xbf16>
    %60 = vector.shape_cast %59 : vector<1x1x128x32xbf16> to vector<128x32xbf16>
    %cst_55 = arith.constant dense<0.000000e+00> : vector<12x32xf32>
    %61 = tpu.matmul %4, %60, %cst_55 {dimension_numbers = #tpu.dot_dimension_numbers<[1], [0], [0], [1], [0, 0, 1, 1], [], []>} : vector<12x128xbf16>, vector<128x32xbf16>, vector<12x32xf32> -> vector<12x32xf32>
    %c0_56 = arith.constant 0 : index
    %c1_57 = arith.constant 1 : index
    %c0_58 = arith.constant 0 : index
    %c0_59 = arith.constant 0 : index
    %62 = vector.load %arg8[%c0_56, %c1_57, %c0_58, %c0_59] : memref<2x4x1x32xf32, #tpu.memory_space<vmem>>, vector<1x1x1x32xf32>
    %63 = vector.shape_cast %62 : vector<1x1x1x32xf32> to vector<1x32xf32>
    %64 = vector.broadcast %63 : vector<1x32xf32> to vector<12x32xf32>
    %65 = arith.addf %61, %64 : vector<12x32xf32>
    %c0_60 = arith.constant 0 : index
    %c1_61 = arith.constant 1 : index
    %c0_62 = arith.constant 0 : index
    %c0_63 = arith.constant 0 : index
    %66 = vector.load %arg5[%c0_60, %c1_61, %c0_62, %c0_63] : memref<2x4x128x32xbf16, #tpu.memory_space<vmem>>, vector<1x1x128x32xbf16>
    %67 = vector.shape_cast %66 : vector<1x1x128x32xbf16> to vector<128x32xbf16>
    %cst_64 = arith.constant dense<0.000000e+00> : vector<12x32xf32>
    %68 = tpu.matmul %4, %67, %cst_64 {dimension_numbers = #tpu.dot_dimension_numbers<[1], [0], [0], [1], [0, 0, 1, 1], [], []>} : vector<12x128xbf16>, vector<128x32xbf16>, vector<12x32xf32> -> vector<12x32xf32>
    %c0_65 = arith.constant 0 : index
    %c1_66 = arith.constant 1 : index
    %c0_67 = arith.constant 0 : index
    %c0_68 = arith.constant 0 : index
    %69 = vector.load %arg9[%c0_65, %c1_66, %c0_67, %c0_68] : memref<2x4x1x32xf32, #tpu.memory_space<vmem>>, vector<1x1x1x32xf32>
    %70 = vector.shape_cast %69 : vector<1x1x1x32xf32> to vector<1x32xf32>
    %71 = vector.broadcast %70 : vector<1x32xf32> to vector<12x32xf32>
    %72 = arith.addf %68, %71 : vector<12x32xf32>
    %73 = arith.truncf %58 : vector<12x32xf32> to vector<12x32xbf16>
    %74 = arith.truncf %65 : vector<12x32xf32> to vector<12x32xbf16>
    %cst_69 = arith.constant dense<0.000000e+00> : vector<12x12xf32>
    %75 = tpu.matmul %73, %74, %cst_69 {dimension_numbers = #tpu.dot_dimension_numbers<[1], [1], [0], [0], [0, 0, 1, 0], [], []>} : vector<12x32xbf16>, vector<12x32xbf16>, vector<12x12xf32> -> vector<12x12xf32>
    %cst_70 = arith.constant 0.176776692 : f32
    %76 = vector.broadcast %cst_70 : f32 to vector<12x12xf32>
    %77 = arith.mulf %75, %76 : vector<12x12xf32>
    %cst_71 = arith.constant dense<0xFF800000> : vector<12xf32>
    %78 = vector.multi_reduction <maximumf>, %77, %cst_71 [1] : vector<12x12xf32> to vector<12xf32>
    %79 = vector.shape_cast %78 : vector<12xf32> to vector<12x1xf32>
    %80 = vector.broadcast %79 : vector<12x1xf32> to vector<12x12xf32>
    %81 = arith.subf %77, %80 : vector<12x12xf32>
    %82 = math.exp %81 : vector<12x12xf32>
    %cst_72 = arith.constant dense<0.000000e+00> : vector<12xf32>
    %83 = vector.multi_reduction <add>, %82, %cst_72 [1] : vector<12x12xf32> to vector<12xf32>
    %84 = vector.shape_cast %83 : vector<12xf32> to vector<12x1xf32>
    %85 = tpu.reciprocal %84 {approx = true} : vector<12x1xf32> -> vector<12x1xf32>
    %86 = vector.broadcast %85 : vector<12x1xf32> to vector<12x12xf32>
    %87 = arith.mulf %82, %86 : vector<12x12xf32>
    %88 = arith.truncf %87 : vector<12x12xf32> to vector<12x12xbf16>
    %89 = arith.truncf %72 : vector<12x32xf32> to vector<12x32xbf16>
    %cst_73 = arith.constant dense<0.000000e+00> : vector<12x32xf32>
    %90 = tpu.matmul %88, %89, %cst_73 {dimension_numbers = #tpu.dot_dimension_numbers<[1], [0], [0], [1], [0, 0, 1, 1], [], []>} : vector<12x12xbf16>, vector<12x32xbf16>, vector<12x32xf32> -> vector<12x32xf32>
    %91 = arith.truncf %90 : vector<12x32xf32> to vector<12x32xbf16>
    %c0_74 = arith.constant 0 : index
    %c1_75 = arith.constant 1 : index
    %c0_76 = arith.constant 0 : index
    %c0_77 = arith.constant 0 : index
    %92 = vector.load %arg6[%c0_74, %c1_75, %c0_76, %c0_77] : memref<2x4x32x128xbf16, #tpu.memory_space<vmem>>, vector<1x1x32x128xbf16>
    %93 = vector.shape_cast %92 : vector<1x1x32x128xbf16> to vector<32x128xbf16>
    %cst_78 = arith.constant dense<0.000000e+00> : vector<12x128xf32>
    %94 = tpu.matmul %91, %93, %cst_78 {dimension_numbers = #tpu.dot_dimension_numbers<[1], [0], [0], [1], [0, 0, 1, 1], [], []>} : vector<12x32xbf16>, vector<32x128xbf16>, vector<12x128xf32> -> vector<12x128xf32>
    %95 = arith.addf %51, %94 : vector<12x128xf32>
    %c0_79 = arith.constant 0 : index
    %c2 = arith.constant 2 : index
    %c0_80 = arith.constant 0 : index
    %c0_81 = arith.constant 0 : index
    %96 = vector.load %arg3[%c0_79, %c2, %c0_80, %c0_81] : memref<2x4x128x32xbf16, #tpu.memory_space<vmem>>, vector<1x1x128x32xbf16>
    %97 = vector.shape_cast %96 : vector<1x1x128x32xbf16> to vector<128x32xbf16>
    %cst_82 = arith.constant dense<0.000000e+00> : vector<12x32xf32>
    %98 = tpu.matmul %4, %97, %cst_82 {dimension_numbers = #tpu.dot_dimension_numbers<[1], [0], [0], [1], [0, 0, 1, 1], [], []>} : vector<12x128xbf16>, vector<128x32xbf16>, vector<12x32xf32> -> vector<12x32xf32>
    %c0_83 = arith.constant 0 : index
    %c2_84 = arith.constant 2 : index
    %c0_85 = arith.constant 0 : index
    %c0_86 = arith.constant 0 : index
    %99 = vector.load %arg7[%c0_83, %c2_84, %c0_85, %c0_86] : memref<2x4x1x32xf32, #tpu.memory_space<vmem>>, vector<1x1x1x32xf32>
    %100 = vector.shape_cast %99 : vector<1x1x1x32xf32> to vector<1x32xf32>
    %101 = vector.broadcast %100 : vector<1x32xf32> to vector<12x32xf32>
    %102 = arith.addf %98, %101 : vector<12x32xf32>
    %c0_87 = arith.constant 0 : index
    %c2_88 = arith.constant 2 : index
    %c0_89 = arith.constant 0 : index
    %c0_90 = arith.constant 0 : index
    %103 = vector.load %arg4[%c0_87, %c2_88, %c0_89, %c0_90] : memref<2x4x128x32xbf16, #tpu.memory_space<vmem>>, vector<1x1x128x32xbf16>
    %104 = vector.shape_cast %103 : vector<1x1x128x32xbf16> to vector<128x32xbf16>
    %cst_91 = arith.constant dense<0.000000e+00> : vector<12x32xf32>
    %105 = tpu.matmul %4, %104, %cst_91 {dimension_numbers = #tpu.dot_dimension_numbers<[1], [0], [0], [1], [0, 0, 1, 1], [], []>} : vector<12x128xbf16>, vector<128x32xbf16>, vector<12x32xf32> -> vector<12x32xf32>
    %c0_92 = arith.constant 0 : index
    %c2_93 = arith.constant 2 : index
    %c0_94 = arith.constant 0 : index
    %c0_95 = arith.constant 0 : index
    %106 = vector.load %arg8[%c0_92, %c2_93, %c0_94, %c0_95] : memref<2x4x1x32xf32, #tpu.memory_space<vmem>>, vector<1x1x1x32xf32>
    %107 = vector.shape_cast %106 : vector<1x1x1x32xf32> to vector<1x32xf32>
    %108 = vector.broadcast %107 : vector<1x32xf32> to vector<12x32xf32>
    %109 = arith.addf %105, %108 : vector<12x32xf32>
    %c0_96 = arith.constant 0 : index
    %c2_97 = arith.constant 2 : index
    %c0_98 = arith.constant 0 : index
    %c0_99 = arith.constant 0 : index
    %110 = vector.load %arg5[%c0_96, %c2_97, %c0_98, %c0_99] : memref<2x4x128x32xbf16, #tpu.memory_space<vmem>>, vector<1x1x128x32xbf16>
    %111 = vector.shape_cast %110 : vector<1x1x128x32xbf16> to vector<128x32xbf16>
    %cst_100 = arith.constant dense<0.000000e+00> : vector<12x32xf32>
    %112 = tpu.matmul %4, %111, %cst_100 {dimension_numbers = #tpu.dot_dimension_numbers<[1], [0], [0], [1], [0, 0, 1, 1], [], []>} : vector<12x128xbf16>, vector<128x32xbf16>, vector<12x32xf32> -> vector<12x32xf32>
    %c0_101 = arith.constant 0 : index
    %c2_102 = arith.constant 2 : index
    %c0_103 = arith.constant 0 : index
    %c0_104 = arith.constant 0 : index
    %113 = vector.load %arg9[%c0_101, %c2_102, %c0_103, %c0_104] : memref<2x4x1x32xf32, #tpu.memory_space<vmem>>, vector<1x1x1x32xf32>
    %114 = vector.shape_cast %113 : vector<1x1x1x32xf32> to vector<1x32xf32>
    %115 = vector.broadcast %114 : vector<1x32xf32> to vector<12x32xf32>
    %116 = arith.addf %112, %115 : vector<12x32xf32>
    %117 = arith.truncf %102 : vector<12x32xf32> to vector<12x32xbf16>
    %118 = arith.truncf %109 : vector<12x32xf32> to vector<12x32xbf16>
    %cst_105 = arith.constant dense<0.000000e+00> : vector<12x12xf32>
    %119 = tpu.matmul %117, %118, %cst_105 {dimension_numbers = #tpu.dot_dimension_numbers<[1], [1], [0], [0], [0, 0, 1, 0], [], []>} : vector<12x32xbf16>, vector<12x32xbf16>, vector<12x12xf32> -> vector<12x12xf32>
    %cst_106 = arith.constant 0.176776692 : f32
    %120 = vector.broadcast %cst_106 : f32 to vector<12x12xf32>
    %121 = arith.mulf %119, %120 : vector<12x12xf32>
    %cst_107 = arith.constant dense<0xFF800000> : vector<12xf32>
    %122 = vector.multi_reduction <maximumf>, %121, %cst_107 [1] : vector<12x12xf32> to vector<12xf32>
    %123 = vector.shape_cast %122 : vector<12xf32> to vector<12x1xf32>
    %124 = vector.broadcast %123 : vector<12x1xf32> to vector<12x12xf32>
    %125 = arith.subf %121, %124 : vector<12x12xf32>
    %126 = math.exp %125 : vector<12x12xf32>
    %cst_108 = arith.constant dense<0.000000e+00> : vector<12xf32>
    %127 = vector.multi_reduction <add>, %126, %cst_108 [1] : vector<12x12xf32> to vector<12xf32>
    %128 = vector.shape_cast %127 : vector<12xf32> to vector<12x1xf32>
    %129 = tpu.reciprocal %128 {approx = true} : vector<12x1xf32> -> vector<12x1xf32>
    %130 = vector.broadcast %129 : vector<12x1xf32> to vector<12x12xf32>
    %131 = arith.mulf %126, %130 : vector<12x12xf32>
    %132 = arith.truncf %131 : vector<12x12xf32> to vector<12x12xbf16>
    %133 = arith.truncf %116 : vector<12x32xf32> to vector<12x32xbf16>
    %cst_109 = arith.constant dense<0.000000e+00> : vector<12x32xf32>
    %134 = tpu.matmul %132, %133, %cst_109 {dimension_numbers = #tpu.dot_dimension_numbers<[1], [0], [0], [1], [0, 0, 1, 1], [], []>} : vector<12x12xbf16>, vector<12x32xbf16>, vector<12x32xf32> -> vector<12x32xf32>
    %135 = arith.truncf %134 : vector<12x32xf32> to vector<12x32xbf16>
    %c0_110 = arith.constant 0 : index
    %c2_111 = arith.constant 2 : index
    %c0_112 = arith.constant 0 : index
    %c0_113 = arith.constant 0 : index
    %136 = vector.load %arg6[%c0_110, %c2_111, %c0_112, %c0_113] : memref<2x4x32x128xbf16, #tpu.memory_space<vmem>>, vector<1x1x32x128xbf16>
    %137 = vector.shape_cast %136 : vector<1x1x32x128xbf16> to vector<32x128xbf16>
    %cst_114 = arith.constant dense<0.000000e+00> : vector<12x128xf32>
    %138 = tpu.matmul %135, %137, %cst_114 {dimension_numbers = #tpu.dot_dimension_numbers<[1], [0], [0], [1], [0, 0, 1, 1], [], []>} : vector<12x32xbf16>, vector<32x128xbf16>, vector<12x128xf32> -> vector<12x128xf32>
    %139 = arith.addf %95, %138 : vector<12x128xf32>
    %c0_115 = arith.constant 0 : index
    %c3 = arith.constant 3 : index
    %c0_116 = arith.constant 0 : index
    %c0_117 = arith.constant 0 : index
    %140 = vector.load %arg3[%c0_115, %c3, %c0_116, %c0_117] : memref<2x4x128x32xbf16, #tpu.memory_space<vmem>>, vector<1x1x128x32xbf16>
    %141 = vector.shape_cast %140 : vector<1x1x128x32xbf16> to vector<128x32xbf16>
    %cst_118 = arith.constant dense<0.000000e+00> : vector<12x32xf32>
    %142 = tpu.matmul %4, %141, %cst_118 {dimension_numbers = #tpu.dot_dimension_numbers<[1], [0], [0], [1], [0, 0, 1, 1], [], []>} : vector<12x128xbf16>, vector<128x32xbf16>, vector<12x32xf32> -> vector<12x32xf32>
    %c0_119 = arith.constant 0 : index
    %c3_120 = arith.constant 3 : index
    %c0_121 = arith.constant 0 : index
    %c0_122 = arith.constant 0 : index
    %143 = vector.load %arg7[%c0_119, %c3_120, %c0_121, %c0_122] : memref<2x4x1x32xf32, #tpu.memory_space<vmem>>, vector<1x1x1x32xf32>
    %144 = vector.shape_cast %143 : vector<1x1x1x32xf32> to vector<1x32xf32>
    %145 = vector.broadcast %144 : vector<1x32xf32> to vector<12x32xf32>
    %146 = arith.addf %142, %145 : vector<12x32xf32>
    %c0_123 = arith.constant 0 : index
    %c3_124 = arith.constant 3 : index
    %c0_125 = arith.constant 0 : index
    %c0_126 = arith.constant 0 : index
    %147 = vector.load %arg4[%c0_123, %c3_124, %c0_125, %c0_126] : memref<2x4x128x32xbf16, #tpu.memory_space<vmem>>, vector<1x1x128x32xbf16>
    %148 = vector.shape_cast %147 : vector<1x1x128x32xbf16> to vector<128x32xbf16>
    %cst_127 = arith.constant dense<0.000000e+00> : vector<12x32xf32>
    %149 = tpu.matmul %4, %148, %cst_127 {dimension_numbers = #tpu.dot_dimension_numbers<[1], [0], [0], [1], [0, 0, 1, 1], [], []>} : vector<12x128xbf16>, vector<128x32xbf16>, vector<12x32xf32> -> vector<12x32xf32>
    %c0_128 = arith.constant 0 : index
    %c3_129 = arith.constant 3 : index
    %c0_130 = arith.constant 0 : index
    %c0_131 = arith.constant 0 : index
    %150 = vector.load %arg8[%c0_128, %c3_129, %c0_130, %c0_131] : memref<2x4x1x32xf32, #tpu.memory_space<vmem>>, vector<1x1x1x32xf32>
    %151 = vector.shape_cast %150 : vector<1x1x1x32xf32> to vector<1x32xf32>
    %152 = vector.broadcast %151 : vector<1x32xf32> to vector<12x32xf32>
    %153 = arith.addf %149, %152 : vector<12x32xf32>
    %c0_132 = arith.constant 0 : index
    %c3_133 = arith.constant 3 : index
    %c0_134 = arith.constant 0 : index
    %c0_135 = arith.constant 0 : index
    %154 = vector.load %arg5[%c0_132, %c3_133, %c0_134, %c0_135] : memref<2x4x128x32xbf16, #tpu.memory_space<vmem>>, vector<1x1x128x32xbf16>
    %155 = vector.shape_cast %154 : vector<1x1x128x32xbf16> to vector<128x32xbf16>
    %cst_136 = arith.constant dense<0.000000e+00> : vector<12x32xf32>
    %156 = tpu.matmul %4, %155, %cst_136 {dimension_numbers = #tpu.dot_dimension_numbers<[1], [0], [0], [1], [0, 0, 1, 1], [], []>} : vector<12x128xbf16>, vector<128x32xbf16>, vector<12x32xf32> -> vector<12x32xf32>
    %c0_137 = arith.constant 0 : index
    %c3_138 = arith.constant 3 : index
    %c0_139 = arith.constant 0 : index
    %c0_140 = arith.constant 0 : index
    %157 = vector.load %arg9[%c0_137, %c3_138, %c0_139, %c0_140] : memref<2x4x1x32xf32, #tpu.memory_space<vmem>>, vector<1x1x1x32xf32>
    %158 = vector.shape_cast %157 : vector<1x1x1x32xf32> to vector<1x32xf32>
    %159 = vector.broadcast %158 : vector<1x32xf32> to vector<12x32xf32>
    %160 = arith.addf %156, %159 : vector<12x32xf32>
    %161 = arith.truncf %146 : vector<12x32xf32> to vector<12x32xbf16>
    %162 = arith.truncf %153 : vector<12x32xf32> to vector<12x32xbf16>
    %cst_141 = arith.constant dense<0.000000e+00> : vector<12x12xf32>
    %163 = tpu.matmul %161, %162, %cst_141 {dimension_numbers = #tpu.dot_dimension_numbers<[1], [1], [0], [0], [0, 0, 1, 0], [], []>} : vector<12x32xbf16>, vector<12x32xbf16>, vector<12x12xf32> -> vector<12x12xf32>
    %cst_142 = arith.constant 0.176776692 : f32
    %164 = vector.broadcast %cst_142 : f32 to vector<12x12xf32>
    %165 = arith.mulf %163, %164 : vector<12x12xf32>
    %cst_143 = arith.constant dense<0xFF800000> : vector<12xf32>
    %166 = vector.multi_reduction <maximumf>, %165, %cst_143 [1] : vector<12x12xf32> to vector<12xf32>
    %167 = vector.shape_cast %166 : vector<12xf32> to vector<12x1xf32>
    %168 = vector.broadcast %167 : vector<12x1xf32> to vector<12x12xf32>
    %169 = arith.subf %165, %168 : vector<12x12xf32>
    %170 = math.exp %169 : vector<12x12xf32>
    %cst_144 = arith.constant dense<0.000000e+00> : vector<12xf32>
    %171 = vector.multi_reduction <add>, %170, %cst_144 [1] : vector<12x12xf32> to vector<12xf32>
    %172 = vector.shape_cast %171 : vector<12xf32> to vector<12x1xf32>
    %173 = tpu.reciprocal %172 {approx = true} : vector<12x1xf32> -> vector<12x1xf32>
    %174 = vector.broadcast %173 : vector<12x1xf32> to vector<12x12xf32>
    %175 = arith.mulf %170, %174 : vector<12x12xf32>
    %176 = arith.truncf %175 : vector<12x12xf32> to vector<12x12xbf16>
    %177 = arith.truncf %160 : vector<12x32xf32> to vector<12x32xbf16>
    %cst_145 = arith.constant dense<0.000000e+00> : vector<12x32xf32>
    %178 = tpu.matmul %176, %177, %cst_145 {dimension_numbers = #tpu.dot_dimension_numbers<[1], [0], [0], [1], [0, 0, 1, 1], [], []>} : vector<12x12xbf16>, vector<12x32xbf16>, vector<12x32xf32> -> vector<12x32xf32>
    %179 = arith.truncf %178 : vector<12x32xf32> to vector<12x32xbf16>
    %c0_146 = arith.constant 0 : index
    %c3_147 = arith.constant 3 : index
    %c0_148 = arith.constant 0 : index
    %c0_149 = arith.constant 0 : index
    %180 = vector.load %arg6[%c0_146, %c3_147, %c0_148, %c0_149] : memref<2x4x32x128xbf16, #tpu.memory_space<vmem>>, vector<1x1x32x128xbf16>
    %181 = vector.shape_cast %180 : vector<1x1x32x128xbf16> to vector<32x128xbf16>
    %cst_150 = arith.constant dense<0.000000e+00> : vector<12x128xf32>
    %182 = tpu.matmul %179, %181, %cst_150 {dimension_numbers = #tpu.dot_dimension_numbers<[1], [0], [0], [1], [0, 0, 1, 1], [], []>} : vector<12x32xbf16>, vector<32x128xbf16>, vector<12x128xf32> -> vector<12x128xf32>
    %183 = arith.addf %139, %182 : vector<12x128xf32>
    %184 = arith.addf %3, %183 : vector<12x128xf32>
    %c0_151 = arith.constant 0 : index
    %c0_152 = arith.constant 0 : index
    %c0_153 = arith.constant 0 : index
    %185 = vector.load %arg11[%c0_151, %c0_152, %c0_153] : memref<2x1x128xf32, #tpu.memory_space<vmem>>, vector<1x1x128xf32>
    %186 = vector.shape_cast %185 : vector<1x1x128xf32> to vector<1x128xf32>
    %c0_154 = arith.constant 0 : index
    %c0_155 = arith.constant 0 : index
    %c0_156 = arith.constant 0 : index
    %187 = vector.load %arg12[%c0_154, %c0_155, %c0_156] : memref<2x1x128xf32, #tpu.memory_space<vmem>>, vector<1x1x128xf32>
    %188 = vector.shape_cast %187 : vector<1x1x128xf32> to vector<1x128xf32>
    %cst_157 = arith.constant dense<0.000000e+00> : vector<12xf32>
    %189 = vector.multi_reduction <add>, %184, %cst_157 [1] : vector<12x128xf32> to vector<12xf32>
    %190 = vector.shape_cast %189 : vector<12xf32> to vector<12x1xf32>
    %cst_158 = arith.constant 1.280000e+02 : f32
    %191 = vector.broadcast %cst_158 : f32 to vector<12x1xf32>
    %192 = arith.divf %190, %191 : vector<12x1xf32>
    %193 = vector.broadcast %192 : vector<12x1xf32> to vector<12x128xf32>
    %194 = arith.subf %184, %193 : vector<12x128xf32>
    %195 = arith.mulf %194, %194 : vector<12x128xf32>
    %cst_159 = arith.constant dense<0.000000e+00> : vector<12xf32>
    %196 = vector.multi_reduction <add>, %195, %cst_159 [1] : vector<12x128xf32> to vector<12xf32>
    %197 = vector.shape_cast %196 : vector<12xf32> to vector<12x1xf32>
    %cst_160 = arith.constant 1.280000e+02 : f32
    %198 = vector.broadcast %cst_160 : f32 to vector<12x1xf32>
    %199 = arith.divf %197, %198 : vector<12x1xf32>
    %cst_161 = arith.constant 9.99999974E-6 : f32
    %200 = vector.broadcast %cst_161 : f32 to vector<12x1xf32>
    %201 = arith.addf %199, %200 : vector<12x1xf32>
    %202 = math.rsqrt %201 : vector<12x1xf32>
    %203 = vector.broadcast %202 : vector<12x1xf32> to vector<12x128xf32>
    %204 = arith.mulf %194, %203 : vector<12x128xf32>
    %205 = vector.broadcast %186 : vector<1x128xf32> to vector<12x128xf32>
    %206 = arith.mulf %204, %205 : vector<12x128xf32>
    %207 = vector.broadcast %188 : vector<1x128xf32> to vector<12x128xf32>
    %208 = arith.addf %206, %207 : vector<12x128xf32>
    %209 = arith.truncf %208 : vector<12x128xf32> to vector<12x128xbf16>
    %c0_162 = arith.constant 0 : index
    %c0_163 = arith.constant 0 : index
    %c0_164 = arith.constant 0 : index
    %210 = vector.load %arg13[%c0_162, %c0_163, %c0_164] : memref<2x128x512xbf16, #tpu.memory_space<vmem>>, vector<1x128x512xbf16>
    %211 = vector.shape_cast %210 : vector<1x128x512xbf16> to vector<128x512xbf16>
    %cst_165 = arith.constant dense<0.000000e+00> : vector<12x512xf32>
    %212 = tpu.matmul %209, %211, %cst_165 {dimension_numbers = #tpu.dot_dimension_numbers<[1], [0], [0], [1], [0, 0, 1, 1], [], []>} : vector<12x128xbf16>, vector<128x512xbf16>, vector<12x512xf32> -> vector<12x512xf32>
    %c0_166 = arith.constant 0 : index
    %c0_167 = arith.constant 0 : index
    %c0_168 = arith.constant 0 : index
    %213 = vector.load %arg14[%c0_166, %c0_167, %c0_168] : memref<2x1x512xf32, #tpu.memory_space<vmem>>, vector<1x1x512xf32>
    %214 = vector.shape_cast %213 : vector<1x1x512xf32> to vector<1x512xf32>
    %215 = vector.broadcast %214 : vector<1x512xf32> to vector<12x512xf32>
    %216 = arith.addf %212, %215 : vector<12x512xf32>
    %cst_169 = arith.constant 0.000000e+00 : f32
    %217 = vector.broadcast %cst_169 : f32 to vector<12x512xf32>
    %218 = arith.maximumf %216, %217 : vector<12x512xf32>
    %219 = arith.truncf %218 : vector<12x512xf32> to vector<12x512xbf16>
    %c0_170 = arith.constant 0 : index
    %c0_171 = arith.constant 0 : index
    %c0_172 = arith.constant 0 : index
    %220 = vector.load %arg15[%c0_170, %c0_171, %c0_172] : memref<2x512x128xbf16, #tpu.memory_space<vmem>>, vector<1x512x128xbf16>
    %221 = vector.shape_cast %220 : vector<1x512x128xbf16> to vector<512x128xbf16>
    %cst_173 = arith.constant dense<0.000000e+00> : vector<12x128xf32>
    %222 = tpu.matmul %219, %221, %cst_173 {dimension_numbers = #tpu.dot_dimension_numbers<[1], [0], [0], [1], [0, 0, 1, 1], [], []>} : vector<12x512xbf16>, vector<512x128xbf16>, vector<12x128xf32> -> vector<12x128xf32>
    %c0_174 = arith.constant 0 : index
    %c0_175 = arith.constant 0 : index
    %c0_176 = arith.constant 0 : index
    %223 = vector.load %arg16[%c0_174, %c0_175, %c0_176] : memref<2x1x128xf32, #tpu.memory_space<vmem>>, vector<1x1x128xf32>
    %224 = vector.shape_cast %223 : vector<1x1x128xf32> to vector<1x128xf32>
    %225 = vector.broadcast %224 : vector<1x128xf32> to vector<12x128xf32>
    %226 = arith.addf %222, %225 : vector<12x128xf32>
    %227 = arith.addf %208, %226 : vector<12x128xf32>
    %c0_177 = arith.constant 0 : index
    %c0_178 = arith.constant 0 : index
    %c0_179 = arith.constant 0 : index
    %228 = vector.load %arg17[%c0_177, %c0_178, %c0_179] : memref<2x1x128xf32, #tpu.memory_space<vmem>>, vector<1x1x128xf32>
    %229 = vector.shape_cast %228 : vector<1x1x128xf32> to vector<1x128xf32>
    %c0_180 = arith.constant 0 : index
    %c0_181 = arith.constant 0 : index
    %c0_182 = arith.constant 0 : index
    %230 = vector.load %arg18[%c0_180, %c0_181, %c0_182] : memref<2x1x128xf32, #tpu.memory_space<vmem>>, vector<1x1x128xf32>
    %231 = vector.shape_cast %230 : vector<1x1x128xf32> to vector<1x128xf32>
    %cst_183 = arith.constant dense<0.000000e+00> : vector<12xf32>
    %232 = vector.multi_reduction <add>, %227, %cst_183 [1] : vector<12x128xf32> to vector<12xf32>
    %233 = vector.shape_cast %232 : vector<12xf32> to vector<12x1xf32>
    %cst_184 = arith.constant 1.280000e+02 : f32
    %234 = vector.broadcast %cst_184 : f32 to vector<12x1xf32>
    %235 = arith.divf %233, %234 : vector<12x1xf32>
    %236 = vector.broadcast %235 : vector<12x1xf32> to vector<12x128xf32>
    %237 = arith.subf %227, %236 : vector<12x128xf32>
    %238 = arith.mulf %237, %237 : vector<12x128xf32>
    %cst_185 = arith.constant dense<0.000000e+00> : vector<12xf32>
    %239 = vector.multi_reduction <add>, %238, %cst_185 [1] : vector<12x128xf32> to vector<12xf32>
    %240 = vector.shape_cast %239 : vector<12xf32> to vector<12x1xf32>
    %cst_186 = arith.constant 1.280000e+02 : f32
    %241 = vector.broadcast %cst_186 : f32 to vector<12x1xf32>
    %242 = arith.divf %240, %241 : vector<12x1xf32>
    %cst_187 = arith.constant 9.99999974E-6 : f32
    %243 = vector.broadcast %cst_187 : f32 to vector<12x1xf32>
    %244 = arith.addf %242, %243 : vector<12x1xf32>
    %245 = math.rsqrt %244 : vector<12x1xf32>
    %246 = vector.broadcast %245 : vector<12x1xf32> to vector<12x128xf32>
    %247 = arith.mulf %237, %246 : vector<12x128xf32>
    %248 = vector.broadcast %229 : vector<1x128xf32> to vector<12x128xf32>
    %249 = arith.mulf %247, %248 : vector<12x128xf32>
    %250 = vector.broadcast %231 : vector<1x128xf32> to vector<12x128xf32>
    %251 = arith.addf %249, %250 : vector<12x128xf32>
    %252 = arith.truncf %251 : vector<12x128xf32> to vector<12x128xbf16>
    %c1_188 = arith.constant 1 : index
    %c0_189 = arith.constant 0 : index
    %c0_190 = arith.constant 0 : index
    %253 = vector.load %arg10[%c1_188, %c0_189, %c0_190] : memref<2x1x128xf32, #tpu.memory_space<vmem>>, vector<1x1x128xf32>
    %254 = vector.shape_cast %253 : vector<1x1x128xf32> to vector<1x128xf32>
    %c1_191 = arith.constant 1 : index
    %c0_192 = arith.constant 0 : index
    %c0_193 = arith.constant 0 : index
    %c0_194 = arith.constant 0 : index
    %255 = vector.load %arg3[%c1_191, %c0_192, %c0_193, %c0_194] : memref<2x4x128x32xbf16, #tpu.memory_space<vmem>>, vector<1x1x128x32xbf16>
    %256 = vector.shape_cast %255 : vector<1x1x128x32xbf16> to vector<128x32xbf16>
    %cst_195 = arith.constant dense<0.000000e+00> : vector<12x32xf32>
    %257 = tpu.matmul %252, %256, %cst_195 {dimension_numbers = #tpu.dot_dimension_numbers<[1], [0], [0], [1], [0, 0, 1, 1], [], []>} : vector<12x128xbf16>, vector<128x32xbf16>, vector<12x32xf32> -> vector<12x32xf32>
    %c1_196 = arith.constant 1 : index
    %c0_197 = arith.constant 0 : index
    %c0_198 = arith.constant 0 : index
    %c0_199 = arith.constant 0 : index
    %258 = vector.load %arg7[%c1_196, %c0_197, %c0_198, %c0_199] : memref<2x4x1x32xf32, #tpu.memory_space<vmem>>, vector<1x1x1x32xf32>
    %259 = vector.shape_cast %258 : vector<1x1x1x32xf32> to vector<1x32xf32>
    %260 = vector.broadcast %259 : vector<1x32xf32> to vector<12x32xf32>
    %261 = arith.addf %257, %260 : vector<12x32xf32>
    %c1_200 = arith.constant 1 : index
    %c0_201 = arith.constant 0 : index
    %c0_202 = arith.constant 0 : index
    %c0_203 = arith.constant 0 : index
    %262 = vector.load %arg4[%c1_200, %c0_201, %c0_202, %c0_203] : memref<2x4x128x32xbf16, #tpu.memory_space<vmem>>, vector<1x1x128x32xbf16>
    %263 = vector.shape_cast %262 : vector<1x1x128x32xbf16> to vector<128x32xbf16>
    %cst_204 = arith.constant dense<0.000000e+00> : vector<12x32xf32>
    %264 = tpu.matmul %252, %263, %cst_204 {dimension_numbers = #tpu.dot_dimension_numbers<[1], [0], [0], [1], [0, 0, 1, 1], [], []>} : vector<12x128xbf16>, vector<128x32xbf16>, vector<12x32xf32> -> vector<12x32xf32>
    %c1_205 = arith.constant 1 : index
    %c0_206 = arith.constant 0 : index
    %c0_207 = arith.constant 0 : index
    %c0_208 = arith.constant 0 : index
    %265 = vector.load %arg8[%c1_205, %c0_206, %c0_207, %c0_208] : memref<2x4x1x32xf32, #tpu.memory_space<vmem>>, vector<1x1x1x32xf32>
    %266 = vector.shape_cast %265 : vector<1x1x1x32xf32> to vector<1x32xf32>
    %267 = vector.broadcast %266 : vector<1x32xf32> to vector<12x32xf32>
    %268 = arith.addf %264, %267 : vector<12x32xf32>
    %c1_209 = arith.constant 1 : index
    %c0_210 = arith.constant 0 : index
    %c0_211 = arith.constant 0 : index
    %c0_212 = arith.constant 0 : index
    %269 = vector.load %arg5[%c1_209, %c0_210, %c0_211, %c0_212] : memref<2x4x128x32xbf16, #tpu.memory_space<vmem>>, vector<1x1x128x32xbf16>
    %270 = vector.shape_cast %269 : vector<1x1x128x32xbf16> to vector<128x32xbf16>
    %cst_213 = arith.constant dense<0.000000e+00> : vector<12x32xf32>
    %271 = tpu.matmul %252, %270, %cst_213 {dimension_numbers = #tpu.dot_dimension_numbers<[1], [0], [0], [1], [0, 0, 1, 1], [], []>} : vector<12x128xbf16>, vector<128x32xbf16>, vector<12x32xf32> -> vector<12x32xf32>
    %c1_214 = arith.constant 1 : index
    %c0_215 = arith.constant 0 : index
    %c0_216 = arith.constant 0 : index
    %c0_217 = arith.constant 0 : index
    %272 = vector.load %arg9[%c1_214, %c0_215, %c0_216, %c0_217] : memref<2x4x1x32xf32, #tpu.memory_space<vmem>>, vector<1x1x1x32xf32>
    %273 = vector.shape_cast %272 : vector<1x1x1x32xf32> to vector<1x32xf32>
    %274 = vector.broadcast %273 : vector<1x32xf32> to vector<12x32xf32>
    %275 = arith.addf %271, %274 : vector<12x32xf32>
    %276 = arith.truncf %261 : vector<12x32xf32> to vector<12x32xbf16>
    %277 = arith.truncf %268 : vector<12x32xf32> to vector<12x32xbf16>
    %cst_218 = arith.constant dense<0.000000e+00> : vector<12x12xf32>
    %278 = tpu.matmul %276, %277, %cst_218 {dimension_numbers = #tpu.dot_dimension_numbers<[1], [1], [0], [0], [0, 0, 1, 0], [], []>} : vector<12x32xbf16>, vector<12x32xbf16>, vector<12x12xf32> -> vector<12x12xf32>
    %cst_219 = arith.constant 0.176776692 : f32
    %279 = vector.broadcast %cst_219 : f32 to vector<12x12xf32>
    %280 = arith.mulf %278, %279 : vector<12x12xf32>
    %cst_220 = arith.constant dense<0xFF800000> : vector<12xf32>
    %281 = vector.multi_reduction <maximumf>, %280, %cst_220 [1] : vector<12x12xf32> to vector<12xf32>
    %282 = vector.shape_cast %281 : vector<12xf32> to vector<12x1xf32>
    %283 = vector.broadcast %282 : vector<12x1xf32> to vector<12x12xf32>
    %284 = arith.subf %280, %283 : vector<12x12xf32>
    %285 = math.exp %284 : vector<12x12xf32>
    %cst_221 = arith.constant dense<0.000000e+00> : vector<12xf32>
    %286 = vector.multi_reduction <add>, %285, %cst_221 [1] : vector<12x12xf32> to vector<12xf32>
    %287 = vector.shape_cast %286 : vector<12xf32> to vector<12x1xf32>
    %288 = tpu.reciprocal %287 {approx = true} : vector<12x1xf32> -> vector<12x1xf32>
    %289 = vector.broadcast %288 : vector<12x1xf32> to vector<12x12xf32>
    %290 = arith.mulf %285, %289 : vector<12x12xf32>
    %291 = arith.truncf %290 : vector<12x12xf32> to vector<12x12xbf16>
    %292 = arith.truncf %275 : vector<12x32xf32> to vector<12x32xbf16>
    %cst_222 = arith.constant dense<0.000000e+00> : vector<12x32xf32>
    %293 = tpu.matmul %291, %292, %cst_222 {dimension_numbers = #tpu.dot_dimension_numbers<[1], [0], [0], [1], [0, 0, 1, 1], [], []>} : vector<12x12xbf16>, vector<12x32xbf16>, vector<12x32xf32> -> vector<12x32xf32>
    %294 = arith.truncf %293 : vector<12x32xf32> to vector<12x32xbf16>
    %c1_223 = arith.constant 1 : index
    %c0_224 = arith.constant 0 : index
    %c0_225 = arith.constant 0 : index
    %c0_226 = arith.constant 0 : index
    %295 = vector.load %arg6[%c1_223, %c0_224, %c0_225, %c0_226] : memref<2x4x32x128xbf16, #tpu.memory_space<vmem>>, vector<1x1x32x128xbf16>
    %296 = vector.shape_cast %295 : vector<1x1x32x128xbf16> to vector<32x128xbf16>
    %cst_227 = arith.constant dense<0.000000e+00> : vector<12x128xf32>
    %297 = tpu.matmul %294, %296, %cst_227 {dimension_numbers = #tpu.dot_dimension_numbers<[1], [0], [0], [1], [0, 0, 1, 1], [], []>} : vector<12x32xbf16>, vector<32x128xbf16>, vector<12x128xf32> -> vector<12x128xf32>
    %298 = vector.broadcast %254 : vector<1x128xf32> to vector<12x128xf32>
    %299 = arith.addf %298, %297 : vector<12x128xf32>
    %c1_228 = arith.constant 1 : index
    %c1_229 = arith.constant 1 : index
    %c0_230 = arith.constant 0 : index
    %c0_231 = arith.constant 0 : index
    %300 = vector.load %arg3[%c1_228, %c1_229, %c0_230, %c0_231] : memref<2x4x128x32xbf16, #tpu.memory_space<vmem>>, vector<1x1x128x32xbf16>
    %301 = vector.shape_cast %300 : vector<1x1x128x32xbf16> to vector<128x32xbf16>
    %cst_232 = arith.constant dense<0.000000e+00> : vector<12x32xf32>
    %302 = tpu.matmul %252, %301, %cst_232 {dimension_numbers = #tpu.dot_dimension_numbers<[1], [0], [0], [1], [0, 0, 1, 1], [], []>} : vector<12x128xbf16>, vector<128x32xbf16>, vector<12x32xf32> -> vector<12x32xf32>
    %c1_233 = arith.constant 1 : index
    %c1_234 = arith.constant 1 : index
    %c0_235 = arith.constant 0 : index
    %c0_236 = arith.constant 0 : index
    %303 = vector.load %arg7[%c1_233, %c1_234, %c0_235, %c0_236] : memref<2x4x1x32xf32, #tpu.memory_space<vmem>>, vector<1x1x1x32xf32>
    %304 = vector.shape_cast %303 : vector<1x1x1x32xf32> to vector<1x32xf32>
    %305 = vector.broadcast %304 : vector<1x32xf32> to vector<12x32xf32>
    %306 = arith.addf %302, %305 : vector<12x32xf32>
    %c1_237 = arith.constant 1 : index
    %c1_238 = arith.constant 1 : index
    %c0_239 = arith.constant 0 : index
    %c0_240 = arith.constant 0 : index
    %307 = vector.load %arg4[%c1_237, %c1_238, %c0_239, %c0_240] : memref<2x4x128x32xbf16, #tpu.memory_space<vmem>>, vector<1x1x128x32xbf16>
    %308 = vector.shape_cast %307 : vector<1x1x128x32xbf16> to vector<128x32xbf16>
    %cst_241 = arith.constant dense<0.000000e+00> : vector<12x32xf32>
    %309 = tpu.matmul %252, %308, %cst_241 {dimension_numbers = #tpu.dot_dimension_numbers<[1], [0], [0], [1], [0, 0, 1, 1], [], []>} : vector<12x128xbf16>, vector<128x32xbf16>, vector<12x32xf32> -> vector<12x32xf32>
    %c1_242 = arith.constant 1 : index
    %c1_243 = arith.constant 1 : index
    %c0_244 = arith.constant 0 : index
    %c0_245 = arith.constant 0 : index
    %310 = vector.load %arg8[%c1_242, %c1_243, %c0_244, %c0_245] : memref<2x4x1x32xf32, #tpu.memory_space<vmem>>, vector<1x1x1x32xf32>
    %311 = vector.shape_cast %310 : vector<1x1x1x32xf32> to vector<1x32xf32>
    %312 = vector.broadcast %311 : vector<1x32xf32> to vector<12x32xf32>
    %313 = arith.addf %309, %312 : vector<12x32xf32>
    %c1_246 = arith.constant 1 : index
    %c1_247 = arith.constant 1 : index
    %c0_248 = arith.constant 0 : index
    %c0_249 = arith.constant 0 : index
    %314 = vector.load %arg5[%c1_246, %c1_247, %c0_248, %c0_249] : memref<2x4x128x32xbf16, #tpu.memory_space<vmem>>, vector<1x1x128x32xbf16>
    %315 = vector.shape_cast %314 : vector<1x1x128x32xbf16> to vector<128x32xbf16>
    %cst_250 = arith.constant dense<0.000000e+00> : vector<12x32xf32>
    %316 = tpu.matmul %252, %315, %cst_250 {dimension_numbers = #tpu.dot_dimension_numbers<[1], [0], [0], [1], [0, 0, 1, 1], [], []>} : vector<12x128xbf16>, vector<128x32xbf16>, vector<12x32xf32> -> vector<12x32xf32>
    %c1_251 = arith.constant 1 : index
    %c1_252 = arith.constant 1 : index
    %c0_253 = arith.constant 0 : index
    %c0_254 = arith.constant 0 : index
    %317 = vector.load %arg9[%c1_251, %c1_252, %c0_253, %c0_254] : memref<2x4x1x32xf32, #tpu.memory_space<vmem>>, vector<1x1x1x32xf32>
    %318 = vector.shape_cast %317 : vector<1x1x1x32xf32> to vector<1x32xf32>
    %319 = vector.broadcast %318 : vector<1x32xf32> to vector<12x32xf32>
    %320 = arith.addf %316, %319 : vector<12x32xf32>
    %321 = arith.truncf %306 : vector<12x32xf32> to vector<12x32xbf16>
    %322 = arith.truncf %313 : vector<12x32xf32> to vector<12x32xbf16>
    %cst_255 = arith.constant dense<0.000000e+00> : vector<12x12xf32>
    %323 = tpu.matmul %321, %322, %cst_255 {dimension_numbers = #tpu.dot_dimension_numbers<[1], [1], [0], [0], [0, 0, 1, 0], [], []>} : vector<12x32xbf16>, vector<12x32xbf16>, vector<12x12xf32> -> vector<12x12xf32>
    %cst_256 = arith.constant 0.176776692 : f32
    %324 = vector.broadcast %cst_256 : f32 to vector<12x12xf32>
    %325 = arith.mulf %323, %324 : vector<12x12xf32>
    %cst_257 = arith.constant dense<0xFF800000> : vector<12xf32>
    %326 = vector.multi_reduction <maximumf>, %325, %cst_257 [1] : vector<12x12xf32> to vector<12xf32>
    %327 = vector.shape_cast %326 : vector<12xf32> to vector<12x1xf32>
    %328 = vector.broadcast %327 : vector<12x1xf32> to vector<12x12xf32>
    %329 = arith.subf %325, %328 : vector<12x12xf32>
    %330 = math.exp %329 : vector<12x12xf32>
    %cst_258 = arith.constant dense<0.000000e+00> : vector<12xf32>
    %331 = vector.multi_reduction <add>, %330, %cst_258 [1] : vector<12x12xf32> to vector<12xf32>
    %332 = vector.shape_cast %331 : vector<12xf32> to vector<12x1xf32>
    %333 = tpu.reciprocal %332 {approx = true} : vector<12x1xf32> -> vector<12x1xf32>
    %334 = vector.broadcast %333 : vector<12x1xf32> to vector<12x12xf32>
    %335 = arith.mulf %330, %334 : vector<12x12xf32>
    %336 = arith.truncf %335 : vector<12x12xf32> to vector<12x12xbf16>
    %337 = arith.truncf %320 : vector<12x32xf32> to vector<12x32xbf16>
    %cst_259 = arith.constant dense<0.000000e+00> : vector<12x32xf32>
    %338 = tpu.matmul %336, %337, %cst_259 {dimension_numbers = #tpu.dot_dimension_numbers<[1], [0], [0], [1], [0, 0, 1, 1], [], []>} : vector<12x12xbf16>, vector<12x32xbf16>, vector<12x32xf32> -> vector<12x32xf32>
    %339 = arith.truncf %338 : vector<12x32xf32> to vector<12x32xbf16>
    %c1_260 = arith.constant 1 : index
    %c1_261 = arith.constant 1 : index
    %c0_262 = arith.constant 0 : index
    %c0_263 = arith.constant 0 : index
    %340 = vector.load %arg6[%c1_260, %c1_261, %c0_262, %c0_263] : memref<2x4x32x128xbf16, #tpu.memory_space<vmem>>, vector<1x1x32x128xbf16>
    %341 = vector.shape_cast %340 : vector<1x1x32x128xbf16> to vector<32x128xbf16>
    %cst_264 = arith.constant dense<0.000000e+00> : vector<12x128xf32>
    %342 = tpu.matmul %339, %341, %cst_264 {dimension_numbers = #tpu.dot_dimension_numbers<[1], [0], [0], [1], [0, 0, 1, 1], [], []>} : vector<12x32xbf16>, vector<32x128xbf16>, vector<12x128xf32> -> vector<12x128xf32>
    %343 = arith.addf %299, %342 : vector<12x128xf32>
    %c1_265 = arith.constant 1 : index
    %c2_266 = arith.constant 2 : index
    %c0_267 = arith.constant 0 : index
    %c0_268 = arith.constant 0 : index
    %344 = vector.load %arg3[%c1_265, %c2_266, %c0_267, %c0_268] : memref<2x4x128x32xbf16, #tpu.memory_space<vmem>>, vector<1x1x128x32xbf16>
    %345 = vector.shape_cast %344 : vector<1x1x128x32xbf16> to vector<128x32xbf16>
    %cst_269 = arith.constant dense<0.000000e+00> : vector<12x32xf32>
    %346 = tpu.matmul %252, %345, %cst_269 {dimension_numbers = #tpu.dot_dimension_numbers<[1], [0], [0], [1], [0, 0, 1, 1], [], []>} : vector<12x128xbf16>, vector<128x32xbf16>, vector<12x32xf32> -> vector<12x32xf32>
    %c1_270 = arith.constant 1 : index
    %c2_271 = arith.constant 2 : index
    %c0_272 = arith.constant 0 : index
    %c0_273 = arith.constant 0 : index
    %347 = vector.load %arg7[%c1_270, %c2_271, %c0_272, %c0_273] : memref<2x4x1x32xf32, #tpu.memory_space<vmem>>, vector<1x1x1x32xf32>
    %348 = vector.shape_cast %347 : vector<1x1x1x32xf32> to vector<1x32xf32>
    %349 = vector.broadcast %348 : vector<1x32xf32> to vector<12x32xf32>
    %350 = arith.addf %346, %349 : vector<12x32xf32>
    %c1_274 = arith.constant 1 : index
    %c2_275 = arith.constant 2 : index
    %c0_276 = arith.constant 0 : index
    %c0_277 = arith.constant 0 : index
    %351 = vector.load %arg4[%c1_274, %c2_275, %c0_276, %c0_277] : memref<2x4x128x32xbf16, #tpu.memory_space<vmem>>, vector<1x1x128x32xbf16>
    %352 = vector.shape_cast %351 : vector<1x1x128x32xbf16> to vector<128x32xbf16>
    %cst_278 = arith.constant dense<0.000000e+00> : vector<12x32xf32>
    %353 = tpu.matmul %252, %352, %cst_278 {dimension_numbers = #tpu.dot_dimension_numbers<[1], [0], [0], [1], [0, 0, 1, 1], [], []>} : vector<12x128xbf16>, vector<128x32xbf16>, vector<12x32xf32> -> vector<12x32xf32>
    %c1_279 = arith.constant 1 : index
    %c2_280 = arith.constant 2 : index
    %c0_281 = arith.constant 0 : index
    %c0_282 = arith.constant 0 : index
    %354 = vector.load %arg8[%c1_279, %c2_280, %c0_281, %c0_282] : memref<2x4x1x32xf32, #tpu.memory_space<vmem>>, vector<1x1x1x32xf32>
    %355 = vector.shape_cast %354 : vector<1x1x1x32xf32> to vector<1x32xf32>
    %356 = vector.broadcast %355 : vector<1x32xf32> to vector<12x32xf32>
    %357 = arith.addf %353, %356 : vector<12x32xf32>
    %c1_283 = arith.constant 1 : index
    %c2_284 = arith.constant 2 : index
    %c0_285 = arith.constant 0 : index
    %c0_286 = arith.constant 0 : index
    %358 = vector.load %arg5[%c1_283, %c2_284, %c0_285, %c0_286] : memref<2x4x128x32xbf16, #tpu.memory_space<vmem>>, vector<1x1x128x32xbf16>
    %359 = vector.shape_cast %358 : vector<1x1x128x32xbf16> to vector<128x32xbf16>
    %cst_287 = arith.constant dense<0.000000e+00> : vector<12x32xf32>
    %360 = tpu.matmul %252, %359, %cst_287 {dimension_numbers = #tpu.dot_dimension_numbers<[1], [0], [0], [1], [0, 0, 1, 1], [], []>} : vector<12x128xbf16>, vector<128x32xbf16>, vector<12x32xf32> -> vector<12x32xf32>
    %c1_288 = arith.constant 1 : index
    %c2_289 = arith.constant 2 : index
    %c0_290 = arith.constant 0 : index
    %c0_291 = arith.constant 0 : index
    %361 = vector.load %arg9[%c1_288, %c2_289, %c0_290, %c0_291] : memref<2x4x1x32xf32, #tpu.memory_space<vmem>>, vector<1x1x1x32xf32>
    %362 = vector.shape_cast %361 : vector<1x1x1x32xf32> to vector<1x32xf32>
    %363 = vector.broadcast %362 : vector<1x32xf32> to vector<12x32xf32>
    %364 = arith.addf %360, %363 : vector<12x32xf32>
    %365 = arith.truncf %350 : vector<12x32xf32> to vector<12x32xbf16>
    %366 = arith.truncf %357 : vector<12x32xf32> to vector<12x32xbf16>
    %cst_292 = arith.constant dense<0.000000e+00> : vector<12x12xf32>
    %367 = tpu.matmul %365, %366, %cst_292 {dimension_numbers = #tpu.dot_dimension_numbers<[1], [1], [0], [0], [0, 0, 1, 0], [], []>} : vector<12x32xbf16>, vector<12x32xbf16>, vector<12x12xf32> -> vector<12x12xf32>
    %cst_293 = arith.constant 0.176776692 : f32
    %368 = vector.broadcast %cst_293 : f32 to vector<12x12xf32>
    %369 = arith.mulf %367, %368 : vector<12x12xf32>
    %cst_294 = arith.constant dense<0xFF800000> : vector<12xf32>
    %370 = vector.multi_reduction <maximumf>, %369, %cst_294 [1] : vector<12x12xf32> to vector<12xf32>
    %371 = vector.shape_cast %370 : vector<12xf32> to vector<12x1xf32>
    %372 = vector.broadcast %371 : vector<12x1xf32> to vector<12x12xf32>
    %373 = arith.subf %369, %372 : vector<12x12xf32>
    %374 = math.exp %373 : vector<12x12xf32>
    %cst_295 = arith.constant dense<0.000000e+00> : vector<12xf32>
    %375 = vector.multi_reduction <add>, %374, %cst_295 [1] : vector<12x12xf32> to vector<12xf32>
    %376 = vector.shape_cast %375 : vector<12xf32> to vector<12x1xf32>
    %377 = tpu.reciprocal %376 {approx = true} : vector<12x1xf32> -> vector<12x1xf32>
    %378 = vector.broadcast %377 : vector<12x1xf32> to vector<12x12xf32>
    %379 = arith.mulf %374, %378 : vector<12x12xf32>
    %380 = arith.truncf %379 : vector<12x12xf32> to vector<12x12xbf16>
    %381 = arith.truncf %364 : vector<12x32xf32> to vector<12x32xbf16>
    %cst_296 = arith.constant dense<0.000000e+00> : vector<12x32xf32>
    %382 = tpu.matmul %380, %381, %cst_296 {dimension_numbers = #tpu.dot_dimension_numbers<[1], [0], [0], [1], [0, 0, 1, 1], [], []>} : vector<12x12xbf16>, vector<12x32xbf16>, vector<12x32xf32> -> vector<12x32xf32>
    %383 = arith.truncf %382 : vector<12x32xf32> to vector<12x32xbf16>
    %c1_297 = arith.constant 1 : index
    %c2_298 = arith.constant 2 : index
    %c0_299 = arith.constant 0 : index
    %c0_300 = arith.constant 0 : index
    %384 = vector.load %arg6[%c1_297, %c2_298, %c0_299, %c0_300] : memref<2x4x32x128xbf16, #tpu.memory_space<vmem>>, vector<1x1x32x128xbf16>
    %385 = vector.shape_cast %384 : vector<1x1x32x128xbf16> to vector<32x128xbf16>
    %cst_301 = arith.constant dense<0.000000e+00> : vector<12x128xf32>
    %386 = tpu.matmul %383, %385, %cst_301 {dimension_numbers = #tpu.dot_dimension_numbers<[1], [0], [0], [1], [0, 0, 1, 1], [], []>} : vector<12x32xbf16>, vector<32x128xbf16>, vector<12x128xf32> -> vector<12x128xf32>
    %387 = arith.addf %343, %386 : vector<12x128xf32>
    %c1_302 = arith.constant 1 : index
    %c3_303 = arith.constant 3 : index
    %c0_304 = arith.constant 0 : index
    %c0_305 = arith.constant 0 : index
    %388 = vector.load %arg3[%c1_302, %c3_303, %c0_304, %c0_305] : memref<2x4x128x32xbf16, #tpu.memory_space<vmem>>, vector<1x1x128x32xbf16>
    %389 = vector.shape_cast %388 : vector<1x1x128x32xbf16> to vector<128x32xbf16>
    %cst_306 = arith.constant dense<0.000000e+00> : vector<12x32xf32>
    %390 = tpu.matmul %252, %389, %cst_306 {dimension_numbers = #tpu.dot_dimension_numbers<[1], [0], [0], [1], [0, 0, 1, 1], [], []>} : vector<12x128xbf16>, vector<128x32xbf16>, vector<12x32xf32> -> vector<12x32xf32>
    %c1_307 = arith.constant 1 : index
    %c3_308 = arith.constant 3 : index
    %c0_309 = arith.constant 0 : index
    %c0_310 = arith.constant 0 : index
    %391 = vector.load %arg7[%c1_307, %c3_308, %c0_309, %c0_310] : memref<2x4x1x32xf32, #tpu.memory_space<vmem>>, vector<1x1x1x32xf32>
    %392 = vector.shape_cast %391 : vector<1x1x1x32xf32> to vector<1x32xf32>
    %393 = vector.broadcast %392 : vector<1x32xf32> to vector<12x32xf32>
    %394 = arith.addf %390, %393 : vector<12x32xf32>
    %c1_311 = arith.constant 1 : index
    %c3_312 = arith.constant 3 : index
    %c0_313 = arith.constant 0 : index
    %c0_314 = arith.constant 0 : index
    %395 = vector.load %arg4[%c1_311, %c3_312, %c0_313, %c0_314] : memref<2x4x128x32xbf16, #tpu.memory_space<vmem>>, vector<1x1x128x32xbf16>
    %396 = vector.shape_cast %395 : vector<1x1x128x32xbf16> to vector<128x32xbf16>
    %cst_315 = arith.constant dense<0.000000e+00> : vector<12x32xf32>
    %397 = tpu.matmul %252, %396, %cst_315 {dimension_numbers = #tpu.dot_dimension_numbers<[1], [0], [0], [1], [0, 0, 1, 1], [], []>} : vector<12x128xbf16>, vector<128x32xbf16>, vector<12x32xf32> -> vector<12x32xf32>
    %c1_316 = arith.constant 1 : index
    %c3_317 = arith.constant 3 : index
    %c0_318 = arith.constant 0 : index
    %c0_319 = arith.constant 0 : index
    %398 = vector.load %arg8[%c1_316, %c3_317, %c0_318, %c0_319] : memref<2x4x1x32xf32, #tpu.memory_space<vmem>>, vector<1x1x1x32xf32>
    %399 = vector.shape_cast %398 : vector<1x1x1x32xf32> to vector<1x32xf32>
    %400 = vector.broadcast %399 : vector<1x32xf32> to vector<12x32xf32>
    %401 = arith.addf %397, %400 : vector<12x32xf32>
    %c1_320 = arith.constant 1 : index
    %c3_321 = arith.constant 3 : index
    %c0_322 = arith.constant 0 : index
    %c0_323 = arith.constant 0 : index
    %402 = vector.load %arg5[%c1_320, %c3_321, %c0_322, %c0_323] : memref<2x4x128x32xbf16, #tpu.memory_space<vmem>>, vector<1x1x128x32xbf16>
    %403 = vector.shape_cast %402 : vector<1x1x128x32xbf16> to vector<128x32xbf16>
    %cst_324 = arith.constant dense<0.000000e+00> : vector<12x32xf32>
    %404 = tpu.matmul %252, %403, %cst_324 {dimension_numbers = #tpu.dot_dimension_numbers<[1], [0], [0], [1], [0, 0, 1, 1], [], []>} : vector<12x128xbf16>, vector<128x32xbf16>, vector<12x32xf32> -> vector<12x32xf32>
    %c1_325 = arith.constant 1 : index
    %c3_326 = arith.constant 3 : index
    %c0_327 = arith.constant 0 : index
    %c0_328 = arith.constant 0 : index
    %405 = vector.load %arg9[%c1_325, %c3_326, %c0_327, %c0_328] : memref<2x4x1x32xf32, #tpu.memory_space<vmem>>, vector<1x1x1x32xf32>
    %406 = vector.shape_cast %405 : vector<1x1x1x32xf32> to vector<1x32xf32>
    %407 = vector.broadcast %406 : vector<1x32xf32> to vector<12x32xf32>
    %408 = arith.addf %404, %407 : vector<12x32xf32>
    %409 = arith.truncf %394 : vector<12x32xf32> to vector<12x32xbf16>
    %410 = arith.truncf %401 : vector<12x32xf32> to vector<12x32xbf16>
    %cst_329 = arith.constant dense<0.000000e+00> : vector<12x12xf32>
    %411 = tpu.matmul %409, %410, %cst_329 {dimension_numbers = #tpu.dot_dimension_numbers<[1], [1], [0], [0], [0, 0, 1, 0], [], []>} : vector<12x32xbf16>, vector<12x32xbf16>, vector<12x12xf32> -> vector<12x12xf32>
    %cst_330 = arith.constant 0.176776692 : f32
    %412 = vector.broadcast %cst_330 : f32 to vector<12x12xf32>
    %413 = arith.mulf %411, %412 : vector<12x12xf32>
    %cst_331 = arith.constant dense<0xFF800000> : vector<12xf32>
    %414 = vector.multi_reduction <maximumf>, %413, %cst_331 [1] : vector<12x12xf32> to vector<12xf32>
    %415 = vector.shape_cast %414 : vector<12xf32> to vector<12x1xf32>
    %416 = vector.broadcast %415 : vector<12x1xf32> to vector<12x12xf32>
    %417 = arith.subf %413, %416 : vector<12x12xf32>
    %418 = math.exp %417 : vector<12x12xf32>
    %cst_332 = arith.constant dense<0.000000e+00> : vector<12xf32>
    %419 = vector.multi_reduction <add>, %418, %cst_332 [1] : vector<12x12xf32> to vector<12xf32>
    %420 = vector.shape_cast %419 : vector<12xf32> to vector<12x1xf32>
    %421 = tpu.reciprocal %420 {approx = true} : vector<12x1xf32> -> vector<12x1xf32>
    %422 = vector.broadcast %421 : vector<12x1xf32> to vector<12x12xf32>
    %423 = arith.mulf %418, %422 : vector<12x12xf32>
    %424 = arith.truncf %423 : vector<12x12xf32> to vector<12x12xbf16>
    %425 = arith.truncf %408 : vector<12x32xf32> to vector<12x32xbf16>
    %cst_333 = arith.constant dense<0.000000e+00> : vector<12x32xf32>
    %426 = tpu.matmul %424, %425, %cst_333 {dimension_numbers = #tpu.dot_dimension_numbers<[1], [0], [0], [1], [0, 0, 1, 1], [], []>} : vector<12x12xbf16>, vector<12x32xbf16>, vector<12x32xf32> -> vector<12x32xf32>
    %427 = arith.truncf %426 : vector<12x32xf32> to vector<12x32xbf16>
    %c1_334 = arith.constant 1 : index
    %c3_335 = arith.constant 3 : index
    %c0_336 = arith.constant 0 : index
    %c0_337 = arith.constant 0 : index
    %428 = vector.load %arg6[%c1_334, %c3_335, %c0_336, %c0_337] : memref<2x4x32x128xbf16, #tpu.memory_space<vmem>>, vector<1x1x32x128xbf16>
    %429 = vector.shape_cast %428 : vector<1x1x32x128xbf16> to vector<32x128xbf16>
    %cst_338 = arith.constant dense<0.000000e+00> : vector<12x128xf32>
    %430 = tpu.matmul %427, %429, %cst_338 {dimension_numbers = #tpu.dot_dimension_numbers<[1], [0], [0], [1], [0, 0, 1, 1], [], []>} : vector<12x32xbf16>, vector<32x128xbf16>, vector<12x128xf32> -> vector<12x128xf32>
    %431 = arith.addf %387, %430 : vector<12x128xf32>
    %432 = arith.addf %251, %431 : vector<12x128xf32>
    %c1_339 = arith.constant 1 : index
    %c0_340 = arith.constant 0 : index
    %c0_341 = arith.constant 0 : index
    %433 = vector.load %arg11[%c1_339, %c0_340, %c0_341] : memref<2x1x128xf32, #tpu.memory_space<vmem>>, vector<1x1x128xf32>
    %434 = vector.shape_cast %433 : vector<1x1x128xf32> to vector<1x128xf32>
    %c1_342 = arith.constant 1 : index
    %c0_343 = arith.constant 0 : index
    %c0_344 = arith.constant 0 : index
    %435 = vector.load %arg12[%c1_342, %c0_343, %c0_344] : memref<2x1x128xf32, #tpu.memory_space<vmem>>, vector<1x1x128xf32>
    %436 = vector.shape_cast %435 : vector<1x1x128xf32> to vector<1x128xf32>
    %cst_345 = arith.constant dense<0.000000e+00> : vector<12xf32>
    %437 = vector.multi_reduction <add>, %432, %cst_345 [1] : vector<12x128xf32> to vector<12xf32>
    %438 = vector.shape_cast %437 : vector<12xf32> to vector<12x1xf32>
    %cst_346 = arith.constant 1.280000e+02 : f32
    %439 = vector.broadcast %cst_346 : f32 to vector<12x1xf32>
    %440 = arith.divf %438, %439 : vector<12x1xf32>
    %441 = vector.broadcast %440 : vector<12x1xf32> to vector<12x128xf32>
    %442 = arith.subf %432, %441 : vector<12x128xf32>
    %443 = arith.mulf %442, %442 : vector<12x128xf32>
    %cst_347 = arith.constant dense<0.000000e+00> : vector<12xf32>
    %444 = vector.multi_reduction <add>, %443, %cst_347 [1] : vector<12x128xf32> to vector<12xf32>
    %445 = vector.shape_cast %444 : vector<12xf32> to vector<12x1xf32>
    %cst_348 = arith.constant 1.280000e+02 : f32
    %446 = vector.broadcast %cst_348 : f32 to vector<12x1xf32>
    %447 = arith.divf %445, %446 : vector<12x1xf32>
    %cst_349 = arith.constant 9.99999974E-6 : f32
    %448 = vector.broadcast %cst_349 : f32 to vector<12x1xf32>
    %449 = arith.addf %447, %448 : vector<12x1xf32>
    %450 = math.rsqrt %449 : vector<12x1xf32>
    %451 = vector.broadcast %450 : vector<12x1xf32> to vector<12x128xf32>
    %452 = arith.mulf %442, %451 : vector<12x128xf32>
    %453 = vector.broadcast %434 : vector<1x128xf32> to vector<12x128xf32>
    %454 = arith.mulf %452, %453 : vector<12x128xf32>
    %455 = vector.broadcast %436 : vector<1x128xf32> to vector<12x128xf32>
    %456 = arith.addf %454, %455 : vector<12x128xf32>
    %457 = arith.truncf %456 : vector<12x128xf32> to vector<12x128xbf16>
    %c1_350 = arith.constant 1 : index
    %c0_351 = arith.constant 0 : index
    %c0_352 = arith.constant 0 : index
    %458 = vector.load %arg13[%c1_350, %c0_351, %c0_352] : memref<2x128x512xbf16, #tpu.memory_space<vmem>>, vector<1x128x512xbf16>
    %459 = vector.shape_cast %458 : vector<1x128x512xbf16> to vector<128x512xbf16>
    %cst_353 = arith.constant dense<0.000000e+00> : vector<12x512xf32>
    %460 = tpu.matmul %457, %459, %cst_353 {dimension_numbers = #tpu.dot_dimension_numbers<[1], [0], [0], [1], [0, 0, 1, 1], [], []>} : vector<12x128xbf16>, vector<128x512xbf16>, vector<12x512xf32> -> vector<12x512xf32>
    %c1_354 = arith.constant 1 : index
    %c0_355 = arith.constant 0 : index
    %c0_356 = arith.constant 0 : index
    %461 = vector.load %arg14[%c1_354, %c0_355, %c0_356] : memref<2x1x512xf32, #tpu.memory_space<vmem>>, vector<1x1x512xf32>
    %462 = vector.shape_cast %461 : vector<1x1x512xf32> to vector<1x512xf32>
    %463 = vector.broadcast %462 : vector<1x512xf32> to vector<12x512xf32>
    %464 = arith.addf %460, %463 : vector<12x512xf32>
    %cst_357 = arith.constant 0.000000e+00 : f32
    %465 = vector.broadcast %cst_357 : f32 to vector<12x512xf32>
    %466 = arith.maximumf %464, %465 : vector<12x512xf32>
    %467 = arith.truncf %466 : vector<12x512xf32> to vector<12x512xbf16>
    %c1_358 = arith.constant 1 : index
    %c0_359 = arith.constant 0 : index
    %c0_360 = arith.constant 0 : index
    %468 = vector.load %arg15[%c1_358, %c0_359, %c0_360] : memref<2x512x128xbf16, #tpu.memory_space<vmem>>, vector<1x512x128xbf16>
    %469 = vector.shape_cast %468 : vector<1x512x128xbf16> to vector<512x128xbf16>
    %cst_361 = arith.constant dense<0.000000e+00> : vector<12x128xf32>
    %470 = tpu.matmul %467, %469, %cst_361 {dimension_numbers = #tpu.dot_dimension_numbers<[1], [0], [0], [1], [0, 0, 1, 1], [], []>} : vector<12x512xbf16>, vector<512x128xbf16>, vector<12x128xf32> -> vector<12x128xf32>
    %c1_362 = arith.constant 1 : index
    %c0_363 = arith.constant 0 : index
    %c0_364 = arith.constant 0 : index
    %471 = vector.load %arg16[%c1_362, %c0_363, %c0_364] : memref<2x1x128xf32, #tpu.memory_space<vmem>>, vector<1x1x128xf32>
    %472 = vector.shape_cast %471 : vector<1x1x128xf32> to vector<1x128xf32>
    %473 = vector.broadcast %472 : vector<1x128xf32> to vector<12x128xf32>
    %474 = arith.addf %470, %473 : vector<12x128xf32>
    %475 = arith.addf %456, %474 : vector<12x128xf32>
    %c1_365 = arith.constant 1 : index
    %c0_366 = arith.constant 0 : index
    %c0_367 = arith.constant 0 : index
    %476 = vector.load %arg17[%c1_365, %c0_366, %c0_367] : memref<2x1x128xf32, #tpu.memory_space<vmem>>, vector<1x1x128xf32>
    %477 = vector.shape_cast %476 : vector<1x1x128xf32> to vector<1x128xf32>
    %c1_368 = arith.constant 1 : index
    %c0_369 = arith.constant 0 : index
    %c0_370 = arith.constant 0 : index
    %478 = vector.load %arg18[%c1_368, %c0_369, %c0_370] : memref<2x1x128xf32, #tpu.memory_space<vmem>>, vector<1x1x128xf32>
    %479 = vector.shape_cast %478 : vector<1x1x128xf32> to vector<1x128xf32>
    %cst_371 = arith.constant dense<0.000000e+00> : vector<12xf32>
    %480 = vector.multi_reduction <add>, %475, %cst_371 [1] : vector<12x128xf32> to vector<12xf32>
    %481 = vector.shape_cast %480 : vector<12xf32> to vector<12x1xf32>
    %cst_372 = arith.constant 1.280000e+02 : f32
    %482 = vector.broadcast %cst_372 : f32 to vector<12x1xf32>
    %483 = arith.divf %481, %482 : vector<12x1xf32>
    %484 = vector.broadcast %483 : vector<12x1xf32> to vector<12x128xf32>
    %485 = arith.subf %475, %484 : vector<12x128xf32>
    %486 = arith.mulf %485, %485 : vector<12x128xf32>
    %cst_373 = arith.constant dense<0.000000e+00> : vector<12xf32>
    %487 = vector.multi_reduction <add>, %486, %cst_373 [1] : vector<12x128xf32> to vector<12xf32>
    %488 = vector.shape_cast %487 : vector<12xf32> to vector<12x1xf32>
    %cst_374 = arith.constant 1.280000e+02 : f32
    %489 = vector.broadcast %cst_374 : f32 to vector<12x1xf32>
    %490 = arith.divf %488, %489 : vector<12x1xf32>
    %cst_375 = arith.constant 9.99999974E-6 : f32
    %491 = vector.broadcast %cst_375 : f32 to vector<12x1xf32>
    %492 = arith.addf %490, %491 : vector<12x1xf32>
    %493 = math.rsqrt %492 : vector<12x1xf32>
    %494 = vector.broadcast %493 : vector<12x1xf32> to vector<12x128xf32>
    %495 = arith.mulf %485, %494 : vector<12x128xf32>
    %496 = vector.broadcast %477 : vector<1x128xf32> to vector<12x128xf32>
    %497 = arith.mulf %495, %496 : vector<12x128xf32>
    %498 = vector.broadcast %479 : vector<1x128xf32> to vector<12x128xf32>
    %499 = arith.addf %497, %498 : vector<12x128xf32>
    %cst_376 = arith.constant dense<0.000000e+00> : vector<128xf32>
    %500 = vector.multi_reduction <add>, %499, %cst_376 [0] : vector<12x128xf32> to vector<128xf32>
    %501 = vector.shape_cast %500 : vector<128xf32> to vector<1x128xf32>
    %cst_377 = arith.constant 1.200000e+01 : f32
    %502 = vector.broadcast %cst_377 : f32 to vector<1x128xf32>
    %503 = arith.divf %501, %502 : vector<1x128xf32>
    %c0_378 = arith.constant 0 : index
    %c0_379 = arith.constant 0 : index
    %504 = vector.load %arg19[%c0_378, %c0_379] : memref<1x128xf32, #tpu.memory_space<vmem>>, vector<1x128xf32>
    %c0_380 = arith.constant 0 : index
    %c0_381 = arith.constant 0 : index
    %505 = vector.load %arg20[%c0_380, %c0_381] : memref<1x128xf32, #tpu.memory_space<vmem>>, vector<1x128xf32>
    %cst_382 = arith.constant dense<0.000000e+00> : vector<1xf32>
    %506 = vector.multi_reduction <add>, %503, %cst_382 [1] : vector<1x128xf32> to vector<1xf32>
    %507 = vector.shape_cast %506 : vector<1xf32> to vector<1x1xf32>
    %cst_383 = arith.constant 1.280000e+02 : f32
    %508 = vector.broadcast %cst_383 : f32 to vector<1x1xf32>
    %509 = arith.divf %507, %508 : vector<1x1xf32>
    %510 = vector.broadcast %509 : vector<1x1xf32> to vector<1x128xf32>
    %511 = arith.subf %503, %510 : vector<1x128xf32>
    %512 = arith.mulf %511, %511 : vector<1x128xf32>
    %cst_384 = arith.constant dense<0.000000e+00> : vector<1xf32>
    %513 = vector.multi_reduction <add>, %512, %cst_384 [1] : vector<1x128xf32> to vector<1xf32>
    %514 = vector.shape_cast %513 : vector<1xf32> to vector<1x1xf32>
    %cst_385 = arith.constant 1.280000e+02 : f32
    %515 = vector.broadcast %cst_385 : f32 to vector<1x1xf32>
    %516 = arith.divf %514, %515 : vector<1x1xf32>
    %cst_386 = arith.constant 9.99999974E-6 : f32
    %517 = vector.broadcast %cst_386 : f32 to vector<1x1xf32>
    %518 = arith.addf %516, %517 : vector<1x1xf32>
    %519 = math.rsqrt %518 : vector<1x1xf32>
    %520 = vector.broadcast %519 : vector<1x1xf32> to vector<1x128xf32>
    %521 = arith.mulf %511, %520 : vector<1x128xf32>
    %522 = arith.mulf %521, %504 : vector<1x128xf32>
    %523 = arith.addf %522, %505 : vector<1x128xf32>
    %c0_387 = arith.constant 0 : index
    %c0_388 = arith.constant 0 : index
    %524 = vector.load %arg21[%c0_387, %c0_388] : memref<1x128xf32, #tpu.memory_space<vmem>>, vector<1x128xf32>
    %525 = arith.mulf %523, %524 : vector<1x128xf32>
    %cst_389 = arith.constant dense<0.000000e+00> : vector<1xf32>
    %526 = vector.multi_reduction <add>, %525, %cst_389 [1] : vector<1x128xf32> to vector<1xf32>
    %527 = vector.shape_cast %526 : vector<1xf32> to vector<1x1xf32>
    %c0_390 = arith.constant 0 : index
    %c0_391 = arith.constant 0 : index
    %528 = vector.load %arg22[%c0_390, %c0_391] : memref<1x1xf32, #tpu.memory_space<vmem>>, vector<1x1xf32>
    %529 = arith.addf %527, %528 : vector<1x1xf32>
    %530 = vector.shape_cast %529 : vector<1x1xf32> to vector<1x1x1xf32>
    %c0_392 = arith.constant 0 : index
    %c0_393 = arith.constant 0 : index
    %c0_394 = arith.constant 0 : index
    %531 = vector.load %arg23[%c0_392, %c0_393, %c0_394] : memref<1x1x1xf32, #tpu.memory_space<vmem>>, vector<1x1x1xf32>
    tpu.vector_store %arg23[%c0_392, %c0_393, %c0_394], %530 {strides = array<i32>} : memref<1x1x1xf32, #tpu.memory_space<vmem>>, vector<1x1x1xf32>,
    return
  }
  func.func @transform_0(%arg0: i32) -> (i32, i32, i32) {
    %c0_i32 = arith.constant 0 : i32
    %c0_i32_0 = arith.constant 0 : i32
    %c0_i32_1 = arith.constant 0 : i32
    return %arg0, %c0_i32, %c0_i32_0 : i32, i32, i32
  }
  func.func @transform_1(%arg0: i32) -> (i32, i32) {
    %c0_i32 = arith.constant 0 : i32
    %c0_i32_0 = arith.constant 0 : i32
    %c0_i32_1 = arith.constant 0 : i32
    return %c0_i32, %c0_i32_0 : i32, i32
  }
  func.func @transform_2(%arg0: i32) -> (i32, i32, i32, i32) {
    %c0_i32 = arith.constant 0 : i32
    %c0_i32_0 = arith.constant 0 : i32
    %c0_i32_1 = arith.constant 0 : i32
    %c0_i32_2 = arith.constant 0 : i32
    %c0_i32_3 = arith.constant 0 : i32
    return %c0_i32, %c0_i32_0, %c0_i32_1, %c0_i32_2 : i32, i32, i32, i32
  }
  func.func @transform_3(%arg0: i32) -> (i32, i32, i32, i32) {
    %c0_i32 = arith.constant 0 : i32
    %c0_i32_0 = arith.constant 0 : i32
    %c0_i32_1 = arith.constant 0 : i32
    %c0_i32_2 = arith.constant 0 : i32
    %c0_i32_3 = arith.constant 0 : i32
    return %c0_i32, %c0_i32_0, %c0_i32_1, %c0_i32_2 : i32, i32, i32, i32
  }
  func.func @transform_4(%arg0: i32) -> (i32, i32, i32, i32) {
    %c0_i32 = arith.constant 0 : i32
    %c0_i32_0 = arith.constant 0 : i32
    %c0_i32_1 = arith.constant 0 : i32
    %c0_i32_2 = arith.constant 0 : i32
    %c0_i32_3 = arith.constant 0 : i32
    return %c0_i32, %c0_i32_0, %c0_i32_1, %c0_i32_2 : i32, i32, i32, i32
  }
  func.func @transform_5(%arg0: i32) -> (i32, i32, i32, i32) {
    %c0_i32 = arith.constant 0 : i32
    %c0_i32_0 = arith.constant 0 : i32
    %c0_i32_1 = arith.constant 0 : i32
    %c0_i32_2 = arith.constant 0 : i32
    %c0_i32_3 = arith.constant 0 : i32
    return %c0_i32, %c0_i32_0, %c0_i32_1, %c0_i32_2 : i32, i32, i32, i32
  }
  func.func @transform_6(%arg0: i32) -> (i32, i32, i32, i32) {
    %c0_i32 = arith.constant 0 : i32
    %c0_i32_0 = arith.constant 0 : i32
    %c0_i32_1 = arith.constant 0 : i32
    %c0_i32_2 = arith.constant 0 : i32
    %c0_i32_3 = arith.constant 0 : i32
    return %c0_i32, %c0_i32_0, %c0_i32_1, %c0_i32_2 : i32, i32, i32, i32
  }
  func.func @transform_7(%arg0: i32) -> (i32, i32, i32, i32) {
    %c0_i32 = arith.constant 0 : i32
    %c0_i32_0 = arith.constant 0 : i32
    %c0_i32_1 = arith.constant 0 : i32
    %c0_i32_2 = arith.constant 0 : i32
    %c0_i32_3 = arith.constant 0 : i32
    return %c0_i32, %c0_i32_0, %c0_i32_1, %c0_i32_2 : i32, i32, i32, i32
  }
  func.func @transform_8(%arg0: i32) -> (i32, i32, i32, i32) {
    %c0_i32 = arith.constant 0 : i32
    %c0_i32_0 = arith.constant 0 : i32
    %c0_i32_1 = arith.constant 0 : i32
    %c0_i32_2 = arith.constant 0 : i32
    %c0_i32_3 = arith.constant 0 : i32
    return %c0_i32, %c0_i32_0, %c0_i32_1, %c0_i32_2 : i32, i32, i32, i32
  }
  func.func @transform_9(%arg0: i32) -> (i32, i32, i32) {
    %c0_i32 = arith.constant 0 : i32
    %c0_i32_0 = arith.constant 0 : i32
    %c0_i32_1 = arith.constant 0 : i32
    %c0_i32_2 = arith.constant 0 : i32
    return %c0_i32, %c0_i32_0, %c0_i32_1 : i32, i32, i32
  }
  func.func @transform_10(%arg0: i32) -> (i32, i32, i32) {
    %c0_i32 = arith.constant 0 : i32
    %c0_i32_0 = arith.constant 0 : i32
    %c0_i32_1 = arith.constant 0 : i32
    %c0_i32_2 = arith.constant 0 : i32
    return %c0_i32, %c0_i32_0, %c0_i32_1 : i32, i32, i32
  }
  func.func @transform_11(%arg0: i32) -> (i32, i32, i32) {
    %c0_i32 = arith.constant 0 : i32
    %c0_i32_0 = arith.constant 0 : i32
    %c0_i32_1 = arith.constant 0 : i32
    %c0_i32_2 = arith.constant 0 : i32
    return %c0_i32, %c0_i32_0, %c0_i32_1 : i32, i32, i32
  }
  func.func @transform_12(%arg0: i32) -> (i32, i32, i32) {
    %c0_i32 = arith.constant 0 : i32
    %c0_i32_0 = arith.constant 0 : i32
    %c0_i32_1 = arith.constant 0 : i32
    %c0_i32_2 = arith.constant 0 : i32
    return %c0_i32, %c0_i32_0, %c0_i32_1 : i32, i32, i32
  }
  func.func @transform_13(%arg0: i32) -> (i32, i32, i32) {
    %c0_i32 = arith.constant 0 : i32
    %c0_i32_0 = arith.constant 0 : i32
    %c0_i32_1 = arith.constant 0 : i32
    %c0_i32_2 = arith.constant 0 : i32
    return %c0_i32, %c0_i32_0, %c0_i32_1 : i32, i32, i32
  }
  func.func @transform_14(%arg0: i32) -> (i32, i32, i32) {
    %c0_i32 = arith.constant 0 : i32
    %c0_i32_0 = arith.constant 0 : i32
    %c0_i32_1 = arith.constant 0 : i32
    %c0_i32_2 = arith.constant 0 : i32
    return %c0_i32, %c0_i32_0, %c0_i32_1 : i32, i32, i32
  }
  func.func @transform_15(%arg0: i32) -> (i32, i32, i32) {
    %c0_i32 = arith.constant 0 : i32
    %c0_i32_0 = arith.constant 0 : i32
    %c0_i32_1 = arith.constant 0 : i32
    %c0_i32_2 = arith.constant 0 : i32
    return %c0_i32, %c0_i32_0, %c0_i32_1 : i32, i32, i32
  }
  func.func @transform_16(%arg0: i32) -> (i32, i32, i32) {
    %c0_i32 = arith.constant 0 : i32
    %c0_i32_0 = arith.constant 0 : i32
    %c0_i32_1 = arith.constant 0 : i32
    %c0_i32_2 = arith.constant 0 : i32
    return %c0_i32, %c0_i32_0, %c0_i32_1 : i32, i32, i32
  }
  func.func @transform_17(%arg0: i32) -> (i32, i32, i32) {
    %c0_i32 = arith.constant 0 : i32
    %c0_i32_0 = arith.constant 0 : i32
    %c0_i32_1 = arith.constant 0 : i32
    %c0_i32_2 = arith.constant 0 : i32
    return %c0_i32, %c0_i32_0, %c0_i32_1 : i32, i32, i32
  }
  func.func @transform_18(%arg0: i32) -> (i32, i32) {
    %c0_i32 = arith.constant 0 : i32
    %c0_i32_0 = arith.constant 0 : i32
    %c0_i32_1 = arith.constant 0 : i32
    return %c0_i32, %c0_i32_0 : i32, i32
  }
  func.func @transform_19(%arg0: i32) -> (i32, i32) {
    %c0_i32 = arith.constant 0 : i32
    %c0_i32_0 = arith.constant 0 : i32
    %c0_i32_1 = arith.constant 0 : i32
    return %c0_i32, %c0_i32_0 : i32, i32
  }
  func.func @transform_20(%arg0: i32) -> (i32, i32) {
    %c0_i32 = arith.constant 0 : i32
    %c0_i32_0 = arith.constant 0 : i32
    %c0_i32_1 = arith.constant 0 : i32
    return %c0_i32, %c0_i32_0 : i32, i32
  }
  func.func @transform_21(%arg0: i32) -> (i32, i32) {
    %c0_i32 = arith.constant 0 : i32
    %c0_i32_0 = arith.constant 0 : i32
    %c0_i32_1 = arith.constant 0 : i32
    return %c0_i32, %c0_i32_0 : i32, i32
  }
  func.func @transform_22(%arg0: i32) -> (i32, i32, i32) {
    %c0_i32 = arith.constant 0 : i32
    %c0_i32_0 = arith.constant 0 : i32
    %c0_i32_1 = arith.constant 0 : i32
    return %arg0, %c0_i32, %c0_i32_0 : i32, i32, i32
  }
}

</mosaic_0001>

<llo_original>
// kernel: gaze_selector_forward.2
$region0: #{gaze_selector_forward.2}
  #allocation0 [shape = 'u32[]', space=smem, size = 0x4, offset = 0x4, fixed_abs, tag = 'smem constant byte address 0x4 - core index']
  #allocation1 [shape = 'u32[144,128]{1,0:T(1,128)}', space=vmem, size = 0x12000, scoped, tag = 'internal scratch']
  %s0 = inlined_call_operand.vmem [shape: f32[2,6,3,256], index: 0, kind: input, shape index: {}]
  %s1 = inlined_call_operand.vmem [shape: bf16[2,288,81], index: 1, kind: input, shape index: {}]
  %s2 = inlined_call_operand.vmem [shape: f32[3,64], index: 2, kind: input, shape index: {}]
  %s3 = inlined_call_operand.vmem [shape: f32[1,64], index: 3, kind: input, shape index: {}]
  %s4 = inlined_call_operand.vmem [shape: bf16[64,128], index: 4, kind: input, shape index: {}]
  %s5 = inlined_call_operand.vmem [shape: f32[1,128], index: 5, kind: input, shape index: {}]
  %s6 = inlined_call_operand.vmem [shape: bf16[81,144], index: 6, kind: input, shape index: {}]
  %s7 = inlined_call_operand.vmem [shape: f32[16,144], index: 7, kind: input, shape index: {}]
  %s8 = inlined_call_operand.vmem [shape: bf16[144,32], index: 8, kind: input, shape index: {}]
  %s9 = inlined_call_operand.vmem [shape: f32[1,32], index: 9, kind: input, shape index: {}]
  %s10 = inlined_call_operand.vmem [shape: bf16[32,128], index: 10, kind: input, shape index: {}]
  %s11 = inlined_call_operand.vmem [shape: f32[1,128], index: 11, kind: input, shape index: {}]
  %s12 = inlined_call_operand.vmem [shape: f32[2,6,128], index: 12, kind: output, shape index: {0}]
  %s13 = inlined_call_operand.vmem [shape: f32[2,18,128], index: 13, kind: output, shape index: {1}]
  %14 = xla_tuple %s12, %s13
  %s15 = sld [smem:[#allocation0]]
  $region89: #{gaze_selector_forward.2} parent=0
    _
  %s17 = ssub.s32 1, %s15
  %s18 = scalar_select 0, %s17, %s15
  loop: start=0, step=1, limit=4
  $region2: #{gaze_selector_forward.2} parent=0 // loop_pre_header
    _
  $region3: #{gaze_selector_forward.2} parent=0 // loop_header
    %s20 = sphi 0, %s24
    %p21 = scmp.ge.s32.totalorder %s20, 4
    %s30 = sphi 0, %s32
    %s33 = sphi 0, %s30
    %s34 = sphi 0, %s33
    %s50 = sphi 0, %s34
    %s56 = sphi 0, %s58
    %s59 = sphi 0, %s56
    %s60 = sphi 0, %s59
    %s76 = sphi 0, %s60
    %s80 = sphi 0, %s80
    %s82 = sphi 0, %s80
    %s83 = sphi 0, %s82
    %s97 = sphi 0, %s83
    %s101 = sphi 0, %s101
    %s103 = sphi 0, %s101
    %s104 = sphi 0, %s103
    %s118 = sphi 0, %s104
    %s122 = sphi 0, %s122
    %s124 = sphi 0, %s122
    %s125 = sphi 0, %s124
    %s139 = sphi 0, %s125
    %s143 = sphi 0, %s143
    %s145 = sphi 0, %s143
    %s146 = sphi 0, %s145
    %s160 = sphi 0, %s146
    %s164 = sphi 0, %s164
    %s166 = sphi 0, %s164
    %s167 = sphi 0, %s166
    %s181 = sphi 0, %s167
    %s185 = sphi 0, %s185
    %s187 = sphi 0, %s185
    %s188 = sphi 0, %s187
    %s202 = sphi 0, %s188
    %s206 = sphi 0, %s206
    %s208 = sphi 0, %s206
    %s209 = sphi 0, %s208
    %s223 = sphi 0, %s209
    %s227 = sphi 0, %s227
    %s229 = sphi 0, %s227
    %s230 = sphi 0, %s229
    %s244 = sphi 0, %s230
    %s248 = sphi 0, %s248
    %s250 = sphi 0, %s248
    %s251 = sphi 0, %s250
    %s265 = sphi 0, %s251
    %s269 = sphi 0, %s269
    %s271 = sphi 0, %s269
    %s272 = sphi 0, %s271
    %s286 = sphi 0, %s272
    %s292 = sphi 0, %s294
    %s295 = sphi 0, %s292
    %s296 = sphi 0, %s295
    %s312 = sphi 0, %s296
    %s318 = sphi 0, %s320
    %s321 = sphi 0, %s318
    %s322 = sphi 0, %s321
    %s338 = sphi 0, %s322
  $region4: #{gaze_selector_forward.2} parent=0 // loop_header_branch
    %23 = sbr.rel (%p21) target = $region8
  $region5: #{gaze_selector_forward.2} parent=0 // loop_body
    %s25 = ssub.s32 %s20, 1
    %s26 = ssub.s32 %s20, 2
    %s27 = sadd.s32 %s20, 1
    %s28 = ssub.s32 %s20, %s27
    %p29 = scmp.eq.s32.totalorder %s28, 0
    %s31 = sadd.s32 %s30, 1
    %s32 = scalar_select %p29, %s30, %s31
    %p35 = pneg %p29
    %p36 = scmp.eq.s32.totalorder %s20, 1
    %p37 = por %p35, %p36
    %p38 = scmp.ne.s32.totalorder %s30, %s33
    %p39 = scmp.eq.s32.totalorder %s20, 0
    %p40 = por %p38, %p39
    %p41 = scmp.ne.s32.totalorder %s30, %s33
    %p42 = scmp.eq.s32.totalorder %s25, 1
    %p43 = por %p41, %p42
    %p44 = scmp.ne.s32.totalorder %s33, %s34
    %p45 = scmp.eq.s32.totalorder %s25, 0
    %p46 = por %p44, %p45
    %p47 = scmp.ne.s32.totalorder %s33, %s34
    %p48 = scmp.eq.s32.totalorder %s26, 1
    %p49 = por %p47, %p48
    %p51 = scmp.ne.s32.totalorder %s34, %s50
    %p52 = scmp.eq.s32.totalorder %s26, 0
    %p53 = por %p51, %p52
    %s54 = ssub.s32 %s20, %s27
    %p55 = scmp.eq.s32.totalorder %s54, 0
    %s57 = sadd.s32 %s56, 1
    %s58 = scalar_select %p55, %s56, %s57
    %p61 = pneg %p55
    %p62 = scmp.eq.s32.totalorder %s20, 1
    %p63 = por %p61, %p62
    %p64 = scmp.ne.s32.totalorder %s56, %s59
    %p65 = scmp.eq.s32.totalorder %s20, 0
    %p66 = por %p64, %p65
    %p67 = scmp.ne.s32.totalorder %s56, %s59
    %p68 = scmp.eq.s32.totalorder %s25, 1
    %p69 = por %p67, %p68
    %p70 = scmp.ne.s32.totalorder %s59, %s60
    %p71 = scmp.eq.s32.totalorder %s25, 0
    %p72 = por %p70, %p71
    %p73 = scmp.ne.s32.totalorder %s59, %s60
    %p74 = scmp.eq.s32.totalorder %s26, 1
    %p75 = por %p73, %p74
    %p77 = scmp.ne.s32.totalorder %s60, %s76
    %p78 = scmp.eq.s32.totalorder %s26, 0
    %p79 = por %p77, %p78
    %s81 = sadd.s32 %s80, 1
    %p84 = scmp.eq.s32.totalorder %s20, 1
    %p85 = scmp.ne.s32.totalorder %s80, %s82
    %p86 = scmp.eq.s32.totalorder %s20, 0
    %p87 = por %p85, %p86
    %p88 = scmp.ne.s32.totalorder %s80, %s82
    %p89 = scmp.eq.s32.totalorder %s25, 1
    %p90 = por %p88, %p89
    %p91 = scmp.ne.s32.totalorder %s82, %s83
    %p92 = scmp.eq.s32.totalorder %s25, 0
    %p93 = por %p91, %p92
    %p94 = scmp.ne.s32.totalorder %s82, %s83
    %p95 = scmp.eq.s32.totalorder %s26, 1
    %p96 = por %p94, %p95
    %p98 = scmp.ne.s32.totalorder %s83, %s97
    %p99 = scmp.eq.s32.totalorder %s26, 0
    %p100 = por %p98, %p99
    %s102 = sadd.s32 %s101, 1
    %p105 = scmp.eq.s32.totalorder %s20, 1
    %p106 = scmp.ne.s32.totalorder %s101, %s103
    %p107 = scmp.eq.s32.totalorder %s20, 0
    %p108 = por %p106, %p107
    %p109 = scmp.ne.s32.totalorder %s101, %s103
    %p110 = scmp.eq.s32.totalorder %s25, 1
    %p111 = por %p109, %p110
    %p112 = scmp.ne.s32.totalorder %s103, %s104
    %p113 = scmp.eq.s32.totalorder %s25, 0
    %p114 = por %p112, %p113
    %p115 = scmp.ne.s32.totalorder %s103, %s104
    %p116 = scmp.eq.s32.totalorder %s26, 1
    %p117 = por %p115, %p116
    %p119 = scmp.ne.s32.totalorder %s104, %s118
    %p120 = scmp.eq.s32.totalorder %s26, 0
    %p121 = por %p119, %p120
    %s123 = sadd.s32 %s122, 1
    %p126 = scmp.eq.s32.totalorder %s20, 1
    %p127 = scmp.ne.s32.totalorder %s122, %s124
    %p128 = scmp.eq.s32.totalorder %s20, 0
    %p129 = por %p127, %p128
    %p130 = scmp.ne.s32.totalorder %s122, %s124
    %p131 = scmp.eq.s32.totalorder %s25, 1
    %p132 = por %p130, %p131
    %p133 = scmp.ne.s32.totalorder %s124, %s125
    %p134 = scmp.eq.s32.totalorder %s25, 0
    %p135 = por %p133, %p134
    %p136 = scmp.ne.s32.totalorder %s124, %s125
    %p137 = scmp.eq.s32.totalorder %s26, 1
    %p138 = por %p136, %p137
    %p140 = scmp.ne.s32.totalorder %s125, %s139
    %p141 = scmp.eq.s32.totalorder %s26, 0
    %p142 = por %p140, %p141
    %s144 = sadd.s32 %s143, 1
    %p147 = scmp.eq.s32.totalorder %s20, 1
    %p148 = scmp.ne.s32.totalorder %s143, %s145
    %p149 = scmp.eq.s32.totalorder %s20, 0
    %p150 = por %p148, %p149
    %p151 = scmp.ne.s32.totalorder %s143, %s145
    %p152 = scmp.eq.s32.totalorder %s25, 1
    %p153 = por %p151, %p152
    %p154 = scmp.ne.s32.totalorder %s145, %s146
    %p155 = scmp.eq.s32.totalorder %s25, 0
    %p156 = por %p154, %p155
    %p157 = scmp.ne.s32.totalorder %s145, %s146
    %p158 = scmp.eq.s32.totalorder %s26, 1
    %p159 = por %p157, %p158
    %p161 = scmp.ne.s32.totalorder %s146, %s160
    %p162 = scmp.eq.s32.totalorder %s26, 0
    %p163 = por %p161, %p162
    %s165 = sadd.s32 %s164, 1
    %p168 = scmp.eq.s32.totalorder %s20, 1
    %p169 = scmp.ne.s32.totalorder %s164, %s166
    %p170 = scmp.eq.s32.totalorder %s20, 0
    %p171 = por %p169, %p170
    %p172 = scmp.ne.s32.totalorder %s164, %s166
    %p173 = scmp.eq.s32.totalorder %s25, 1
    %p174 = por %p172, %p173
    %p175 = scmp.ne.s32.totalorder %s166, %s167
    %p176 = scmp.eq.s32.totalorder %s25, 0
    %p177 = por %p175, %p176
    %p178 = scmp.ne.s32.totalorder %s166, %s167
    %p179 = scmp.eq.s32.totalorder %s26, 1
    %p180 = por %p178, %p179
    %p182 = scmp.ne.s32.totalorder %s167, %s181
    %p183 = scmp.eq.s32.totalorder %s26, 0
    %p184 = por %p182, %p183
    %s186 = sadd.s32 %s185, 1
    %p189 = scmp.eq.s32.totalorder %s20, 1
    %p190 = scmp.ne.s32.totalorder %s185, %s187
    %p191 = scmp.eq.s32.totalorder %s20, 0
    %p192 = por %p190, %p191
    %p193 = scmp.ne.s32.totalorder %s185, %s187
    %p194 = scmp.eq.s32.totalorder %s25, 1
    %p195 = por %p193, %p194
    %p196 = scmp.ne.s32.totalorder %s187, %s188
    %p197 = scmp.eq.s32.totalorder %s25, 0
    %p198 = por %p196, %p197
    %p199 = scmp.ne.s32.totalorder %s187, %s188
    %p200 = scmp.eq.s32.totalorder %s26, 1
    %p201 = por %p199, %p200
    %p203 = scmp.ne.s32.totalorder %s188, %s202
    %p204 = scmp.eq.s32.totalorder %s26, 0
    %p205 = por %p203, %p204
    %s207 = sadd.s32 %s206, 1
    %p210 = scmp.eq.s32.totalorder %s20, 1
    %p211 = scmp.ne.s32.totalorder %s206, %s208
    %p212 = scmp.eq.s32.totalorder %s20, 0
    %p213 = por %p211, %p212
    %p214 = scmp.ne.s32.totalorder %s206, %s208
    %p215 = scmp.eq.s32.totalorder %s25, 1
    %p216 = por %p214, %p215
    %p217 = scmp.ne.s32.totalorder %s208, %s209
    %p218 = scmp.eq.s32.totalorder %s25, 0
    %p219 = por %p217, %p218
    %p220 = scmp.ne.s32.totalorder %s208, %s209
    %p221 = scmp.eq.s32.totalorder %s26, 1
    %p222 = por %p220, %p221
    %p224 = scmp.ne.s32.totalorder %s209, %s223
    %p225 = scmp.eq.s32.totalorder %s26, 0
    %p226 = por %p224, %p225
    %s228 = sadd.s32 %s227, 1
    %p231 = scmp.eq.s32.totalorder %s20, 1
    %p232 = scmp.ne.s32.totalorder %s227, %s229
    %p233 = scmp.eq.s32.totalorder %s20, 0
    %p234 = por %p232, %p233
    %p235 = scmp.ne.s32.totalorder %s227, %s229
    %p236 = scmp.eq.s32.totalorder %s25, 1
    %p237 = por %p235, %p236
    %p238 = scmp.ne.s32.totalorder %s229, %s230
    %p239 = scmp.eq.s32.totalorder %s25, 0
    %p240 = por %p238, %p239
    %p241 = scmp.ne.s32.totalorder %s229, %s230
    %p242 = scmp.eq.s32.totalorder %s26, 1
    %p243 = por %p241, %p242
    %p245 = scmp.ne.s32.totalorder %s230, %s244
    %p246 = scmp.eq.s32.totalorder %s26, 0
    %p247 = por %p245, %p246
    %s249 = sadd.s32 %s248, 1
    %p252 = scmp.eq.s32.totalorder %s20, 1
    %p253 = scmp.ne.s32.totalorder %s248, %s250
    %p254 = scmp.eq.s32.totalorder %s20, 0
    %p255 = por %p253, %p254
    %p256 = scmp.ne.s32.totalorder %s248, %s250
    %p257 = scmp.eq.s32.totalorder %s25, 1
    %p258 = por %p256, %p257
    %p259 = scmp.ne.s32.totalorder %s250, %s251
    %p260 = scmp.eq.s32.totalorder %s25, 0
    %p261 = por %p259, %p260
    %p262 = scmp.ne.s32.totalorder %s250, %s251
    %p263 = scmp.eq.s32.totalorder %s26, 1
    %p264 = por %p262, %p263
    %p266 = scmp.ne.s32.totalorder %s251, %s265
    %p267 = scmp.eq.s32.totalorder %s26, 0
    %p268 = por %p266, %p267
    %s270 = sadd.s32 %s269, 1
    %p273 = scmp.eq.s32.totalorder %s20, 1
    %p274 = scmp.ne.s32.totalorder %s269, %s271
    %p275 = scmp.eq.s32.totalorder %s20, 0
    %p276 = por %p274, %p275
    %p277 = scmp.ne.s32.totalorder %s269, %s271
    %p278 = scmp.eq.s32.totalorder %s25, 1
    %p279 = por %p277, %p278
    %p280 = scmp.ne.s32.totalorder %s271, %s272
    %p281 = scmp.eq.s32.totalorder %s25, 0
    %p282 = por %p280, %p281
    %p283 = scmp.ne.s32.totalorder %s271, %s272
    %p284 = scmp.eq.s32.totalorder %s26, 1
    %p285 = por %p283, %p284
    %p287 = scmp.ne.s32.totalorder %s272, %s286
    %p288 = scmp.eq.s32.totalorder %s26, 0
    %p289 = por %p287, %p288
    %s290 = ssub.s32 %s20, %s27
    %p291 = scmp.eq.s32.totalorder %s290, 0
    %s293 = sadd.s32 %s292, 1
    %s294 = scalar_select %p291, %s292, %s293
    %p297 = pneg %p291
    %p298 = scmp.eq.s32.totalorder %s20, 1
    %p299 = por %p297, %p298
    %p300 = scmp.ne.s32.totalorder %s292, %s295
    %p301 = scmp.eq.s32.totalorder %s20, 0
    %p302 = por %p300, %p301
    %p303 = scmp.ne.s32.totalorder %s292, %s295
    %p304 = scmp.eq.s32.totalorder %s25, 1
    %p305 = por %p303, %p304
    %p306 = scmp.ne.s32.totalorder %s295, %s296
    %p307 = scmp.eq.s32.totalorder %s25, 0
    %p308 = por %p306, %p307
    %p309 = scmp.ne.s32.totalorder %s295, %s296
    %p310 = scmp.eq.s32.totalorder %s26, 1
    %p311 = por %p309, %p310
    %p313 = scmp.ne.s32.totalorder %s296, %s312
    %p314 = scmp.eq.s32.totalorder %s26, 0
    %p315 = por %p313, %p314
    %s316 = ssub.s32 %s20, %s27
    %p317 = scmp.eq.s32.totalorder %s316, 0
    %s319 = sadd.s32 %s318, 1
    %s320 = scalar_select %p317, %s318, %s319
    %p323 = pneg %p317
    %p324 = scmp.eq.s32.totalorder %s20, 1
    %p325 = por %p323, %p324
    %p326 = scmp.ne.s32.totalorder %s318, %s321
    %p327 = scmp.eq.s32.totalorder %s20, 0
    %p328 = por %p326, %p327
    %p329 = scmp.ne.s32.totalorder %s318, %s321
    %p330 = scmp.eq.s32.totalorder %s25, 1
    %p331 = por %p329, %p330
    %p332 = scmp.ne.s32.totalorder %s321, %s322
    %p333 = scmp.eq.s32.totalorder %s25, 0
    %p334 = por %p332, %p333
    %p335 = scmp.ne.s32.totalorder %s321, %s322
    %p336 = scmp.eq.s32.totalorder %s26, 1
    %p337 = por %p335, %p336
    %p339 = scmp.ne.s32.totalorder %s322, %s338
    %p340 = scmp.eq.s32.totalorder %s26, 0
    %p341 = por %p339, %p340
    %p342 = scmp.le.s32.totalorder 1, %s20
    %p343 = scmp.lt.s32.totalorder %s20, 3
    %p344 = pnand %p342, %p343
    %p345 = pneg %p344
    // Predicated region
    $region9: #{gaze_selector_forward.2} parent=5 // pred_check
      _
    $region10: #{gaze_selector_forward.2} parent=5 // pred_check_branch
      %347 = sbr.rel (%p344) target = $region12
    $region11: #{gaze_selector_forward.2} parent=5 // pred_region
      %s348 = ssub.s32 %s20, 1
      // Predicated region
      $region13: #{gaze_selector_forward.2} parent=11 // pred_check
        %p349 = pneg %p93
      $region14: #{gaze_selector_forward.2} parent=11 // pred_check_branch
        %351 = sbr.rel (%p349) target = $region16
      $region15: #{gaze_selector_forward.2} parent=11 // pred_region
        _
      $region16: #{gaze_selector_forward.2} parent=11 // pred_fallthru
        _
      // Predicated region
      $region17: #{gaze_selector_forward.2} parent=11 // pred_check
        %p352 = pneg %p114
      $region18: #{gaze_selector_forward.2} parent=11 // pred_check_branch
        %354 = sbr.rel (%p352) target = $region20
      $region19: #{gaze_selector_forward.2} parent=11 // pred_region
        _
      $region20: #{gaze_selector_forward.2} parent=11 // pred_fallthru
        _
      // Predicated region
      $region21: #{gaze_selector_forward.2} parent=11 // pred_check
        %p355 = pneg %p135
      $region22: #{gaze_selector_forward.2} parent=11 // pred_check_branch
        %357 = sbr.rel (%p355) target = $region24
      $region23: #{gaze_selector_forward.2} parent=11 // pred_region
        _
      $region24: #{gaze_selector_forward.2} parent=11 // pred_fallthru
        _
      // Predicated region
      $region25: #{gaze_selector_forward.2} parent=11 // pred_check
        %p358 = pneg %p156
      $region26: #{gaze_selector_forward.2} parent=11 // pred_check_branch
        %360 = sbr.rel (%p358) target = $region28
      $region27: #{gaze_selector_forward.2} parent=11 // pred_region
        _
      $region28: #{gaze_selector_forward.2} parent=11 // pred_fallthru
        _
      // Predicated region
      $region29: #{gaze_selector_forward.2} parent=11 // pred_check
        %p361 = pneg %p177
      $region30: #{gaze_selector_forward.2} parent=11 // pred_check_branch
        %363 = sbr.rel (%p361) target = $region32
      $region31: #{gaze_selector_forward.2} parent=11 // pred_region
        _
      $region32: #{gaze_selector_forward.2} parent=11 // pred_fallthru
        _
      // Predicated region
      $region33: #{gaze_selector_forward.2} parent=11 // pred_check
        %p364 = pneg %p198
      $region34: #{gaze_selector_forward.2} parent=11 // pred_check_branch
        %366 = sbr.rel (%p364) target = $region36
      $region35: #{gaze_selector_forward.2} parent=11 // pred_region
        _
      $region36: #{gaze_selector_forward.2} parent=11 // pred_fallthru
        _
      // Predicated region
      $region37: #{gaze_selector_forward.2} parent=11 // pred_check
        %p367 = pneg %p219
      $region38: #{gaze_selector_forward.2} parent=11 // pred_check_branch
        %369 = sbr.rel (%p367) target = $region40
      $region39: #{gaze_selector_forward.2} parent=11 // pred_region
        _
      $region40: #{gaze_selector_forward.2} parent=11 // pred_fallthru
        _
      // Predicated region
      $region41: #{gaze_selector_forward.2} parent=11 // pred_check
        %p370 = pneg %p240
      $region42: #{gaze_selector_forward.2} parent=11 // pred_check_branch
        %372 = sbr.rel (%p370) target = $region44
      $region43: #{gaze_selector_forward.2} parent=11 // pred_region
        _
      $region44: #{gaze_selector_forward.2} parent=11 // pred_fallthru
        _
      // Predicated region
      $region45: #{gaze_selector_forward.2} parent=11 // pred_check
        %p373 = pneg %p261
      $region46: #{gaze_selector_forward.2} parent=11 // pred_check_branch
        %375 = sbr.rel (%p373) target = $region48
      $region47: #{gaze_selector_forward.2} parent=11 // pred_region
        _
      $region48: #{gaze_selector_forward.2} parent=11 // pred_fallthru
        _
      // Predicated region
      $region49: #{gaze_selector_forward.2} parent=11 // pred_check
        %p376 = pneg %p282
      $region50: #{gaze_selector_forward.2} parent=11 // pred_check_branch
        %378 = sbr.rel (%p376) target = $region52
      $region51: #{gaze_selector_forward.2} parent=11 // pred_region
        _
      $region52: #{gaze_selector_forward.2} parent=11 // pred_fallthru
        _
    $region12: #{gaze_selector_forward.2} parent=5 // pred_fallthru
      _
    %p379 = scmp.lt.s32.totalorder %s20, 2
    // Predicated region
    $region53: #{gaze_selector_forward.2} parent=5 // pred_check
      %p380 = pneg %p379
    $region54: #{gaze_selector_forward.2} parent=5 // pred_check_branch
      %382 = sbr.rel (%p380) target = $region56
    $region55: #{gaze_selector_forward.2} parent=5 // pred_region
      // Predicated region
      $region57: #{gaze_selector_forward.2} parent=55 // pred_check
        %p383 = pneg %p40
      $region58: #{gaze_selector_forward.2} parent=55 // pred_check_branch
        %385 = sbr.rel (%p383) target = $region60
      $region59: #{gaze_selector_forward.2} parent=55 // pred_region
        %p386 = scmp.lt.s32.totalorder %s20, 1
        %s387 = scalar_select %p386, %s20, 1
        %s388 = smul.addr %s387, 12
        %s389 = smul.addr %s388, 4
        %s390 = scalar_lea.vmem %s0, %s389
      $region60: #{gaze_selector_forward.2} parent=55 // pred_fallthru
        _
      // Predicated region
      $region61: #{gaze_selector_forward.2} parent=55 // pred_check
        %p391 = pneg %p66
      $region62: #{gaze_selector_forward.2} parent=55 // pred_check_branch
        %393 = sbr.rel (%p391) target = $region64
      $region63: #{gaze_selector_forward.2} parent=55 // pred_region
        %p394 = scmp.lt.s32.totalorder %s20, 1
        %s395 = scalar_select %p394, %s20, 1
        %s396 = smul.addr %s395, 36
        %s397 = smul.addr %s396, 4
        %s398 = scalar_lea.vmem %s1, %s397
      $region64: #{gaze_selector_forward.2} parent=55 // pred_fallthru
        _
    $region56: #{gaze_selector_forward.2} parent=5 // pred_fallthru
      _
    %p399 = scmp.le.s32.totalorder 1, %s20
    %p400 = scmp.lt.s32.totalorder %s20, 3
    %p401 = pnand %p399, %p400
    %p402 = pneg %p401
    // Predicated region
    $region65: #{gaze_selector_forward.2} parent=5 // pred_check
      _
    $region66: #{gaze_selector_forward.2} parent=5 // pred_check_branch
      %404 = sbr.rel (%p401) target = $region68
    $region67: #{gaze_selector_forward.2} parent=5 // pred_region
      %s405 = ssub.s32 %s20, 1
      %p406 = scmp.lt.s32.totalorder %s25, 1
      %s407 = scalar_select %p406, %s25, 1
      %s408 = smul.addr %s407, 12
      %s409 = smul.addr %s408, 4
      %s410 = scalar_lea.vmem %s0, %s409
      %p411 = pneg %p46
      %p412 = pneg %p43
      %p413 = scmp.lt.s32.totalorder %s25, 1
      %s414 = scalar_select %p413, %s25, 1
      %s415 = smul.addr %s414, 36
      %s416 = smul.addr %s415, 4
      %s417 = scalar_lea.vmem %s1, %s416
      %p418 = pneg %p72
      %p419 = pneg %p69
      %p420 = pneg %p93
      %p421 = pneg %p90
      %p422 = pneg %p114
      %p423 = pneg %p111
      %p424 = pneg %p135
      %p425 = pneg %p132
      %p426 = pneg %p156
      %p427 = pneg %p153
      %p428 = pneg %p177
      %p429 = pneg %p174
      %p430 = pneg %p198
      %p431 = pneg %p195
      %p432 = pneg %p219
      %p433 = pneg %p216
      %p434 = pneg %p240
      %p435 = pneg %p237
      %p436 = pneg %p261
      %p437 = pneg %p258
      %p438 = pneg %p282
      %p439 = pneg %p279
      %p440 = pneg %p308
      %p441 = pneg %p305
      %p442 = scmp.lt.s32.totalorder %s25, 1
      %s443 = scalar_select %p442, %s25, 1
      %s444 = smul.addr %s443, 8
      %s445 = scalar_lea.vmem %s12, %s444
      %p446 = pneg %p334
      %p447 = pneg %p331
      %p448 = scmp.lt.s32.totalorder %s25, 1
      %s449 = scalar_select %p448, %s25, 1
      %s450 = smul.addr %s449, 3
      %s451 = smul.addr %s450, 8
      %s452 = scalar_lea.vmem %s13, %s451
      %p453 = scmp.lt.s32.totalorder %s25, 1
      %s454 = scalar_select %p453, %s25, 1
      %s455 = smul.addr %s454, 12
      %s456 = smul.addr %s455, 4
      %s457 = scalar_lea.vmem %s0, %s456
      %p458 = scmp.lt.s32.totalorder %s25, 1
      %s459 = scalar_select %p458, %s25, 1
      %s460 = smul.addr %s459, 36
      %s461 = smul.addr %s460, 4
      %s462 = scalar_lea.vmem %s1, %s461
      %p463 = scmp.lt.s32.totalorder %s25, 1
      %s464 = scalar_select %p463, %s25, 1
      %s465 = smul.addr %s464, 8
      %s466 = scalar_lea.vmem %s12, %s465
      %p467 = scmp.lt.s32.totalorder %s25, 1
      %s468 = scalar_select %p467, %s25, 1
      %s469 = smul.addr %s468, 3
      %s470 = smul.addr %s469, 8
      %s471 = scalar_lea.vmem %s13, %s470
      %v473 = vld [vmem:[%s457] sm:$0x77]
      %v474 = vld [vmem:[%s457 + $0x8] sm:$0x77]
      %v475 = vld [vmem:[%s457 + $0x10] sm:$0x77]
      %v476 = vld [vmem:[%s457 + $0x18] sm:$0x77]
      %v477 = vld [vmem:[%s457 + $0x20] sm:$0x77]
      %v478 = vld [vmem:[%s457 + $0x28] sm:$0x77]
      %v485 = vcombine.high %v473, %v473
      %v486 = vcombine.high %v474, %v474
      %v487 = vcombine.high %v475, %v475
      %v488 = vcombine.high %v476, %v476
      %v489 = vcombine.high %v477, %v477
      %v490 = vcombine.high %v478, %v478
      %vm497 = vcmask 1042432
      %v498 = vsel %vm497, %v473, 0.0
      %v499 = vsel %vm497, %v485, 0.0
      %v500 = vadd.f32 %v498, %v499
      %501 = vadd.xlane.f32.xlu0 %v500
      %v502 = vpop.xlane.xlu0 %501
      %v503 = vsel %vm497, %v474, 0.0
      %v504 = vsel %vm497, %v486, 0.0
      %v505 = vadd.f32 %v503, %v504
      %506 = vadd.xlane.f32.xlu0 %v505
      %v507 = vpop.xlane.xlu0 %506
      %v508 = vsel %vm497, %v475, 0.0
      %v509 = vsel %vm497, %v487, 0.0
      %v510 = vadd.f32 %v508, %v509
      %511 = vadd.xlane.f32.xlu0 %v510
      %v512 = vpop.xlane.xlu0 %511
      %v513 = vsel %vm497, %v476, 0.0
      %v514 = vsel %vm497, %v488, 0.0
      %v515 = vadd.f32 %v513, %v514
      %516 = vadd.xlane.f32.xlu0 %v515
      %v517 = vpop.xlane.xlu0 %516
      %v518 = vsel %vm497, %v477, 0.0
      %v519 = vsel %vm497, %v489, 0.0
      %v520 = vadd.f32 %v518, %v519
      %521 = vadd.xlane.f32.xlu0 %v520
      %v522 = vpop.xlane.xlu0 %521
      %v523 = vsel %vm497, %v478, 0.0
      %v524 = vsel %vm497, %v490, 0.0
      %v525 = vadd.f32 %v523, %v524
      %526 = vadd.xlane.f32.xlu0 %v525
      %v527 = vpop.xlane.xlu0 %526
      %v528 = vrcp.pop 256.0
      %v529 = vmul.f32 %v502, %v528
      %v530 = vmul.f32 %v507, %v528
      %v531 = vmul.f32 %v512, %v528
      %v532 = vmul.f32 %v517, %v528
      %v533 = vmul.f32 %v522, %v528
      %v534 = vmul.f32 %v527, %v528
      %v535 = vld [vmem:[%s2] sm:$0x7]
      %v536 = vld [vmem:[%s3] sm:$0x1]
      %v538 = vlaneseq
      %v539 = vshrl.u32 %v538, 7
      %v540 = vsub.s32 0, %v539
      %v541 = vrot.slane %v536, %v540
      %v549 = vlaneseq
      %v550 = vand.u32 %v549, 127
      %v551 = vlaneseq
      %v552 = vshrl.u32 %v551, 7
      %v553 = vsub.s32 %v550, %v552
      %v554 = vrot.slane %v529, %v553
      %v555 = vlaneseq
      %v556 = vshrl.u32 %v555, 7
      %v557 = vsub.s32 %v550, %v556
      %v558 = vrot.slane %v530, %v557
      %v559 = vlaneseq
      %v560 = vshrl.u32 %v559, 7
      %v561 = vsub.s32 %v550, %v560
      %v562 = vrot.slane %v531, %v561
      %v563 = vlaneseq
      %v564 = vshrl.u32 %v563, 7
      %v565 = vsub.s32 %v550, %v564
      %v566 = vrot.slane %v532, %v565
      %v567 = vlaneseq
      %v568 = vshrl.u32 %v567, 7
      %v569 = vsub.s32 %v550, %v568
      %v570 = vrot.slane %v533, %v569
      %v571 = vlaneseq
      %v572 = vshrl.u32 %v571, 7
      %v573 = vsub.s32 %v550, %v572
      %v574 = vrot.slane %v534, %v573
      %vm575 = vcmask 1041409
      %v576 = vsel %vm575, %v558, %v554
      %vm577 = vcmask 1042434
      %v578 = vsel %vm577, %v562, %v576
      %vm579 = vcmask 1043459
      %v580 = vsel %vm579, %v566, %v578
      %vm581 = vcmask 1044484
      %v582 = vsel %vm581, %v570, %v580
      %vm583 = vcmask 1045509
      %v584 = vsel %vm583, %v574, %v582
      %vm585 = vcmask 23552
      %v586 = vsel %vm585, %v584, 0
      %v589 = vsel %vm497, %v535, 0
      %591 = vmatprep.subr.mxu0 0.0
      %592 = vmatpush1.msra.mxu0 0.0
      %593 = vmatprep.subr.mxu0 0.0
      %594 = vmatpush1.msra.mxu0 0.0
      %595 = vmatprep.subr.mxu0 0.0
      %596 = vmatpush1.msra.mxu0 0.0
      %597 = vmatprep.subr.mxu0 0.0
      %598 = vmatpush1.msra.mxu0 0.0
      %599 = vmatprep.subr.mxu0 0.0
      %600 = vmatpush1.msra.mxu0 0.0
      %601 = vmatprep.subr.mxu0 0.0
      %602 = vmatpush1.msra.mxu0 0.0
      %603 = vmatprep.subr.mxu0 0.0
      %604 = vmatpush1.msra.mxu0 0.0
      %605 = vmatprep.subr.mxu0 0.0
      %606 = vmatpush1.msra.mxu0 0.0
      %607 = vmatprep.subr.mxu0 0.0
      %608 = vmatpush1.msra.mxu0 0.0
      %609 = vmatprep.subr.mxu0 0.0
      %610 = vmatpush1.msra.mxu0 0.0
      %611 = vmatprep.subr.mxu0 0.0
      %612 = vmatpush1.msra.mxu0 0.0
      %613 = vmatprep.subr.mxu0 0.0
      %614 = vmatpush1.msra.mxu0 0.0
      %615 = vmatprep.subr.mxu0 0.0
      %616 = vmatpush1.msra.mxu0 0.0
      %617 = vmatprep.subr.mxu0 0.0
      %618 = vmatpush1.msra.mxu0 0.0
      %619 = vmatprep.subr.mxu0 0.0
      %620 = vmatpush1.msra.mxu0 0.0
      %621 = vmatprep.subr.mxu0 0.0
      %622 = vmatpush1.msra.mxu0 %v589
      %623 = vmatprep.subr.mxu0 0.0
      %624 = vmatpush2.msra.mxu0 0.0
      %625 = vmatprep.subr.mxu0 0.0
      %626 = vmatpush2.msra.mxu0 0.0
      %627 = vmatprep.subr.mxu0 0.0
      %628 = vmatpush2.msra.mxu0 0.0
      %629 = vmatprep.subr.mxu0 0.0
      %630 = vmatpush2.msra.mxu0 0.0
      %631 = vmatprep.subr.mxu0 0.0
      %632 = vmatpush2.msra.mxu0 0.0
      %633 = vmatprep.subr.mxu0 0.0
      %634 = vmatpush2.msra.mxu0 0.0
      %635 = vmatprep.subr.mxu0 0.0
      %636 = vmatpush2.msra.mxu0 0.0
      %637 = vmatprep.subr.mxu0 0.0
      %638 = vmatpush2.msra.mxu0 0.0
      %639 = vmatprep.subr.mxu0 0.0
      %640 = vmatpush2.msra.mxu0 0.0
      %641 = vmatprep.subr.mxu0 0.0
      %642 = vmatpush2.msra.mxu0 0.0
      %643 = vmatprep.subr.mxu0 0.0
      %644 = vmatpush2.msra.mxu0 0.0
      %645 = vmatprep.subr.mxu0 0.0
      %646 = vmatpush2.msra.mxu0 0.0
      %647 = vmatprep.subr.mxu0 0.0
      %648 = vmatpush2.msra.mxu0 0.0
      %649 = vmatprep.subr.mxu0 0.0
      %650 = vmatpush2.msra.mxu0 0.0
      %651 = vmatprep.subr.mxu0 0.0
      %652 = vmatpush2.msra.mxu0 0.0
      %653 = vmatprep.subr.mxu0 0.0
      %654 = vmatpush2.msra.mxu0 0.0
      %655 = vmatprep.mubr.f32.mxu0 0.0
      %656 = vmatmul.mubr.f32.gmra.mxu0 %v586
      %v657 = vpop.f32.mrf.mxu0
      %v658 = vadd.f32 %v541, %v657
      %v659 = vpop.f32.mrf.mxu0
      %660 = vdwg.mxu0
      %v661 = vpack.c.bf16 %v658, %v658
      %v662 = vld [vmem:[%s4] sm:$0xf]
      %v663 = vld [vmem:[%s4 + $0x4] sm:$0xf]
      %v664 = vld [vmem:[%s4 + $0x8] sm:$0xf]
      %v665 = vld [vmem:[%s4 + $0xc] sm:$0xf]
      %v666 = vld [vmem:[%s4 + $0x10] sm:$0xf]
      %v667 = vld [vmem:[%s4 + $0x14] sm:$0xf]
      %v668 = vld [vmem:[%s4 + $0x18] sm:$0xf]
      %v669 = vld [vmem:[%s4 + $0x1c] sm:$0xf]
      %v670 = vld [vmem:[%s5] sm:$0x1]
      %v672 = vlaneseq
      %v673 = vshrl.u32 %v672, 7
      %v674 = vsub.s32 0, %v673
      %v675 = vrot.slane %v670, %v674
      %v685 = vunpack.c.l.b16 %v662
      %v686 = vunpack.c.l.b16 %v663
      %v687 = vunpack.c.l.b16 %v664
      %v688 = vunpack.c.l.b16 %v665
      %v689 = vunpack.c.l.b16 %v666
      %v690 = vunpack.c.l.b16 %v667
      %v691 = vunpack.c.l.b16 %v668
      %v692 = vunpack.c.l.b16 %v669
      %v693 = vpack.c.b16 %v686, %v685
      %v694 = vpack.c.b16 %v688, %v687
      %v695 = vpack.c.b16 %v690, %v689
      %v696 = vpack.c.b16 %v692, %v691
      %vm701 = vcmask 523264
      %v703 = vsel %vm701, %v661, 0
      %705 = vmatprep.subr.bf16.mxu0 0
      %706 = vmatpush1.bf16.msra.mxu0 0
      %707 = vmatprep.subr.bf16.mxu0 0
      %708 = vmatpush1.bf16.msra.mxu0 0
      %709 = vmatprep.subr.bf16.mxu0 0
      %710 = vmatpush1.bf16.msra.mxu0 0
      %711 = vmatprep.subr.bf16.mxu0 0
      %712 = vmatpush1.bf16.msra.mxu0 0
      %713 = vmatprep.subr.bf16.mxu0 0
      %714 = vmatpush1.bf16.msra.mxu0 %v696
      %715 = vmatprep.subr.bf16.mxu0 0
      %716 = vmatpush1.bf16.msra.mxu0 %v695
      %717 = vmatprep.subr.bf16.mxu0 0
      %718 = vmatpush1.bf16.msra.mxu0 %v694
      %719 = vmatprep.subr.bf16.mxu0 0
      %720 = vmatpush1.bf16.msra.mxu0 %v693
      %721 = vmatprep.subr.bf16.mxu0 0
      %722 = vmatpush2.bf16.msra.mxu0 0
      %723 = vmatprep.subr.bf16.mxu0 0
      %724 = vmatpush2.bf16.msra.mxu0 0
      %725 = vmatprep.subr.bf16.mxu0 0
      %726 = vmatpush2.bf16.msra.mxu0 0
      %727 = vmatprep.subr.bf16.mxu0 0
      %728 = vmatpush2.bf16.msra.mxu0 0
      %729 = vmatprep.subr.bf16.mxu0 0
      %730 = vmatpush2.bf16.msra.mxu0 0
      %731 = vmatprep.subr.bf16.mxu0 0
      %732 = vmatpush2.bf16.msra.mxu0 0
      %733 = vmatprep.subr.bf16.mxu0 0
      %734 = vmatpush2.bf16.msra.mxu0 0
      %735 = vmatprep.subr.bf16.mxu0 0
      %736 = vmatpush2.bf16.msra.mxu0 0
      %737 = vmatprep.mubr.bf16.mxu0 0
      %738 = vmatmul.mubr.bf16.gmra.mxu0 %v703
      %v739 = vpop.f32.mrf.mxu0
      %v740 = vadd.f32 %v675, %v739
      %v741 = vpop.f32.mrf.mxu0
      %v742 = vpop.f32.mrf.mxu0
      %v743 = vpop.f32.mrf.mxu0
      %744 = vdwg.mxu0
      %745 = vst [vmem:[%s466] sm:$0x3f] %v740
      %v746 = vld [vmem:[%s462] sm:$0xf]
      %v747 = vld [vmem:[%s462 + $0x4] sm:$0xf]
      %v748 = vld [vmem:[%s462 + $0x8] sm:$0xf]
      %v749 = vld [vmem:[%s462 + $0xc] sm:$0xf]
      %v750 = vld [vmem:[%s462 + $0x10] sm:$0xf]
      %v751 = vld [vmem:[%s462 + $0x14] sm:$0xf]
      %v752 = vld [vmem:[%s462 + $0x18] sm:$0xf]
      %v753 = vld [vmem:[%s462 + $0x1c] sm:$0xf]
      %v754 = vld [vmem:[%s462 + $0x20] sm:$0xf]
      %v755 = vld [vmem:[%s462 + $0x24] sm:$0xf]
      %v756 = vld [vmem:[%s462 + $0x28] sm:$0xf]
      %v757 = vld [vmem:[%s462 + $0x2c] sm:$0xf]
      %v758 = vld [vmem:[%s462 + $0x30] sm:$0xf]
      %v759 = vld [vmem:[%s462 + $0x34] sm:$0xf]
      %v760 = vld [vmem:[%s462 + $0x38] sm:$0xf]
      %v761 = vld [vmem:[%s462 + $0x3c] sm:$0xf]
      %v762 = vld [vmem:[%s462 + $0x40] sm:$0xf]
      %v763 = vld [vmem:[%s462 + $0x44] sm:$0xf]
      %v764 = vld [vmem:[%s462 + $0x48] sm:$0xf]
      %v765 = vld [vmem:[%s462 + $0x4c] sm:$0xf]
      %v766 = vld [vmem:[%s462 + $0x50] sm:$0xf]
      %v767 = vld [vmem:[%s462 + $0x54] sm:$0xf]
      %v768 = vld [vmem:[%s462 + $0x58] sm:$0xf]
      %v769 = vld [vmem:[%s462 + $0x5c] sm:$0xf]
      %v770 = vld [vmem:[%s462 + $0x60] sm:$0xf]
      %v771 = vld [vmem:[%s462 + $0x64] sm:$0xf]
      %v772 = vld [vmem:[%s462 + $0x68] sm:$0xf]
      %v773 = vld [vmem:[%s462 + $0x6c] sm:$0xf]
      %v774 = vld [vmem:[%s462 + $0x70] sm:$0xf]
      %v775 = vld [vmem:[%s462 + $0x74] sm:$0xf]
      %v776 = vld [vmem:[%s462 + $0x78] sm:$0xf]
      %v777 = vld [vmem:[%s462 + $0x7c] sm:$0xf]
      %v778 = vld [vmem:[%s462 + $0x80] sm:$0xf]
      %v779 = vld [vmem:[%s462 + $0x84] sm:$0xf]
      %v780 = vld [vmem:[%s462 + $0x88] sm:$0xf]
      %v781 = vld [vmem:[%s462 + $0x8c] sm:$0xf]
      %v782 = vld [vmem:[%s6] sm:$0xff]
      %v783 = vld [vmem:[%s6 + $0x8] sm:$0xff]
      %v784 = vld [vmem:[%s6 + $0x10] sm:$0xff]
      %v785 = vld [vmem:[%s6 + $0x18] sm:$0xff]
      %v786 = vld [vmem:[%s6 + $0x20] sm:$0xff]
      %v787 = vld [vmem:[%s6 + $0x28] sm:$0xff]
      %v788 = vld [vmem:[%s6 + $0x30] sm:$0xff]
      %v789 = vld [vmem:[%s6 + $0x38] sm:$0xff]
      %v790 = vld [vmem:[%s6 + $0x40] sm:$0xff]
      %v791 = vld [vmem:[%s6 + $0x48] sm:$0xff]
      %v792 = vld [vmem:[%s6 + $0x50] sm:$0x11]
      %v829 = vunpack.c.l.b16 %v746
      %v830 = vunpack.c.l.b16 %v747
      %v831 = vunpack.c.l.b16 %v748
      %v832 = vunpack.c.l.b16 %v749
      %v833 = vunpack.c.l.b16 %v750
      %v834 = vunpack.c.l.b16 %v751
      %v835 = vunpack.c.l.b16 %v752
      %v836 = vunpack.c.l.b16 %v753
      %v837 = vunpack.c.l.b16 %v754
      %v838 = vunpack.c.l.b16 %v755
      %v839 = vunpack.c.l.b16 %v756
      %v840 = vunpack.c.l.b16 %v757
      %v841 = vunpack.c.l.b16 %v758
      %v842 = vunpack.c.l.b16 %v759
      %v843 = vunpack.c.l.b16 %v760
      %v844 = vunpack.c.l.b16 %v761
      %v845 = vunpack.c.l.b16 %v762
      %v846 = vunpack.c.l.b16 %v763
      %v847 = vunpack.c.l.b16 %v764
      %v848 = vunpack.c.l.b16 %v765
      %v849 = vunpack.c.l.b16 %v766
      %v850 = vunpack.c.l.b16 %v767
      %v851 = vunpack.c.l.b16 %v768
      %v852 = vunpack.c.l.b16 %v769
      %v853 = vunpack.c.l.b16 %v770
      %v854 = vunpack.c.l.b16 %v771
      %v855 = vunpack.c.l.b16 %v772
      %v856 = vunpack.c.l.b16 %v773
      %v857 = vunpack.c.l.b16 %v774
      %v858 = vunpack.c.l.b16 %v775
      %v859 = vunpack.c.l.b16 %v776
      %v860 = vunpack.c.l.b16 %v777
      %v861 = vunpack.c.l.b16 %v778
      %v862 = vunpack.c.l.b16 %v779
      %v863 = vunpack.c.l.b16 %v780
      %v864 = vunpack.c.l.b16 %v781
      %v865 = vpack.c.b16 %v830, %v829
      %v866 = vpack.c.b16 %v832, %v831
      %v867 = vpack.c.b16 %v834, %v833
      %v868 = vpack.c.b16 %v836, %v835
      %v869 = vpack.c.b16 %v838, %v837
      %v870 = vpack.c.b16 %v840, %v839
      %v871 = vpack.c.b16 %v842, %v841
      %v872 = vpack.c.b16 %v844, %v843
      %v873 = vpack.c.b16 %v846, %v845
      %v874 = vpack.c.b16 %v848, %v847
      %v875 = vpack.c.b16 %v850, %v849
      %v876 = vpack.c.b16 %v852, %v851
      %v877 = vpack.c.b16 %v854, %v853
      %v878 = vpack.c.b16 %v856, %v855
      %v879 = vpack.c.b16 %v858, %v857
      %v880 = vpack.c.b16 %v860, %v859
      %v881 = vpack.c.b16 %v862, %v861
      %v882 = vpack.c.b16 %v864, %v863
      %v894 = vunpack.c.l.b16 %v782
      %v895 = vunpack.c.h.b16 %v782
      %v896 = vunpack.c.l.b16 %v783
      %v897 = vunpack.c.h.b16 %v783
      %v898 = vunpack.c.l.b16 %v784
      %v899 = vunpack.c.h.b16 %v784
      %v900 = vunpack.c.l.b16 %v785
      %v901 = vunpack.c.h.b16 %v785
      %v902 = vunpack.c.l.b16 %v786
      %v903 = vunpack.c.h.b16 %v786
      %v904 = vunpack.c.l.b16 %v787
      %v905 = vunpack.c.h.b16 %v787
      %v906 = vunpack.c.l.b16 %v788
      %v907 = vunpack.c.h.b16 %v788
      %v908 = vunpack.c.l.b16 %v789
      %v909 = vunpack.c.h.b16 %v789
      %v910 = vunpack.c.l.b16 %v790
      %v911 = vunpack.c.h.b16 %v790
      %v912 = vunpack.c.l.b16 %v791
      %v913 = vunpack.c.h.b16 %v791
      %v914 = vunpack.c.l.b16 %v792
      %v915 = vunpack.c.h.b16 %v792
      %v916 = vpack.c.b16 %v896, %v894
      %v917 = vpack.c.b16 %v897, %v895
      %v918 = vpack.c.b16 %v900, %v898
      %v919 = vpack.c.b16 %v901, %v899
      %v920 = vpack.c.b16 %v904, %v902
      %v921 = vpack.c.b16 %v905, %v903
      %v922 = vpack.c.b16 %v908, %v906
      %v923 = vpack.c.b16 %v909, %v907
      %v924 = vpack.c.b16 %v912, %v910
      %v925 = vpack.c.b16 %v913, %v911
      %v926 = vpack.c.b16 %v914, %v914
      %v927 = vpack.c.b16 %v915, %v915
      %vm938 = vcmask 662528
      %v940 = vsel %vm938, %v865, 0
      %v943 = vsel %vm938, %v866, 0
      %v946 = vsel %vm938, %v867, 0
      %v949 = vsel %vm938, %v868, 0
      %v952 = vsel %vm938, %v869, 0
      %v955 = vsel %vm938, %v870, 0
      %v958 = vsel %vm938, %v871, 0
      %v961 = vsel %vm938, %v872, 0
      %v964 = vsel %vm938, %v873, 0
      %v967 = vsel %vm938, %v874, 0
      %v970 = vsel %vm938, %v875, 0
      %v973 = vsel %vm938, %v876, 0
      %v976 = vsel %vm938, %v877, 0
      %v979 = vsel %vm938, %v878, 0
      %v982 = vsel %vm938, %v879, 0
      %v985 = vsel %vm938, %v880, 0
      %v988 = vsel %vm938, %v881, 0
      %v991 = vsel %vm938, %v882, 0
      %vm993 = vcmask 1040384
      %v994 = vsel 0, 4294967295, 65535
      %v995 = vsel %vm993, %v994, 0
      %v997 = vand.u32 %v926, %v995
      %v1000 = vand.u32 %v927, %v995
      %1002 = vmatprep.subr.bf16.mxu0 0
      %1003 = vmatpush1.bf16.msra.mxu0 0
      %1004 = vmatprep.subr.bf16.mxu0 0
      %1005 = vmatpush1.bf16.msra.mxu0 0
      %1006 = vmatprep.subr.bf16.mxu0 %v1000
      %1007 = vmatpush1.bf16.msra.mxu0 %v997
      %1008 = vmatprep.subr.bf16.mxu0 %v925
      %1009 = vmatpush1.bf16.msra.mxu0 %v924
      %1010 = vmatprep.subr.bf16.mxu0 %v923
      %1011 = vmatpush1.bf16.msra.mxu0 %v922
      %1012 = vmatprep.subr.bf16.mxu0 %v921
      %1013 = vmatpush1.bf16.msra.mxu0 %v920
      %1014 = vmatprep.subr.bf16.mxu0 %v919
      %1015 = vmatpush1.bf16.msra.mxu0 %v918
      %1016 = vmatprep.subr.bf16.mxu0 %v917
      %1017 = vmatpush1.bf16.msra.mxu0 %v916
      %1018 = vmatprep.subr.bf16.mxu0 0
      %1019 = vmatpush2.bf16.msra.mxu0 0
      %1020 = vmatprep.subr.bf16.mxu0 0
      %1021 = vmatpush2.bf16.msra.mxu0 0
      %1022 = vmatprep.subr.bf16.mxu0 0
      %1023 = vmatpush2.bf16.msra.mxu0 0
      %1024 = vmatprep.subr.bf16.mxu0 0
      %1025 = vmatpush2.bf16.msra.mxu0 0
      %1026 = vmatprep.subr.bf16.mxu0 0
      %1027 = vmatpush2.bf16.msra.mxu0 0
      %1028 = vmatprep.subr.bf16.mxu0 0
      %1029 = vmatpush2.bf16.msra.mxu0 0
      %1030 = vmatprep.subr.bf16.mxu0 0
      %1031 = vmatpush2.bf16.msra.mxu0 0
      %1032 = vmatprep.subr.bf16.mxu0 0
      %1033 = vmatpush2.bf16.msra.mxu0 0
      %1034 = vmatprep.mubr.bf16.mxu0 0
      %1035 = vmatmul.mubr.bf16.gmra.mxu0 %v940
      %v1036 = vpop.f32.mrf.mxu0
      %v1037 = vadd.f32 0.0, %v1036
      %v1038 = vpop.f32.mrf.mxu0
      %v1039 = vadd.f32 0.0, %v1038
      %v1040 = vpop.f32.mrf.mxu0
      %v1041 = vadd.f32 0.0, %v1040
      %v1042 = vpop.f32.mrf.mxu0
      %v1043 = vadd.f32 0.0, %v1042
      %1044 = vmatprep.mubr.bf16.mxu0 0
      %1045 = vmatmul.mubr.bf16.gmra.mxu0 %v943
      %v1046 = vpop.f32.mrf.mxu0
      %v1047 = vadd.f32 0.0, %v1046
      %v1048 = vpop.f32.mrf.mxu0
      %v1049 = vadd.f32 0.0, %v1048
      %v1050 = vpop.f32.mrf.mxu0
      %v1051 = vadd.f32 0.0, %v1050
      %v1052 = vpop.f32.mrf.mxu0
      %v1053 = vadd.f32 0.0, %v1052
      %1054 = vmatprep.mubr.bf16.mxu0 0
      %1055 = vmatmul.mubr.bf16.gmra.mxu0 %v946
      %v1056 = vpop.f32.mrf.mxu0
      %v1057 = vadd.f32 0.0, %v1056
      %v1058 = vpop.f32.mrf.mxu0
      %v1059 = vadd.f32 0.0, %v1058
      %v1060 = vpop.f32.mrf.mxu0
      %v1061 = vadd.f32 0.0, %v1060
      %v1062 = vpop.f32.mrf.mxu0
      %v1063 = vadd.f32 0.0, %v1062
      %1064 = vmatprep.mubr.bf16.mxu0 0
      %1065 = vmatmul.mubr.bf16.gmra.mxu0 %v949
      %v1066 = vpop.f32.mrf.mxu0
      %v1067 = vadd.f32 0.0, %v1066
      %v1068 = vpop.f32.mrf.mxu0
      %v1069 = vadd.f32 0.0, %v1068
      %v1070 = vpop.f32.mrf.mxu0
      %v1071 = vadd.f32 0.0, %v1070
      %v1072 = vpop.f32.mrf.mxu0
      %v1073 = vadd.f32 0.0, %v1072
      %1074 = vmatprep.mubr.bf16.mxu0 0
      %1075 = vmatmul.mubr.bf16.gmra.mxu0 %v952
      %v1076 = vpop.f32.mrf.mxu0
      %v1077 = vadd.f32 0.0, %v1076
      %v1078 = vpop.f32.mrf.mxu0
      %v1079 = vadd.f32 0.0, %v1078
      %v1080 = vpop.f32.mrf.mxu0
      %v1081 = vadd.f32 0.0, %v1080
      %v1082 = vpop.f32.mrf.mxu0
      %v1083 = vadd.f32 0.0, %v1082
      %1084 = vmatprep.mubr.bf16.mxu0 0
      %1085 = vmatmul.mubr.bf16.gmra.mxu0 %v955
      %v1086 = vpop.f32.mrf.mxu0
      %v1087 = vadd.f32 0.0, %v1086
      %v1088 = vpop.f32.mrf.mxu0
      %v1089 = vadd.f32 0.0, %v1088
      %v1090 = vpop.f32.mrf.mxu0
      %v1091 = vadd.f32 0.0, %v1090
      %v1092 = vpop.f32.mrf.mxu0
      %v1093 = vadd.f32 0.0, %v1092
      %1094 = vmatprep.mubr.bf16.mxu0 0
      %1095 = vmatmul.mubr.bf16.gmra.mxu0 %v958
      %v1096 = vpop.f32.mrf.mxu0
      %v1097 = vadd.f32 0.0, %v1096
      %v1098 = vpop.f32.mrf.mxu0
      %v1099 = vadd.f32 0.0, %v1098
      %v1100 = vpop.f32.mrf.mxu0
      %v1101 = vadd.f32 0.0, %v1100
      %v1102 = vpop.f32.mrf.mxu0
      %v1103 = vadd.f32 0.0, %v1102
      %1104 = vmatprep.mubr.bf16.mxu0 0
      %1105 = vmatmul.mubr.bf16.gmra.mxu0 %v961
      %v1106 = vpop.f32.mrf.mxu0
      %v1107 = vadd.f32 0.0, %v1106
      %v1108 = vpop.f32.mrf.mxu0
      %v1109 = vadd.f32 0.0, %v1108
      %v1110 = vpop.f32.mrf.mxu0
      %v1111 = vadd.f32 0.0, %v1110
      %v1112 = vpop.f32.mrf.mxu0
      %v1113 = vadd.f32 0.0, %v1112
      %1114 = vmatprep.mubr.bf16.mxu0 0
      %1115 = vmatmul.mubr.bf16.gmra.mxu0 %v964
      %v1116 = vpop.f32.mrf.mxu0
      %v1117 = vadd.f32 0.0, %v1116
      %v1118 = vpop.f32.mrf.mxu0
      %v1119 = vadd.f32 0.0, %v1118
      %v1120 = vpop.f32.mrf.mxu0
      %v1121 = vadd.f32 0.0, %v1120
      %v1122 = vpop.f32.mrf.mxu0
      %v1123 = vadd.f32 0.0, %v1122
      %1124 = vmatprep.mubr.bf16.mxu0 0
      %1125 = vmatmul.mubr.bf16.gmra.mxu0 %v967
      %v1126 = vpop.f32.mrf.mxu0
      %v1127 = vadd.f32 0.0, %v1126
      %v1128 = vpop.f32.mrf.mxu0
      %v1129 = vadd.f32 0.0, %v1128
      %v1130 = vpop.f32.mrf.mxu0
      %v1131 = vadd.f32 0.0, %v1130
      %v1132 = vpop.f32.mrf.mxu0
      %v1133 = vadd.f32 0.0, %v1132
      %1134 = vmatprep.mubr.bf16.mxu0 0
      %1135 = vmatmul.mubr.bf16.gmra.mxu0 %v970
      %v1136 = vpop.f32.mrf.mxu0
      %v1137 = vadd.f32 0.0, %v1136
      %v1138 = vpop.f32.mrf.mxu0
      %v1139 = vadd.f32 0.0, %v1138
      %v1140 = vpop.f32.mrf.mxu0
      %v1141 = vadd.f32 0.0, %v1140
      %v1142 = vpop.f32.mrf.mxu0
      %v1143 = vadd.f32 0.0, %v1142
      %1144 = vmatprep.mubr.bf16.mxu0 0
      %1145 = vmatmul.mubr.bf16.gmra.mxu0 %v973
      %v1146 = vpop.f32.mrf.mxu0
      %v1147 = vadd.f32 0.0, %v1146
      %v1148 = vpop.f32.mrf.mxu0
      %v1149 = vadd.f32 0.0, %v1148
      %v1150 = vpop.f32.mrf.mxu0
      %v1151 = vadd.f32 0.0, %v1150
      %v1152 = vpop.f32.mrf.mxu0
      %v1153 = vadd.f32 0.0, %v1152
      %1154 = vmatprep.mubr.bf16.mxu0 0
      %1155 = vmatmul.mubr.bf16.gmra.mxu0 %v976
      %v1156 = vpop.f32.mrf.mxu0
      %v1157 = vadd.f32 0.0, %v1156
      %v1158 = vpop.f32.mrf.mxu0
      %v1159 = vadd.f32 0.0, %v1158
      %v1160 = vpop.f32.mrf.mxu0
      %v1161 = vadd.f32 0.0, %v1160
      %v1162 = vpop.f32.mrf.mxu0
      %v1163 = vadd.f32 0.0, %v1162
      %1164 = vmatprep.mubr.bf16.mxu0 0
      %1165 = vmatmul.mubr.bf16.gmra.mxu0 %v979
      %v1166 = vpop.f32.mrf.mxu0
      %v1167 = vadd.f32 0.0, %v1166
      %v1168 = vpop.f32.mrf.mxu0
      %v1169 = vadd.f32 0.0, %v1168
      %v1170 = vpop.f32.mrf.mxu0
      %v1171 = vadd.f32 0.0, %v1170
      %v1172 = vpop.f32.mrf.mxu0
      %v1173 = vadd.f32 0.0, %v1172
      %1174 = vmatprep.mubr.bf16.mxu0 0
      %1175 = vmatmul.mubr.bf16.gmra.mxu0 %v982
      %v1176 = vpop.f32.mrf.mxu0
      %v1177 = vadd.f32 0.0, %v1176
      %v1178 = vpop.f32.mrf.mxu0
      %v1179 = vadd.f32 0.0, %v1178
      %v1180 = vpop.f32.mrf.mxu0
      %v1181 = vadd.f32 0.0, %v1180
      %v1182 = vpop.f32.mrf.mxu0
      %v1183 = vadd.f32 0.0, %v1182
      %1184 = vmatprep.mubr.bf16.mxu0 0
      %1185 = vmatmul.mubr.bf16.gmra.mxu0 %v985
      %v1186 = vpop.f32.mrf.mxu0
      %v1187 = vadd.f32 0.0, %v1186
      %v1188 = vpop.f32.mrf.mxu0
      %v1189 = vadd.f32 0.0, %v1188
      %v1190 = vpop.f32.mrf.mxu0
      %v1191 = vadd.f32 0.0, %v1190
      %v1192 = vpop.f32.mrf.mxu0
      %v1193 = vadd.f32 0.0, %v1192
      %1194 = vmatprep.mubr.bf16.mxu0 0
      %1195 = vmatmul.mubr.bf16.gmra.mxu0 %v988
      %v1196 = vpop.f32.mrf.mxu0
      %v1197 = vadd.f32 0.0, %v1196
      %v1198 = vpop.f32.mrf.mxu0
      %v1199 = vadd.f32 0.0, %v1198
      %v1200 = vpop.f32.mrf.mxu0
      %v1201 = vadd.f32 0.0, %v1200
      %v1202 = vpop.f32.mrf.mxu0
      %v1203 = vadd.f32 0.0, %v1202
      %1204 = vmatprep.mubr.bf16.mxu0 0
      %1205 = vmatmul.mubr.bf16.gmra.mxu0 %v991
      %v1206 = vpop.f32.mrf.mxu0
      %v1207 = vadd.f32 0.0, %v1206
      %v1208 = vpop.f32.mrf.mxu0
      %v1209 = vadd.f32 0.0, %v1208
      %v1210 = vpop.f32.mrf.mxu0
      %v1211 = vadd.f32 0.0, %v1210
      %v1212 = vpop.f32.mrf.mxu0
      %v1213 = vadd.f32 0.0, %v1212
      %1214 = vdwg.mxu0
      %v1215 = vld [vmem:[%s7] sm:$0xff]
      %v1216 = vld [vmem:[%s7 + $0x8] sm:$0xff]
      %v1217 = vld [vmem:[%s7 + $0x10] sm:$0xff]
      %v1218 = vld [vmem:[%s7 + $0x18] sm:$0xff]
      %v1219 = vadd.f32 %v1037, %v1215
      %v1220 = vadd.f32 %v1039, %v1216
      %v1221 = vadd.f32 %v1041, %v1217
      %v1222 = vadd.f32 %v1043, %v1218
      %v1223 = vadd.f32 %v1047, %v1215
      %v1224 = vadd.f32 %v1049, %v1216
      %v1225 = vadd.f32 %v1051, %v1217
      %v1226 = vadd.f32 %v1053, %v1218
      %v1227 = vadd.f32 %v1057, %v1215
      %v1228 = vadd.f32 %v1059, %v1216
      %v1229 = vadd.f32 %v1061, %v1217
      %v1230 = vadd.f32 %v1063, %v1218
      %v1231 = vadd.f32 %v1067, %v1215
      %v1232 = vadd.f32 %v1069, %v1216
      %v1233 = vadd.f32 %v1071, %v1217
      %v1234 = vadd.f32 %v1073, %v1218
      %v1235 = vadd.f32 %v1077, %v1215
      %v1236 = vadd.f32 %v1079, %v1216
      %v1237 = vadd.f32 %v1081, %v1217
      %v1238 = vadd.f32 %v1083, %v1218
      %v1239 = vadd.f32 %v1087, %v1215
      %v1240 = vadd.f32 %v1089, %v1216
      %v1241 = vadd.f32 %v1091, %v1217
      %v1242 = vadd.f32 %v1093, %v1218
      %v1243 = vadd.f32 %v1097, %v1215
      %v1244 = vadd.f32 %v1099, %v1216
      %v1245 = vadd.f32 %v1101, %v1217
      %v1246 = vadd.f32 %v1103, %v1218
      %v1247 = vadd.f32 %v1107, %v1215
      %v1248 = vadd.f32 %v1109, %v1216
      %v1249 = vadd.f32 %v1111, %v1217
      %v1250 = vadd.f32 %v1113, %v1218
      %v1251 = vadd.f32 %v1117, %v1215
      %v1252 = vadd.f32 %v1119, %v1216
      %v1253 = vadd.f32 %v1121, %v1217
      %v1254 = vadd.f32 %v1123, %v1218
      %v1255 = vadd.f32 %v1127, %v1215
      %v1256 = vadd.f32 %v1129, %v1216
      %v1257 = vadd.f32 %v1131, %v1217
      %v1258 = vadd.f32 %v1133, %v1218
      %v1259 = vadd.f32 %v1137, %v1215
      %v1260 = vadd.f32 %v1139, %v1216
      %v1261 = vadd.f32 %v1141, %v1217
      %v1262 = vadd.f32 %v1143, %v1218
      %v1263 = vadd.f32 %v1147, %v1215
      %v1264 = vadd.f32 %v1149, %v1216
      %v1265 = vadd.f32 %v1151, %v1217
      %v1266 = vadd.f32 %v1153, %v1218
      %v1267 = vadd.f32 %v1157, %v1215
      %v1268 = vadd.f32 %v1159, %v1216
      %v1269 = vadd.f32 %v1161, %v1217
      %v1270 = vadd.f32 %v1163, %v1218
      %v1271 = vadd.f32 %v1167, %v1215
      %v1272 = vadd.f32 %v1169, %v1216
      %v1273 = vadd.f32 %v1171, %v1217
      %v1274 = vadd.f32 %v1173, %v1218
      %v1275 = vadd.f32 %v1177, %v1215
      %v1276 = vadd.f32 %v1179, %v1216
      %v1277 = vadd.f32 %v1181, %v1217
      %v1278 = vadd.f32 %v1183, %v1218
      %v1279 = vadd.f32 %v1187, %v1215
      %v1280 = vadd.f32 %v1189, %v1216
      %v1281 = vadd.f32 %v1191, %v1217
      %v1282 = vadd.f32 %v1193, %v1218
      %v1283 = vadd.f32 %v1197, %v1215
      %v1284 = vadd.f32 %v1199, %v1216
      %v1285 = vadd.f32 %v1201, %v1217
      %v1286 = vadd.f32 %v1203, %v1218
      %v1287 = vadd.f32 %v1207, %v1215
      %v1288 = vadd.f32 %v1209, %v1216
      %v1289 = vadd.f32 %v1211, %v1217
      %v1290 = vadd.f32 %v1213, %v1218
      %v1291 = vmax.f32 %v1219, 0.0
      %v1292 = vmax.f32 %v1220, 0.0
      %v1293 = vmax.f32 %v1221, 0.0
      %v1294 = vmax.f32 %v1222, 0.0
      %v1295 = vmax.f32 %v1223, 0.0
      %v1296 = vmax.f32 %v1224, 0.0
      %v1297 = vmax.f32 %v1225, 0.0
      %v1298 = vmax.f32 %v1226, 0.0
      %v1299 = vmax.f32 %v1227, 0.0
      %v1300 = vmax.f32 %v1228, 0.0
      %v1301 = vmax.f32 %v1229, 0.0
      %v1302 = vmax.f32 %v1230, 0.0
      %v1303 = vmax.f32 %v1231, 0.0
      %v1304 = vmax.f32 %v1232, 0.0
      %v1305 = vmax.f32 %v1233, 0.0
      %v1306 = vmax.f32 %v1234, 0.0
      %v1307 = vmax.f32 %v1235, 0.0
      %v1308 = vmax.f32 %v1236, 0.0
      %v1309 = vmax.f32 %v1237, 0.0
      %v1310 = vmax.f32 %v1238, 0.0
      %v1311 = vmax.f32 %v1239, 0.0
      %v1312 = vmax.f32 %v1240, 0.0
      %v1313 = vmax.f32 %v1241, 0.0
      %v1314 = vmax.f32 %v1242, 0.0
      %v1315 = vmax.f32 %v1243, 0.0
      %v1316 = vmax.f32 %v1244, 0.0
      %v1317 = vmax.f32 %v1245, 0.0
      %v1318 = vmax.f32 %v1246, 0.0
      %v1319 = vmax.f32 %v1247, 0.0
      %v1320 = vmax.f32 %v1248, 0.0
      %v1321 = vmax.f32 %v1249, 0.0
      %v1322 = vmax.f32 %v1250, 0.0
      %v1323 = vmax.f32 %v1251, 0.0
      %v1324 = vmax.f32 %v1252, 0.0
      %v1325 = vmax.f32 %v1253, 0.0
      %v1326 = vmax.f32 %v1254, 0.0
      %v1327 = vmax.f32 %v1255, 0.0
      %v1328 = vmax.f32 %v1256, 0.0
      %v1329 = vmax.f32 %v1257, 0.0
      %v1330 = vmax.f32 %v1258, 0.0
      %v1331 = vmax.f32 %v1259, 0.0
      %v1332 = vmax.f32 %v1260, 0.0
      %v1333 = vmax.f32 %v1261, 0.0
      %v1334 = vmax.f32 %v1262, 0.0
      %v1335 = vmax.f32 %v1263, 0.0
      %v1336 = vmax.f32 %v1264, 0.0
      %v1337 = vmax.f32 %v1265, 0.0
      %v1338 = vmax.f32 %v1266, 0.0
      %v1339 = vmax.f32 %v1267, 0.0
      %v1340 = vmax.f32 %v1268, 0.0
      %v1341 = vmax.f32 %v1269, 0.0
      %v1342 = vmax.f32 %v1270, 0.0
      %v1343 = vmax.f32 %v1271, 0.0
      %v1344 = vmax.f32 %v1272, 0.0
      %v1345 = vmax.f32 %v1273, 0.0
      %v1346 = vmax.f32 %v1274, 0.0
      %v1347 = vmax.f32 %v1275, 0.0
      %v1348 = vmax.f32 %v1276, 0.0
      %v1349 = vmax.f32 %v1277, 0.0
      %v1350 = vmax.f32 %v1278, 0.0
      %v1351 = vmax.f32 %v1279, 0.0
      %v1352 = vmax.f32 %v1280, 0.0
      %v1353 = vmax.f32 %v1281, 0.0
      %v1354 = vmax.f32 %v1282, 0.0
      %v1355 = vmax.f32 %v1283, 0.0
      %v1356 = vmax.f32 %v1284, 0.0
      %v1357 = vmax.f32 %v1285, 0.0
      %v1358 = vmax.f32 %v1286, 0.0
      %v1359 = vmax.f32 %v1287, 0.0
      %v1360 = vmax.f32 %v1288, 0.0
      %v1361 = vmax.f32 %v1289, 0.0
      %v1362 = vmax.f32 %v1290, 0.0
      %v1363 = vpack.c.bf16 %v1293, %v1291
      %v1364 = vpack.c.bf16 %v1294, %v1292
      %v1365 = vpack.c.bf16 %v1297, %v1295
      %v1366 = vpack.c.bf16 %v1298, %v1296
      %v1367 = vpack.c.bf16 %v1301, %v1299
      %v1368 = vpack.c.bf16 %v1302, %v1300
      %v1369 = vpack.c.bf16 %v1305, %v1303
      %v1370 = vpack.c.bf16 %v1306, %v1304
      %v1371 = vpack.c.bf16 %v1309, %v1307
      %v1372 = vpack.c.bf16 %v1310, %v1308
      %v1373 = vpack.c.bf16 %v1313, %v1311
      %v1374 = vpack.c.bf16 %v1314, %v1312
      %v1375 = vpack.c.bf16 %v1317, %v1315
      %v1376 = vpack.c.bf16 %v1318, %v1316
      %v1377 = vpack.c.bf16 %v1321, %v1319
      %v1378 = vpack.c.bf16 %v1322, %v1320
      %v1379 = vpack.c.bf16 %v1325, %v1323
      %v1380 = vpack.c.bf16 %v1326, %v1324
      %v1381 = vpack.c.bf16 %v1329, %v1327
      %v1382 = vpack.c.bf16 %v1330, %v1328
      %v1383 = vpack.c.bf16 %v1333, %v1331
      %v1384 = vpack.c.bf16 %v1334, %v1332
      %v1385 = vpack.c.bf16 %v1337, %v1335
      %v1386 = vpack.c.bf16 %v1338, %v1336
      %v1387 = vpack.c.bf16 %v1341, %v1339
      %v1388 = vpack.c.bf16 %v1342, %v1340
      %v1389 = vpack.c.bf16 %v1345, %v1343
      %v1390 = vpack.c.bf16 %v1346, %v1344
      %v1391 = vpack.c.bf16 %v1349, %v1347
      %v1392 = vpack.c.bf16 %v1350, %v1348
      %v1393 = vpack.c.bf16 %v1353, %v1351
      %v1394 = vpack.c.bf16 %v1354, %v1352
      %v1395 = vpack.c.bf16 %v1357, %v1355
      %v1396 = vpack.c.bf16 %v1358, %v1356
      %v1397 = vpack.c.bf16 %v1361, %v1359
      %v1398 = vpack.c.bf16 %v1362, %v1360
      %v1399 = vld [vmem:[%s8] sm:$0xf]
      %v1400 = vld [vmem:[%s8 + $0x4] sm:$0xf]
      %v1401 = vld [vmem:[%s8 + $0x8] sm:$0xf]
      %v1402 = vld [vmem:[%s8 + $0xc] sm:$0xf]
      %v1403 = vld [vmem:[%s8 + $0x10] sm:$0xf]
      %v1404 = vld [vmem:[%s8 + $0x14] sm:$0xf]
      %v1405 = vld [vmem:[%s8 + $0x18] sm:$0xf]
      %v1406 = vld [vmem:[%s8 + $0x1c] sm:$0xf]
      %v1407 = vld [vmem:[%s8 + $0x20] sm:$0xf]
      %v1408 = vld [vmem:[%s8 + $0x24] sm:$0xf]
      %v1409 = vld [vmem:[%s8 + $0x28] sm:$0xf]
      %v1410 = vld [vmem:[%s8 + $0x2c] sm:$0xf]
      %v1411 = vld [vmem:[%s8 + $0x30] sm:$0xf]
      %v1412 = vld [vmem:[%s8 + $0x34] sm:$0xf]
      %v1413 = vld [vmem:[%s8 + $0x38] sm:$0xf]
      %v1414 = vld [vmem:[%s8 + $0x3c] sm:$0xf]
      %v1415 = vld [vmem:[%s8 + $0x40] sm:$0xf]
      %v1416 = vld [vmem:[%s8 + $0x44] sm:$0xf]
      %v1417 = vld [vmem:[%s9] sm:$0x1]
      %v1419 = vlaneseq
      %v1420 = vshrl.u32 %v1419, 7
      %v1421 = vsub.s32 0, %v1420
      %v1422 = vrot.slane %v1417, %v1421
      %v1442 = vunpack.c.l.b16 %v1399
      %v1443 = vunpack.c.l.b16 %v1400
      %v1444 = vunpack.c.l.b16 %v1401
      %v1445 = vunpack.c.l.b16 %v1402
      %v1446 = vunpack.c.l.b16 %v1403
      %v1447 = vunpack.c.l.b16 %v1404
      %v1448 = vunpack.c.l.b16 %v1405
      %v1449 = vunpack.c.l.b16 %v1406
      %v1450 = vunpack.c.l.b16 %v1407
      %v1451 = vunpack.c.l.b16 %v1408
      %v1452 = vunpack.c.l.b16 %v1409
      %v1453 = vunpack.c.l.b16 %v1410
      %v1454 = vunpack.c.l.b16 %v1411
      %v1455 = vunpack.c.l.b16 %v1412
      %v1456 = vunpack.c.l.b16 %v1413
      %v1457 = vunpack.c.l.b16 %v1414
      %v1458 = vunpack.c.l.b16 %v1415
      %v1459 = vunpack.c.l.b16 %v1416
      %v1460 = vpack.c.b16 %v1443, %v1442
      %v1461 = vpack.c.b16 %v1445, %v1444
      %v1462 = vpack.c.b16 %v1447, %v1446
      %v1463 = vpack.c.b16 %v1449, %v1448
      %v1464 = vpack.c.b16 %v1451, %v1450
      %v1465 = vpack.c.b16 %v1453, %v1452
      %v1466 = vpack.c.b16 %v1455, %v1454
      %v1467 = vpack.c.b16 %v1457, %v1456
      %v1468 = vpack.c.b16 %v1459, %v1458
      %vm1478 = vcmask 130048
      %v1480 = vsel %vm1478, %v1364, 0
      %v1483 = vsel %vm1478, %v1366, 0
      %v1486 = vsel %vm1478, %v1368, 0
      %v1489 = vsel %vm1478, %v1370, 0
      %v1492 = vsel %vm1478, %v1372, 0
      %v1495 = vsel %vm1478, %v1374, 0
      %v1498 = vsel %vm1478, %v1376, 0
      %v1501 = vsel %vm1478, %v1378, 0
      %v1504 = vsel %vm1478, %v1380, 0
      %v1507 = vsel %vm1478, %v1382, 0
      %v1510 = vsel %vm1478, %v1384, 0
      %v1513 = vsel %vm1478, %v1386, 0
      %v1516 = vsel %vm1478, %v1388, 0
      %v1519 = vsel %vm1478, %v1390, 0
      %v1522 = vsel %vm1478, %v1392, 0
      %v1525 = vsel %vm1478, %v1394, 0
      %v1528 = vsel %vm1478, %v1396, 0
      %v1531 = vsel %vm1478, %v1398, 0
      %1533 = vmatprep.subr.bf16.mxu0 0
      %1534 = vmatpush1.bf16.msra.mxu0 %v1467
      %1535 = vmatprep.subr.bf16.mxu0 0
      %1536 = vmatpush1.bf16.msra.mxu0 %v1466
      %1537 = vmatprep.subr.bf16.mxu0 0
      %1538 = vmatpush1.bf16.msra.mxu0 %v1465
      %1539 = vmatprep.subr.bf16.mxu0 0
      %1540 = vmatpush1.bf16.msra.mxu0 %v1464
      %1541 = vmatprep.subr.bf16.mxu0 0
      %1542 = vmatpush1.bf16.msra.mxu0 %v1463
      %1543 = vmatprep.subr.bf16.mxu0 0
      %1544 = vmatpush1.bf16.msra.mxu0 %v1462
      %1545 = vmatprep.subr.bf16.mxu0 0
      %1546 = vmatpush1.bf16.msra.mxu0 %v1461
      %1547 = vmatprep.subr.bf16.mxu0 0
      %1548 = vmatpush1.bf16.msra.mxu0 %v1460
      %1549 = vmatprep.subr.bf16.mxu0 0
      %1550 = vmatpush2.bf16.msra.mxu0 0
      %1551 = vmatprep.subr.bf16.mxu0 0
      %1552 = vmatpush2.bf16.msra.mxu0 0
      %1553 = vmatprep.subr.bf16.mxu0 0
      %1554 = vmatpush2.bf16.msra.mxu0 0
      %1555 = vmatprep.subr.bf16.mxu0 0
      %1556 = vmatpush2.bf16.msra.mxu0 0
      %1557 = vmatprep.subr.bf16.mxu0 0
      %1558 = vmatpush2.bf16.msra.mxu0 0
      %1559 = vmatprep.subr.bf16.mxu0 0
      %1560 = vmatpush2.bf16.msra.mxu0 0
      %1561 = vmatprep.subr.bf16.mxu0 0
      %1562 = vmatpush2.bf16.msra.mxu0 0
      %1563 = vmatprep.subr.bf16.mxu0 0
      %1564 = vmatpush2.bf16.msra.mxu0 %v1468
      %1565 = vmatprep.mubr.bf16.mxu0 %v1480
      %1566 = vmatmul.mubr.bf16.gmra.mxu0 %v1363
      %v1567 = vpop.f32.mrf.mxu0
      %v1568 = vadd.f32 %v1422, %v1567
      %v1569 = vpop.f32.mrf.mxu0
      %v1570 = vpop.f32.mrf.mxu0
      %v1571 = vadd.f32 %v1422, %v1570
      %v1572 = vpop.f32.mrf.mxu0
      %1573 = vmatprep.mubr.bf16.mxu0 %v1483
      %1574 = vmatmul.mubr.bf16.gmra.mxu0 %v1365
      %v1575 = vpop.f32.mrf.mxu0
      %v1576 = vadd.f32 %v1422, %v1575
      %v1577 = vpop.f32.mrf.mxu0
      %v1578 = vpop.f32.mrf.mxu0
      %v1579 = vadd.f32 %v1422, %v1578
      %v1580 = vpop.f32.mrf.mxu0
      %1581 = vmatprep.mubr.bf16.mxu0 %v1486
      %1582 = vmatmul.mubr.bf16.gmra.mxu0 %v1367
      %v1583 = vpop.f32.mrf.mxu0
      %v1584 = vadd.f32 %v1422, %v1583
      %v1585 = vpop.f32.mrf.mxu0
      %v1586 = vpop.f32.mrf.mxu0
      %v1587 = vadd.f32 %v1422, %v1586
      %v1588 = vpop.f32.mrf.mxu0
      %1589 = vmatprep.mubr.bf16.mxu0 %v1489
      %1590 = vmatmul.mubr.bf16.gmra.mxu0 %v1369
      %v1591 = vpop.f32.mrf.mxu0
      %v1592 = vadd.f32 %v1422, %v1591
      %v1593 = vpop.f32.mrf.mxu0
      %v1594 = vpop.f32.mrf.mxu0
      %v1595 = vadd.f32 %v1422, %v1594
      %v1596 = vpop.f32.mrf.mxu0
      %1597 = vmatprep.mubr.bf16.mxu0 %v1492
      %1598 = vmatmul.mubr.bf16.gmra.mxu0 %v1371
      %v1599 = vpop.f32.mrf.mxu0
      %v1600 = vadd.f32 %v1422, %v1599
      %v1601 = vpop.f32.mrf.mxu0
      %v1602 = vpop.f32.mrf.mxu0
      %v1603 = vadd.f32 %v1422, %v1602
      %v1604 = vpop.f32.mrf.mxu0
      %1605 = vmatprep.mubr.bf16.mxu0 %v1495
      %1606 = vmatmul.mubr.bf16.gmra.mxu0 %v1373
      %v1607 = vpop.f32.mrf.mxu0
      %v1608 = vadd.f32 %v1422, %v1607
      %v1609 = vpop.f32.mrf.mxu0
      %v1610 = vpop.f32.mrf.mxu0
      %v1611 = vadd.f32 %v1422, %v1610
      %v1612 = vpop.f32.mrf.mxu0
      %1613 = vmatprep.mubr.bf16.mxu0 %v1498
      %1614 = vmatmul.mubr.bf16.gmra.mxu0 %v1375
      %v1615 = vpop.f32.mrf.mxu0
      %v1616 = vadd.f32 %v1422, %v1615
      %v1617 = vpop.f32.mrf.mxu0
      %v1618 = vpop.f32.mrf.mxu0
      %v1619 = vadd.f32 %v1422, %v1618
      %v1620 = vpop.f32.mrf.mxu0
      %1621 = vmatprep.mubr.bf16.mxu0 %v1501
      %1622 = vmatmul.mubr.bf16.gmra.mxu0 %v1377
      %v1623 = vpop.f32.mrf.mxu0
      %v1624 = vadd.f32 %v1422, %v1623
      %v1625 = vpop.f32.mrf.mxu0
      %v1626 = vpop.f32.mrf.mxu0
      %v1627 = vadd.f32 %v1422, %v1626
      %v1628 = vpop.f32.mrf.mxu0
      %1629 = vmatprep.mubr.bf16.mxu0 %v1504
      %1630 = vmatmul.mubr.bf16.gmra.mxu0 %v1379
      %v1631 = vpop.f32.mrf.mxu0
      %v1632 = vadd.f32 %v1422, %v1631
      %v1633 = vpop.f32.mrf.mxu0
      %v1634 = vpop.f32.mrf.mxu0
      %v1635 = vadd.f32 %v1422, %v1634
      %v1636 = vpop.f32.mrf.mxu0
      %1637 = vmatprep.mubr.bf16.mxu0 %v1507
      %1638 = vmatmul.mubr.bf16.gmra.mxu0 %v1381
      %v1639 = vpop.f32.mrf.mxu0
      %v1640 = vadd.f32 %v1422, %v1639
      %v1641 = vpop.f32.mrf.mxu0
      %v1642 = vpop.f32.mrf.mxu0
      %v1643 = vadd.f32 %v1422, %v1642
      %v1644 = vpop.f32.mrf.mxu0
      %1645 = vmatprep.mubr.bf16.mxu0 %v1510
      %1646 = vmatmul.mubr.bf16.gmra.mxu0 %v1383
      %v1647 = vpop.f32.mrf.mxu0
      %v1648 = vadd.f32 %v1422, %v1647
      %v1649 = vpop.f32.mrf.mxu0
      %v1650 = vpop.f32.mrf.mxu0
      %v1651 = vadd.f32 %v1422, %v1650
      %v1652 = vpop.f32.mrf.mxu0
      %1653 = vmatprep.mubr.bf16.mxu0 %v1513
      %1654 = vmatmul.mubr.bf16.gmra.mxu0 %v1385
      %v1655 = vpop.f32.mrf.mxu0
      %v1656 = vadd.f32 %v1422, %v1655
      %v1657 = vpop.f32.mrf.mxu0
      %v1658 = vpop.f32.mrf.mxu0
      %v1659 = vadd.f32 %v1422, %v1658
      %v1660 = vpop.f32.mrf.mxu0
      %1661 = vmatprep.mubr.bf16.mxu0 %v1516
      %1662 = vmatmul.mubr.bf16.gmra.mxu0 %v1387
      %v1663 = vpop.f32.mrf.mxu0
      %v1664 = vadd.f32 %v1422, %v1663
      %v1665 = vpop.f32.mrf.mxu0
      %v1666 = vpop.f32.mrf.mxu0
      %v1667 = vadd.f32 %v1422, %v1666
      %v1668 = vpop.f32.mrf.mxu0
      %1669 = vmatprep.mubr.bf16.mxu0 %v1519
      %1670 = vmatmul.mubr.bf16.gmra.mxu0 %v1389
      %v1671 = vpop.f32.mrf.mxu0
      %v1672 = vadd.f32 %v1422, %v1671
      %v1673 = vpop.f32.mrf.mxu0
      %v1674 = vpop.f32.mrf.mxu0
      %v1675 = vadd.f32 %v1422, %v1674
      %v1676 = vpop.f32.mrf.mxu0
      %1677 = vmatprep.mubr.bf16.mxu0 %v1522
      %1678 = vmatmul.mubr.bf16.gmra.mxu0 %v1391
      %v1679 = vpop.f32.mrf.mxu0
      %v1680 = vadd.f32 %v1422, %v1679
      %v1681 = vpop.f32.mrf.mxu0
      %v1682 = vpop.f32.mrf.mxu0
      %v1683 = vadd.f32 %v1422, %v1682
      %v1684 = vpop.f32.mrf.mxu0
      %1685 = vmatprep.mubr.bf16.mxu0 %v1525
      %1686 = vmatmul.mubr.bf16.gmra.mxu0 %v1393
      %v1687 = vpop.f32.mrf.mxu0
      %v1688 = vadd.f32 %v1422, %v1687
      %v1689 = vpop.f32.mrf.mxu0
      %v1690 = vpop.f32.mrf.mxu0
      %v1691 = vadd.f32 %v1422, %v1690
      %v1692 = vpop.f32.mrf.mxu0
      %1693 = vmatprep.mubr.bf16.mxu0 %v1528
      %1694 = vmatmul.mubr.bf16.gmra.mxu0 %v1395
      %v1695 = vpop.f32.mrf.mxu0
      %v1696 = vadd.f32 %v1422, %v1695
      %v1697 = vpop.f32.mrf.mxu0
      %v1698 = vpop.f32.mrf.mxu0
      %v1699 = vadd.f32 %v1422, %v1698
      %v1700 = vpop.f32.mrf.mxu0
      %1701 = vmatprep.mubr.bf16.mxu0 %v1531
      %1702 = vmatmul.mubr.bf16.gmra.mxu0 %v1397
      %v1703 = vpop.f32.mrf.mxu0
      %v1704 = vadd.f32 %v1422, %v1703
      %v1705 = vpop.f32.mrf.mxu0
      %v1706 = vpop.f32.mrf.mxu0
      %v1707 = vadd.f32 %v1422, %v1706
      %v1708 = vpop.f32.mrf.mxu0
      %1709 = vdwg.mxu0
      %v1710 = vmax.f32 %v1568, 0.0
      %v1711 = vmax.f32 %v1571, 0.0
      %v1712 = vmax.f32 %v1576, 0.0
      %v1713 = vmax.f32 %v1579, 0.0
      %v1714 = vmax.f32 %v1584, 0.0
      %v1715 = vmax.f32 %v1587, 0.0
      %v1716 = vmax.f32 %v1592, 0.0
      %v1717 = vmax.f32 %v1595, 0.0
      %v1718 = vmax.f32 %v1600, 0.0
      %v1719 = vmax.f32 %v1603, 0.0
      %v1720 = vmax.f32 %v1608, 0.0
      %v1721 = vmax.f32 %v1611, 0.0
      %v1722 = vmax.f32 %v1616, 0.0
      %v1723 = vmax.f32 %v1619, 0.0
      %v1724 = vmax.f32 %v1624, 0.0
      %v1725 = vmax.f32 %v1627, 0.0
      %v1726 = vmax.f32 %v1632, 0.0
      %v1727 = vmax.f32 %v1635, 0.0
      %v1728 = vmax.f32 %v1640, 0.0
      %v1729 = vmax.f32 %v1643, 0.0
      %v1730 = vmax.f32 %v1648, 0.0
      %v1731 = vmax.f32 %v1651, 0.0
      %v1732 = vmax.f32 %v1656, 0.0
      %v1733 = vmax.f32 %v1659, 0.0
      %v1734 = vmax.f32 %v1664, 0.0
      %v1735 = vmax.f32 %v1667, 0.0
      %v1736 = vmax.f32 %v1672, 0.0
      %v1737 = vmax.f32 %v1675, 0.0
      %v1738 = vmax.f32 %v1680, 0.0
      %v1739 = vmax.f32 %v1683, 0.0
      %v1740 = vmax.f32 %v1688, 0.0
      %v1741 = vmax.f32 %v1691, 0.0
      %v1742 = vmax.f32 %v1696, 0.0
      %v1743 = vmax.f32 %v1699, 0.0
      %v1744 = vmax.f32 %v1704, 0.0
      %v1745 = vmax.f32 %v1707, 0.0
      %vm1746 = vcmask 261120
      %v1747 = vsel %vm1746, %v1710, 0.0
      %v1748 = vsel %vm1746, %v1711, 0.0
      %v1749 = vadd.f32 %v1747, %v1748
      %v1750 = vrot.slane %v1749, 4
      %v1751 = vadd.f32 %v1749, %v1750
      %v1752 = vrot.slane %v1751, 2
      %v1753 = vadd.f32 %v1751, %v1752
      %v1754 = vrot.slane %v1753, 1
      %v1755 = vadd.f32 %v1753, %v1754
      %v1756 = vsel %vm1746, %v1712, 0.0
      %v1757 = vsel %vm1746, %v1713, 0.0
      %v1758 = vadd.f32 %v1756, %v1757
      %v1759 = vrot.slane %v1758, 4
      %v1760 = vadd.f32 %v1758, %v1759
      %v1761 = vrot.slane %v1760, 2
      %v1762 = vadd.f32 %v1760, %v1761
      %v1763 = vrot.slane %v1762, 1
      %v1764 = vadd.f32 %v1762, %v1763
      %v1765 = vsel %vm1746, %v1714, 0.0
      %v1766 = vsel %vm1746, %v1715, 0.0
      %v1767 = vadd.f32 %v1765, %v1766
      %v1768 = vrot.slane %v1767, 4
      %v1769 = vadd.f32 %v1767, %v1768
      %v1770 = vrot.slane %v1769, 2
      %v1771 = vadd.f32 %v1769, %v1770
      %v1772 = vrot.slane %v1771, 1
      %v1773 = vadd.f32 %v1771, %v1772
      %v1774 = vsel %vm1746, %v1716, 0.0
      %v1775 = vsel %vm1746, %v1717, 0.0
      %v1776 = vadd.f32 %v1774, %v1775
      %v1777 = vrot.slane %v1776, 4
      %v1778 = vadd.f32 %v1776, %v1777
      %v1779 = vrot.slane %v1778, 2
      %v1780 = vadd.f32 %v1778, %v1779
      %v1781 = vrot.slane %v1780, 1
      %v1782 = vadd.f32 %v1780, %v1781
      %v1783 = vsel %vm1746, %v1718, 0.0
      %v1784 = vsel %vm1746, %v1719, 0.0
      %v1785 = vadd.f32 %v1783, %v1784
      %v1786 = vrot.slane %v1785, 4
      %v1787 = vadd.f32 %v1785, %v1786
      %v1788 = vrot.slane %v1787, 2
      %v1789 = vadd.f32 %v1787, %v1788
      %v1790 = vrot.slane %v1789, 1
      %v1791 = vadd.f32 %v1789, %v1790
      %v1792 = vsel %vm1746, %v1720, 0.0
      %v1793 = vsel %vm1746, %v1721, 0.0
      %v1794 = vadd.f32 %v1792, %v1793
      %v1795 = vrot.slane %v1794, 4
      %v1796 = vadd.f32 %v1794, %v1795
      %v1797 = vrot.slane %v1796, 2
      %v1798 = vadd.f32 %v1796, %v1797
      %v1799 = vrot.slane %v1798, 1
      %v1800 = vadd.f32 %v1798, %v1799
      %v1801 = vsel %vm1746, %v1722, 0.0
      %v1802 = vsel %vm1746, %v1723, 0.0
      %v1803 = vadd.f32 %v1801, %v1802
      %v1804 = vrot.slane %v1803, 4
      %v1805 = vadd.f32 %v1803, %v1804
      %v1806 = vrot.slane %v1805, 2
      %v1807 = vadd.f32 %v1805, %v1806
      %v1808 = vrot.slane %v1807, 1
      %v1809 = vadd.f32 %v1807, %v1808
      %v1810 = vsel %vm1746, %v1724, 0.0
      %v1811 = vsel %vm1746, %v1725, 0.0
      %v1812 = vadd.f32 %v1810, %v1811
      %v1813 = vrot.slane %v1812, 4
      %v1814 = vadd.f32 %v1812, %v1813
      %v1815 = vrot.slane %v1814, 2
      %v1816 = vadd.f32 %v1814, %v1815
      %v1817 = vrot.slane %v1816, 1
      %v1818 = vadd.f32 %v1816, %v1817
      %v1819 = vsel %vm1746, %v1726, 0.0
      %v1820 = vsel %vm1746, %v1727, 0.0
      %v1821 = vadd.f32 %v1819, %v1820
      %v1822 = vrot.slane %v1821, 4
      %v1823 = vadd.f32 %v1821, %v1822
      %v1824 = vrot.slane %v1823, 2
      %v1825 = vadd.f32 %v1823, %v1824
      %v1826 = vrot.slane %v1825, 1
      %v1827 = vadd.f32 %v1825, %v1826
      %v1828 = vsel %vm1746, %v1728, 0.0
      %v1829 = vsel %vm1746, %v1729, 0.0
      %v1830 = vadd.f32 %v1828, %v1829
      %v1831 = vrot.slane %v1830, 4
      %v1832 = vadd.f32 %v1830, %v1831
      %v1833 = vrot.slane %v1832, 2
      %v1834 = vadd.f32 %v1832, %v1833
      %v1835 = vrot.slane %v1834, 1
      %v1836 = vadd.f32 %v1834, %v1835
      %v1837 = vsel %vm1746, %v1730, 0.0
      %v1838 = vsel %vm1746, %v1731, 0.0
      %v1839 = vadd.f32 %v1837, %v1838
      %v1840 = vrot.slane %v1839, 4
      %v1841 = vadd.f32 %v1839, %v1840
      %v1842 = vrot.slane %v1841, 2
      %v1843 = vadd.f32 %v1841, %v1842
      %v1844 = vrot.slane %v1843, 1
      %v1845 = vadd.f32 %v1843, %v1844
      %v1846 = vsel %vm1746, %v1732, 0.0
      %v1847 = vsel %vm1746, %v1733, 0.0
      %v1848 = vadd.f32 %v1846, %v1847
      %v1849 = vrot.slane %v1848, 4
      %v1850 = vadd.f32 %v1848, %v1849
      %v1851 = vrot.slane %v1850, 2
      %v1852 = vadd.f32 %v1850, %v1851
      %v1853 = vrot.slane %v1852, 1
      %v1854 = vadd.f32 %v1852, %v1853
      %v1855 = vsel %vm1746, %v1734, 0.0
      %v1856 = vsel %vm1746, %v1735, 0.0
      %v1857 = vadd.f32 %v1855, %v1856
      %v1858 = vrot.slane %v1857, 4
      %v1859 = vadd.f32 %v1857, %v1858
      %v1860 = vrot.slane %v1859, 2
      %v1861 = vadd.f32 %v1859, %v1860
      %v1862 = vrot.slane %v1861, 1
      %v1863 = vadd.f32 %v1861, %v1862
      %v1864 = vsel %vm1746, %v1736, 0.0
      %v1865 = vsel %vm1746, %v1737, 0.0
      %v1866 = vadd.f32 %v1864, %v1865
      %v1867 = vrot.slane %v1866, 4
      %v1868 = vadd.f32 %v1866, %v1867
      %v1869 = vrot.slane %v1868, 2
      %v1870 = vadd.f32 %v1868, %v1869
      %v1871 = vrot.slane %v1870, 1
      %v1872 = vadd.f32 %v1870, %v1871
      %v1873 = vsel %vm1746, %v1738, 0.0
      %v1874 = vsel %vm1746, %v1739, 0.0
      %v1875 = vadd.f32 %v1873, %v1874
      %v1876 = vrot.slane %v1875, 4
      %v1877 = vadd.f32 %v1875, %v1876
      %v1878 = vrot.slane %v1877, 2
      %v1879 = vadd.f32 %v1877, %v1878
      %v1880 = vrot.slane %v1879, 1
      %v1881 = vadd.f32 %v1879, %v1880
      %v1882 = vsel %vm1746, %v1740, 0.0
      %v1883 = vsel %vm1746, %v1741, 0.0
      %v1884 = vadd.f32 %v1882, %v1883
      %v1885 = vrot.slane %v1884, 4
      %v1886 = vadd.f32 %v1884, %v1885
      %v1887 = vrot.slane %v1886, 2
      %v1888 = vadd.f32 %v1886, %v1887
      %v1889 = vrot.slane %v1888, 1
      %v1890 = vadd.f32 %v1888, %v1889
      %v1891 = vsel %vm1746, %v1742, 0.0
      %v1892 = vsel %vm1746, %v1743, 0.0
      %v1893 = vadd.f32 %v1891, %v1892
      %v1894 = vrot.slane %v1893, 4
      %v1895 = vadd.f32 %v1893, %v1894
      %v1896 = vrot.slane %v1895, 2
      %v1897 = vadd.f32 %v1895, %v1896
      %v1898 = vrot.slane %v1897, 1
      %v1899 = vadd.f32 %v1897, %v1898
      %v1900 = vsel %vm1746, %v1744, 0.0
      %v1901 = vsel %vm1746, %v1745, 0.0
      %v1902 = vadd.f32 %v1900, %v1901
      %v1903 = vrot.slane %v1902, 4
      %v1904 = vadd.f32 %v1902, %v1903
      %v1905 = vrot.slane %v1904, 2
      %v1906 = vadd.f32 %v1904, %v1905
      %v1907 = vrot.slane %v1906, 1
      %v1908 = vadd.f32 %v1906, %v1907
      %v1909 = vrcp.pop 16.0
      %v1910 = vmul.f32 %v1755, %v1909
      %v1911 = vmul.f32 %v1764, %v1909
      %v1912 = vmul.f32 %v1773, %v1909
      %v1913 = vmul.f32 %v1782, %v1909
      %v1914 = vmul.f32 %v1791, %v1909
      %v1915 = vmul.f32 %v1800, %v1909
      %v1916 = vmul.f32 %v1809, %v1909
      %v1917 = vmul.f32 %v1818, %v1909
      %v1918 = vmul.f32 %v1827, %v1909
      %v1919 = vmul.f32 %v1836, %v1909
      %v1920 = vmul.f32 %v1845, %v1909
      %v1921 = vmul.f32 %v1854, %v1909
      %v1922 = vmul.f32 %v1863, %v1909
      %v1923 = vmul.f32 %v1872, %v1909
      %v1924 = vmul.f32 %v1881, %v1909
      %v1925 = vmul.f32 %v1890, %v1909
      %v1926 = vmul.f32 %v1899, %v1909
      %v1927 = vmul.f32 %v1908, %v1909
      %v1928 = vpack.c.bf16 %v1910, %v1910
      %v1929 = vpack.c.bf16 %v1911, %v1911
      %v1930 = vpack.c.bf16 %v1912, %v1912
      %v1931 = vpack.c.bf16 %v1913, %v1913
      %v1932 = vpack.c.bf16 %v1914, %v1914
      %v1933 = vpack.c.bf16 %v1915, %v1915
      %v1934 = vpack.c.bf16 %v1916, %v1916
      %v1935 = vpack.c.bf16 %v1917, %v1917
      %v1936 = vpack.c.bf16 %v1918, %v1918
      %v1937 = vpack.c.bf16 %v1919, %v1919
      %v1938 = vpack.c.bf16 %v1920, %v1920
      %v1939 = vpack.c.bf16 %v1921, %v1921
      %v1940 = vpack.c.bf16 %v1922, %v1922
      %v1941 = vpack.c.bf16 %v1923, %v1923
      %v1942 = vpack.c.bf16 %v1924, %v1924
      %v1943 = vpack.c.bf16 %v1925, %v1925
      %v1944 = vpack.c.bf16 %v1926, %v1926
      %v1945 = vpack.c.bf16 %v1927, %v1927
      %v1946 = vld [vmem:[%s10] sm:$0xf]
      %v1947 = vld [vmem:[%s10 + $0x4] sm:$0xf]
      %v1948 = vld [vmem:[%s10 + $0x8] sm:$0xf]
      %v1949 = vld [vmem:[%s10 + $0xc] sm:$0xf]
      %v1950 = vld [vmem:[%s11] sm:$0x1]
      %v1952 = vlaneseq
      %v1953 = vshrl.u32 %v1952, 7
      %v1954 = vsub.s32 0, %v1953
      %v1955 = vrot.slane %v1950, %v1954
      %v1975 = vunpack.c.l.b16 %v1928
      %v1976 = vunpack.c.l.b16 %v1929
      %v1977 = vunpack.c.l.b16 %v1930
      %v1978 = vunpack.c.l.b16 %v1931
      %v1979 = vunpack.c.l.b16 %v1932
      %v1980 = vunpack.c.l.b16 %v1933
      %v1981 = vunpack.c.l.b16 %v1934
      %v1982 = vunpack.c.l.b16 %v1935
      %v1983 = vunpack.c.l.b16 %v1936
      %v1984 = vunpack.c.l.b16 %v1937
      %v1985 = vunpack.c.l.b16 %v1938
      %v1986 = vunpack.c.l.b16 %v1939
      %v1987 = vunpack.c.l.b16 %v1940
      %v1988 = vunpack.c.l.b16 %v1941
      %v1989 = vunpack.c.l.b16 %v1942
      %v1990 = vunpack.c.l.b16 %v1943
      %v1991 = vunpack.c.l.b16 %v1944
      %v1992 = vunpack.c.l.b16 %v1945
      %v1993 = vsel %vm575, %v1976, %v1975
      %v1994 = vsel %vm577, %v1977, %v1993
      %v1995 = vsel %vm579, %v1978, %v1994
      %v1996 = vsel %vm581, %v1979, %v1995
      %v1997 = vsel %vm583, %v1980, %v1996
      %vm1998 = vcmask 1046534
      %v1999 = vsel %vm1998, %v1981, %v1997
      %vm2000 = vcmask 1047559
      %v2001 = vsel %vm2000, %v1982, %v1999
      %v2002 = vsel %vm575, %v1984, %v1983
      %v2003 = vsel %vm577, %v1985, %v2002
      %v2004 = vsel %vm579, %v1986, %v2003
      %v2005 = vsel %vm581, %v1987, %v2004
      %v2006 = vsel %vm583, %v1988, %v2005
      %v2007 = vsel %vm1998, %v1989, %v2006
      %v2008 = vsel %vm2000, %v1990, %v2007
      %v2009 = vsel %vm575, %v1992, %v1991
      %v2010 = vpack.c.b16 %v2008, %v2001
      %v2011 = vpack.c.b16 %v2009, %v2009
      %v2016 = vunpack.c.l.b16 %v1946
      %v2017 = vunpack.c.l.b16 %v1947
      %v2018 = vunpack.c.l.b16 %v1948
      %v2019 = vunpack.c.l.b16 %v1949
      %v2020 = vpack.c.b16 %v2017, %v2016
      %v2021 = vpack.c.b16 %v2019, %v2018
      %v2025 = vsel %vm1746, %v2010, 0
      %v2028 = vsel %vm1746, %v2011, 0
      %2030 = vmatprep.subr.bf16.mxu0 0
      %2031 = vmatpush1.bf16.msra.mxu0 0
      %2032 = vmatprep.subr.bf16.mxu0 0
      %2033 = vmatpush1.bf16.msra.mxu0 0
      %2034 = vmatprep.subr.bf16.mxu0 0
      %2035 = vmatpush1.bf16.msra.mxu0 0
      %2036 = vmatprep.subr.bf16.mxu0 0
      %2037 = vmatpush1.bf16.msra.mxu0 0
      %2038 = vmatprep.subr.bf16.mxu0 0
      %2039 = vmatpush1.bf16.msra.mxu0 0
      %2040 = vmatprep.subr.bf16.mxu0 0
      %2041 = vmatpush1.bf16.msra.mxu0 0
      %2042 = vmatprep.subr.bf16.mxu0 0
      %2043 = vmatpush1.bf16.msra.mxu0 %v2021
      %2044 = vmatprep.subr.bf16.mxu0 0
      %2045 = vmatpush1.bf16.msra.mxu0 %v2020
      %2046 = vmatprep.subr.bf16.mxu0 0
      %2047 = vmatpush2.bf16.msra.mxu0 0
      %2048 = vmatprep.subr.bf16.mxu0 0
      %2049 = vmatpush2.bf16.msra.mxu0 0
      %2050 = vmatprep.subr.bf16.mxu0 0
      %2051 = vmatpush2.bf16.msra.mxu0 0
      %2052 = vmatprep.subr.bf16.mxu0 0
      %2053 = vmatpush2.bf16.msra.mxu0 0
      %2054 = vmatprep.subr.bf16.mxu0 0
      %2055 = vmatpush2.bf16.msra.mxu0 0
      %2056 = vmatprep.subr.bf16.mxu0 0
      %2057 = vmatpush2.bf16.msra.mxu0 0
      %2058 = vmatprep.subr.bf16.mxu0 0
      %2059 = vmatpush2.bf16.msra.mxu0 0
      %2060 = vmatprep.subr.bf16.mxu0 0
      %2061 = vmatpush2.bf16.msra.mxu0 0
      %2062 = vmatprep.mubr.bf16.mxu0 0
      %2063 = vmatmul.mubr.bf16.gmra.mxu0 %v2025
      %v2064 = vpop.f32.mrf.mxu0
      %v2065 = vadd.f32 %v1955, %v2064
      %v2066 = vpop.f32.mrf.mxu0
      %v2067 = vpop.f32.mrf.mxu0
      %v2068 = vadd.f32 %v1955, %v2067
      %v2069 = vpop.f32.mrf.mxu0
      %2070 = vmatprep.mubr.bf16.mxu0 0
      %2071 = vmatmul.mubr.bf16.gmra.mxu0 %v2028
      %v2072 = vpop.f32.mrf.mxu0
      %v2073 = vadd.f32 %v1955, %v2072
      %v2074 = vpop.f32.mrf.mxu0
      %v2075 = vpop.f32.mrf.mxu0
      %v2076 = vpop.f32.mrf.mxu0
      %2077 = vdwg.mxu0
      %2078 = vst [vmem:[%s471] sm:$0xff] %v2065
      %2079 = vst [vmem:[%s471 + $0x8] sm:$0xff] %v2068
      %2080 = vst [vmem:[%s471 + $0x10] sm:$0x3] %v2073
      %p2081 = scmp.lt.s32.totalorder %s25, 1
      %s2082 = scalar_select %p2081, %s25, 1
      %s2083 = smul.addr %s2082, 8
      %s2084 = scalar_lea.vmem %s12, %s2083
      %p2085 = scmp.lt.s32.totalorder %s25, 1
      %s2086 = scalar_select %p2085, %s25, 1
      %s2087 = smul.addr %s2086, 3
      %s2088 = smul.addr %s2087, 8
      %s2089 = scalar_lea.vmem %s13, %s2088
      // Predicated region
      $region69: #{gaze_selector_forward.2} parent=67 // pred_check
        %p2090 = pneg %p305
      $region70: #{gaze_selector_forward.2} parent=67 // pred_check_branch
        %2092 = sbr.rel (%p2090) target = $region72
      $region71: #{gaze_selector_forward.2} parent=67 // pred_region
        _
      $region72: #{gaze_selector_forward.2} parent=67 // pred_fallthru
        _
      // Predicated region
      $region73: #{gaze_selector_forward.2} parent=67 // pred_check
        %p2093 = pneg %p331
      $region74: #{gaze_selector_forward.2} parent=67 // pred_check_branch
        %2095 = sbr.rel (%p2093) target = $region76
      $region75: #{gaze_selector_forward.2} parent=67 // pred_region
        _
      $region76: #{gaze_selector_forward.2} parent=67 // pred_fallthru
        _
    $region68: #{gaze_selector_forward.2} parent=5 // pred_fallthru
      _
    %p2096 = scmp.le.s32.totalorder 2, %s20
    // Predicated region
    $region77: #{gaze_selector_forward.2} parent=5 // pred_check
      %p2097 = pneg %p2096
    $region78: #{gaze_selector_forward.2} parent=5 // pred_check_branch
      %2099 = sbr.rel (%p2097) target = $region80
    $region79: #{gaze_selector_forward.2} parent=5 // pred_region
      %s2100 = ssub.s32 %s20, 2
      // Predicated region
      $region81: #{gaze_selector_forward.2} parent=79 // pred_check
        %p2101 = pneg %p311
      $region82: #{gaze_selector_forward.2} parent=79 // pred_check_branch
        %2103 = sbr.rel (%p2101) target = $region84
      $region83: #{gaze_selector_forward.2} parent=79 // pred_region
        %p2104 = scmp.lt.s32.totalorder %s26, 1
        %s2105 = scalar_select %p2104, %s26, 1
        %s2106 = smul.addr %s2105, 8
        %s2107 = scalar_lea.vmem %s12, %s2106
      $region84: #{gaze_selector_forward.2} parent=79 // pred_fallthru
        _
      // Predicated region
      $region85: #{gaze_selector_forward.2} parent=79 // pred_check
        %p2108 = pneg %p337
      $region86: #{gaze_selector_forward.2} parent=79 // pred_check_branch
        %2110 = sbr.rel (%p2108) target = $region88
      $region87: #{gaze_selector_forward.2} parent=79 // pred_region
        %p2111 = scmp.lt.s32.totalorder %s26, 1
        %s2112 = scalar_select %p2111, %s26, 1
        %s2113 = smul.addr %s2112, 3
        %s2114 = smul.addr %s2113, 8
        %s2115 = scalar_lea.vmem %s13, %s2114
      $region88: #{gaze_selector_forward.2} parent=79 // pred_fallthru
        _
    $region80: #{gaze_selector_forward.2} parent=5 // pred_fallthru
      _
  $region6: #{gaze_selector_forward.2} parent=0 // loop_footer
    %s24 = sadd.s32 1, %s20
  $region7: #{gaze_selector_forward.2} parent=0 // loop_footer_branch
    %19 = sbr.rel target = $region3
  $region8: #{gaze_selector_forward.2} parent=0 // loop_exit
    _

// kernel: gaze_selector_forward.3
$region0: #{gaze_selector_forward.3}
  #allocation0 [shape = 'u32[]', space=smem, size = 0x4, offset = 0x4, fixed_abs, tag = 'smem constant byte address 0x4 - core index']
  #allocation1 [shape = 'u32[144,128]{1,0:T(1,128)}', space=vmem, size = 0x12000, scoped, tag = 'internal scratch']
  #allocation2 [shape = 'f32[1,1]{1,0:T(1,128)S(1)}', space=vmem, size = 0x200, scoped, tag = 'scoped memory for gaze_selector_forward.3']
  %s0 = inlined_call_operand.vmem [shape: f32[6,12,128], index: 0, kind: input, shape index: {}]
  %s1 = inlined_call_operand.vmem [shape: f32[12,128], index: 1, kind: input, shape index: {}]
  %s2 = inlined_call_operand.vmem [shape: bf16[2,4,128,32], index: 2, kind: input, shape index: {}]
  %s3 = inlined_call_operand.vmem [shape: bf16[2,4,128,32], index: 3, kind: input, shape index: {}]
  %s4 = inlined_call_operand.vmem [shape: bf16[2,4,128,32], index: 4, kind: input, shape index: {}]
  %s5 = inlined_call_operand.vmem [shape: bf16[2,4,32,128], index: 5, kind: input, shape index: {}]
  %s6 = inlined_call_operand.vmem [shape: f32[2,4,1,32], index: 6, kind: input, shape index: {}]
  %s7 = inlined_call_operand.vmem [shape: f32[2,4,1,32], index: 7, kind: input, shape index: {}]
  %s8 = inlined_call_operand.vmem [shape: f32[2,4,1,32], index: 8, kind: input, shape index: {}]
  %s9 = inlined_call_operand.vmem [shape: f32[2,1,128], index: 9, kind: input, shape index: {}]
  %s10 = inlined_call_operand.vmem [shape: f32[2,1,128], index: 10, kind: input, shape index: {}]
  %s11 = inlined_call_operand.vmem [shape: f32[2,1,128], index: 11, kind: input, shape index: {}]
  %s12 = inlined_call_operand.vmem [shape: bf16[2,128,512], index: 12, kind: input, shape index: {}]
  %s13 = inlined_call_operand.vmem [shape: f32[2,1,512], index: 13, kind: input, shape index: {}]
  %s14 = inlined_call_operand.vmem [shape: bf16[2,512,128], index: 14, kind: input, shape index: {}]
  %s15 = inlined_call_operand.vmem [shape: f32[2,1,128], index: 15, kind: input, shape index: {}]
  %s16 = inlined_call_operand.vmem [shape: f32[2,1,128], index: 16, kind: input, shape index: {}]
  %s17 = inlined_call_operand.vmem [shape: f32[2,1,128], index: 17, kind: input, shape index: {}]
  %s18 = inlined_call_operand.vmem [shape: f32[1,128], index: 18, kind: input, shape index: {}]
  %s19 = inlined_call_operand.vmem [shape: f32[1,128], index: 19, kind: input, shape index: {}]
  %s20 = inlined_call_operand.vmem [shape: f32[1,128], index: 20, kind: input, shape index: {}]
  %s21 = inlined_call_operand.<no memory space> [shape: f32[1,1], index: 21, kind: input, shape index: {}]
  %s22 = inlined_call_operand.vmem [shape: f32[6,1,1], index: 22, kind: output, shape index: {}]
  %s23 = sld [smem:[#allocation0]]
  $region121: #{gaze_selector_forward.3} parent=0
    _
  %s25 = ssub.s32 1, %s23
  %s26 = scalar_select 0, %s25, %s23
  %v27 = vstv %s21
  %28 = vst [vmem:[#allocation2] sm:$0x1] %v27
  loop: start=0, step=1, limit=8
  $region2: #{gaze_selector_forward.3} parent=0 // loop_pre_header
    _
  $region3: #{gaze_selector_forward.3} parent=0 // loop_header
    %s30 = sphi 0, %s34
    %p31 = scmp.ge.s32.totalorder %s30, 8
    %s40 = sphi 0, %s42
    %s43 = sphi 0, %s40
    %s44 = sphi 0, %s43
    %s60 = sphi 0, %s44
    %s64 = sphi 0, %s64
    %s66 = sphi 0, %s64
    %s67 = sphi 0, %s66
    %s81 = sphi 0, %s67
    %s85 = sphi 0, %s85
    %s87 = sphi 0, %s85
    %s88 = sphi 0, %s87
    %s102 = sphi 0, %s88
    %s106 = sphi 0, %s106
    %s108 = sphi 0, %s106
    %s109 = sphi 0, %s108
    %s123 = sphi 0, %s109
    %s127 = sphi 0, %s127
    %s129 = sphi 0, %s127
    %s130 = sphi 0, %s129
    %s144 = sphi 0, %s130
    %s148 = sphi 0, %s148
    %s150 = sphi 0, %s148
    %s151 = sphi 0, %s150
    %s165 = sphi 0, %s151
    %s169 = sphi 0, %s169
    %s171 = sphi 0, %s169
    %s172 = sphi 0, %s171
    %s186 = sphi 0, %s172
    %s190 = sphi 0, %s190
    %s192 = sphi 0, %s190
    %s193 = sphi 0, %s192
    %s207 = sphi 0, %s193
    %s211 = sphi 0, %s211
    %s213 = sphi 0, %s211
    %s214 = sphi 0, %s213
    %s228 = sphi 0, %s214
    %s232 = sphi 0, %s232
    %s234 = sphi 0, %s232
    %s235 = sphi 0, %s234
    %s249 = sphi 0, %s235
    %s253 = sphi 0, %s253
    %s255 = sphi 0, %s253
    %s256 = sphi 0, %s255
    %s270 = sphi 0, %s256
    %s274 = sphi 0, %s274
    %s276 = sphi 0, %s274
    %s277 = sphi 0, %s276
    %s291 = sphi 0, %s277
    %s295 = sphi 0, %s295
    %s297 = sphi 0, %s295
    %s298 = sphi 0, %s297
    %s312 = sphi 0, %s298
    %s316 = sphi 0, %s316
    %s318 = sphi 0, %s316
    %s319 = sphi 0, %s318
    %s333 = sphi 0, %s319
    %s337 = sphi 0, %s337
    %s339 = sphi 0, %s337
    %s340 = sphi 0, %s339
    %s354 = sphi 0, %s340
    %s358 = sphi 0, %s358
    %s360 = sphi 0, %s358
    %s361 = sphi 0, %s360
    %s375 = sphi 0, %s361
    %s379 = sphi 0, %s379
    %s381 = sphi 0, %s379
    %s382 = sphi 0, %s381
    %s396 = sphi 0, %s382
    %s400 = sphi 0, %s400
    %s402 = sphi 0, %s400
    %s403 = sphi 0, %s402
    %s417 = sphi 0, %s403
    %s421 = sphi 0, %s421
    %s423 = sphi 0, %s421
    %s424 = sphi 0, %s423
    %s438 = sphi 0, %s424
    %s442 = sphi 0, %s442
    %s444 = sphi 0, %s442
    %s445 = sphi 0, %s444
    %s459 = sphi 0, %s445
    %s463 = sphi 0, %s463
    %s465 = sphi 0, %s463
    %s466 = sphi 0, %s465
    %s480 = sphi 0, %s466
    %s484 = sphi 0, %s484
    %s486 = sphi 0, %s484
    %s487 = sphi 0, %s486
    %s501 = sphi 0, %s487
    %s507 = sphi 0, %s509
    %s510 = sphi 0, %s507
    %s511 = sphi 0, %s510
    %s527 = sphi 0, %s511
  $region4: #{gaze_selector_forward.3} parent=0 // loop_header_branch
    %33 = sbr.rel (%p31) target = $region8
  $region5: #{gaze_selector_forward.3} parent=0 // loop_body
    %s35 = ssub.s32 %s30, 1
    %s36 = ssub.s32 %s30, 2
    %s37 = sadd.s32 %s30, 1
    %s38 = ssub.s32 %s30, %s37
    %p39 = scmp.eq.s32.totalorder %s38, 0
    %s41 = sadd.s32 %s40, 1
    %s42 = scalar_select %p39, %s40, %s41
    %p45 = pneg %p39
    %p46 = scmp.eq.s32.totalorder %s30, 5
    %p47 = por %p45, %p46
    %p48 = scmp.ne.s32.totalorder %s40, %s43
    %p49 = scmp.eq.s32.totalorder %s30, 0
    %p50 = por %p48, %p49
    %p51 = scmp.ne.s32.totalorder %s40, %s43
    %p52 = scmp.eq.s32.totalorder %s35, 5
    %p53 = por %p51, %p52
    %p54 = scmp.ne.s32.totalorder %s43, %s44
    %p55 = scmp.eq.s32.totalorder %s35, 0
    %p56 = por %p54, %p55
    %p57 = scmp.ne.s32.totalorder %s43, %s44
    %p58 = scmp.eq.s32.totalorder %s36, 5
    %p59 = por %p57, %p58
    %p61 = scmp.ne.s32.totalorder %s44, %s60
    %p62 = scmp.eq.s32.totalorder %s36, 0
    %p63 = por %p61, %p62
    %s65 = sadd.s32 %s64, 1
    %p68 = scmp.eq.s32.totalorder %s30, 5
    %p69 = scmp.ne.s32.totalorder %s64, %s66
    %p70 = scmp.eq.s32.totalorder %s30, 0
    %p71 = por %p69, %p70
    %p72 = scmp.ne.s32.totalorder %s64, %s66
    %p73 = scmp.eq.s32.totalorder %s35, 5
    %p74 = por %p72, %p73
    %p75 = scmp.ne.s32.totalorder %s66, %s67
    %p76 = scmp.eq.s32.totalorder %s35, 0
    %p77 = por %p75, %p76
    %p78 = scmp.ne.s32.totalorder %s66, %s67
    %p79 = scmp.eq.s32.totalorder %s36, 5
    %p80 = por %p78, %p79
    %p82 = scmp.ne.s32.totalorder %s67, %s81
    %p83 = scmp.eq.s32.totalorder %s36, 0
    %p84 = por %p82, %p83
    %s86 = sadd.s32 %s85, 1
    %p89 = scmp.eq.s32.totalorder %s30, 5
    %p90 = scmp.ne.s32.totalorder %s85, %s87
    %p91 = scmp.eq.s32.totalorder %s30, 0
    %p92 = por %p90, %p91
    %p93 = scmp.ne.s32.totalorder %s85, %s87
    %p94 = scmp.eq.s32.totalorder %s35, 5
    %p95 = por %p93, %p94
    %p96 = scmp.ne.s32.totalorder %s87, %s88
    %p97 = scmp.eq.s32.totalorder %s35, 0
    %p98 = por %p96, %p97
    %p99 = scmp.ne.s32.totalorder %s87, %s88
    %p100 = scmp.eq.s32.totalorder %s36, 5
    %p101 = por %p99, %p100
    %p103 = scmp.ne.s32.totalorder %s88, %s102
    %p104 = scmp.eq.s32.totalorder %s36, 0
    %p105 = por %p103, %p104
    %s107 = sadd.s32 %s106, 1
    %p110 = scmp.eq.s32.totalorder %s30, 5
    %p111 = scmp.ne.s32.totalorder %s106, %s108
    %p112 = scmp.eq.s32.totalorder %s30, 0
    %p113 = por %p111, %p112
    %p114 = scmp.ne.s32.totalorder %s106, %s108
    %p115 = scmp.eq.s32.totalorder %s35, 5
    %p116 = por %p114, %p115
    %p117 = scmp.ne.s32.totalorder %s108, %s109
    %p118 = scmp.eq.s32.totalorder %s35, 0
    %p119 = por %p117, %p118
    %p120 = scmp.ne.s32.totalorder %s108, %s109
    %p121 = scmp.eq.s32.totalorder %s36, 5
    %p122 = por %p120, %p121
    %p124 = scmp.ne.s32.totalorder %s109, %s123
    %p125 = scmp.eq.s32.totalorder %s36, 0
    %p126 = por %p124, %p125
    %s128 = sadd.s32 %s127, 1
    %p131 = scmp.eq.s32.totalorder %s30, 5
    %p132 = scmp.ne.s32.totalorder %s127, %s129
    %p133 = scmp.eq.s32.totalorder %s30, 0
    %p134 = por %p132, %p133
    %p135 = scmp.ne.s32.totalorder %s127, %s129
    %p136 = scmp.eq.s32.totalorder %s35, 5
    %p137 = por %p135, %p136
    %p138 = scmp.ne.s32.totalorder %s129, %s130
    %p139 = scmp.eq.s32.totalorder %s35, 0
    %p140 = por %p138, %p139
    %p141 = scmp.ne.s32.totalorder %s129, %s130
    %p142 = scmp.eq.s32.totalorder %s36, 5
    %p143 = por %p141, %p142
    %p145 = scmp.ne.s32.totalorder %s130, %s144
    %p146 = scmp.eq.s32.totalorder %s36, 0
    %p147 = por %p145, %p146
    %s149 = sadd.s32 %s148, 1
    %p152 = scmp.eq.s32.totalorder %s30, 5
    %p153 = scmp.ne.s32.totalorder %s148, %s150
    %p154 = scmp.eq.s32.totalorder %s30, 0
    %p155 = por %p153, %p154
    %p156 = scmp.ne.s32.totalorder %s148, %s150
    %p157 = scmp.eq.s32.totalorder %s35, 5
    %p158 = por %p156, %p157
    %p159 = scmp.ne.s32.totalorder %s150, %s151
    %p160 = scmp.eq.s32.totalorder %s35, 0
    %p161 = por %p159, %p160
    %p162 = scmp.ne.s32.totalorder %s150, %s151
    %p163 = scmp.eq.s32.totalorder %s36, 5
    %p164 = por %p162, %p163
    %p166 = scmp.ne.s32.totalorder %s151, %s165
    %p167 = scmp.eq.s32.totalorder %s36, 0
    %p168 = por %p166, %p167
    %s170 = sadd.s32 %s169, 1
    %p173 = scmp.eq.s32.totalorder %s30, 5
    %p174 = scmp.ne.s32.totalorder %s169, %s171
    %p175 = scmp.eq.s32.totalorder %s30, 0
    %p176 = por %p174, %p175
    %p177 = scmp.ne.s32.totalorder %s169, %s171
    %p178 = scmp.eq.s32.totalorder %s35, 5
    %p179 = por %p177, %p178
    %p180 = scmp.ne.s32.totalorder %s171, %s172
    %p181 = scmp.eq.s32.totalorder %s35, 0
    %p182 = por %p180, %p181
    %p183 = scmp.ne.s32.totalorder %s171, %s172
    %p184 = scmp.eq.s32.totalorder %s36, 5
    %p185 = por %p183, %p184
    %p187 = scmp.ne.s32.totalorder %s172, %s186
    %p188 = scmp.eq.s32.totalorder %s36, 0
    %p189 = por %p187, %p188
    %s191 = sadd.s32 %s190, 1
    %p194 = scmp.eq.s32.totalorder %s30, 5
    %p195 = scmp.ne.s32.totalorder %s190, %s192
    %p196 = scmp.eq.s32.totalorder %s30, 0
    %p197 = por %p195, %p196
    %p198 = scmp.ne.s32.totalorder %s190, %s192
    %p199 = scmp.eq.s32.totalorder %s35, 5
    %p200 = por %p198, %p199
    %p201 = scmp.ne.s32.totalorder %s192, %s193
    %p202 = scmp.eq.s32.totalorder %s35, 0
    %p203 = por %p201, %p202
    %p204 = scmp.ne.s32.totalorder %s192, %s193
    %p205 = scmp.eq.s32.totalorder %s36, 5
    %p206 = por %p204, %p205
    %p208 = scmp.ne.s32.totalorder %s193, %s207
    %p209 = scmp.eq.s32.totalorder %s36, 0
    %p210 = por %p208, %p209
    %s212 = sadd.s32 %s211, 1
    %p215 = scmp.eq.s32.totalorder %s30, 5
    %p216 = scmp.ne.s32.totalorder %s211, %s213
    %p217 = scmp.eq.s32.totalorder %s30, 0
    %p218 = por %p216, %p217
    %p219 = scmp.ne.s32.totalorder %s211, %s213
    %p220 = scmp.eq.s32.totalorder %s35, 5
    %p221 = por %p219, %p220
    %p222 = scmp.ne.s32.totalorder %s213, %s214
    %p223 = scmp.eq.s32.totalorder %s35, 0
    %p224 = por %p222, %p223
    %p225 = scmp.ne.s32.totalorder %s213, %s214
    %p226 = scmp.eq.s32.totalorder %s36, 5
    %p227 = por %p225, %p226
    %p229 = scmp.ne.s32.totalorder %s214, %s228
    %p230 = scmp.eq.s32.totalorder %s36, 0
    %p231 = por %p229, %p230
    %s233 = sadd.s32 %s232, 1
    %p236 = scmp.eq.s32.totalorder %s30, 5
    %p237 = scmp.ne.s32.totalorder %s232, %s234
    %p238 = scmp.eq.s32.totalorder %s30, 0
    %p239 = por %p237, %p238
    %p240 = scmp.ne.s32.totalorder %s232, %s234
    %p241 = scmp.eq.s32.totalorder %s35, 5
    %p242 = por %p240, %p241
    %p243 = scmp.ne.s32.totalorder %s234, %s235
    %p244 = scmp.eq.s32.totalorder %s35, 0
    %p245 = por %p243, %p244
    %p246 = scmp.ne.s32.totalorder %s234, %s235
    %p247 = scmp.eq.s32.totalorder %s36, 5
    %p248 = por %p246, %p247
    %p250 = scmp.ne.s32.totalorder %s235, %s249
    %p251 = scmp.eq.s32.totalorder %s36, 0
    %p252 = por %p250, %p251
    %s254 = sadd.s32 %s253, 1
    %p257 = scmp.eq.s32.totalorder %s30, 5
    %p258 = scmp.ne.s32.totalorder %s253, %s255
    %p259 = scmp.eq.s32.totalorder %s30, 0
    %p260 = por %p258, %p259
    %p261 = scmp.ne.s32.totalorder %s253, %s255
    %p262 = scmp.eq.s32.totalorder %s35, 5
    %p263 = por %p261, %p262
    %p264 = scmp.ne.s32.totalorder %s255, %s256
    %p265 = scmp.eq.s32.totalorder %s35, 0
    %p266 = por %p264, %p265
    %p267 = scmp.ne.s32.totalorder %s255, %s256
    %p268 = scmp.eq.s32.totalorder %s36, 5
    %p269 = por %p267, %p268
    %p271 = scmp.ne.s32.totalorder %s256, %s270
    %p272 = scmp.eq.s32.totalorder %s36, 0
    %p273 = por %p271, %p272
    %s275 = sadd.s32 %s274, 1
    %p278 = scmp.eq.s32.totalorder %s30, 5
    %p279 = scmp.ne.s32.totalorder %s274, %s276
    %p280 = scmp.eq.s32.totalorder %s30, 0
    %p281 = por %p279, %p280
    %p282 = scmp.ne.s32.totalorder %s274, %s276
    %p283 = scmp.eq.s32.totalorder %s35, 5
    %p284 = por %p282, %p283
    %p285 = scmp.ne.s32.totalorder %s276, %s277
    %p286 = scmp.eq.s32.totalorder %s35, 0
    %p287 = por %p285, %p286
    %p288 = scmp.ne.s32.totalorder %s276, %s277
    %p289 = scmp.eq.s32.totalorder %s36, 5
    %p290 = por %p288, %p289
    %p292 = scmp.ne.s32.totalorder %s277, %s291
    %p293 = scmp.eq.s32.totalorder %s36, 0
    %p294 = por %p292, %p293
    %s296 = sadd.s32 %s295, 1
    %p299 = scmp.eq.s32.totalorder %s30, 5
    %p300 = scmp.ne.s32.totalorder %s295, %s297
    %p301 = scmp.eq.s32.totalorder %s30, 0
    %p302 = por %p300, %p301
    %p303 = scmp.ne.s32.totalorder %s295, %s297
    %p304 = scmp.eq.s32.totalorder %s35, 5
    %p305 = por %p303, %p304
    %p306 = scmp.ne.s32.totalorder %s297, %s298
    %p307 = scmp.eq.s32.totalorder %s35, 0
    %p308 = por %p306, %p307
    %p309 = scmp.ne.s32.totalorder %s297, %s298
    %p310 = scmp.eq.s32.totalorder %s36, 5
    %p311 = por %p309, %p310
    %p313 = scmp.ne.s32.totalorder %s298, %s312
    %p314 = scmp.eq.s32.totalorder %s36, 0
    %p315 = por %p313, %p314
    %s317 = sadd.s32 %s316, 1
    %p320 = scmp.eq.s32.totalorder %s30, 5
    %p321 = scmp.ne.s32.totalorder %s316, %s318
    %p322 = scmp.eq.s32.totalorder %s30, 0
    %p323 = por %p321, %p322
    %p324 = scmp.ne.s32.totalorder %s316, %s318
    %p325 = scmp.eq.s32.totalorder %s35, 5
    %p326 = por %p324, %p325
    %p327 = scmp.ne.s32.totalorder %s318, %s319
    %p328 = scmp.eq.s32.totalorder %s35, 0
    %p329 = por %p327, %p328
    %p330 = scmp.ne.s32.totalorder %s318, %s319
    %p331 = scmp.eq.s32.totalorder %s36, 5
    %p332 = por %p330, %p331
    %p334 = scmp.ne.s32.totalorder %s319, %s333
    %p335 = scmp.eq.s32.totalorder %s36, 0
    %p336 = por %p334, %p335
    %s338 = sadd.s32 %s337, 1
    %p341 = scmp.eq.s32.totalorder %s30, 5
    %p342 = scmp.ne.s32.totalorder %s337, %s339
    %p343 = scmp.eq.s32.totalorder %s30, 0
    %p344 = por %p342, %p343
    %p345 = scmp.ne.s32.totalorder %s337, %s339
    %p346 = scmp.eq.s32.totalorder %s35, 5
    %p347 = por %p345, %p346
    %p348 = scmp.ne.s32.totalorder %s339, %s340
    %p349 = scmp.eq.s32.totalorder %s35, 0
    %p350 = por %p348, %p349
    %p351 = scmp.ne.s32.totalorder %s339, %s340
    %p352 = scmp.eq.s32.totalorder %s36, 5
    %p353 = por %p351, %p352
    %p355 = scmp.ne.s32.totalorder %s340, %s354
    %p356 = scmp.eq.s32.totalorder %s36, 0
    %p357 = por %p355, %p356
    %s359 = sadd.s32 %s358, 1
    %p362 = scmp.eq.s32.totalorder %s30, 5
    %p363 = scmp.ne.s32.totalorder %s358, %s360
    %p364 = scmp.eq.s32.totalorder %s30, 0
    %p365 = por %p363, %p364
    %p366 = scmp.ne.s32.totalorder %s358, %s360
    %p367 = scmp.eq.s32.totalorder %s35, 5
    %p368 = por %p366, %p367
    %p369 = scmp.ne.s32.totalorder %s360, %s361
    %p370 = scmp.eq.s32.totalorder %s35, 0
    %p371 = por %p369, %p370
    %p372 = scmp.ne.s32.totalorder %s360, %s361
    %p373 = scmp.eq.s32.totalorder %s36, 5
    %p374 = por %p372, %p373
    %p376 = scmp.ne.s32.totalorder %s361, %s375
    %p377 = scmp.eq.s32.totalorder %s36, 0
    %p378 = por %p376, %p377
    %s380 = sadd.s32 %s379, 1
    %p383 = scmp.eq.s32.totalorder %s30, 5
    %p384 = scmp.ne.s32.totalorder %s379, %s381
    %p385 = scmp.eq.s32.totalorder %s30, 0
    %p386 = por %p384, %p385
    %p387 = scmp.ne.s32.totalorder %s379, %s381
    %p388 = scmp.eq.s32.totalorder %s35, 5
    %p389 = por %p387, %p388
    %p390 = scmp.ne.s32.totalorder %s381, %s382
    %p391 = scmp.eq.s32.totalorder %s35, 0
    %p392 = por %p390, %p391
    %p393 = scmp.ne.s32.totalorder %s381, %s382
    %p394 = scmp.eq.s32.totalorder %s36, 5
    %p395 = por %p393, %p394
    %p397 = scmp.ne.s32.totalorder %s382, %s396
    %p398 = scmp.eq.s32.totalorder %s36, 0
    %p399 = por %p397, %p398
    %s401 = sadd.s32 %s400, 1
    %p404 = scmp.eq.s32.totalorder %s30, 5
    %p405 = scmp.ne.s32.totalorder %s400, %s402
    %p406 = scmp.eq.s32.totalorder %s30, 0
    %p407 = por %p405, %p406
    %p408 = scmp.ne.s32.totalorder %s400, %s402
    %p409 = scmp.eq.s32.totalorder %s35, 5
    %p410 = por %p408, %p409
    %p411 = scmp.ne.s32.totalorder %s402, %s403
    %p412 = scmp.eq.s32.totalorder %s35, 0
    %p413 = por %p411, %p412
    %p414 = scmp.ne.s32.totalorder %s402, %s403
    %p415 = scmp.eq.s32.totalorder %s36, 5
    %p416 = por %p414, %p415
    %p418 = scmp.ne.s32.totalorder %s403, %s417
    %p419 = scmp.eq.s32.totalorder %s36, 0
    %p420 = por %p418, %p419
    %s422 = sadd.s32 %s421, 1
    %p425 = scmp.eq.s32.totalorder %s30, 5
    %p426 = scmp.ne.s32.totalorder %s421, %s423
    %p427 = scmp.eq.s32.totalorder %s30, 0
    %p428 = por %p426, %p427
    %p429 = scmp.ne.s32.totalorder %s421, %s423
    %p430 = scmp.eq.s32.totalorder %s35, 5
    %p431 = por %p429, %p430
    %p432 = scmp.ne.s32.totalorder %s423, %s424
    %p433 = scmp.eq.s32.totalorder %s35, 0
    %p434 = por %p432, %p433
    %p435 = scmp.ne.s32.totalorder %s423, %s424
    %p436 = scmp.eq.s32.totalorder %s36, 5
    %p437 = por %p435, %p436
    %p439 = scmp.ne.s32.totalorder %s424, %s438
    %p440 = scmp.eq.s32.totalorder %s36, 0
    %p441 = por %p439, %p440
    %s443 = sadd.s32 %s442, 1
    %p446 = scmp.eq.s32.totalorder %s30, 5
    %p447 = scmp.ne.s32.totalorder %s442, %s444
    %p448 = scmp.eq.s32.totalorder %s30, 0
    %p449 = por %p447, %p448
    %p450 = scmp.ne.s32.totalorder %s442, %s444
    %p451 = scmp.eq.s32.totalorder %s35, 5
    %p452 = por %p450, %p451
    %p453 = scmp.ne.s32.totalorder %s444, %s445
    %p454 = scmp.eq.s32.totalorder %s35, 0
    %p455 = por %p453, %p454
    %p456 = scmp.ne.s32.totalorder %s444, %s445
    %p457 = scmp.eq.s32.totalorder %s36, 5
    %p458 = por %p456, %p457
    %p460 = scmp.ne.s32.totalorder %s445, %s459
    %p461 = scmp.eq.s32.totalorder %s36, 0
    %p462 = por %p460, %p461
    %s464 = sadd.s32 %s463, 1
    %p467 = scmp.eq.s32.totalorder %s30, 5
    %p468 = scmp.ne.s32.totalorder %s463, %s465
    %p469 = scmp.eq.s32.totalorder %s30, 0
    %p470 = por %p468, %p469
    %p471 = scmp.ne.s32.totalorder %s463, %s465
    %p472 = scmp.eq.s32.totalorder %s35, 5
    %p473 = por %p471, %p472
    %p474 = scmp.ne.s32.totalorder %s465, %s466
    %p475 = scmp.eq.s32.totalorder %s35, 0
    %p476 = por %p474, %p475
    %p477 = scmp.ne.s32.totalorder %s465, %s466
    %p478 = scmp.eq.s32.totalorder %s36, 5
    %p479 = por %p477, %p478
    %p481 = scmp.ne.s32.totalorder %s466, %s480
    %p482 = scmp.eq.s32.totalorder %s36, 0
    %p483 = por %p481, %p482
    %s485 = sadd.s32 %s484, 1
    %p488 = scmp.eq.s32.totalorder %s30, 5
    %p489 = scmp.ne.s32.totalorder %s484, %s486
    %p490 = scmp.eq.s32.totalorder %s30, 0
    %p491 = por %p489, %p490
    %p492 = scmp.ne.s32.totalorder %s484, %s486
    %p493 = scmp.eq.s32.totalorder %s35, 5
    %p494 = por %p492, %p493
    %p495 = scmp.ne.s32.totalorder %s486, %s487
    %p496 = scmp.eq.s32.totalorder %s35, 0
    %p497 = por %p495, %p496
    %p498 = scmp.ne.s32.totalorder %s486, %s487
    %p499 = scmp.eq.s32.totalorder %s36, 5
    %p500 = por %p498, %p499
    %p502 = scmp.ne.s32.totalorder %s487, %s501
    %p503 = scmp.eq.s32.totalorder %s36, 0
    %p504 = por %p502, %p503
    %s505 = ssub.s32 %s30, %s37
    %p506 = scmp.eq.s32.totalorder %s505, 0
    %s508 = sadd.s32 %s507, 1
    %s509 = scalar_select %p506, %s507, %s508
    %p512 = pneg %p506
    %p513 = scmp.eq.s32.totalorder %s30, 5
    %p514 = por %p512, %p513
    %p515 = scmp.ne.s32.totalorder %s507, %s510
    %p516 = scmp.eq.s32.totalorder %s30, 0
    %p517 = por %p515, %p516
    %p518 = scmp.ne.s32.totalorder %s507, %s510
    %p519 = scmp.eq.s32.totalorder %s35, 5
    %p520 = por %p518, %p519
    %p521 = scmp.ne.s32.totalorder %s510, %s511
    %p522 = scmp.eq.s32.totalorder %s35, 0
    %p523 = por %p521, %p522
    %p524 = scmp.ne.s32.totalorder %s510, %s511
    %p525 = scmp.eq.s32.totalorder %s36, 5
    %p526 = por %p524, %p525
    %p528 = scmp.ne.s32.totalorder %s511, %s527
    %p529 = scmp.eq.s32.totalorder %s36, 0
    %p530 = por %p528, %p529
    %p531 = scmp.le.s32.totalorder 1, %s30
    %p532 = scmp.lt.s32.totalorder %s30, 7
    %p533 = pnand %p531, %p532
    %p534 = pneg %p533
    // Predicated region
    $region9: #{gaze_selector_forward.3} parent=5 // pred_check
      _
    $region10: #{gaze_selector_forward.3} parent=5 // pred_check_branch
      %536 = sbr.rel (%p533) target = $region12
    $region11: #{gaze_selector_forward.3} parent=5 // pred_region
      %s537 = ssub.s32 %s30, 1
      // Predicated region
      $region13: #{gaze_selector_forward.3} parent=11 // pred_check
        %p538 = pneg %p77
      $region14: #{gaze_selector_forward.3} parent=11 // pred_check_branch
        %540 = sbr.rel (%p538) target = $region16
      $region15: #{gaze_selector_forward.3} parent=11 // pred_region
        _
      $region16: #{gaze_selector_forward.3} parent=11 // pred_fallthru
        _
      // Predicated region
      $region17: #{gaze_selector_forward.3} parent=11 // pred_check
        %p541 = pneg %p98
      $region18: #{gaze_selector_forward.3} parent=11 // pred_check_branch
        %543 = sbr.rel (%p541) target = $region20
      $region19: #{gaze_selector_forward.3} parent=11 // pred_region
        _
      $region20: #{gaze_selector_forward.3} parent=11 // pred_fallthru
        _
      // Predicated region
      $region21: #{gaze_selector_forward.3} parent=11 // pred_check
        %p544 = pneg %p119
      $region22: #{gaze_selector_forward.3} parent=11 // pred_check_branch
        %546 = sbr.rel (%p544) target = $region24
      $region23: #{gaze_selector_forward.3} parent=11 // pred_region
        _
      $region24: #{gaze_selector_forward.3} parent=11 // pred_fallthru
        _
      // Predicated region
      $region25: #{gaze_selector_forward.3} parent=11 // pred_check
        %p547 = pneg %p140
      $region26: #{gaze_selector_forward.3} parent=11 // pred_check_branch
        %549 = sbr.rel (%p547) target = $region28
      $region27: #{gaze_selector_forward.3} parent=11 // pred_region
        _
      $region28: #{gaze_selector_forward.3} parent=11 // pred_fallthru
        _
      // Predicated region
      $region29: #{gaze_selector_forward.3} parent=11 // pred_check
        %p550 = pneg %p161
      $region30: #{gaze_selector_forward.3} parent=11 // pred_check_branch
        %552 = sbr.rel (%p550) target = $region32
      $region31: #{gaze_selector_forward.3} parent=11 // pred_region
        _
      $region32: #{gaze_selector_forward.3} parent=11 // pred_fallthru
        _
      // Predicated region
      $region33: #{gaze_selector_forward.3} parent=11 // pred_check
        %p553 = pneg %p182
      $region34: #{gaze_selector_forward.3} parent=11 // pred_check_branch
        %555 = sbr.rel (%p553) target = $region36
      $region35: #{gaze_selector_forward.3} parent=11 // pred_region
        _
      $region36: #{gaze_selector_forward.3} parent=11 // pred_fallthru
        _
      // Predicated region
      $region37: #{gaze_selector_forward.3} parent=11 // pred_check
        %p556 = pneg %p203
      $region38: #{gaze_selector_forward.3} parent=11 // pred_check_branch
        %558 = sbr.rel (%p556) target = $region40
      $region39: #{gaze_selector_forward.3} parent=11 // pred_region
        _
      $region40: #{gaze_selector_forward.3} parent=11 // pred_fallthru
        _
      // Predicated region
      $region41: #{gaze_selector_forward.3} parent=11 // pred_check
        %p559 = pneg %p224
      $region42: #{gaze_selector_forward.3} parent=11 // pred_check_branch
        %561 = sbr.rel (%p559) target = $region44
      $region43: #{gaze_selector_forward.3} parent=11 // pred_region
        _
      $region44: #{gaze_selector_forward.3} parent=11 // pred_fallthru
        _
      // Predicated region
      $region45: #{gaze_selector_forward.3} parent=11 // pred_check
        %p562 = pneg %p245
      $region46: #{gaze_selector_forward.3} parent=11 // pred_check_branch
        %564 = sbr.rel (%p562) target = $region48
      $region47: #{gaze_selector_forward.3} parent=11 // pred_region
        _
      $region48: #{gaze_selector_forward.3} parent=11 // pred_fallthru
        _
      // Predicated region
      $region49: #{gaze_selector_forward.3} parent=11 // pred_check
        %p565 = pneg %p266
      $region50: #{gaze_selector_forward.3} parent=11 // pred_check_branch
        %567 = sbr.rel (%p565) target = $region52
      $region51: #{gaze_selector_forward.3} parent=11 // pred_region
        _
      $region52: #{gaze_selector_forward.3} parent=11 // pred_fallthru
        _
      // Predicated region
      $region53: #{gaze_selector_forward.3} parent=11 // pred_check
        %p568 = pneg %p287
      $region54: #{gaze_selector_forward.3} parent=11 // pred_check_branch
        %570 = sbr.rel (%p568) target = $region56
      $region55: #{gaze_selector_forward.3} parent=11 // pred_region
        _
      $region56: #{gaze_selector_forward.3} parent=11 // pred_fallthru
        _
      // Predicated region
      $region57: #{gaze_selector_forward.3} parent=11 // pred_check
        %p571 = pneg %p308
      $region58: #{gaze_selector_forward.3} parent=11 // pred_check_branch
        %573 = sbr.rel (%p571) target = $region60
      $region59: #{gaze_selector_forward.3} parent=11 // pred_region
        _
      $region60: #{gaze_selector_forward.3} parent=11 // pred_fallthru
        _
      // Predicated region
      $region61: #{gaze_selector_forward.3} parent=11 // pred_check
        %p574 = pneg %p329
      $region62: #{gaze_selector_forward.3} parent=11 // pred_check_branch
        %576 = sbr.rel (%p574) target = $region64
      $region63: #{gaze_selector_forward.3} parent=11 // pred_region
        _
      $region64: #{gaze_selector_forward.3} parent=11 // pred_fallthru
        _
      // Predicated region
      $region65: #{gaze_selector_forward.3} parent=11 // pred_check
        %p577 = pneg %p350
      $region66: #{gaze_selector_forward.3} parent=11 // pred_check_branch
        %579 = sbr.rel (%p577) target = $region68
      $region67: #{gaze_selector_forward.3} parent=11 // pred_region
        _
      $region68: #{gaze_selector_forward.3} parent=11 // pred_fallthru
        _
      // Predicated region
      $region69: #{gaze_selector_forward.3} parent=11 // pred_check
        %p580 = pneg %p371
      $region70: #{gaze_selector_forward.3} parent=11 // pred_check_branch
        %582 = sbr.rel (%p580) target = $region72
      $region71: #{gaze_selector_forward.3} parent=11 // pred_region
        _
      $region72: #{gaze_selector_forward.3} parent=11 // pred_fallthru
        _
      // Predicated region
      $region73: #{gaze_selector_forward.3} parent=11 // pred_check
        %p583 = pneg %p392
      $region74: #{gaze_selector_forward.3} parent=11 // pred_check_branch
        %585 = sbr.rel (%p583) target = $region76
      $region75: #{gaze_selector_forward.3} parent=11 // pred_region
        _
      $region76: #{gaze_selector_forward.3} parent=11 // pred_fallthru
        _
      // Predicated region
      $region77: #{gaze_selector_forward.3} parent=11 // pred_check
        %p586 = pneg %p413
      $region78: #{gaze_selector_forward.3} parent=11 // pred_check_branch
        %588 = sbr.rel (%p586) target = $region80
      $region79: #{gaze_selector_forward.3} parent=11 // pred_region
        _
      $region80: #{gaze_selector_forward.3} parent=11 // pred_fallthru
        _
      // Predicated region
      $region81: #{gaze_selector_forward.3} parent=11 // pred_check
        %p589 = pneg %p434
      $region82: #{gaze_selector_forward.3} parent=11 // pred_check_branch
        %591 = sbr.rel (%p589) target = $region84
      $region83: #{gaze_selector_forward.3} parent=11 // pred_region
        _
      $region84: #{gaze_selector_forward.3} parent=11 // pred_fallthru
        _
      // Predicated region
      $region85: #{gaze_selector_forward.3} parent=11 // pred_check
        %p592 = pneg %p455
      $region86: #{gaze_selector_forward.3} parent=11 // pred_check_branch
        %594 = sbr.rel (%p592) target = $region88
      $region87: #{gaze_selector_forward.3} parent=11 // pred_region
        _
      $region88: #{gaze_selector_forward.3} parent=11 // pred_fallthru
        _
      // Predicated region
      $region89: #{gaze_selector_forward.3} parent=11 // pred_check
        %p595 = pneg %p476
      $region90: #{gaze_selector_forward.3} parent=11 // pred_check_branch
        %597 = sbr.rel (%p595) target = $region92
      $region91: #{gaze_selector_forward.3} parent=11 // pred_region
        _
      $region92: #{gaze_selector_forward.3} parent=11 // pred_fallthru
        _
      // Predicated region
      $region93: #{gaze_selector_forward.3} parent=11 // pred_check
        %p598 = pneg %p497
      $region94: #{gaze_selector_forward.3} parent=11 // pred_check_branch
        %600 = sbr.rel (%p598) target = $region96
      $region95: #{gaze_selector_forward.3} parent=11 // pred_region
        _
      $region96: #{gaze_selector_forward.3} parent=11 // pred_fallthru
        _
    $region12: #{gaze_selector_forward.3} parent=5 // pred_fallthru
      _
    %p601 = scmp.lt.s32.totalorder %s30, 6
    // Predicated region
    $region97: #{gaze_selector_forward.3} parent=5 // pred_check
      %p602 = pneg %p601
    $region98: #{gaze_selector_forward.3} parent=5 // pred_check_branch
      %604 = sbr.rel (%p602) target = $region100
    $region99: #{gaze_selector_forward.3} parent=5 // pred_region
      // Predicated region
      $region101: #{gaze_selector_forward.3} parent=99 // pred_check
        %p605 = pneg %p50
      $region102: #{gaze_selector_forward.3} parent=99 // pred_check_branch
        %607 = sbr.rel (%p605) target = $region104
      $region103: #{gaze_selector_forward.3} parent=99 // pred_region
        %p608 = scmp.lt.s32.totalorder %s30, 5
        %s609 = scalar_select %p608, %s30, 5
        %s610 = smul.addr %s609, 2
        %s611 = smul.addr %s610, 8
        %s612 = scalar_lea.vmem %s0, %s611
      $region104: #{gaze_selector_forward.3} parent=99 // pred_fallthru
        _
    $region100: #{gaze_selector_forward.3} parent=5 // pred_fallthru
      _
    %p613 = scmp.le.s32.totalorder 1, %s30
    %p614 = scmp.lt.s32.totalorder %s30, 7
    %p615 = pnand %p613, %p614
    %p616 = pneg %p615
    // Predicated region
    $region105: #{gaze_selector_forward.3} parent=5 // pred_check
      _
    $region106: #{gaze_selector_forward.3} parent=5 // pred_check_branch
      %618 = sbr.rel (%p615) target = $region108
    $region107: #{gaze_selector_forward.3} parent=5 // pred_region
      %s619 = ssub.s32 %s30, 1
      %p620 = scmp.lt.s32.totalorder %s35, 5
      %s621 = scalar_select %p620, %s35, 5
      %s622 = smul.addr %s621, 2
      %s623 = smul.addr %s622, 8
      %s624 = scalar_lea.vmem %s0, %s623
      %p625 = pneg %p56
      %p626 = pneg %p53
      %p627 = pneg %p77
      %p628 = pneg %p74
      %p629 = pneg %p98
      %p630 = pneg %p95
      %p631 = pneg %p119
      %p632 = pneg %p116
      %p633 = pneg %p140
      %p634 = pneg %p137
      %p635 = pneg %p161
      %p636 = pneg %p158
      %p637 = pneg %p182
      %p638 = pneg %p179
      %p639 = pneg %p203
      %p640 = pneg %p200
      %p641 = pneg %p224
      %p642 = pneg %p221
      %p643 = pneg %p245
      %p644 = pneg %p242
      %p645 = pneg %p266
      %p646 = pneg %p263
      %p647 = pneg %p287
      %p648 = pneg %p284
      %p649 = pneg %p308
      %p650 = pneg %p305
      %p651 = pneg %p329
      %p652 = pneg %p326
      %p653 = pneg %p350
      %p654 = pneg %p347
      %p655 = pneg %p371
      %p656 = pneg %p368
      %p657 = pneg %p392
      %p658 = pneg %p389
      %p659 = pneg %p413
      %p660 = pneg %p410
      %p661 = pneg %p434
      %p662 = pneg %p431
      %p663 = pneg %p455
      %p664 = pneg %p452
      %p665 = pneg %p476
      %p666 = pneg %p473
      %p667 = pneg %p497
      %p668 = pneg %p494
      %p669 = pneg %p523
      %p670 = pneg %p520
      %p671 = scmp.lt.s32.totalorder %s35, 5
      %s672 = scalar_select %p671, %s35, 5
      %s673 = scalar_lea.vmem %s22, %s672
      %p674 = scmp.lt.s32.totalorder %s35, 5
      %s675 = scalar_select %p674, %s35, 5
      %s676 = smul.addr %s675, 2
      %s677 = smul.addr %s676, 8
      %s678 = scalar_lea.vmem %s0, %s677
      %p679 = scmp.lt.s32.totalorder %s35, 5
      %s680 = scalar_select %p679, %s35, 5
      %s681 = scalar_lea.vmem %s22, %s680
      %v683 = vld [vmem:[%s678] sm:$0xff]
      %v684 = vld [vmem:[%s678 + $0x8] sm:$0xf]
      %v685 = vld [vmem:[%s1] sm:$0xff]
      %v686 = vld [vmem:[%s1 + $0x8] sm:$0xf]
      %v687 = vadd.f32 %v683, %v685
      %v688 = vadd.f32 %v684, %v686
      %v689 = vpack.c.bf16 %v688, %v687
      %v690 = vld [vmem:[%s9] sm:$0x1]
      %v691 = vld [vmem:[%s2] sm:$0xf]
      %v692 = vld [vmem:[%s2 + $0x4] sm:$0xf]
      %v693 = vld [vmem:[%s2 + $0x8] sm:$0xf]
      %v694 = vld [vmem:[%s2 + $0xc] sm:$0xf]
      %v695 = vld [vmem:[%s2 + $0x10] sm:$0xf]
      %v696 = vld [vmem:[%s2 + $0x14] sm:$0xf]
      %v697 = vld [vmem:[%s2 + $0x18] sm:$0xf]
      %v698 = vld [vmem:[%s2 + $0x1c] sm:$0xf]
      %v699 = vld [vmem:[%s2 + $0x20] sm:$0xf]
      %v700 = vld [vmem:[%s2 + $0x24] sm:$0xf]
      %v701 = vld [vmem:[%s2 + $0x28] sm:$0xf]
      %v702 = vld [vmem:[%s2 + $0x2c] sm:$0xf]
      %v703 = vld [vmem:[%s2 + $0x30] sm:$0xf]
      %v704 = vld [vmem:[%s2 + $0x34] sm:$0xf]
      %v705 = vld [vmem:[%s2 + $0x38] sm:$0xf]
      %v706 = vld [vmem:[%s2 + $0x3c] sm:$0xf]
      %v707 = vld [vmem:[%s6] sm:$0x1]
      %v709 = vlaneseq
      %v710 = vshrl.u32 %v709, 7
      %v711 = vsub.s32 0, %v710
      %v712 = vrot.slane %v707, %v711
      %v730 = vunpack.c.l.b16 %v691
      %v731 = vunpack.c.l.b16 %v692
      %v732 = vunpack.c.l.b16 %v693
      %v733 = vunpack.c.l.b16 %v694
      %v734 = vunpack.c.l.b16 %v695
      %v735 = vunpack.c.l.b16 %v696
      %v736 = vunpack.c.l.b16 %v697
      %v737 = vunpack.c.l.b16 %v698
      %v738 = vunpack.c.l.b16 %v699
      %v739 = vunpack.c.l.b16 %v700
      %v740 = vunpack.c.l.b16 %v701
      %v741 = vunpack.c.l.b16 %v702
      %v742 = vunpack.c.l.b16 %v703
      %v743 = vunpack.c.l.b16 %v704
      %v744 = vunpack.c.l.b16 %v705
      %v745 = vunpack.c.l.b16 %v706
      %v746 = vpack.c.b16 %v731, %v730
      %v747 = vpack.c.b16 %v733, %v732
      %v748 = vpack.c.b16 %v735, %v734
      %v749 = vpack.c.b16 %v737, %v736
      %v750 = vpack.c.b16 %v739, %v738
      %v751 = vpack.c.b16 %v741, %v740
      %v752 = vpack.c.b16 %v743, %v742
      %v753 = vpack.c.b16 %v745, %v744
      %762 = vmatprep.subr.bf16.mxu0 0
      %763 = vmatpush1.bf16.msra.mxu0 %v753
      %764 = vmatprep.subr.bf16.mxu0 0
      %765 = vmatpush1.bf16.msra.mxu0 %v752
      %766 = vmatprep.subr.bf16.mxu0 0
      %767 = vmatpush1.bf16.msra.mxu0 %v751
      %768 = vmatprep.subr.bf16.mxu0 0
      %769 = vmatpush1.bf16.msra.mxu0 %v750
      %770 = vmatprep.subr.bf16.mxu0 0
      %771 = vmatpush1.bf16.msra.mxu0 %v749
      %772 = vmatprep.subr.bf16.mxu0 0
      %773 = vmatpush1.bf16.msra.mxu0 %v748
      %774 = vmatprep.subr.bf16.mxu0 0
      %775 = vmatpush1.bf16.msra.mxu0 %v747
      %776 = vmatprep.subr.bf16.mxu0 0
      %777 = vmatpush1.bf16.msra.mxu0 %v746
      %778 = vmatprep.subr.bf16.mxu0 0
      %779 = vmatpush2.bf16.msra.mxu0 0
      %780 = vmatprep.subr.bf16.mxu0 0
      %781 = vmatpush2.bf16.msra.mxu0 0
      %782 = vmatprep.subr.bf16.mxu0 0
      %783 = vmatpush2.bf16.msra.mxu0 0
      %784 = vmatprep.subr.bf16.mxu0 0
      %785 = vmatpush2.bf16.msra.mxu0 0
      %786 = vmatprep.subr.bf16.mxu0 0
      %787 = vmatpush2.bf16.msra.mxu0 0
      %788 = vmatprep.subr.bf16.mxu0 0
      %789 = vmatpush2.bf16.msra.mxu0 0
      %790 = vmatprep.subr.bf16.mxu0 0
      %791 = vmatpush2.bf16.msra.mxu0 0
      %792 = vmatprep.subr.bf16.mxu0 0
      %793 = vmatpush2.bf16.msra.mxu0 0
      %794 = vmatprep.mubr.bf16.mxu0 0
      %795 = vmatmul.mubr.bf16.gmra.mxu0 %v689
      %v796 = vpop.f32.mrf.mxu0
      %v797 = vadd.f32 %v712, %v796
      %v798 = vpop.f32.mrf.mxu0
      %v799 = vpop.f32.mrf.mxu0
      %v800 = vadd.f32 %v712, %v799
      %v801 = vpop.f32.mrf.mxu0
      %802 = vdwg.mxu0
      %v803 = vld [vmem:[%s3] sm:$0xf]
      %v804 = vld [vmem:[%s3 + $0x4] sm:$0xf]
      %v805 = vld [vmem:[%s3 + $0x8] sm:$0xf]
      %v806 = vld [vmem:[%s3 + $0xc] sm:$0xf]
      %v807 = vld [vmem:[%s3 + $0x10] sm:$0xf]
      %v808 = vld [vmem:[%s3 + $0x14] sm:$0xf]
      %v809 = vld [vmem:[%s3 + $0x18] sm:$0xf]
      %v810 = vld [vmem:[%s3 + $0x1c] sm:$0xf]
      %v811 = vld [vmem:[%s3 + $0x20] sm:$0xf]
      %v812 = vld [vmem:[%s3 + $0x24] sm:$0xf]
      %v813 = vld [vmem:[%s3 + $0x28] sm:$0xf]
      %v814 = vld [vmem:[%s3 + $0x2c] sm:$0xf]
      %v815 = vld [vmem:[%s3 + $0x30] sm:$0xf]
      %v816 = vld [vmem:[%s3 + $0x34] sm:$0xf]
      %v817 = vld [vmem:[%s3 + $0x38] sm:$0xf]
      %v818 = vld [vmem:[%s3 + $0x3c] sm:$0xf]
      %v819 = vld [vmem:[%s7] sm:$0x1]
      %v821 = vlaneseq
      %v822 = vshrl.u32 %v821, 7
      %v823 = vsub.s32 0, %v822
      %v824 = vrot.slane %v819, %v823
      %v842 = vunpack.c.l.b16 %v803
      %v843 = vunpack.c.l.b16 %v804
      %v844 = vunpack.c.l.b16 %v805
      %v845 = vunpack.c.l.b16 %v806
      %v846 = vunpack.c.l.b16 %v807
      %v847 = vunpack.c.l.b16 %v808
      %v848 = vunpack.c.l.b16 %v809
      %v849 = vunpack.c.l.b16 %v810
      %v850 = vunpack.c.l.b16 %v811
      %v851 = vunpack.c.l.b16 %v812
      %v852 = vunpack.c.l.b16 %v813
      %v853 = vunpack.c.l.b16 %v814
      %v854 = vunpack.c.l.b16 %v815
      %v855 = vunpack.c.l.b16 %v816
      %v856 = vunpack.c.l.b16 %v817
      %v857 = vunpack.c.l.b16 %v818
      %v858 = vpack.c.b16 %v843, %v842
      %v859 = vpack.c.b16 %v845, %v844
      %v860 = vpack.c.b16 %v847, %v846
      %v861 = vpack.c.b16 %v849, %v848
      %v862 = vpack.c.b16 %v851, %v850
      %v863 = vpack.c.b16 %v853, %v852
      %v864 = vpack.c.b16 %v855, %v854
      %v865 = vpack.c.b16 %v857, %v856
      %874 = vmatprep.subr.bf16.mxu0 0
      %875 = vmatpush1.bf16.msra.mxu0 %v865
      %876 = vmatprep.subr.bf16.mxu0 0
      %877 = vmatpush1.bf16.msra.mxu0 %v864
      %878 = vmatprep.subr.bf16.mxu0 0
      %879 = vmatpush1.bf16.msra.mxu0 %v863
      %880 = vmatprep.subr.bf16.mxu0 0
      %881 = vmatpush1.bf16.msra.mxu0 %v862
      %882 = vmatprep.subr.bf16.mxu0 0
      %883 = vmatpush1.bf16.msra.mxu0 %v861
      %884 = vmatprep.subr.bf16.mxu0 0
      %885 = vmatpush1.bf16.msra.mxu0 %v860
      %886 = vmatprep.subr.bf16.mxu0 0
      %887 = vmatpush1.bf16.msra.mxu0 %v859
      %888 = vmatprep.subr.bf16.mxu0 0
      %889 = vmatpush1.bf16.msra.mxu0 %v858
      %890 = vmatprep.subr.bf16.mxu0 0
      %891 = vmatpush2.bf16.msra.mxu0 0
      %892 = vmatprep.subr.bf16.mxu0 0
      %893 = vmatpush2.bf16.msra.mxu0 0
      %894 = vmatprep.subr.bf16.mxu0 0
      %895 = vmatpush2.bf16.msra.mxu0 0
      %896 = vmatprep.subr.bf16.mxu0 0
      %897 = vmatpush2.bf16.msra.mxu0 0
      %898 = vmatprep.subr.bf16.mxu0 0
      %899 = vmatpush2.bf16.msra.mxu0 0
      %900 = vmatprep.subr.bf16.mxu0 0
      %901 = vmatpush2.bf16.msra.mxu0 0
      %902 = vmatprep.subr.bf16.mxu0 0
      %903 = vmatpush2.bf16.msra.mxu0 0
      %904 = vmatprep.subr.bf16.mxu0 0
      %905 = vmatpush2.bf16.msra.mxu0 0
      %906 = vmatprep.mubr.bf16.mxu0 0
      %907 = vmatmul.mubr.bf16.gmra.mxu0 %v689
      %v908 = vpop.f32.mrf.mxu0
      %v909 = vadd.f32 %v824, %v908
      %v910 = vpop.f32.mrf.mxu0
      %v911 = vpop.f32.mrf.mxu0
      %v912 = vadd.f32 %v824, %v911
      %v913 = vpop.f32.mrf.mxu0
      %914 = vdwg.mxu0
      %v915 = vld [vmem:[%s4] sm:$0xf]
      %v916 = vld [vmem:[%s4 + $0x4] sm:$0xf]
      %v917 = vld [vmem:[%s4 + $0x8] sm:$0xf]
      %v918 = vld [vmem:[%s4 + $0xc] sm:$0xf]
      %v919 = vld [vmem:[%s4 + $0x10] sm:$0xf]
      %v920 = vld [vmem:[%s4 + $0x14] sm:$0xf]
      %v921 = vld [vmem:[%s4 + $0x18] sm:$0xf]
      %v922 = vld [vmem:[%s4 + $0x1c] sm:$0xf]
      %v923 = vld [vmem:[%s4 + $0x20] sm:$0xf]
      %v924 = vld [vmem:[%s4 + $0x24] sm:$0xf]
      %v925 = vld [vmem:[%s4 + $0x28] sm:$0xf]
      %v926 = vld [vmem:[%s4 + $0x2c] sm:$0xf]
      %v927 = vld [vmem:[%s4 + $0x30] sm:$0xf]
      %v928 = vld [vmem:[%s4 + $0x34] sm:$0xf]
      %v929 = vld [vmem:[%s4 + $0x38] sm:$0xf]
      %v930 = vld [vmem:[%s4 + $0x3c] sm:$0xf]
      %v931 = vld [vmem:[%s8] sm:$0x1]
      %v933 = vlaneseq
      %v934 = vshrl.u32 %v933, 7
      %v935 = vsub.s32 0, %v934
      %v936 = vrot.slane %v931, %v935
      %v954 = vunpack.c.l.b16 %v915
      %v955 = vunpack.c.l.b16 %v916
      %v956 = vunpack.c.l.b16 %v917
      %v957 = vunpack.c.l.b16 %v918
      %v958 = vunpack.c.l.b16 %v919
      %v959 = vunpack.c.l.b16 %v920
      %v960 = vunpack.c.l.b16 %v921
      %v961 = vunpack.c.l.b16 %v922
      %v962 = vunpack.c.l.b16 %v923
      %v963 = vunpack.c.l.b16 %v924
      %v964 = vunpack.c.l.b16 %v925
      %v965 = vunpack.c.l.b16 %v926
      %v966 = vunpack.c.l.b16 %v927
      %v967 = vunpack.c.l.b16 %v928
      %v968 = vunpack.c.l.b16 %v929
      %v969 = vunpack.c.l.b16 %v930
      %v970 = vpack.c.b16 %v955, %v954
      %v971 = vpack.c.b16 %v957, %v956
      %v972 = vpack.c.b16 %v959, %v958
      %v973 = vpack.c.b16 %v961, %v960
      %v974 = vpack.c.b16 %v963, %v962
      %v975 = vpack.c.b16 %v965, %v964
      %v976 = vpack.c.b16 %v967, %v966
      %v977 = vpack.c.b16 %v969, %v968
      %986 = vmatprep.subr.bf16.mxu0 0
      %987 = vmatpush1.bf16.msra.mxu0 %v977
      %988 = vmatprep.subr.bf16.mxu0 0
      %989 = vmatpush1.bf16.msra.mxu0 %v976
      %990 = vmatprep.subr.bf16.mxu0 0
      %991 = vmatpush1.bf16.msra.mxu0 %v975
      %992 = vmatprep.subr.bf16.mxu0 0
      %993 = vmatpush1.bf16.msra.mxu0 %v974
      %994 = vmatprep.subr.bf16.mxu0 0
      %995 = vmatpush1.bf16.msra.mxu0 %v973
      %996 = vmatprep.subr.bf16.mxu0 0
      %997 = vmatpush1.bf16.msra.mxu0 %v972
      %998 = vmatprep.subr.bf16.mxu0 0
      %999 = vmatpush1.bf16.msra.mxu0 %v971
      %1000 = vmatprep.subr.bf16.mxu0 0
      %1001 = vmatpush1.bf16.msra.mxu0 %v970
      %1002 = vmatprep.subr.bf16.mxu0 0
      %1003 = vmatpush2.bf16.msra.mxu0 0
      %1004 = vmatprep.subr.bf16.mxu0 0
      %1005 = vmatpush2.bf16.msra.mxu0 0
      %1006 = vmatprep.subr.bf16.mxu0 0
      %1007 = vmatpush2.bf16.msra.mxu0 0
      %1008 = vmatprep.subr.bf16.mxu0 0
      %1009 = vmatpush2.bf16.msra.mxu0 0
      %1010 = vmatprep.subr.bf16.mxu0 0
      %1011 = vmatpush2.bf16.msra.mxu0 0
      %1012 = vmatprep.subr.bf16.mxu0 0
      %1013 = vmatpush2.bf16.msra.mxu0 0
      %1014 = vmatprep.subr.bf16.mxu0 0
      %1015 = vmatpush2.bf16.msra.mxu0 0
      %1016 = vmatprep.subr.bf16.mxu0 0
      %1017 = vmatpush2.bf16.msra.mxu0 0
      %1018 = vmatprep.mubr.bf16.mxu0 0
      %1019 = vmatmul.mubr.bf16.gmra.mxu0 %v689
      %v1020 = vpop.f32.mrf.mxu0
      %v1021 = vadd.f32 %v936, %v1020
      %v1022 = vpop.f32.mrf.mxu0
      %v1023 = vpop.f32.mrf.mxu0
      %v1024 = vadd.f32 %v936, %v1023
      %v1025 = vpop.f32.mrf.mxu0
      %1026 = vdwg.mxu0
      %v1027 = vpack.c.bf16 %v800, %v797
      %v1028 = vpack.c.bf16 %v912, %v909
      %vm1029 = vcmask 261120
      %v1031 = vsel %vm1029, %v1027, 0
      %v1034 = vsel %vm1029, %v1028, 0
      %1036 = vmatprep.subr.bf16.mxu0 0
      %1037 = vmatpush1.bf16.xpose.msra.mxu0 0
      %1038 = vmatprep.subr.bf16.mxu0 0
      %1039 = vmatpush1.bf16.xpose.msra.mxu0 0
      %1040 = vmatprep.subr.bf16.mxu0 0
      %1041 = vmatpush1.bf16.xpose.msra.mxu0 0
      %1042 = vmatprep.subr.bf16.mxu0 0
      %1043 = vmatpush1.bf16.xpose.msra.mxu0 0
      %1044 = vmatprep.subr.bf16.mxu0 0
      %1045 = vmatpush1.bf16.xpose.msra.mxu0 0
      %1046 = vmatprep.subr.bf16.mxu0 0
      %1047 = vmatpush1.bf16.xpose.msra.mxu0 0
      %1048 = vmatprep.subr.bf16.mxu0 0
      %1049 = vmatpush1.bf16.xpose.msra.mxu0 0
      %1050 = vmatprep.subr.bf16.mxu0 0
      %1051 = vmatpush1.bf16.xpose.msra.mxu0 %v1034
      %1052 = vmatprep.subr.bf16.mxu0 0
      %1053 = vmatpush2.bf16.xpose.msra.mxu0 0
      %1054 = vmatprep.subr.bf16.mxu0 0
      %1055 = vmatpush2.bf16.xpose.msra.mxu0 0
      %1056 = vmatprep.subr.bf16.mxu0 0
      %1057 = vmatpush2.bf16.xpose.msra.mxu0 0
      %1058 = vmatprep.subr.bf16.mxu0 0
      %1059 = vmatpush2.bf16.xpose.msra.mxu0 0
      %1060 = vmatprep.subr.bf16.mxu0 0
      %1061 = vmatpush2.bf16.xpose.msra.mxu0 0
      %1062 = vmatprep.subr.bf16.mxu0 0
      %1063 = vmatpush2.bf16.xpose.msra.mxu0 0
      %1064 = vmatprep.subr.bf16.mxu0 0
      %1065 = vmatpush2.bf16.xpose.msra.mxu0 0
      %1066 = vmatprep.subr.bf16.mxu0 0
      %1067 = vmatpush2.bf16.xpose.msra.mxu0 0
      %1068 = vmatprep.mubr.bf16.mxu0 0
      %1069 = vmatmul.mubr.bf16.gmra.mxu0 %v1031
      %v1070 = vpop.f32.mrf.mxu0
      %v1071 = vadd.f32 0.0, %v1070
      %v1072 = vpop.f32.mrf.mxu0
      %v1073 = vpop.f32.mrf.mxu0
      %v1074 = vadd.f32 0.0, %v1073
      %v1075 = vpop.f32.mrf.mxu0
      %1076 = vdwg.mxu0
      %v1077 = vmul.f32 %v1071, 0.17677669
      %v1078 = vmul.f32 %v1074, 0.17677669
      %vm1079 = vcmask 97280
      %v1080 = vsel %vm1079, %v1077, -inf
      %1081 = vmax.xlane.f32.xlu0 %v1080
      %v1082 = vpop.xlane.xlu0 %1081
      %vm1083 = vcmask 93184
      %v1084 = vsel %vm1083, %v1078, -inf
      %1085 = vmax.xlane.f32.xlu0 %v1084
      %v1086 = vpop.xlane.xlu0 %1085
      %v1087 = vsub.f32 %v1077, %v1082
      %v1088 = vsub.f32 %v1078, %v1086
      %v1089 = vmul.f32 %v1087, 1.442695
      %v1090 = vpow.pop %v1089
      %v1091 = vmul.f32 %v1088, 1.442695
      %v1092 = vpow.pop %v1091
      %v1093 = vsel %vm1079, %v1090, 0.0
      %1094 = vadd.xlane.f32.xlu0 %v1093
      %v1095 = vpop.xlane.xlu0 %1094
      %v1096 = vsel %vm1083, %v1092, 0.0
      %1097 = vadd.xlane.f32.xlu0 %v1096
      %v1098 = vpop.xlane.xlu0 %1097
      %v1099 = vrcp.pop %v1095
      %v1100 = vrcp.pop %v1098
      %v1101 = vmul.f32 %v1090, %v1099
      %v1102 = vmul.f32 %v1092, %v1100
      %v1103 = vpack.c.bf16 %v1102, %v1101
      %v1104 = vpack.c.bf16 %v1024, %v1021
      %v1106 = vsel %vm1079, %v1103, 0
      %vm1108 = vcmask 1045504
      %v1110 = vsel %vm1108, %v1104, 0
      %1112 = vmatprep.subr.bf16.mxu0 0
      %1113 = vmatpush1.bf16.msra.mxu0 0
      %1114 = vmatprep.subr.bf16.mxu0 0
      %1115 = vmatpush1.bf16.msra.mxu0 0
      %1116 = vmatprep.subr.bf16.mxu0 0
      %1117 = vmatpush1.bf16.msra.mxu0 0
      %1118 = vmatprep.subr.bf16.mxu0 0
      %1119 = vmatpush1.bf16.msra.mxu0 0
      %1120 = vmatprep.subr.bf16.mxu0 0
      %1121 = vmatpush1.bf16.msra.mxu0 0
      %1122 = vmatprep.subr.bf16.mxu0 0
      %1123 = vmatpush1.bf16.msra.mxu0 0
      %1124 = vmatprep.subr.bf16.mxu0 0
      %1125 = vmatpush1.bf16.msra.mxu0 0
      %1126 = vmatprep.subr.bf16.mxu0 0
      %1127 = vmatpush1.bf16.msra.mxu0 %v1110
      %1128 = vmatprep.subr.bf16.mxu0 0
      %1129 = vmatpush2.bf16.msra.mxu0 0
      %1130 = vmatprep.subr.bf16.mxu0 0
      %1131 = vmatpush2.bf16.msra.mxu0 0
      %1132 = vmatprep.subr.bf16.mxu0 0
      %1133 = vmatpush2.bf16.msra.mxu0 0
      %1134 = vmatprep.subr.bf16.mxu0 0
      %1135 = vmatpush2.bf16.msra.mxu0 0
      %1136 = vmatprep.subr.bf16.mxu0 0
      %1137 = vmatpush2.bf16.msra.mxu0 0
      %1138 = vmatprep.subr.bf16.mxu0 0
      %1139 = vmatpush2.bf16.msra.mxu0 0
      %1140 = vmatprep.subr.bf16.mxu0 0
      %1141 = vmatpush2.bf16.msra.mxu0 0
      %1142 = vmatprep.subr.bf16.mxu0 0
      %1143 = vmatpush2.bf16.msra.mxu0 0
      %1144 = vmatprep.mubr.bf16.mxu0 0
      %1145 = vmatmul.mubr.bf16.gmra.mxu0 %v1106
      %v1146 = vpop.f32.mrf.mxu0
      %v1147 = vadd.f32 0.0, %v1146
      %v1148 = vpop.f32.mrf.mxu0
      %v1149 = vpop.f32.mrf.mxu0
      %v1150 = vadd.f32 0.0, %v1149
      %v1151 = vpop.f32.mrf.mxu0
      %1152 = vdwg.mxu0
      %v1153 = vpack.c.bf16 %v1150, %v1147
      %v1154 = vld [vmem:[%s5] sm:$0xf]
      %v1155 = vld [vmem:[%s5 + $0x4] sm:$0xf]
      %v1156 = vld [vmem:[%s5 + $0x8] sm:$0xf]
      %v1157 = vld [vmem:[%s5 + $0xc] sm:$0xf]
      %v1162 = vunpack.c.l.b16 %v1154
      %v1163 = vunpack.c.l.b16 %v1155
      %v1164 = vunpack.c.l.b16 %v1156
      %v1165 = vunpack.c.l.b16 %v1157
      %v1166 = vpack.c.b16 %v1163, %v1162
      %v1167 = vpack.c.b16 %v1165, %v1164
      %v1171 = vsel %vm1029, %v1153, 0
      %1173 = vmatprep.subr.bf16.mxu0 0
      %1174 = vmatpush1.bf16.msra.mxu0 0
      %1175 = vmatprep.subr.bf16.mxu0 0
      %1176 = vmatpush1.bf16.msra.mxu0 0
      %1177 = vmatprep.subr.bf16.mxu0 0
      %1178 = vmatpush1.bf16.msra.mxu0 0
      %1179 = vmatprep.subr.bf16.mxu0 0
      %1180 = vmatpush1.bf16.msra.mxu0 0
      %1181 = vmatprep.subr.bf16.mxu0 0
      %1182 = vmatpush1.bf16.msra.mxu0 0
      %1183 = vmatprep.subr.bf16.mxu0 0
      %1184 = vmatpush1.bf16.msra.mxu0 0
      %1185 = vmatprep.subr.bf16.mxu0 0
      %1186 = vmatpush1.bf16.msra.mxu0 %v1167
      %1187 = vmatprep.subr.bf16.mxu0 0
      %1188 = vmatpush1.bf16.msra.mxu0 %v1166
      %1189 = vmatprep.subr.bf16.mxu0 0
      %1190 = vmatpush2.bf16.msra.mxu0 0
      %1191 = vmatprep.subr.bf16.mxu0 0
      %1192 = vmatpush2.bf16.msra.mxu0 0
      %1193 = vmatprep.subr.bf16.mxu0 0
      %1194 = vmatpush2.bf16.msra.mxu0 0
      %1195 = vmatprep.subr.bf16.mxu0 0
      %1196 = vmatpush2.bf16.msra.mxu0 0
      %1197 = vmatprep.subr.bf16.mxu0 0
      %1198 = vmatpush2.bf16.msra.mxu0 0
      %1199 = vmatprep.subr.bf16.mxu0 0
      %1200 = vmatpush2.bf16.msra.mxu0 0
      %1201 = vmatprep.subr.bf16.mxu0 0
      %1202 = vmatpush2.bf16.msra.mxu0 0
      %1203 = vmatprep.subr.bf16.mxu0 0
      %1204 = vmatpush2.bf16.msra.mxu0 0
      %1205 = vmatprep.mubr.bf16.mxu0 0
      %1206 = vmatmul.mubr.bf16.gmra.mxu0 %v1171
      %v1207 = vpop.f32.mrf.mxu0
      %v1208 = vadd.f32 0.0, %v1207
      %v1209 = vpop.f32.mrf.mxu0
      %v1210 = vpop.f32.mrf.mxu0
      %v1211 = vadd.f32 0.0, %v1210
      %v1212 = vpop.f32.mrf.mxu0
      %1213 = vdwg.mxu0
      %v1215 = vlaneseq
      %v1216 = vshrl.u32 %v1215, 7
      %v1217 = vsub.s32 0, %v1216
      %v1218 = vrot.slane %v690, %v1217
      %v1220 = vadd.f32 %v1218, %v1208
      %v1221 = vadd.f32 %v1218, %v1211
      %s1222 = scalar_lea.vmem %s2, 64
      %v1223 = vld [vmem:[%s1222] sm:$0xf]
      %v1224 = vld [vmem:[%s1222 + $0x4] sm:$0xf]
      %v1225 = vld [vmem:[%s1222 + $0x8] sm:$0xf]
      %v1226 = vld [vmem:[%s1222 + $0xc] sm:$0xf]
      %v1227 = vld [vmem:[%s1222 + $0x10] sm:$0xf]
      %v1228 = vld [vmem:[%s1222 + $0x14] sm:$0xf]
      %v1229 = vld [vmem:[%s1222 + $0x18] sm:$0xf]
      %v1230 = vld [vmem:[%s1222 + $0x1c] sm:$0xf]
      %v1231 = vld [vmem:[%s1222 + $0x20] sm:$0xf]
      %v1232 = vld [vmem:[%s1222 + $0x24] sm:$0xf]
      %v1233 = vld [vmem:[%s1222 + $0x28] sm:$0xf]
      %v1234 = vld [vmem:[%s1222 + $0x2c] sm:$0xf]
      %v1235 = vld [vmem:[%s1222 + $0x30] sm:$0xf]
      %v1236 = vld [vmem:[%s1222 + $0x34] sm:$0xf]
      %v1237 = vld [vmem:[%s1222 + $0x38] sm:$0xf]
      %v1238 = vld [vmem:[%s1222 + $0x3c] sm:$0xf]
      %s1239 = scalar_lea.vmem %s6, 1
      %v1240 = vld [vmem:[%s1239] sm:$0x1]
      %v1242 = vlaneseq
      %v1243 = vshrl.u32 %v1242, 7
      %v1244 = vsub.s32 0, %v1243
      %v1245 = vrot.slane %v1240, %v1244
      %v1263 = vunpack.c.l.b16 %v1223
      %v1264 = vunpack.c.l.b16 %v1224
      %v1265 = vunpack.c.l.b16 %v1225
      %v1266 = vunpack.c.l.b16 %v1226
      %v1267 = vunpack.c.l.b16 %v1227
      %v1268 = vunpack.c.l.b16 %v1228
      %v1269 = vunpack.c.l.b16 %v1229
      %v1270 = vunpack.c.l.b16 %v1230
      %v1271 = vunpack.c.l.b16 %v1231
      %v1272 = vunpack.c.l.b16 %v1232
      %v1273 = vunpack.c.l.b16 %v1233
      %v1274 = vunpack.c.l.b16 %v1234
      %v1275 = vunpack.c.l.b16 %v1235
      %v1276 = vunpack.c.l.b16 %v1236
      %v1277 = vunpack.c.l.b16 %v1237
      %v1278 = vunpack.c.l.b16 %v1238
      %v1279 = vpack.c.b16 %v1264, %v1263
      %v1280 = vpack.c.b16 %v1266, %v1265
      %v1281 = vpack.c.b16 %v1268, %v1267
      %v1282 = vpack.c.b16 %v1270, %v1269
      %v1283 = vpack.c.b16 %v1272, %v1271
      %v1284 = vpack.c.b16 %v1274, %v1273
      %v1285 = vpack.c.b16 %v1276, %v1275
      %v1286 = vpack.c.b16 %v1278, %v1277
      %1295 = vmatprep.subr.bf16.mxu0 0
      %1296 = vmatpush1.bf16.msra.mxu0 %v1286
      %1297 = vmatprep.subr.bf16.mxu0 0
      %1298 = vmatpush1.bf16.msra.mxu0 %v1285
      %1299 = vmatprep.subr.bf16.mxu0 0
      %1300 = vmatpush1.bf16.msra.mxu0 %v1284
      %1301 = vmatprep.subr.bf16.mxu0 0
      %1302 = vmatpush1.bf16.msra.mxu0 %v1283
      %1303 = vmatprep.subr.bf16.mxu0 0
      %1304 = vmatpush1.bf16.msra.mxu0 %v1282
      %1305 = vmatprep.subr.bf16.mxu0 0
      %1306 = vmatpush1.bf16.msra.mxu0 %v1281
      %1307 = vmatprep.subr.bf16.mxu0 0
      %1308 = vmatpush1.bf16.msra.mxu0 %v1280
      %1309 = vmatprep.subr.bf16.mxu0 0
      %1310 = vmatpush1.bf16.msra.mxu0 %v1279
      %1311 = vmatprep.subr.bf16.mxu0 0
      %1312 = vmatpush2.bf16.msra.mxu0 0
      %1313 = vmatprep.subr.bf16.mxu0 0
      %1314 = vmatpush2.bf16.msra.mxu0 0
      %1315 = vmatprep.subr.bf16.mxu0 0
      %1316 = vmatpush2.bf16.msra.mxu0 0
      %1317 = vmatprep.subr.bf16.mxu0 0
      %1318 = vmatpush2.bf16.msra.mxu0 0
      %1319 = vmatprep.subr.bf16.mxu0 0
      %1320 = vmatpush2.bf16.msra.mxu0 0
      %1321 = vmatprep.subr.bf16.mxu0 0
      %1322 = vmatpush2.bf16.msra.mxu0 0
      %1323 = vmatprep.subr.bf16.mxu0 0
      %1324 = vmatpush2.bf16.msra.mxu0 0
      %1325 = vmatprep.subr.bf16.mxu0 0
      %1326 = vmatpush2.bf16.msra.mxu0 0
      %1327 = vmatprep.mubr.bf16.mxu0 0
      %1328 = vmatmul.mubr.bf16.gmra.mxu0 %v689
      %v1329 = vpop.f32.mrf.mxu0
      %v1330 = vadd.f32 %v1245, %v1329
      %v1331 = vpop.f32.mrf.mxu0
      %v1332 = vpop.f32.mrf.mxu0
      %v1333 = vadd.f32 %v1245, %v1332
      %v1334 = vpop.f32.mrf.mxu0
      %1335 = vdwg.mxu0
      %s1336 = scalar_lea.vmem %s3, 64
      %v1337 = vld [vmem:[%s1336] sm:$0xf]
      %v1338 = vld [vmem:[%s1336 + $0x4] sm:$0xf]
      %v1339 = vld [vmem:[%s1336 + $0x8] sm:$0xf]
      %v1340 = vld [vmem:[%s1336 + $0xc] sm:$0xf]
      %v1341 = vld [vmem:[%s1336 + $0x10] sm:$0xf]
      %v1342 = vld [vmem:[%s1336 + $0x14] sm:$0xf]
      %v1343 = vld [vmem:[%s1336 + $0x18] sm:$0xf]
      %v1344 = vld [vmem:[%s1336 + $0x1c] sm:$0xf]
      %v1345 = vld [vmem:[%s1336 + $0x20] sm:$0xf]
      %v1346 = vld [vmem:[%s1336 + $0x24] sm:$0xf]
      %v1347 = vld [vmem:[%s1336 + $0x28] sm:$0xf]
      %v1348 = vld [vmem:[%s1336 + $0x2c] sm:$0xf]
      %v1349 = vld [vmem:[%s1336 + $0x30] sm:$0xf]
      %v1350 = vld [vmem:[%s1336 + $0x34] sm:$0xf]
      %v1351 = vld [vmem:[%s1336 + $0x38] sm:$0xf]
      %v1352 = vld [vmem:[%s1336 + $0x3c] sm:$0xf]
      %s1353 = scalar_lea.vmem %s7, 1
      %v1354 = vld [vmem:[%s1353] sm:$0x1]
      %v1356 = vlaneseq
      %v1357 = vshrl.u32 %v1356, 7
      %v1358 = vsub.s32 0, %v1357
      %v1359 = vrot.slane %v1354, %v1358
      %v1377 = vunpack.c.l.b16 %v1337
      %v1378 = vunpack.c.l.b16 %v1338
      %v1379 = vunpack.c.l.b16 %v1339
      %v1380 = vunpack.c.l.b16 %v1340
      %v1381 = vunpack.c.l.b16 %v1341
      %v1382 = vunpack.c.l.b16 %v1342
      %v1383 = vunpack.c.l.b16 %v1343
      %v1384 = vunpack.c.l.b16 %v1344
      %v1385 = vunpack.c.l.b16 %v1345
      %v1386 = vunpack.c.l.b16 %v1346
      %v1387 = vunpack.c.l.b16 %v1347
      %v1388 = vunpack.c.l.b16 %v1348
      %v1389 = vunpack.c.l.b16 %v1349
      %v1390 = vunpack.c.l.b16 %v1350
      %v1391 = vunpack.c.l.b16 %v1351
      %v1392 = vunpack.c.l.b16 %v1352
      %v1393 = vpack.c.b16 %v1378, %v1377
      %v1394 = vpack.c.b16 %v1380, %v1379
      %v1395 = vpack.c.b16 %v1382, %v1381
      %v1396 = vpack.c.b16 %v1384, %v1383
      %v1397 = vpack.c.b16 %v1386, %v1385
      %v1398 = vpack.c.b16 %v1388, %v1387
      %v1399 = vpack.c.b16 %v1390, %v1389
      %v1400 = vpack.c.b16 %v1392, %v1391
      %1409 = vmatprep.subr.bf16.mxu0 0
      %1410 = vmatpush1.bf16.msra.mxu0 %v1400
      %1411 = vmatprep.subr.bf16.mxu0 0
      %1412 = vmatpush1.bf16.msra.mxu0 %v1399
      %1413 = vmatprep.subr.bf16.mxu0 0
      %1414 = vmatpush1.bf16.msra.mxu0 %v1398
      %1415 = vmatprep.subr.bf16.mxu0 0
      %1416 = vmatpush1.bf16.msra.mxu0 %v1397
      %1417 = vmatprep.subr.bf16.mxu0 0
      %1418 = vmatpush1.bf16.msra.mxu0 %v1396
      %1419 = vmatprep.subr.bf16.mxu0 0
      %1420 = vmatpush1.bf16.msra.mxu0 %v1395
      %1421 = vmatprep.subr.bf16.mxu0 0
      %1422 = vmatpush1.bf16.msra.mxu0 %v1394
      %1423 = vmatprep.subr.bf16.mxu0 0
      %1424 = vmatpush1.bf16.msra.mxu0 %v1393
      %1425 = vmatprep.subr.bf16.mxu0 0
      %1426 = vmatpush2.bf16.msra.mxu0 0
      %1427 = vmatprep.subr.bf16.mxu0 0
      %1428 = vmatpush2.bf16.msra.mxu0 0
      %1429 = vmatprep.subr.bf16.mxu0 0
      %1430 = vmatpush2.bf16.msra.mxu0 0
      %1431 = vmatprep.subr.bf16.mxu0 0
      %1432 = vmatpush2.bf16.msra.mxu0 0
      %1433 = vmatprep.subr.bf16.mxu0 0
      %1434 = vmatpush2.bf16.msra.mxu0 0
      %1435 = vmatprep.subr.bf16.mxu0 0
      %1436 = vmatpush2.bf16.msra.mxu0 0
      %1437 = vmatprep.subr.bf16.mxu0 0
      %1438 = vmatpush2.bf16.msra.mxu0 0
      %1439 = vmatprep.subr.bf16.mxu0 0
      %1440 = vmatpush2.bf16.msra.mxu0 0
      %1441 = vmatprep.mubr.bf16.mxu0 0
      %1442 = vmatmul.mubr.bf16.gmra.mxu0 %v689
      %v1443 = vpop.f32.mrf.mxu0
      %v1444 = vadd.f32 %v1359, %v1443
      %v1445 = vpop.f32.mrf.mxu0
      %v1446 = vpop.f32.mrf.mxu0
      %v1447 = vadd.f32 %v1359, %v1446
      %v1448 = vpop.f32.mrf.mxu0
      %1449 = vdwg.mxu0
      %s1450 = scalar_lea.vmem %s4, 64
      %v1451 = vld [vmem:[%s1450] sm:$0xf]
      %v1452 = vld [vmem:[%s1450 + $0x4] sm:$0xf]
      %v1453 = vld [vmem:[%s1450 + $0x8] sm:$0xf]
      %v1454 = vld [vmem:[%s1450 + $0xc] sm:$0xf]
      %v1455 = vld [vmem:[%s1450 + $0x10] sm:$0xf]
      %v1456 = vld [vmem:[%s1450 + $0x14] sm:$0xf]
      %v1457 = vld [vmem:[%s1450 + $0x18] sm:$0xf]
      %v1458 = vld [vmem:[%s1450 + $0x1c] sm:$0xf]
      %v1459 = vld [vmem:[%s1450 + $0x20] sm:$0xf]
      %v1460 = vld [vmem:[%s1450 + $0x24] sm:$0xf]
      %v1461 = vld [vmem:[%s1450 + $0x28] sm:$0xf]
      %v1462 = vld [vmem:[%s1450 + $0x2c] sm:$0xf]
      %v1463 = vld [vmem:[%s1450 + $0x30] sm:$0xf]
      %v1464 = vld [vmem:[%s1450 + $0x34] sm:$0xf]
      %v1465 = vld [vmem:[%s1450 + $0x38] sm:$0xf]
      %v1466 = vld [vmem:[%s1450 + $0x3c] sm:$0xf]
      %s1467 = scalar_lea.vmem %s8, 1
      %v1468 = vld [vmem:[%s1467] sm:$0x1]
      %v1470 = vlaneseq
      %v1471 = vshrl.u32 %v1470, 7
      %v1472 = vsub.s32 0, %v1471
      %v1473 = vrot.slane %v1468, %v1472
      %v1491 = vunpack.c.l.b16 %v1451
      %v1492 = vunpack.c.l.b16 %v1452
      %v1493 = vunpack.c.l.b16 %v1453
      %v1494 = vunpack.c.l.b16 %v1454
      %v1495 = vunpack.c.l.b16 %v1455
      %v1496 = vunpack.c.l.b16 %v1456
      %v1497 = vunpack.c.l.b16 %v1457
      %v1498 = vunpack.c.l.b16 %v1458
      %v1499 = vunpack.c.l.b16 %v1459
      %v1500 = vunpack.c.l.b16 %v1460
      %v1501 = vunpack.c.l.b16 %v1461
      %v1502 = vunpack.c.l.b16 %v1462
      %v1503 = vunpack.c.l.b16 %v1463
      %v1504 = vunpack.c.l.b16 %v1464
      %v1505 = vunpack.c.l.b16 %v1465
      %v1506 = vunpack.c.l.b16 %v1466
      %v1507 = vpack.c.b16 %v1492, %v1491
      %v1508 = vpack.c.b16 %v1494, %v1493
      %v1509 = vpack.c.b16 %v1496, %v1495
      %v1510 = vpack.c.b16 %v1498, %v1497
      %v1511 = vpack.c.b16 %v1500, %v1499
      %v1512 = vpack.c.b16 %v1502, %v1501
      %v1513 = vpack.c.b16 %v1504, %v1503
      %v1514 = vpack.c.b16 %v1506, %v1505
      %1523 = vmatprep.subr.bf16.mxu0 0
      %1524 = vmatpush1.bf16.msra.mxu0 %v1514
      %1525 = vmatprep.subr.bf16.mxu0 0
      %1526 = vmatpush1.bf16.msra.mxu0 %v1513
      %1527 = vmatprep.subr.bf16.mxu0 0
      %1528 = vmatpush1.bf16.msra.mxu0 %v1512
      %1529 = vmatprep.subr.bf16.mxu0 0
      %1530 = vmatpush1.bf16.msra.mxu0 %v1511
      %1531 = vmatprep.subr.bf16.mxu0 0
      %1532 = vmatpush1.bf16.msra.mxu0 %v1510
      %1533 = vmatprep.subr.bf16.mxu0 0
      %1534 = vmatpush1.bf16.msra.mxu0 %v1509
      %1535 = vmatprep.subr.bf16.mxu0 0
      %1536 = vmatpush1.bf16.msra.mxu0 %v1508
      %1537 = vmatprep.subr.bf16.mxu0 0
      %1538 = vmatpush1.bf16.msra.mxu0 %v1507
      %1539 = vmatprep.subr.bf16.mxu0 0
      %1540 = vmatpush2.bf16.msra.mxu0 0
      %1541 = vmatprep.subr.bf16.mxu0 0
      %1542 = vmatpush2.bf16.msra.mxu0 0
      %1543 = vmatprep.subr.bf16.mxu0 0
      %1544 = vmatpush2.bf16.msra.mxu0 0
      %1545 = vmatprep.subr.bf16.mxu0 0
      %1546 = vmatpush2.bf16.msra.mxu0 0
      %1547 = vmatprep.subr.bf16.mxu0 0
      %1548 = vmatpush2.bf16.msra.mxu0 0
      %1549 = vmatprep.subr.bf16.mxu0 0
      %1550 = vmatpush2.bf16.msra.mxu0 0
      %1551 = vmatprep.subr.bf16.mxu0 0
      %1552 = vmatpush2.bf16.msra.mxu0 0
      %1553 = vmatprep.subr.bf16.mxu0 0
      %1554 = vmatpush2.bf16.msra.mxu0 0
      %1555 = vmatprep.mubr.bf16.mxu0 0
      %1556 = vmatmul.mubr.bf16.gmra.mxu0 %v689
      %v1557 = vpop.f32.mrf.mxu0
      %v1558 = vadd.f32 %v1473, %v1557
      %v1559 = vpop.f32.mrf.mxu0
      %v1560 = vpop.f32.mrf.mxu0
      %v1561 = vadd.f32 %v1473, %v1560
      %v1562 = vpop.f32.mrf.mxu0
      %1563 = vdwg.mxu0
      %v1564 = vpack.c.bf16 %v1333, %v1330
      %v1565 = vpack.c.bf16 %v1447, %v1444
      %v1567 = vsel %vm1029, %v1564, 0
      %v1570 = vsel %vm1029, %v1565, 0
      %1572 = vmatprep.subr.bf16.mxu0 0
      %1573 = vmatpush1.bf16.xpose.msra.mxu0 0
      %1574 = vmatprep.subr.bf16.mxu0 0
      %1575 = vmatpush1.bf16.xpose.msra.mxu0 0
      %1576 = vmatprep.subr.bf16.mxu0 0
      %1577 = vmatpush1.bf16.xpose.msra.mxu0 0
      %1578 = vmatprep.subr.bf16.mxu0 0
      %1579 = vmatpush1.bf16.xpose.msra.mxu0 0
      %1580 = vmatprep.subr.bf16.mxu0 0
      %1581 = vmatpush1.bf16.xpose.msra.mxu0 0
      %1582 = vmatprep.subr.bf16.mxu0 0
      %1583 = vmatpush1.bf16.xpose.msra.mxu0 0
      %1584 = vmatprep.subr.bf16.mxu0 0
      %1585 = vmatpush1.bf16.xpose.msra.mxu0 0
      %1586 = vmatprep.subr.bf16.mxu0 0
      %1587 = vmatpush1.bf16.xpose.msra.mxu0 %v1570
      %1588 = vmatprep.subr.bf16.mxu0 0
      %1589 = vmatpush2.bf16.xpose.msra.mxu0 0
      %1590 = vmatprep.subr.bf16.mxu0 0
      %1591 = vmatpush2.bf16.xpose.msra.mxu0 0
      %1592 = vmatprep.subr.bf16.mxu0 0
      %1593 = vmatpush2.bf16.xpose.msra.mxu0 0
      %1594 = vmatprep.subr.bf16.mxu0 0
      %1595 = vmatpush2.bf16.xpose.msra.mxu0 0
      %1596 = vmatprep.subr.bf16.mxu0 0
      %1597 = vmatpush2.bf16.xpose.msra.mxu0 0
      %1598 = vmatprep.subr.bf16.mxu0 0
      %1599 = vmatpush2.bf16.xpose.msra.mxu0 0
      %1600 = vmatprep.subr.bf16.mxu0 0
      %1601 = vmatpush2.bf16.xpose.msra.mxu0 0
      %1602 = vmatprep.subr.bf16.mxu0 0
      %1603 = vmatpush2.bf16.xpose.msra.mxu0 0
      %1604 = vmatprep.mubr.bf16.mxu0 0
      %1605 = vmatmul.mubr.bf16.gmra.mxu0 %v1567
      %v1606 = vpop.f32.mrf.mxu0
      %v1607 = vadd.f32 0.0, %v1606
      %v1608 = vpop.f32.mrf.mxu0
      %v1609 = vpop.f32.mrf.mxu0
      %v1610 = vadd.f32 0.0, %v1609
      %v1611 = vpop.f32.mrf.mxu0
      %1612 = vdwg.mxu0
      %v1613 = vmul.f32 %v1607, 0.17677669
      %v1614 = vmul.f32 %v1610, 0.17677669
      %v1615 = vsel %vm1079, %v1613, -inf
      %1616 = vmax.xlane.f32.xlu0 %v1615
      %v1617 = vpop.xlane.xlu0 %1616
      %v1618 = vsel %vm1083, %v1614, -inf
      %1619 = vmax.xlane.f32.xlu0 %v1618
      %v1620 = vpop.xlane.xlu0 %1619
      %v1621 = vsub.f32 %v1613, %v1617
      %v1622 = vsub.f32 %v1614, %v1620
      %v1623 = vmul.f32 %v1621, 1.442695
      %v1624 = vpow.pop %v1623
      %v1625 = vmul.f32 %v1622, 1.442695
      %v1626 = vpow.pop %v1625
      %v1627 = vsel %vm1079, %v1624, 0.0
      %1628 = vadd.xlane.f32.xlu0 %v1627
      %v1629 = vpop.xlane.xlu0 %1628
      %v1630 = vsel %vm1083, %v1626, 0.0
      %1631 = vadd.xlane.f32.xlu0 %v1630
      %v1632 = vpop.xlane.xlu0 %1631
      %v1633 = vrcp.pop %v1629
      %v1634 = vrcp.pop %v1632
      %v1635 = vmul.f32 %v1624, %v1633
      %v1636 = vmul.f32 %v1626, %v1634
      %v1637 = vpack.c.bf16 %v1636, %v1635
      %v1638 = vpack.c.bf16 %v1561, %v1558
      %v1640 = vsel %vm1079, %v1637, 0
      %v1643 = vsel %vm1108, %v1638, 0
      %1645 = vmatprep.subr.bf16.mxu0 0
      %1646 = vmatpush1.bf16.msra.mxu0 0
      %1647 = vmatprep.subr.bf16.mxu0 0
      %1648 = vmatpush1.bf16.msra.mxu0 0
      %1649 = vmatprep.subr.bf16.mxu0 0
      %1650 = vmatpush1.bf16.msra.mxu0 0
      %1651 = vmatprep.subr.bf16.mxu0 0
      %1652 = vmatpush1.bf16.msra.mxu0 0
      %1653 = vmatprep.subr.bf16.mxu0 0
      %1654 = vmatpush1.bf16.msra.mxu0 0
      %1655 = vmatprep.subr.bf16.mxu0 0
      %1656 = vmatpush1.bf16.msra.mxu0 0
      %1657 = vmatprep.subr.bf16.mxu0 0
      %1658 = vmatpush1.bf16.msra.mxu0 0
      %1659 = vmatprep.subr.bf16.mxu0 0
      %1660 = vmatpush1.bf16.msra.mxu0 %v1643
      %1661 = vmatprep.subr.bf16.mxu0 0
      %1662 = vmatpush2.bf16.msra.mxu0 0
      %1663 = vmatprep.subr.bf16.mxu0 0
      %1664 = vmatpush2.bf16.msra.mxu0 0
      %1665 = vmatprep.subr.bf16.mxu0 0
      %1666 = vmatpush2.bf16.msra.mxu0 0
      %1667 = vmatprep.subr.bf16.mxu0 0
      %1668 = vmatpush2.bf16.msra.mxu0 0
      %1669 = vmatprep.subr.bf16.mxu0 0
      %1670 = vmatpush2.bf16.msra.mxu0 0
      %1671 = vmatprep.subr.bf16.mxu0 0
      %1672 = vmatpush2.bf16.msra.mxu0 0
      %1673 = vmatprep.subr.bf16.mxu0 0
      %1674 = vmatpush2.bf16.msra.mxu0 0
      %1675 = vmatprep.subr.bf16.mxu0 0
      %1676 = vmatpush2.bf16.msra.mxu0 0
      %1677 = vmatprep.mubr.bf16.mxu0 0
      %1678 = vmatmul.mubr.bf16.gmra.mxu0 %v1640
      %v1679 = vpop.f32.mrf.mxu0
      %v1680 = vadd.f32 0.0, %v1679
      %v1681 = vpop.f32.mrf.mxu0
      %v1682 = vpop.f32.mrf.mxu0
      %v1683 = vadd.f32 0.0, %v1682
      %v1684 = vpop.f32.mrf.mxu0
      %1685 = vdwg.mxu0
      %v1686 = vpack.c.bf16 %v1683, %v1680
      %s1687 = scalar_lea.vmem %s5, 16
      %v1688 = vld [vmem:[%s1687] sm:$0xf]
      %v1689 = vld [vmem:[%s1687 + $0x4] sm:$0xf]
      %v1690 = vld [vmem:[%s1687 + $0x8] sm:$0xf]
      %v1691 = vld [vmem:[%s1687 + $0xc] sm:$0xf]
      %v1696 = vunpack.c.l.b16 %v1688
      %v1697 = vunpack.c.l.b16 %v1689
      %v1698 = vunpack.c.l.b16 %v1690
      %v1699 = vunpack.c.l.b16 %v1691
      %v1700 = vpack.c.b16 %v1697, %v1696
      %v1701 = vpack.c.b16 %v1699, %v1698
      %v1705 = vsel %vm1029, %v1686, 0
      %1707 = vmatprep.subr.bf16.mxu0 0
      %1708 = vmatpush1.bf16.msra.mxu0 0
      %1709 = vmatprep.subr.bf16.mxu0 0
      %1710 = vmatpush1.bf16.msra.mxu0 0
      %1711 = vmatprep.subr.bf16.mxu0 0
      %1712 = vmatpush1.bf16.msra.mxu0 0
      %1713 = vmatprep.subr.bf16.mxu0 0
      %1714 = vmatpush1.bf16.msra.mxu0 0
      %1715 = vmatprep.subr.bf16.mxu0 0
      %1716 = vmatpush1.bf16.msra.mxu0 0
      %1717 = vmatprep.subr.bf16.mxu0 0
      %1718 = vmatpush1.bf16.msra.mxu0 0
      %1719 = vmatprep.subr.bf16.mxu0 0
      %1720 = vmatpush1.bf16.msra.mxu0 %v1701
      %1721 = vmatprep.subr.bf16.mxu0 0
      %1722 = vmatpush1.bf16.msra.mxu0 %v1700
      %1723 = vmatprep.subr.bf16.mxu0 0
      %1724 = vmatpush2.bf16.msra.mxu0 0
      %1725 = vmatprep.subr.bf16.mxu0 0
      %1726 = vmatpush2.bf16.msra.mxu0 0
      %1727 = vmatprep.subr.bf16.mxu0 0
      %1728 = vmatpush2.bf16.msra.mxu0 0
      %1729 = vmatprep.subr.bf16.mxu0 0
      %1730 = vmatpush2.bf16.msra.mxu0 0
      %1731 = vmatprep.subr.bf16.mxu0 0
      %1732 = vmatpush2.bf16.msra.mxu0 0
      %1733 = vmatprep.subr.bf16.mxu0 0
      %1734 = vmatpush2.bf16.msra.mxu0 0
      %1735 = vmatprep.subr.bf16.mxu0 0
      %1736 = vmatpush2.bf16.msra.mxu0 0
      %1737 = vmatprep.subr.bf16.mxu0 0
      %1738 = vmatpush2.bf16.msra.mxu0 0
      %1739 = vmatprep.mubr.bf16.mxu0 0
      %1740 = vmatmul.mubr.bf16.gmra.mxu0 %v1705
      %v1741 = vpop.f32.mrf.mxu0
      %v1742 = vadd.f32 0.0, %v1741
      %v1743 = vpop.f32.mrf.mxu0
      %v1744 = vpop.f32.mrf.mxu0
      %v1745 = vadd.f32 0.0, %v1744
      %v1746 = vpop.f32.mrf.mxu0
      %1747 = vdwg.mxu0
      %v1748 = vadd.f32 %v1220, %v1742
      %v1749 = vadd.f32 %v1221, %v1745
      %s1750 = scalar_lea.vmem %s2, 128
      %v1751 = vld [vmem:[%s1750] sm:$0xf]
      %v1752 = vld [vmem:[%s1750 + $0x4] sm:$0xf]
      %v1753 = vld [vmem:[%s1750 + $0x8] sm:$0xf]
      %v1754 = vld [vmem:[%s1750 + $0xc] sm:$0xf]
      %v1755 = vld [vmem:[%s1750 + $0x10] sm:$0xf]
      %v1756 = vld [vmem:[%s1750 + $0x14] sm:$0xf]
      %v1757 = vld [vmem:[%s1750 + $0x18] sm:$0xf]
      %v1758 = vld [vmem:[%s1750 + $0x1c] sm:$0xf]
      %v1759 = vld [vmem:[%s1750 + $0x20] sm:$0xf]
      %v1760 = vld [vmem:[%s1750 + $0x24] sm:$0xf]
      %v1761 = vld [vmem:[%s1750 + $0x28] sm:$0xf]
      %v1762 = vld [vmem:[%s1750 + $0x2c] sm:$0xf]
      %v1763 = vld [vmem:[%s1750 + $0x30] sm:$0xf]
      %v1764 = vld [vmem:[%s1750 + $0x34] sm:$0xf]
      %v1765 = vld [vmem:[%s1750 + $0x38] sm:$0xf]
      %v1766 = vld [vmem:[%s1750 + $0x3c] sm:$0xf]
      %s1767 = scalar_lea.vmem %s6, 2
      %v1768 = vld [vmem:[%s1767] sm:$0x1]
      %v1770 = vlaneseq
      %v1771 = vshrl.u32 %v1770, 7
      %v1772 = vsub.s32 0, %v1771
      %v1773 = vrot.slane %v1768, %v1772
      %v1791 = vunpack.c.l.b16 %v1751
      %v1792 = vunpack.c.l.b16 %v1752
      %v1793 = vunpack.c.l.b16 %v1753
      %v1794 = vunpack.c.l.b16 %v1754
      %v1795 = vunpack.c.l.b16 %v1755
      %v1796 = vunpack.c.l.b16 %v1756
      %v1797 = vunpack.c.l.b16 %v1757
      %v1798 = vunpack.c.l.b16 %v1758
      %v1799 = vunpack.c.l.b16 %v1759
      %v1800 = vunpack.c.l.b16 %v1760
      %v1801 = vunpack.c.l.b16 %v1761
      %v1802 = vunpack.c.l.b16 %v1762
      %v1803 = vunpack.c.l.b16 %v1763
      %v1804 = vunpack.c.l.b16 %v1764
      %v1805 = vunpack.c.l.b16 %v1765
      %v1806 = vunpack.c.l.b16 %v1766
      %v1807 = vpack.c.b16 %v1792, %v1791
      %v1808 = vpack.c.b16 %v1794, %v1793
      %v1809 = vpack.c.b16 %v1796, %v1795
      %v1810 = vpack.c.b16 %v1798, %v1797
      %v1811 = vpack.c.b16 %v1800, %v1799
      %v1812 = vpack.c.b16 %v1802, %v1801
      %v1813 = vpack.c.b16 %v1804, %v1803
      %v1814 = vpack.c.b16 %v1806, %v1805
      %1823 = vmatprep.subr.bf16.mxu0 0
      %1824 = vmatpush1.bf16.msra.mxu0 %v1814
      %1825 = vmatprep.subr.bf16.mxu0 0
      %1826 = vmatpush1.bf16.msra.mxu0 %v1813
      %1827 = vmatprep.subr.bf16.mxu0 0
      %1828 = vmatpush1.bf16.msra.mxu0 %v1812
      %1829 = vmatprep.subr.bf16.mxu0 0
      %1830 = vmatpush1.bf16.msra.mxu0 %v1811
      %1831 = vmatprep.subr.bf16.mxu0 0
      %1832 = vmatpush1.bf16.msra.mxu0 %v1810
      %1833 = vmatprep.subr.bf16.mxu0 0
      %1834 = vmatpush1.bf16.msra.mxu0 %v1809
      %1835 = vmatprep.subr.bf16.mxu0 0
      %1836 = vmatpush1.bf16.msra.mxu0 %v1808
      %1837 = vmatprep.subr.bf16.mxu0 0
      %1838 = vmatpush1.bf16.msra.mxu0 %v1807
      %1839 = vmatprep.subr.bf16.mxu0 0
      %1840 = vmatpush2.bf16.msra.mxu0 0
      %1841 = vmatprep.subr.bf16.mxu0 0
      %1842 = vmatpush2.bf16.msra.mxu0 0
      %1843 = vmatprep.subr.bf16.mxu0 0
      %1844 = vmatpush2.bf16.msra.mxu0 0
      %1845 = vmatprep.subr.bf16.mxu0 0
      %1846 = vmatpush2.bf16.msra.mxu0 0
      %1847 = vmatprep.subr.bf16.mxu0 0
      %1848 = vmatpush2.bf16.msra.mxu0 0
      %1849 = vmatprep.subr.bf16.mxu0 0
      %1850 = vmatpush2.bf16.msra.mxu0 0
      %1851 = vmatprep.subr.bf16.mxu0 0
      %1852 = vmatpush2.bf16.msra.mxu0 0
      %1853 = vmatprep.subr.bf16.mxu0 0
      %1854 = vmatpush2.bf16.msra.mxu0 0
      %1855 = vmatprep.mubr.bf16.mxu0 0
      %1856 = vmatmul.mubr.bf16.gmra.mxu0 %v689
      %v1857 = vpop.f32.mrf.mxu0
      %v1858 = vadd.f32 %v1773, %v1857
      %v1859 = vpop.f32.mrf.mxu0
      %v1860 = vpop.f32.mrf.mxu0
      %v1861 = vadd.f32 %v1773, %v1860
      %v1862 = vpop.f32.mrf.mxu0
      %1863 = vdwg.mxu0
      %s1864 = scalar_lea.vmem %s3, 128
      %v1865 = vld [vmem:[%s1864] sm:$0xf]
      %v1866 = vld [vmem:[%s1864 + $0x4] sm:$0xf]
      %v1867 = vld [vmem:[%s1864 + $0x8] sm:$0xf]
      %v1868 = vld [vmem:[%s1864 + $0xc] sm:$0xf]
      %v1869 = vld [vmem:[%s1864 + $0x10] sm:$0xf]
      %v1870 = vld [vmem:[%s1864 + $0x14] sm:$0xf]
      %v1871 = vld [vmem:[%s1864 + $0x18] sm:$0xf]
      %v1872 = vld [vmem:[%s1864 + $0x1c] sm:$0xf]
      %v1873 = vld [vmem:[%s1864 + $0x20] sm:$0xf]
      %v1874 = vld [vmem:[%s1864 + $0x24] sm:$0xf]
      %v1875 = vld [vmem:[%s1864 + $0x28] sm:$0xf]
      %v1876 = vld [vmem:[%s1864 + $0x2c] sm:$0xf]
      %v1877 = vld [vmem:[%s1864 + $0x30] sm:$0xf]
      %v1878 = vld [vmem:[%s1864 + $0x34] sm:$0xf]
      %v1879 = vld [vmem:[%s1864 + $0x38] sm:$0xf]
      %v1880 = vld [vmem:[%s1864 + $0x3c] sm:$0xf]
      %s1881 = scalar_lea.vmem %s7, 2
      %v1882 = vld [vmem:[%s1881] sm:$0x1]
      %v1884 = vlaneseq
      %v1885 = vshrl.u32 %v1884, 7
      %v1886 = vsub.s32 0, %v1885
      %v1887 = vrot.slane %v1882, %v1886
      %v1905 = vunpack.c.l.b16 %v1865
      %v1906 = vunpack.c.l.b16 %v1866
      %v1907 = vunpack.c.l.b16 %v1867
      %v1908 = vunpack.c.l.b16 %v1868
      %v1909 = vunpack.c.l.b16 %v1869
      %v1910 = vunpack.c.l.b16 %v1870
      %v1911 = vunpack.c.l.b16 %v1871
      %v1912 = vunpack.c.l.b16 %v1872
      %v1913 = vunpack.c.l.b16 %v1873
      %v1914 = vunpack.c.l.b16 %v1874
      %v1915 = vunpack.c.l.b16 %v1875
      %v1916 = vunpack.c.l.b16 %v1876
      %v1917 = vunpack.c.l.b16 %v1877
      %v1918 = vunpack.c.l.b16 %v1878
      %v1919 = vunpack.c.l.b16 %v1879
      %v1920 = vunpack.c.l.b16 %v1880
      %v1921 = vpack.c.b16 %v1906, %v1905
      %v1922 = vpack.c.b16 %v1908, %v1907
      %v1923 = vpack.c.b16 %v1910, %v1909
      %v1924 = vpack.c.b16 %v1912, %v1911
      %v1925 = vpack.c.b16 %v1914, %v1913
      %v1926 = vpack.c.b16 %v1916, %v1915
      %v1927 = vpack.c.b16 %v1918, %v1917
      %v1928 = vpack.c.b16 %v1920, %v1919
      %1937 = vmatprep.subr.bf16.mxu0 0
      %1938 = vmatpush1.bf16.msra.mxu0 %v1928
      %1939 = vmatprep.subr.bf16.mxu0 0
      %1940 = vmatpush1.bf16.msra.mxu0 %v1927
      %1941 = vmatprep.subr.bf16.mxu0 0
      %1942 = vmatpush1.bf16.msra.mxu0 %v1926
      %1943 = vmatprep.subr.bf16.mxu0 0
      %1944 = vmatpush1.bf16.msra.mxu0 %v1925
      %1945 = vmatprep.subr.bf16.mxu0 0
      %1946 = vmatpush1.bf16.msra.mxu0 %v1924
      %1947 = vmatprep.subr.bf16.mxu0 0
      %1948 = vmatpush1.bf16.msra.mxu0 %v1923
      %1949 = vmatprep.subr.bf16.mxu0 0
      %1950 = vmatpush1.bf16.msra.mxu0 %v1922
      %1951 = vmatprep.subr.bf16.mxu0 0
      %1952 = vmatpush1.bf16.msra.mxu0 %v1921
      %1953 = vmatprep.subr.bf16.mxu0 0
      %1954 = vmatpush2.bf16.msra.mxu0 0
      %1955 = vmatprep.subr.bf16.mxu0 0
      %1956 = vmatpush2.bf16.msra.mxu0 0
      %1957 = vmatprep.subr.bf16.mxu0 0
      %1958 = vmatpush2.bf16.msra.mxu0 0
      %1959 = vmatprep.subr.bf16.mxu0 0
      %1960 = vmatpush2.bf16.msra.mxu0 0
      %1961 = vmatprep.subr.bf16.mxu0 0
      %1962 = vmatpush2.bf16.msra.mxu0 0
      %1963 = vmatprep.subr.bf16.mxu0 0
      %1964 = vmatpush2.bf16.msra.mxu0 0
      %1965 = vmatprep.subr.bf16.mxu0 0
      %1966 = vmatpush2.bf16.msra.mxu0 0
      %1967 = vmatprep.subr.bf16.mxu0 0
      %1968 = vmatpush2.bf16.msra.mxu0 0
      %1969 = vmatprep.mubr.bf16.mxu0 0
      %1970 = vmatmul.mubr.bf16.gmra.mxu0 %v689
      %v1971 = vpop.f32.mrf.mxu0
      %v1972 = vadd.f32 %v1887, %v1971
      %v1973 = vpop.f32.mrf.mxu0
      %v1974 = vpop.f32.mrf.mxu0
      %v1975 = vadd.f32 %v1887, %v1974
      %v1976 = vpop.f32.mrf.mxu0
      %1977 = vdwg.mxu0
      %s1978 = scalar_lea.vmem %s4, 128
      %v1979 = vld [vmem:[%s1978] sm:$0xf]
      %v1980 = vld [vmem:[%s1978 + $0x4] sm:$0xf]
      %v1981 = vld [vmem:[%s1978 + $0x8] sm:$0xf]
      %v1982 = vld [vmem:[%s1978 + $0xc] sm:$0xf]
      %v1983 = vld [vmem:[%s1978 + $0x10] sm:$0xf]
      %v1984 = vld [vmem:[%s1978 + $0x14] sm:$0xf]
      %v1985 = vld [vmem:[%s1978 + $0x18] sm:$0xf]
      %v1986 = vld [vmem:[%s1978 + $0x1c] sm:$0xf]
      %v1987 = vld [vmem:[%s1978 + $0x20] sm:$0xf]
      %v1988 = vld [vmem:[%s1978 + $0x24] sm:$0xf]
      %v1989 = vld [vmem:[%s1978 + $0x28] sm:$0xf]
      %v1990 = vld [vmem:[%s1978 + $0x2c] sm:$0xf]
      %v1991 = vld [vmem:[%s1978 + $0x30] sm:$0xf]
      %v1992 = vld [vmem:[%s1978 + $0x34] sm:$0xf]
      %v1993 = vld [vmem:[%s1978 + $0x38] sm:$0xf]
      %v1994 = vld [vmem:[%s1978 + $0x3c] sm:$0xf]
      %s1995 = scalar_lea.vmem %s8, 2
      %v1996 = vld [vmem:[%s1995] sm:$0x1]
      %v1998 = vlaneseq
      %v1999 = vshrl.u32 %v1998, 7
      %v2000 = vsub.s32 0, %v1999
      %v2001 = vrot.slane %v1996, %v2000
      %v2019 = vunpack.c.l.b16 %v1979
      %v2020 = vunpack.c.l.b16 %v1980
      %v2021 = vunpack.c.l.b16 %v1981
      %v2022 = vunpack.c.l.b16 %v1982
      %v2023 = vunpack.c.l.b16 %v1983
      %v2024 = vunpack.c.l.b16 %v1984
      %v2025 = vunpack.c.l.b16 %v1985
      %v2026 = vunpack.c.l.b16 %v1986
      %v2027 = vunpack.c.l.b16 %v1987
      %v2028 = vunpack.c.l.b16 %v1988
      %v2029 = vunpack.c.l.b16 %v1989
      %v2030 = vunpack.c.l.b16 %v1990
      %v2031 = vunpack.c.l.b16 %v1991
      %v2032 = vunpack.c.l.b16 %v1992
      %v2033 = vunpack.c.l.b16 %v1993
      %v2034 = vunpack.c.l.b16 %v1994
      %v2035 = vpack.c.b16 %v2020, %v2019
      %v2036 = vpack.c.b16 %v2022, %v2021
      %v2037 = vpack.c.b16 %v2024, %v2023
      %v2038 = vpack.c.b16 %v2026, %v2025
      %v2039 = vpack.c.b16 %v2028, %v2027
      %v2040 = vpack.c.b16 %v2030, %v2029
      %v2041 = vpack.c.b16 %v2032, %v2031
      %v2042 = vpack.c.b16 %v2034, %v2033
      %2051 = vmatprep.subr.bf16.mxu0 0
      %2052 = vmatpush1.bf16.msra.mxu0 %v2042
      %2053 = vmatprep.subr.bf16.mxu0 0
      %2054 = vmatpush1.bf16.msra.mxu0 %v2041
      %2055 = vmatprep.subr.bf16.mxu0 0
      %2056 = vmatpush1.bf16.msra.mxu0 %v2040
      %2057 = vmatprep.subr.bf16.mxu0 0
      %2058 = vmatpush1.bf16.msra.mxu0 %v2039
      %2059 = vmatprep.subr.bf16.mxu0 0
      %2060 = vmatpush1.bf16.msra.mxu0 %v2038
      %2061 = vmatprep.subr.bf16.mxu0 0
      %2062 = vmatpush1.bf16.msra.mxu0 %v2037
      %2063 = vmatprep.subr.bf16.mxu0 0
      %2064 = vmatpush1.bf16.msra.mxu0 %v2036
      %2065 = vmatprep.subr.bf16.mxu0 0
      %2066 = vmatpush1.bf16.msra.mxu0 %v2035
      %2067 = vmatprep.subr.bf16.mxu0 0
      %2068 = vmatpush2.bf16.msra.mxu0 0
      %2069 = vmatprep.subr.bf16.mxu0 0
      %2070 = vmatpush2.bf16.msra.mxu0 0
      %2071 = vmatprep.subr.bf16.mxu0 0
      %2072 = vmatpush2.bf16.msra.mxu0 0
      %2073 = vmatprep.subr.bf16.mxu0 0
      %2074 = vmatpush2.bf16.msra.mxu0 0
      %2075 = vmatprep.subr.bf16.mxu0 0
      %2076 = vmatpush2.bf16.msra.mxu0 0
      %2077 = vmatprep.subr.bf16.mxu0 0
      %2078 = vmatpush2.bf16.msra.mxu0 0
      %2079 = vmatprep.subr.bf16.mxu0 0
      %2080 = vmatpush2.bf16.msra.mxu0 0
      %2081 = vmatprep.subr.bf16.mxu0 0
      %2082 = vmatpush2.bf16.msra.mxu0 0
      %2083 = vmatprep.mubr.bf16.mxu0 0
      %2084 = vmatmul.mubr.bf16.gmra.mxu0 %v689
      %v2085 = vpop.f32.mrf.mxu0
      %v2086 = vadd.f32 %v2001, %v2085
      %v2087 = vpop.f32.mrf.mxu0
      %v2088 = vpop.f32.mrf.mxu0
      %v2089 = vadd.f32 %v2001, %v2088
      %v2090 = vpop.f32.mrf.mxu0
      %2091 = vdwg.mxu0
      %v2092 = vpack.c.bf16 %v1861, %v1858
      %v2093 = vpack.c.bf16 %v1975, %v1972
      %v2095 = vsel %vm1029, %v2092, 0
      %v2098 = vsel %vm1029, %v2093, 0
      %2100 = vmatprep.subr.bf16.mxu0 0
      %2101 = vmatpush1.bf16.xpose.msra.mxu0 0
      %2102 = vmatprep.subr.bf16.mxu0 0
      %2103 = vmatpush1.bf16.xpose.msra.mxu0 0
      %2104 = vmatprep.subr.bf16.mxu0 0
      %2105 = vmatpush1.bf16.xpose.msra.mxu0 0
      %2106 = vmatprep.subr.bf16.mxu0 0
      %2107 = vmatpush1.bf16.xpose.msra.mxu0 0
      %2108 = vmatprep.subr.bf16.mxu0 0
      %2109 = vmatpush1.bf16.xpose.msra.mxu0 0
      %2110 = vmatprep.subr.bf16.mxu0 0
      %2111 = vmatpush1.bf16.xpose.msra.mxu0 0
      %2112 = vmatprep.subr.bf16.mxu0 0
      %2113 = vmatpush1.bf16.xpose.msra.mxu0 0
      %2114 = vmatprep.subr.bf16.mxu0 0
      %2115 = vmatpush1.bf16.xpose.msra.mxu0 %v2098
      %2116 = vmatprep.subr.bf16.mxu0 0
      %2117 = vmatpush2.bf16.xpose.msra.mxu0 0
      %2118 = vmatprep.subr.bf16.mxu0 0
      %2119 = vmatpush2.bf16.xpose.msra.mxu0 0
      %2120 = vmatprep.subr.bf16.mxu0 0
      %2121 = vmatpush2.bf16.xpose.msra.mxu0 0
      %2122 = vmatprep.subr.bf16.mxu0 0
      %2123 = vmatpush2.bf16.xpose.msra.mxu0 0
      %2124 = vmatprep.subr.bf16.mxu0 0
      %2125 = vmatpush2.bf16.xpose.msra.mxu0 0
      %2126 = vmatprep.subr.bf16.mxu0 0
      %2127 = vmatpush2.bf16.xpose.msra.mxu0 0
      %2128 = vmatprep.subr.bf16.mxu0 0
      %2129 = vmatpush2.bf16.xpose.msra.mxu0 0
      %2130 = vmatprep.subr.bf16.mxu0 0
      %2131 = vmatpush2.bf16.xpose.msra.mxu0 0
      %2132 = vmatprep.mubr.bf16.mxu0 0
      %2133 = vmatmul.mubr.bf16.gmra.mxu0 %v2095
      %v2134 = vpop.f32.mrf.mxu0
      %v2135 = vadd.f32 0.0, %v2134
      %v2136 = vpop.f32.mrf.mxu0
      %v2137 = vpop.f32.mrf.mxu0
      %v2138 = vadd.f32 0.0, %v2137
      %v2139 = vpop.f32.mrf.mxu0
      %2140 = vdwg.mxu0
      %v2141 = vmul.f32 %v2135, 0.17677669
      %v2142 = vmul.f32 %v2138, 0.17677669
      %v2143 = vsel %vm1079, %v2141, -inf
      %2144 = vmax.xlane.f32.xlu0 %v2143
      %v2145 = vpop.xlane.xlu0 %2144
      %v2146 = vsel %vm1083, %v2142, -inf
      %2147 = vmax.xlane.f32.xlu0 %v2146
      %v2148 = vpop.xlane.xlu0 %2147
      %v2149 = vsub.f32 %v2141, %v2145
      %v2150 = vsub.f32 %v2142, %v2148
      %v2151 = vmul.f32 %v2149, 1.442695
      %v2152 = vpow.pop %v2151
      %v2153 = vmul.f32 %v2150, 1.442695
      %v2154 = vpow.pop %v2153
      %v2155 = vsel %vm1079, %v2152, 0.0
      %2156 = vadd.xlane.f32.xlu0 %v2155
      %v2157 = vpop.xlane.xlu0 %2156
      %v2158 = vsel %vm1083, %v2154, 0.0
      %2159 = vadd.xlane.f32.xlu0 %v2158
      %v2160 = vpop.xlane.xlu0 %2159
      %v2161 = vrcp.pop %v2157
      %v2162 = vrcp.pop %v2160
      %v2163 = vmul.f32 %v2152, %v2161
      %v2164 = vmul.f32 %v2154, %v2162
      %v2165 = vpack.c.bf16 %v2164, %v2163
      %v2166 = vpack.c.bf16 %v2089, %v2086
      %v2168 = vsel %vm1079, %v2165, 0
      %v2171 = vsel %vm1108, %v2166, 0
      %2173 = vmatprep.subr.bf16.mxu0 0
      %2174 = vmatpush1.bf16.msra.mxu0 0
      %2175 = vmatprep.subr.bf16.mxu0 0
      %2176 = vmatpush1.bf16.msra.mxu0 0
      %2177 = vmatprep.subr.bf16.mxu0 0
      %2178 = vmatpush1.bf16.msra.mxu0 0
      %2179 = vmatprep.subr.bf16.mxu0 0
      %2180 = vmatpush1.bf16.msra.mxu0 0
      %2181 = vmatprep.subr.bf16.mxu0 0
      %2182 = vmatpush1.bf16.msra.mxu0 0
      %2183 = vmatprep.subr.bf16.mxu0 0
      %2184 = vmatpush1.bf16.msra.mxu0 0
      %2185 = vmatprep.subr.bf16.mxu0 0
      %2186 = vmatpush1.bf16.msra.mxu0 0
      %2187 = vmatprep.subr.bf16.mxu0 0
      %2188 = vmatpush1.bf16.msra.mxu0 %v2171
      %2189 = vmatprep.subr.bf16.mxu0 0
      %2190 = vmatpush2.bf16.msra.mxu0 0
      %2191 = vmatprep.subr.bf16.mxu0 0
      %2192 = vmatpush2.bf16.msra.mxu0 0
      %2193 = vmatprep.subr.bf16.mxu0 0
      %2194 = vmatpush2.bf16.msra.mxu0 0
      %2195 = vmatprep.subr.bf16.mxu0 0
      %2196 = vmatpush2.bf16.msra.mxu0 0
      %2197 = vmatprep.subr.bf16.mxu0 0
      %2198 = vmatpush2.bf16.msra.mxu0 0
      %2199 = vmatprep.subr.bf16.mxu0 0
      %2200 = vmatpush2.bf16.msra.mxu0 0
      %2201 = vmatprep.subr.bf16.mxu0 0
      %2202 = vmatpush2.bf16.msra.mxu0 0
      %2203 = vmatprep.subr.bf16.mxu0 0
      %2204 = vmatpush2.bf16.msra.mxu0 0
      %2205 = vmatprep.mubr.bf16.mxu0 0
      %2206 = vmatmul.mubr.bf16.gmra.mxu0 %v2168
      %v2207 = vpop.f32.mrf.mxu0
      %v2208 = vadd.f32 0.0, %v2207
      %v2209 = vpop.f32.mrf.mxu0
      %v2210 = vpop.f32.mrf.mxu0
      %v2211 = vadd.f32 0.0, %v2210
      %v2212 = vpop.f32.mrf.mxu0
      %2213 = vdwg.mxu0
      %v2214 = vpack.c.bf16 %v2211, %v2208
      %s2215 = scalar_lea.vmem %s5, 32
      %v2216 = vld [vmem:[%s2215] sm:$0xf]
      %v2217 = vld [vmem:[%s2215 + $0x4] sm:$0xf]
      %v2218 = vld [vmem:[%s2215 + $0x8] sm:$0xf]
      %v2219 = vld [vmem:[%s2215 + $0xc] sm:$0xf]
      %v2224 = vunpack.c.l.b16 %v2216
      %v2225 = vunpack.c.l.b16 %v2217
      %v2226 = vunpack.c.l.b16 %v2218
      %v2227 = vunpack.c.l.b16 %v2219
      %v2228 = vpack.c.b16 %v2225, %v2224
      %v2229 = vpack.c.b16 %v2227, %v2226
      %v2233 = vsel %vm1029, %v2214, 0
      %2235 = vmatprep.subr.bf16.mxu0 0
      %2236 = vmatpush1.bf16.msra.mxu0 0
      %2237 = vmatprep.subr.bf16.mxu0 0
      %2238 = vmatpush1.bf16.msra.mxu0 0
      %2239 = vmatprep.subr.bf16.mxu0 0
      %2240 = vmatpush1.bf16.msra.mxu0 0
      %2241 = vmatprep.subr.bf16.mxu0 0
      %2242 = vmatpush1.bf16.msra.mxu0 0
      %2243 = vmatprep.subr.bf16.mxu0 0
      %2244 = vmatpush1.bf16.msra.mxu0 0
      %2245 = vmatprep.subr.bf16.mxu0 0
      %2246 = vmatpush1.bf16.msra.mxu0 0
      %2247 = vmatprep.subr.bf16.mxu0 0
      %2248 = vmatpush1.bf16.msra.mxu0 %v2229
      %2249 = vmatprep.subr.bf16.mxu0 0
      %2250 = vmatpush1.bf16.msra.mxu0 %v2228
      %2251 = vmatprep.subr.bf16.mxu0 0
      %2252 = vmatpush2.bf16.msra.mxu0 0
      %2253 = vmatprep.subr.bf16.mxu0 0
      %2254 = vmatpush2.bf16.msra.mxu0 0
      %2255 = vmatprep.subr.bf16.mxu0 0
      %2256 = vmatpush2.bf16.msra.mxu0 0
      %2257 = vmatprep.subr.bf16.mxu0 0
      %2258 = vmatpush2.bf16.msra.mxu0 0
      %2259 = vmatprep.subr.bf16.mxu0 0
      %2260 = vmatpush2.bf16.msra.mxu0 0
      %2261 = vmatprep.subr.bf16.mxu0 0
      %2262 = vmatpush2.bf16.msra.mxu0 0
      %2263 = vmatprep.subr.bf16.mxu0 0
      %2264 = vmatpush2.bf16.msra.mxu0 0
      %2265 = vmatprep.subr.bf16.mxu0 0
      %2266 = vmatpush2.bf16.msra.mxu0 0
      %2267 = vmatprep.mubr.bf16.mxu0 0
      %2268 = vmatmul.mubr.bf16.gmra.mxu0 %v2233
      %v2269 = vpop.f32.mrf.mxu0
      %v2270 = vadd.f32 0.0, %v2269
      %v2271 = vpop.f32.mrf.mxu0
      %v2272 = vpop.f32.mrf.mxu0
      %v2273 = vadd.f32 0.0, %v2272
      %v2274 = vpop.f32.mrf.mxu0
      %2275 = vdwg.mxu0
      %v2276 = vadd.f32 %v1748, %v2270
      %v2277 = vadd.f32 %v1749, %v2273
      %s2278 = scalar_lea.vmem %s2, 192
      %v2279 = vld [vmem:[%s2278] sm:$0xf]
      %v2280 = vld [vmem:[%s2278 + $0x4] sm:$0xf]
      %v2281 = vld [vmem:[%s2278 + $0x8] sm:$0xf]
      %v2282 = vld [vmem:[%s2278 + $0xc] sm:$0xf]
      %v2283 = vld [vmem:[%s2278 + $0x10] sm:$0xf]
      %v2284 = vld [vmem:[%s2278 + $0x14] sm:$0xf]
      %v2285 = vld [vmem:[%s2278 + $0x18] sm:$0xf]
      %v2286 = vld [vmem:[%s2278 + $0x1c] sm:$0xf]
      %v2287 = vld [vmem:[%s2278 + $0x20] sm:$0xf]
      %v2288 = vld [vmem:[%s2278 + $0x24] sm:$0xf]
      %v2289 = vld [vmem:[%s2278 + $0x28] sm:$0xf]
      %v2290 = vld [vmem:[%s2278 + $0x2c] sm:$0xf]
      %v2291 = vld [vmem:[%s2278 + $0x30] sm:$0xf]
      %v2292 = vld [vmem:[%s2278 + $0x34] sm:$0xf]
      %v2293 = vld [vmem:[%s2278 + $0x38] sm:$0xf]
      %v2294 = vld [vmem:[%s2278 + $0x3c] sm:$0xf]
      %s2295 = scalar_lea.vmem %s6, 3
      %v2296 = vld [vmem:[%s2295] sm:$0x1]
      %v2298 = vlaneseq
      %v2299 = vshrl.u32 %v2298, 7
      %v2300 = vsub.s32 0, %v2299
      %v2301 = vrot.slane %v2296, %v2300
      %v2319 = vunpack.c.l.b16 %v2279
      %v2320 = vunpack.c.l.b16 %v2280
      %v2321 = vunpack.c.l.b16 %v2281
      %v2322 = vunpack.c.l.b16 %v2282
      %v2323 = vunpack.c.l.b16 %v2283
      %v2324 = vunpack.c.l.b16 %v2284
      %v2325 = vunpack.c.l.b16 %v2285
      %v2326 = vunpack.c.l.b16 %v2286
      %v2327 = vunpack.c.l.b16 %v2287
      %v2328 = vunpack.c.l.b16 %v2288
      %v2329 = vunpack.c.l.b16 %v2289
      %v2330 = vunpack.c.l.b16 %v2290
      %v2331 = vunpack.c.l.b16 %v2291
      %v2332 = vunpack.c.l.b16 %v2292
      %v2333 = vunpack.c.l.b16 %v2293
      %v2334 = vunpack.c.l.b16 %v2294
      %v2335 = vpack.c.b16 %v2320, %v2319
      %v2336 = vpack.c.b16 %v2322, %v2321
      %v2337 = vpack.c.b16 %v2324, %v2323
      %v2338 = vpack.c.b16 %v2326, %v2325
      %v2339 = vpack.c.b16 %v2328, %v2327
      %v2340 = vpack.c.b16 %v2330, %v2329
      %v2341 = vpack.c.b16 %v2332, %v2331
      %v2342 = vpack.c.b16 %v2334, %v2333
      %2351 = vmatprep.subr.bf16.mxu0 0
      %2352 = vmatpush1.bf16.msra.mxu0 %v2342
      %2353 = vmatprep.subr.bf16.mxu0 0
      %2354 = vmatpush1.bf16.msra.mxu0 %v2341
      %2355 = vmatprep.subr.bf16.mxu0 0
      %2356 = vmatpush1.bf16.msra.mxu0 %v2340
      %2357 = vmatprep.subr.bf16.mxu0 0
      %2358 = vmatpush1.bf16.msra.mxu0 %v2339
      %2359 = vmatprep.subr.bf16.mxu0 0
      %2360 = vmatpush1.bf16.msra.mxu0 %v2338
      %2361 = vmatprep.subr.bf16.mxu0 0
      %2362 = vmatpush1.bf16.msra.mxu0 %v2337
      %2363 = vmatprep.subr.bf16.mxu0 0
      %2364 = vmatpush1.bf16.msra.mxu0 %v2336
      %2365 = vmatprep.subr.bf16.mxu0 0
      %2366 = vmatpush1.bf16.msra.mxu0 %v2335
      %2367 = vmatprep.subr.bf16.mxu0 0
      %2368 = vmatpush2.bf16.msra.mxu0 0
      %2369 = vmatprep.subr.bf16.mxu0 0
      %2370 = vmatpush2.bf16.msra.mxu0 0
      %2371 = vmatprep.subr.bf16.mxu0 0
      %2372 = vmatpush2.bf16.msra.mxu0 0
      %2373 = vmatprep.subr.bf16.mxu0 0
      %2374 = vmatpush2.bf16.msra.mxu0 0
      %2375 = vmatprep.subr.bf16.mxu0 0
      %2376 = vmatpush2.bf16.msra.mxu0 0
      %2377 = vmatprep.subr.bf16.mxu0 0
      %2378 = vmatpush2.bf16.msra.mxu0 0
      %2379 = vmatprep.subr.bf16.mxu0 0
      %2380 = vmatpush2.bf16.msra.mxu0 0
      %2381 = vmatprep.subr.bf16.mxu0 0
      %2382 = vmatpush2.bf16.msra.mxu0 0
      %2383 = vmatprep.mubr.bf16.mxu0 0
      %2384 = vmatmul.mubr.bf16.gmra.mxu0 %v689
      %v2385 = vpop.f32.mrf.mxu0
      %v2386 = vadd.f32 %v2301, %v2385
      %v2387 = vpop.f32.mrf.mxu0
      %v2388 = vpop.f32.mrf.mxu0
      %v2389 = vadd.f32 %v2301, %v2388
      %v2390 = vpop.f32.mrf.mxu0
      %2391 = vdwg.mxu0
      %s2392 = scalar_lea.vmem %s3, 192
      %v2393 = vld [vmem:[%s2392] sm:$0xf]
      %v2394 = vld [vmem:[%s2392 + $0x4] sm:$0xf]
      %v2395 = vld [vmem:[%s2392 + $0x8] sm:$0xf]
      %v2396 = vld [vmem:[%s2392 + $0xc] sm:$0xf]
      %v2397 = vld [vmem:[%s2392 + $0x10] sm:$0xf]
      %v2398 = vld [vmem:[%s2392 + $0x14] sm:$0xf]
      %v2399 = vld [vmem:[%s2392 + $0x18] sm:$0xf]
      %v2400 = vld [vmem:[%s2392 + $0x1c] sm:$0xf]
      %v2401 = vld [vmem:[%s2392 + $0x20] sm:$0xf]
      %v2402 = vld [vmem:[%s2392 + $0x24] sm:$0xf]
      %v2403 = vld [vmem:[%s2392 + $0x28] sm:$0xf]
      %v2404 = vld [vmem:[%s2392 + $0x2c] sm:$0xf]
      %v2405 = vld [vmem:[%s2392 + $0x30] sm:$0xf]
      %v2406 = vld [vmem:[%s2392 + $0x34] sm:$0xf]
      %v2407 = vld [vmem:[%s2392 + $0x38] sm:$0xf]
      %v2408 = vld [vmem:[%s2392 + $0x3c] sm:$0xf]
      %s2409 = scalar_lea.vmem %s7, 3
      %v2410 = vld [vmem:[%s2409] sm:$0x1]
      %v2412 = vlaneseq
      %v2413 = vshrl.u32 %v2412, 7
      %v2414 = vsub.s32 0, %v2413
      %v2415 = vrot.slane %v2410, %v2414
      %v2433 = vunpack.c.l.b16 %v2393
      %v2434 = vunpack.c.l.b16 %v2394
      %v2435 = vunpack.c.l.b16 %v2395
      %v2436 = vunpack.c.l.b16 %v2396
      %v2437 = vunpack.c.l.b16 %v2397
      %v2438 = vunpack.c.l.b16 %v2398
      %v2439 = vunpack.c.l.b16 %v2399
      %v2440 = vunpack.c.l.b16 %v2400
      %v2441 = vunpack.c.l.b16 %v2401
      %v2442 = vunpack.c.l.b16 %v2402
      %v2443 = vunpack.c.l.b16 %v2403
      %v2444 = vunpack.c.l.b16 %v2404
      %v2445 = vunpack.c.l.b16 %v2405
      %v2446 = vunpack.c.l.b16 %v2406
      %v2447 = vunpack.c.l.b16 %v2407
      %v2448 = vunpack.c.l.b16 %v2408
      %v2449 = vpack.c.b16 %v2434, %v2433
      %v2450 = vpack.c.b16 %v2436, %v2435
      %v2451 = vpack.c.b16 %v2438, %v2437
      %v2452 = vpack.c.b16 %v2440, %v2439
      %v2453 = vpack.c.b16 %v2442, %v2441
      %v2454 = vpack.c.b16 %v2444, %v2443
      %v2455 = vpack.c.b16 %v2446, %v2445
      %v2456 = vpack.c.b16 %v2448, %v2447
      %2465 = vmatprep.subr.bf16.mxu0 0
      %2466 = vmatpush1.bf16.msra.mxu0 %v2456
      %2467 = vmatprep.subr.bf16.mxu0 0
      %2468 = vmatpush1.bf16.msra.mxu0 %v2455
      %2469 = vmatprep.subr.bf16.mxu0 0
      %2470 = vmatpush1.bf16.msra.mxu0 %v2454
      %2471 = vmatprep.subr.bf16.mxu0 0
      %2472 = vmatpush1.bf16.msra.mxu0 %v2453
      %2473 = vmatprep.subr.bf16.mxu0 0
      %2474 = vmatpush1.bf16.msra.mxu0 %v2452
      %2475 = vmatprep.subr.bf16.mxu0 0
      %2476 = vmatpush1.bf16.msra.mxu0 %v2451
      %2477 = vmatprep.subr.bf16.mxu0 0
      %2478 = vmatpush1.bf16.msra.mxu0 %v2450
      %2479 = vmatprep.subr.bf16.mxu0 0
      %2480 = vmatpush1.bf16.msra.mxu0 %v2449
      %2481 = vmatprep.subr.bf16.mxu0 0
      %2482 = vmatpush2.bf16.msra.mxu0 0
      %2483 = vmatprep.subr.bf16.mxu0 0
      %2484 = vmatpush2.bf16.msra.mxu0 0
      %2485 = vmatprep.subr.bf16.mxu0 0
      %2486 = vmatpush2.bf16.msra.mxu0 0
      %2487 = vmatprep.subr.bf16.mxu0 0
      %2488 = vmatpush2.bf16.msra.mxu0 0
      %2489 = vmatprep.subr.bf16.mxu0 0
      %2490 = vmatpush2.bf16.msra.mxu0 0
      %2491 = vmatprep.subr.bf16.mxu0 0
      %2492 = vmatpush2.bf16.msra.mxu0 0
      %2493 = vmatprep.subr.bf16.mxu0 0
      %2494 = vmatpush2.bf16.msra.mxu0 0
      %2495 = vmatprep.subr.bf16.mxu0 0
      %2496 = vmatpush2.bf16.msra.mxu0 0
      %2497 = vmatprep.mubr.bf16.mxu0 0
      %2498 = vmatmul.mubr.bf16.gmra.mxu0 %v689
      %v2499 = vpop.f32.mrf.mxu0
      %v2500 = vadd.f32 %v2415, %v2499
      %v2501 = vpop.f32.mrf.mxu0
      %v2502 = vpop.f32.mrf.mxu0
      %v2503 = vadd.f32 %v2415, %v2502
      %v2504 = vpop.f32.mrf.mxu0
      %2505 = vdwg.mxu0
      %s2506 = scalar_lea.vmem %s4, 192
      %v2507 = vld [vmem:[%s2506] sm:$0xf]
      %v2508 = vld [vmem:[%s2506 + $0x4] sm:$0xf]
      %v2509 = vld [vmem:[%s2506 + $0x8] sm:$0xf]
      %v2510 = vld [vmem:[%s2506 + $0xc] sm:$0xf]
      %v2511 = vld [vmem:[%s2506 + $0x10] sm:$0xf]
      %v2512 = vld [vmem:[%s2506 + $0x14] sm:$0xf]
      %v2513 = vld [vmem:[%s2506 + $0x18] sm:$0xf]
      %v2514 = vld [vmem:[%s2506 + $0x1c] sm:$0xf]
      %v2515 = vld [vmem:[%s2506 + $0x20] sm:$0xf]
      %v2516 = vld [vmem:[%s2506 + $0x24] sm:$0xf]
      %v2517 = vld [vmem:[%s2506 + $0x28] sm:$0xf]
      %v2518 = vld [vmem:[%s2506 + $0x2c] sm:$0xf]
      %v2519 = vld [vmem:[%s2506 + $0x30] sm:$0xf]
      %v2520 = vld [vmem:[%s2506 + $0x34] sm:$0xf]
      %v2521 = vld [vmem:[%s2506 + $0x38] sm:$0xf]
      %v2522 = vld [vmem:[%s2506 + $0x3c] sm:$0xf]
      %s2523 = scalar_lea.vmem %s8, 3
      %v2524 = vld [vmem:[%s2523] sm:$0x1]
      %v2526 = vlaneseq
      %v2527 = vshrl.u32 %v2526, 7
      %v2528 = vsub.s32 0, %v2527
      %v2529 = vrot.slane %v2524, %v2528
      %v2547 = vunpack.c.l.b16 %v2507
      %v2548 = vunpack.c.l.b16 %v2508
      %v2549 = vunpack.c.l.b16 %v2509
      %v2550 = vunpack.c.l.b16 %v2510
      %v2551 = vunpack.c.l.b16 %v2511
      %v2552 = vunpack.c.l.b16 %v2512
      %v2553 = vunpack.c.l.b16 %v2513
      %v2554 = vunpack.c.l.b16 %v2514
      %v2555 = vunpack.c.l.b16 %v2515
      %v2556 = vunpack.c.l.b16 %v2516
      %v2557 = vunpack.c.l.b16 %v2517
      %v2558 = vunpack.c.l.b16 %v2518
      %v2559 = vunpack.c.l.b16 %v2519
      %v2560 = vunpack.c.l.b16 %v2520
      %v2561 = vunpack.c.l.b16 %v2521
      %v2562 = vunpack.c.l.b16 %v2522
      %v2563 = vpack.c.b16 %v2548, %v2547
      %v2564 = vpack.c.b16 %v2550, %v2549
      %v2565 = vpack.c.b16 %v2552, %v2551
      %v2566 = vpack.c.b16 %v2554, %v2553
      %v2567 = vpack.c.b16 %v2556, %v2555
      %v2568 = vpack.c.b16 %v2558, %v2557
      %v2569 = vpack.c.b16 %v2560, %v2559
      %v2570 = vpack.c.b16 %v2562, %v2561
      %2579 = vmatprep.subr.bf16.mxu0 0
      %2580 = vmatpush1.bf16.msra.mxu0 %v2570
      %2581 = vmatprep.subr.bf16.mxu0 0
      %2582 = vmatpush1.bf16.msra.mxu0 %v2569
      %2583 = vmatprep.subr.bf16.mxu0 0
      %2584 = vmatpush1.bf16.msra.mxu0 %v2568
      %2585 = vmatprep.subr.bf16.mxu0 0
      %2586 = vmatpush1.bf16.msra.mxu0 %v2567
      %2587 = vmatprep.subr.bf16.mxu0 0
      %2588 = vmatpush1.bf16.msra.mxu0 %v2566
      %2589 = vmatprep.subr.bf16.mxu0 0
      %2590 = vmatpush1.bf16.msra.mxu0 %v2565
      %2591 = vmatprep.subr.bf16.mxu0 0
      %2592 = vmatpush1.bf16.msra.mxu0 %v2564
      %2593 = vmatprep.subr.bf16.mxu0 0
      %2594 = vmatpush1.bf16.msra.mxu0 %v2563
      %2595 = vmatprep.subr.bf16.mxu0 0
      %2596 = vmatpush2.bf16.msra.mxu0 0
      %2597 = vmatprep.subr.bf16.mxu0 0
      %2598 = vmatpush2.bf16.msra.mxu0 0
      %2599 = vmatprep.subr.bf16.mxu0 0
      %2600 = vmatpush2.bf16.msra.mxu0 0
      %2601 = vmatprep.subr.bf16.mxu0 0
      %2602 = vmatpush2.bf16.msra.mxu0 0
      %2603 = vmatprep.subr.bf16.mxu0 0
      %2604 = vmatpush2.bf16.msra.mxu0 0
      %2605 = vmatprep.subr.bf16.mxu0 0
      %2606 = vmatpush2.bf16.msra.mxu0 0
      %2607 = vmatprep.subr.bf16.mxu0 0
      %2608 = vmatpush2.bf16.msra.mxu0 0
      %2609 = vmatprep.subr.bf16.mxu0 0
      %2610 = vmatpush2.bf16.msra.mxu0 0
      %2611 = vmatprep.mubr.bf16.mxu0 0
      %2612 = vmatmul.mubr.bf16.gmra.mxu0 %v689
      %v2613 = vpop.f32.mrf.mxu0
      %v2614 = vadd.f32 %v2529, %v2613
      %v2615 = vpop.f32.mrf.mxu0
      %v2616 = vpop.f32.mrf.mxu0
      %v2617 = vadd.f32 %v2529, %v2616
      %v2618 = vpop.f32.mrf.mxu0
      %2619 = vdwg.mxu0
      %v2620 = vpack.c.bf16 %v2389, %v2386
      %v2621 = vpack.c.bf16 %v2503, %v2500
      %v2623 = vsel %vm1029, %v2620, 0
      %v2626 = vsel %vm1029, %v2621, 0
      %2628 = vmatprep.subr.bf16.mxu0 0
      %2629 = vmatpush1.bf16.xpose.msra.mxu0 0
      %2630 = vmatprep.subr.bf16.mxu0 0
      %2631 = vmatpush1.bf16.xpose.msra.mxu0 0
      %2632 = vmatprep.subr.bf16.mxu0 0
      %2633 = vmatpush1.bf16.xpose.msra.mxu0 0
      %2634 = vmatprep.subr.bf16.mxu0 0
      %2635 = vmatpush1.bf16.xpose.msra.mxu0 0
      %2636 = vmatprep.subr.bf16.mxu0 0
      %2637 = vmatpush1.bf16.xpose.msra.mxu0 0
      %2638 = vmatprep.subr.bf16.mxu0 0
      %2639 = vmatpush1.bf16.xpose.msra.mxu0 0
      %2640 = vmatprep.subr.bf16.mxu0 0
      %2641 = vmatpush1.bf16.xpose.msra.mxu0 0
      %2642 = vmatprep.subr.bf16.mxu0 0
      %2643 = vmatpush1.bf16.xpose.msra.mxu0 %v2626
      %2644 = vmatprep.subr.bf16.mxu0 0
      %2645 = vmatpush2.bf16.xpose.msra.mxu0 0
      %2646 = vmatprep.subr.bf16.mxu0 0
      %2647 = vmatpush2.bf16.xpose.msra.mxu0 0
      %2648 = vmatprep.subr.bf16.mxu0 0
      %2649 = vmatpush2.bf16.xpose.msra.mxu0 0
      %2650 = vmatprep.subr.bf16.mxu0 0
      %2651 = vmatpush2.bf16.xpose.msra.mxu0 0
      %2652 = vmatprep.subr.bf16.mxu0 0
      %2653 = vmatpush2.bf16.xpose.msra.mxu0 0
      %2654 = vmatprep.subr.bf16.mxu0 0
      %2655 = vmatpush2.bf16.xpose.msra.mxu0 0
      %2656 = vmatprep.subr.bf16.mxu0 0
      %2657 = vmatpush2.bf16.xpose.msra.mxu0 0
      %2658 = vmatprep.subr.bf16.mxu0 0
      %2659 = vmatpush2.bf16.xpose.msra.mxu0 0
      %2660 = vmatprep.mubr.bf16.mxu0 0
      %2661 = vmatmul.mubr.bf16.gmra.mxu0 %v2623
      %v2662 = vpop.f32.mrf.mxu0
      %v2663 = vadd.f32 0.0, %v2662
      %v2664 = vpop.f32.mrf.mxu0
      %v2665 = vpop.f32.mrf.mxu0
      %v2666 = vadd.f32 0.0, %v2665
      %v2667 = vpop.f32.mrf.mxu0
      %2668 = vdwg.mxu0
      %v2669 = vmul.f32 %v2663, 0.17677669
      %v2670 = vmul.f32 %v2666, 0.17677669
      %v2671 = vsel %vm1079, %v2669, -inf
      %2672 = vmax.xlane.f32.xlu0 %v2671
      %v2673 = vpop.xlane.xlu0 %2672
      %v2674 = vsel %vm1083, %v2670, -inf
      %2675 = vmax.xlane.f32.xlu0 %v2674
      %v2676 = vpop.xlane.xlu0 %2675
      %v2677 = vsub.f32 %v2669, %v2673
      %v2678 = vsub.f32 %v2670, %v2676
      %v2679 = vmul.f32 %v2677, 1.442695
      %v2680 = vpow.pop %v2679
      %v2681 = vmul.f32 %v2678, 1.442695
      %v2682 = vpow.pop %v2681
      %v2683 = vsel %vm1079, %v2680, 0.0
      %2684 = vadd.xlane.f32.xlu0 %v2683
      %v2685 = vpop.xlane.xlu0 %2684
      %v2686 = vsel %vm1083, %v2682, 0.0
      %2687 = vadd.xlane.f32.xlu0 %v2686
      %v2688 = vpop.xlane.xlu0 %2687
      %v2689 = vrcp.pop %v2685
      %v2690 = vrcp.pop %v2688
      %v2691 = vmul.f32 %v2680, %v2689
      %v2692 = vmul.f32 %v2682, %v2690
      %v2693 = vpack.c.bf16 %v2692, %v2691
      %v2694 = vpack.c.bf16 %v2617, %v2614
      %v2696 = vsel %vm1079, %v2693, 0
      %v2699 = vsel %vm1108, %v2694, 0
      %2701 = vmatprep.subr.bf16.mxu0 0
      %2702 = vmatpush1.bf16.msra.mxu0 0
      %2703 = vmatprep.subr.bf16.mxu0 0
      %2704 = vmatpush1.bf16.msra.mxu0 0
      %2705 = vmatprep.subr.bf16.mxu0 0
      %2706 = vmatpush1.bf16.msra.mxu0 0
      %2707 = vmatprep.subr.bf16.mxu0 0
      %2708 = vmatpush1.bf16.msra.mxu0 0
      %2709 = vmatprep.subr.bf16.mxu0 0
      %2710 = vmatpush1.bf16.msra.mxu0 0
      %2711 = vmatprep.subr.bf16.mxu0 0
      %2712 = vmatpush1.bf16.msra.mxu0 0
      %2713 = vmatprep.subr.bf16.mxu0 0
      %2714 = vmatpush1.bf16.msra.mxu0 0
      %2715 = vmatprep.subr.bf16.mxu0 0
      %2716 = vmatpush1.bf16.msra.mxu0 %v2699
      %2717 = vmatprep.subr.bf16.mxu0 0
      %2718 = vmatpush2.bf16.msra.mxu0 0
      %2719 = vmatprep.subr.bf16.mxu0 0
      %2720 = vmatpush2.bf16.msra.mxu0 0
      %2721 = vmatprep.subr.bf16.mxu0 0
      %2722 = vmatpush2.bf16.msra.mxu0 0
      %2723 = vmatprep.subr.bf16.mxu0 0
      %2724 = vmatpush2.bf16.msra.mxu0 0
      %2725 = vmatprep.subr.bf16.mxu0 0
      %2726 = vmatpush2.bf16.msra.mxu0 0
      %2727 = vmatprep.subr.bf16.mxu0 0
      %2728 = vmatpush2.bf16.msra.mxu0 0
      %2729 = vmatprep.subr.bf16.mxu0 0
      %2730 = vmatpush2.bf16.msra.mxu0 0
      %2731 = vmatprep.subr.bf16.mxu0 0
      %2732 = vmatpush2.bf16.msra.mxu0 0
      %2733 = vmatprep.mubr.bf16.mxu0 0
      %2734 = vmatmul.mubr.bf16.gmra.mxu0 %v2696
      %v2735 = vpop.f32.mrf.mxu0
      %v2736 = vadd.f32 0.0, %v2735
      %v2737 = vpop.f32.mrf.mxu0
      %v2738 = vpop.f32.mrf.mxu0
      %v2739 = vadd.f32 0.0, %v2738
      %v2740 = vpop.f32.mrf.mxu0
      %2741 = vdwg.mxu0
      %v2742 = vpack.c.bf16 %v2739, %v2736
      %s2743 = scalar_lea.vmem %s5, 48
      %v2744 = vld [vmem:[%s2743] sm:$0xf]
      %v2745 = vld [vmem:[%s2743 + $0x4] sm:$0xf]
      %v2746 = vld [vmem:[%s2743 + $0x8] sm:$0xf]
      %v2747 = vld [vmem:[%s2743 + $0xc] sm:$0xf]
      %v2752 = vunpack.c.l.b16 %v2744
      %v2753 = vunpack.c.l.b16 %v2745
      %v2754 = vunpack.c.l.b16 %v2746
      %v2755 = vunpack.c.l.b16 %v2747
      %v2756 = vpack.c.b16 %v2753, %v2752
      %v2757 = vpack.c.b16 %v2755, %v2754
      %v2761 = vsel %vm1029, %v2742, 0
      %2763 = vmatprep.subr.bf16.mxu0 0
      %2764 = vmatpush1.bf16.msra.mxu0 0
      %2765 = vmatprep.subr.bf16.mxu0 0
      %2766 = vmatpush1.bf16.msra.mxu0 0
      %2767 = vmatprep.subr.bf16.mxu0 0
      %2768 = vmatpush1.bf16.msra.mxu0 0
      %2769 = vmatprep.subr.bf16.mxu0 0
      %2770 = vmatpush1.bf16.msra.mxu0 0
      %2771 = vmatprep.subr.bf16.mxu0 0
      %2772 = vmatpush1.bf16.msra.mxu0 0
      %2773 = vmatprep.subr.bf16.mxu0 0
      %2774 = vmatpush1.bf16.msra.mxu0 0
      %2775 = vmatprep.subr.bf16.mxu0 0
      %2776 = vmatpush1.bf16.msra.mxu0 %v2757
      %2777 = vmatprep.subr.bf16.mxu0 0
      %2778 = vmatpush1.bf16.msra.mxu0 %v2756
      %2779 = vmatprep.subr.bf16.mxu0 0
      %2780 = vmatpush2.bf16.msra.mxu0 0
      %2781 = vmatprep.subr.bf16.mxu0 0
      %2782 = vmatpush2.bf16.msra.mxu0 0
      %2783 = vmatprep.subr.bf16.mxu0 0
      %2784 = vmatpush2.bf16.msra.mxu0 0
      %2785 = vmatprep.subr.bf16.mxu0 0
      %2786 = vmatpush2.bf16.msra.mxu0 0
      %2787 = vmatprep.subr.bf16.mxu0 0
      %2788 = vmatpush2.bf16.msra.mxu0 0
      %2789 = vmatprep.subr.bf16.mxu0 0
      %2790 = vmatpush2.bf16.msra.mxu0 0
      %2791 = vmatprep.subr.bf16.mxu0 0
      %2792 = vmatpush2.bf16.msra.mxu0 0
      %2793 = vmatprep.subr.bf16.mxu0 0
      %2794 = vmatpush2.bf16.msra.mxu0 0
      %2795 = vmatprep.mubr.bf16.mxu0 0
      %2796 = vmatmul.mubr.bf16.gmra.mxu0 %v2761
      %v2797 = vpop.f32.mrf.mxu0
      %v2798 = vadd.f32 0.0, %v2797
      %v2799 = vpop.f32.mrf.mxu0
      %v2800 = vpop.f32.mrf.mxu0
      %v2801 = vadd.f32 0.0, %v2800
      %v2802 = vpop.f32.mrf.mxu0
      %2803 = vdwg.mxu0
      %v2804 = vadd.f32 %v2276, %v2798
      %v2805 = vadd.f32 %v2277, %v2801
      %v2806 = vadd.f32 %v687, %v2804
      %v2807 = vadd.f32 %v688, %v2805
      %v2808 = vld [vmem:[%s10] sm:$0x1]
      %v2809 = vld [vmem:[%s11] sm:$0x1]
      %2810 = vadd.xlane.f32.xlu0 %v2806
      %v2811 = vpop.xlane.xlu0 %2810
      %vm2812 = vcmask 1043456
      %v2813 = vsel %vm2812, %v2807, 0.0
      %2814 = vadd.xlane.f32.xlu0 %v2813
      %v2815 = vpop.xlane.xlu0 %2814
      %v2816 = vrcp.pop 128.0
      %v2817 = vmul.f32 %v2811, %v2816
      %v2818 = vmul.f32 %v2815, %v2816
      %v2819 = vsub.f32 %v2806, %v2817
      %v2820 = vsub.f32 %v2807, %v2818
      %v2821 = vmul.f32 %v2819, %v2819
      %v2822 = vmul.f32 %v2820, %v2820
      %2823 = vadd.xlane.f32.xlu0 %v2821
      %v2824 = vpop.xlane.xlu0 %2823
      %v2825 = vsel %vm2812, %v2822, 0.0
      %2826 = vadd.xlane.f32.xlu0 %v2825
      %v2827 = vpop.xlane.xlu0 %2826
      %v2828 = vmul.f32 %v2824, %v2816
      %v2829 = vmul.f32 %v2827, %v2816
      %v2830 = vadd.f32 %v2828, 1e-05
      %v2831 = vadd.f32 %v2829, 1e-05
      %v2832 = vrsqrt.pop %v2830
      %v2833 = vrsqrt.pop %v2831
      %v2834 = vmul.f32 %v2819, %v2832
      %v2835 = vmul.f32 %v2820, %v2833
      %v2837 = vlaneseq
      %v2838 = vshrl.u32 %v2837, 7
      %v2839 = vsub.s32 0, %v2838
      %v2840 = vrot.slane %v2808, %v2839
      %v2842 = vmul.f32 %v2834, %v2840
      %v2843 = vmul.f32 %v2835, %v2840
      %v2845 = vlaneseq
      %v2846 = vshrl.u32 %v2845, 7
      %v2847 = vsub.s32 0, %v2846
      %v2848 = vrot.slane %v2809, %v2847
      %v2850 = vadd.f32 %v2842, %v2848
      %v2851 = vadd.f32 %v2843, %v2848
      %v2852 = vpack.c.bf16 %v2851, %v2850
      %v2853 = vld [vmem:[%s12] sm:$0xff]
      %v2854 = vld [vmem:[%s12 + $0x8] sm:$0xff]
      %v2855 = vld [vmem:[%s12 + $0x10] sm:$0xff]
      %v2856 = vld [vmem:[%s12 + $0x18] sm:$0xff]
      %v2857 = vld [vmem:[%s12 + $0x20] sm:$0xff]
      %v2858 = vld [vmem:[%s12 + $0x28] sm:$0xff]
      %v2859 = vld [vmem:[%s12 + $0x30] sm:$0xff]
      %v2860 = vld [vmem:[%s12 + $0x38] sm:$0xff]
      %v2861 = vld [vmem:[%s12 + $0x40] sm:$0xff]
      %v2862 = vld [vmem:[%s12 + $0x48] sm:$0xff]
      %v2863 = vld [vmem:[%s12 + $0x50] sm:$0xff]
      %v2864 = vld [vmem:[%s12 + $0x58] sm:$0xff]
      %v2865 = vld [vmem:[%s12 + $0x60] sm:$0xff]
      %v2866 = vld [vmem:[%s12 + $0x68] sm:$0xff]
      %v2867 = vld [vmem:[%s12 + $0x70] sm:$0xff]
      %v2868 = vld [vmem:[%s12 + $0x78] sm:$0xff]
      %v2869 = vld [vmem:[%s12 + $0x80] sm:$0xff]
      %v2870 = vld [vmem:[%s12 + $0x88] sm:$0xff]
      %v2871 = vld [vmem:[%s12 + $0x90] sm:$0xff]
      %v2872 = vld [vmem:[%s12 + $0x98] sm:$0xff]
      %v2873 = vld [vmem:[%s12 + $0xa0] sm:$0xff]
      %v2874 = vld [vmem:[%s12 + $0xa8] sm:$0xff]
      %v2875 = vld [vmem:[%s12 + $0xb0] sm:$0xff]
      %v2876 = vld [vmem:[%s12 + $0xb8] sm:$0xff]
      %v2877 = vld [vmem:[%s12 + $0xc0] sm:$0xff]
      %v2878 = vld [vmem:[%s12 + $0xc8] sm:$0xff]
      %v2879 = vld [vmem:[%s12 + $0xd0] sm:$0xff]
      %v2880 = vld [vmem:[%s12 + $0xd8] sm:$0xff]
      %v2881 = vld [vmem:[%s12 + $0xe0] sm:$0xff]
      %v2882 = vld [vmem:[%s12 + $0xe8] sm:$0xff]
      %v2883 = vld [vmem:[%s12 + $0xf0] sm:$0xff]
      %v2884 = vld [vmem:[%s12 + $0xf8] sm:$0xff]
      %v2885 = vld [vmem:[%s13] sm:$0xf]
      %v2887 = vlaneseq
      %v2888 = vshrl.u32 %v2887, 7
      %v2889 = vsub.s32 0, %v2888
      %v2890 = vrot.slane %v2885, %v2889
      %v2891 = vlaneseq
      %v2892 = vshrl.u32 %v2891, 7
      %v2893 = vsub.s32 1, %v2892
      %v2894 = vrot.slane %v2885, %v2893
      %v2895 = vlaneseq
      %v2896 = vshrl.u32 %v2895, 7
      %v2897 = vsub.s32 2, %v2896
      %v2898 = vrot.slane %v2885, %v2897
      %v2899 = vlaneseq
      %v2900 = vshrl.u32 %v2899, 7
      %v2901 = vsub.s32 3, %v2900
      %v2902 = vrot.slane %v2885, %v2901
      %v2939 = vunpack.c.l.b16 %v2853
      %v2940 = vunpack.c.h.b16 %v2853
      %v2941 = vunpack.c.l.b16 %v2854
      %v2942 = vunpack.c.h.b16 %v2854
      %v2943 = vunpack.c.l.b16 %v2855
      %v2944 = vunpack.c.h.b16 %v2855
      %v2945 = vunpack.c.l.b16 %v2856
      %v2946 = vunpack.c.h.b16 %v2856
      %v2947 = vunpack.c.l.b16 %v2857
      %v2948 = vunpack.c.h.b16 %v2857
      %v2949 = vunpack.c.l.b16 %v2858
      %v2950 = vunpack.c.h.b16 %v2858
      %v2951 = vunpack.c.l.b16 %v2859
      %v2952 = vunpack.c.h.b16 %v2859
      %v2953 = vunpack.c.l.b16 %v2860
      %v2954 = vunpack.c.h.b16 %v2860
      %v2955 = vunpack.c.l.b16 %v2861
      %v2956 = vunpack.c.h.b16 %v2861
      %v2957 = vunpack.c.l.b16 %v2862
      %v2958 = vunpack.c.h.b16 %v2862
      %v2959 = vunpack.c.l.b16 %v2863
      %v2960 = vunpack.c.h.b16 %v2863
      %v2961 = vunpack.c.l.b16 %v2864
      %v2962 = vunpack.c.h.b16 %v2864
      %v2963 = vunpack.c.l.b16 %v2865
      %v2964 = vunpack.c.h.b16 %v2865
      %v2965 = vunpack.c.l.b16 %v2866
      %v2966 = vunpack.c.h.b16 %v2866
      %v2967 = vunpack.c.l.b16 %v2867
      %v2968 = vunpack.c.h.b16 %v2867
      %v2969 = vunpack.c.l.b16 %v2868
      %v2970 = vunpack.c.h.b16 %v2868
      %v2971 = vunpack.c.l.b16 %v2869
      %v2972 = vunpack.c.h.b16 %v2869
      %v2973 = vunpack.c.l.b16 %v2870
      %v2974 = vunpack.c.h.b16 %v2870
      %v2975 = vunpack.c.l.b16 %v2871
      %v2976 = vunpack.c.h.b16 %v2871
      %v2977 = vunpack.c.l.b16 %v2872
      %v2978 = vunpack.c.h.b16 %v2872
      %v2979 = vunpack.c.l.b16 %v2873
      %v2980 = vunpack.c.h.b16 %v2873
      %v2981 = vunpack.c.l.b16 %v2874
      %v2982 = vunpack.c.h.b16 %v2874
      %v2983 = vunpack.c.l.b16 %v2875
      %v2984 = vunpack.c.h.b16 %v2875
      %v2985 = vunpack.c.l.b16 %v2876
      %v2986 = vunpack.c.h.b16 %v2876
      %v2987 = vunpack.c.l.b16 %v2877
      %v2988 = vunpack.c.h.b16 %v2877
      %v2989 = vunpack.c.l.b16 %v2878
      %v2990 = vunpack.c.h.b16 %v2878
      %v2991 = vunpack.c.l.b16 %v2879
      %v2992 = vunpack.c.h.b16 %v2879
      %v2993 = vunpack.c.l.b16 %v2880
      %v2994 = vunpack.c.h.b16 %v2880
      %v2995 = vunpack.c.l.b16 %v2881
      %v2996 = vunpack.c.h.b16 %v2881
      %v2997 = vunpack.c.l.b16 %v2882
      %v2998 = vunpack.c.h.b16 %v2882
      %v2999 = vunpack.c.l.b16 %v2883
      %v3000 = vunpack.c.h.b16 %v2883
      %v3001 = vunpack.c.l.b16 %v2884
      %v3002 = vunpack.c.h.b16 %v2884
      %v3003 = vpack.c.b16 %v2943, %v2939
      %v3004 = vpack.c.b16 %v2944, %v2940
      %v3005 = vpack.c.b16 %v2945, %v2941
      %v3006 = vpack.c.b16 %v2946, %v2942
      %v3007 = vpack.c.b16 %v2951, %v2947
      %v3008 = vpack.c.b16 %v2952, %v2948
      %v3009 = vpack.c.b16 %v2953, %v2949
      %v3010 = vpack.c.b16 %v2954, %v2950
      %v3011 = vpack.c.b16 %v2959, %v2955
      %v3012 = vpack.c.b16 %v2960, %v2956
      %v3013 = vpack.c.b16 %v2961, %v2957
      %v3014 = vpack.c.b16 %v2962, %v2958
      %v3015 = vpack.c.b16 %v2967, %v2963
      %v3016 = vpack.c.b16 %v2968, %v2964
      %v3017 = vpack.c.b16 %v2969, %v2965
      %v3018 = vpack.c.b16 %v2970, %v2966
      %v3019 = vpack.c.b16 %v2975, %v2971
      %v3020 = vpack.c.b16 %v2976, %v2972
      %v3021 = vpack.c.b16 %v2977, %v2973
      %v3022 = vpack.c.b16 %v2978, %v2974
      %v3023 = vpack.c.b16 %v2983, %v2979
      %v3024 = vpack.c.b16 %v2984, %v2980
      %v3025 = vpack.c.b16 %v2985, %v2981
      %v3026 = vpack.c.b16 %v2986, %v2982
      %v3027 = vpack.c.b16 %v2991, %v2987
      %v3028 = vpack.c.b16 %v2992, %v2988
      %v3029 = vpack.c.b16 %v2993, %v2989
      %v3030 = vpack.c.b16 %v2994, %v2990
      %v3031 = vpack.c.b16 %v2999, %v2995
      %v3032 = vpack.c.b16 %v3000, %v2996
      %v3033 = vpack.c.b16 %v3001, %v2997
      %v3034 = vpack.c.b16 %v3002, %v2998
      %3067 = vmatprep.subr.bf16.mxu0 %v3032
      %3068 = vmatpush1.bf16.msra.mxu0 %v3031
      %3069 = vmatprep.subr.bf16.mxu0 %v3028
      %3070 = vmatpush1.bf16.msra.mxu0 %v3027
      %3071 = vmatprep.subr.bf16.mxu0 %v3024
      %3072 = vmatpush1.bf16.msra.mxu0 %v3023
      %3073 = vmatprep.subr.bf16.mxu0 %v3020
      %3074 = vmatpush1.bf16.msra.mxu0 %v3019
      %3075 = vmatprep.subr.bf16.mxu0 %v3016
      %3076 = vmatpush1.bf16.msra.mxu0 %v3015
      %3077 = vmatprep.subr.bf16.mxu0 %v3012
      %3078 = vmatpush1.bf16.msra.mxu0 %v3011
      %3079 = vmatprep.subr.bf16.mxu0 %v3008
      %3080 = vmatpush1.bf16.msra.mxu0 %v3007
      %3081 = vmatprep.subr.bf16.mxu0 %v3004
      %3082 = vmatpush1.bf16.msra.mxu0 %v3003
      %3083 = vmatprep.subr.bf16.mxu0 0
      %3084 = vmatpush2.bf16.msra.mxu0 0
      %3085 = vmatprep.subr.bf16.mxu0 0
      %3086 = vmatpush2.bf16.msra.mxu0 0
      %3087 = vmatprep.subr.bf16.mxu0 0
      %3088 = vmatpush2.bf16.msra.mxu0 0
      %3089 = vmatprep.subr.bf16.mxu0 0
      %3090 = vmatpush2.bf16.msra.mxu0 0
      %3091 = vmatprep.subr.bf16.mxu0 0
      %3092 = vmatpush2.bf16.msra.mxu0 0
      %3093 = vmatprep.subr.bf16.mxu0 0
      %3094 = vmatpush2.bf16.msra.mxu0 0
      %3095 = vmatprep.subr.bf16.mxu0 0
      %3096 = vmatpush2.bf16.msra.mxu0 0
      %3097 = vmatprep.subr.bf16.mxu0 0
      %3098 = vmatpush2.bf16.msra.mxu0 0
      %3099 = vmatprep.mubr.bf16.mxu0 0
      %3100 = vmatmul.mubr.bf16.gmra.mxu0 %v2852
      %v3101 = vpop.f32.mrf.mxu0
      %v3102 = vadd.f32 %v2890, %v3101
      %v3103 = vpop.f32.mrf.mxu0
      %v3104 = vadd.f32 %v2894, %v3103
      %v3105 = vpop.f32.mrf.mxu0
      %v3106 = vadd.f32 %v2890, %v3105
      %v3107 = vpop.f32.mrf.mxu0
      %v3108 = vadd.f32 %v2894, %v3107
      %3109 = vdwg.mxu0
      %3110 = vmatprep.subr.bf16.mxu0 %v3034
      %3111 = vmatpush1.bf16.msra.mxu0 %v3033
      %3112 = vmatprep.subr.bf16.mxu0 %v3030
      %3113 = vmatpush1.bf16.msra.mxu0 %v3029
      %3114 = vmatprep.subr.bf16.mxu0 %v3026
      %3115 = vmatpush1.bf16.msra.mxu0 %v3025
      %3116 = vmatprep.subr.bf16.mxu0 %v3022
      %3117 = vmatpush1.bf16.msra.mxu0 %v3021
      %3118 = vmatprep.subr.bf16.mxu0 %v3018
      %3119 = vmatpush1.bf16.msra.mxu0 %v3017
      %3120 = vmatprep.subr.bf16.mxu0 %v3014
      %3121 = vmatpush1.bf16.msra.mxu0 %v3013
      %3122 = vmatprep.subr.bf16.mxu0 %v3010
      %3123 = vmatpush1.bf16.msra.mxu0 %v3009
      %3124 = vmatprep.subr.bf16.mxu0 %v3006
      %3125 = vmatpush1.bf16.msra.mxu0 %v3005
      %3126 = vmatprep.subr.bf16.mxu0 0
      %3127 = vmatpush2.bf16.msra.mxu0 0
      %3128 = vmatprep.subr.bf16.mxu0 0
      %3129 = vmatpush2.bf16.msra.mxu0 0
      %3130 = vmatprep.subr.bf16.mxu0 0
      %3131 = vmatpush2.bf16.msra.mxu0 0
      %3132 = vmatprep.subr.bf16.mxu0 0
      %3133 = vmatpush2.bf16.msra.mxu0 0
      %3134 = vmatprep.subr.bf16.mxu0 0
      %3135 = vmatpush2.bf16.msra.mxu0 0
      %3136 = vmatprep.subr.bf16.mxu0 0
      %3137 = vmatpush2.bf16.msra.mxu0 0
      %3138 = vmatprep.subr.bf16.mxu0 0
      %3139 = vmatpush2.bf16.msra.mxu0 0
      %3140 = vmatprep.subr.bf16.mxu0 0
      %3141 = vmatpush2.bf16.msra.mxu0 0
      %3142 = vmatprep.mubr.bf16.mxu0 0
      %3143 = vmatmul.mubr.bf16.gmra.mxu0 %v2852
      %v3144 = vpop.f32.mrf.mxu0
      %v3145 = vadd.f32 %v2898, %v3144
      %v3146 = vpop.f32.mrf.mxu0
      %v3147 = vadd.f32 %v2902, %v3146
      %v3148 = vpop.f32.mrf.mxu0
      %v3149 = vadd.f32 %v2898, %v3148
      %v3150 = vpop.f32.mrf.mxu0
      %v3151 = vadd.f32 %v2902, %v3150
      %3152 = vdwg.mxu0
      %v3153 = vmax.f32 %v3102, 0.0
      %v3154 = vmax.f32 %v3104, 0.0
      %v3155 = vmax.f32 %v3145, 0.0
      %v3156 = vmax.f32 %v3147, 0.0
      %v3157 = vmax.f32 %v3106, 0.0
      %v3158 = vmax.f32 %v3108, 0.0
      %v3159 = vmax.f32 %v3149, 0.0
      %v3160 = vmax.f32 %v3151, 0.0
      %v3161 = vpack.c.bf16 %v3157, %v3153
      %v3162 = vpack.c.bf16 %v3158, %v3154
      %v3163 = vpack.c.bf16 %v3159, %v3155
      %v3164 = vpack.c.bf16 %v3160, %v3156
      %v3165 = vld [vmem:[%s14] sm:$0xf]
      %v3166 = vld [vmem:[%s14 + $0x4] sm:$0xf]
      %v3167 = vld [vmem:[%s14 + $0x8] sm:$0xf]
      %v3168 = vld [vmem:[%s14 + $0xc] sm:$0xf]
      %v3169 = vld [vmem:[%s14 + $0x10] sm:$0xf]
      %v3170 = vld [vmem:[%s14 + $0x14] sm:$0xf]
      %v3171 = vld [vmem:[%s14 + $0x18] sm:$0xf]
      %v3172 = vld [vmem:[%s14 + $0x1c] sm:$0xf]
      %v3173 = vld [vmem:[%s14 + $0x20] sm:$0xf]
      %v3174 = vld [vmem:[%s14 + $0x24] sm:$0xf]
      %v3175 = vld [vmem:[%s14 + $0x28] sm:$0xf]
      %v3176 = vld [vmem:[%s14 + $0x2c] sm:$0xf]
      %v3177 = vld [vmem:[%s14 + $0x30] sm:$0xf]
      %v3178 = vld [vmem:[%s14 + $0x34] sm:$0xf]
      %v3179 = vld [vmem:[%s14 + $0x38] sm:$0xf]
      %v3180 = vld [vmem:[%s14 + $0x3c] sm:$0xf]
      %v3181 = vld [vmem:[%s14 + $0x40] sm:$0xf]
      %v3182 = vld [vmem:[%s14 + $0x44] sm:$0xf]
      %v3183 = vld [vmem:[%s14 + $0x48] sm:$0xf]
      %v3184 = vld [vmem:[%s14 + $0x4c] sm:$0xf]
      %v3185 = vld [vmem:[%s14 + $0x50] sm:$0xf]
      %v3186 = vld [vmem:[%s14 + $0x54] sm:$0xf]
      %v3187 = vld [vmem:[%s14 + $0x58] sm:$0xf]
      %v3188 = vld [vmem:[%s14 + $0x5c] sm:$0xf]
      %v3189 = vld [vmem:[%s14 + $0x60] sm:$0xf]
      %v3190 = vld [vmem:[%s14 + $0x64] sm:$0xf]
      %v3191 = vld [vmem:[%s14 + $0x68] sm:$0xf]
      %v3192 = vld [vmem:[%s14 + $0x6c] sm:$0xf]
      %v3193 = vld [vmem:[%s14 + $0x70] sm:$0xf]
      %v3194 = vld [vmem:[%s14 + $0x74] sm:$0xf]
      %v3195 = vld [vmem:[%s14 + $0x78] sm:$0xf]
      %v3196 = vld [vmem:[%s14 + $0x7c] sm:$0xf]
      %v3197 = vld [vmem:[%s14 + $0x80] sm:$0xf]
      %v3198 = vld [vmem:[%s14 + $0x84] sm:$0xf]
      %v3199 = vld [vmem:[%s14 + $0x88] sm:$0xf]
      %v3200 = vld [vmem:[%s14 + $0x8c] sm:$0xf]
      %v3201 = vld [vmem:[%s14 + $0x90] sm:$0xf]
      %v3202 = vld [vmem:[%s14 + $0x94] sm:$0xf]
      %v3203 = vld [vmem:[%s14 + $0x98] sm:$0xf]
      %v3204 = vld [vmem:[%s14 + $0x9c] sm:$0xf]
      %v3205 = vld [vmem:[%s14 + $0xa0] sm:$0xf]
      %v3206 = vld [vmem:[%s14 + $0xa4] sm:$0xf]
      %v3207 = vld [vmem:[%s14 + $0xa8] sm:$0xf]
      %v3208 = vld [vmem:[%s14 + $0xac] sm:$0xf]
      %v3209 = vld [vmem:[%s14 + $0xb0] sm:$0xf]
      %v3210 = vld [vmem:[%s14 + $0xb4] sm:$0xf]
      %v3211 = vld [vmem:[%s14 + $0xb8] sm:$0xf]
      %v3212 = vld [vmem:[%s14 + $0xbc] sm:$0xf]
      %v3213 = vld [vmem:[%s14 + $0xc0] sm:$0xf]
      %v3214 = vld [vmem:[%s14 + $0xc4] sm:$0xf]
      %v3215 = vld [vmem:[%s14 + $0xc8] sm:$0xf]
      %v3216 = vld [vmem:[%s14 + $0xcc] sm:$0xf]
      %v3217 = vld [vmem:[%s14 + $0xd0] sm:$0xf]
      %v3218 = vld [vmem:[%s14 + $0xd4] sm:$0xf]
      %v3219 = vld [vmem:[%s14 + $0xd8] sm:$0xf]
      %v3220 = vld [vmem:[%s14 + $0xdc] sm:$0xf]
      %v3221 = vld [vmem:[%s14 + $0xe0] sm:$0xf]
      %v3222 = vld [vmem:[%s14 + $0xe4] sm:$0xf]
      %v3223 = vld [vmem:[%s14 + $0xe8] sm:$0xf]
      %v3224 = vld [vmem:[%s14 + $0xec] sm:$0xf]
      %v3225 = vld [vmem:[%s14 + $0xf0] sm:$0xf]
      %v3226 = vld [vmem:[%s14 + $0xf4] sm:$0xf]
      %v3227 = vld [vmem:[%s14 + $0xf8] sm:$0xf]
      %v3228 = vld [vmem:[%s14 + $0xfc] sm:$0xf]
      %v3229 = vld [vmem:[%s15] sm:$0x1]
      %v3231 = vlaneseq
      %v3232 = vshrl.u32 %v3231, 7
      %v3233 = vsub.s32 0, %v3232
      %v3234 = vrot.slane %v3229, %v3233
      %v3300 = vunpack.c.l.b16 %v3165
      %v3301 = vunpack.c.l.b16 %v3166
      %v3302 = vunpack.c.l.b16 %v3167
      %v3303 = vunpack.c.l.b16 %v3168
      %v3304 = vunpack.c.l.b16 %v3169
      %v3305 = vunpack.c.l.b16 %v3170
      %v3306 = vunpack.c.l.b16 %v3171
      %v3307 = vunpack.c.l.b16 %v3172
      %v3308 = vunpack.c.l.b16 %v3173
      %v3309 = vunpack.c.l.b16 %v3174
      %v3310 = vunpack.c.l.b16 %v3175
      %v3311 = vunpack.c.l.b16 %v3176
      %v3312 = vunpack.c.l.b16 %v3177
      %v3313 = vunpack.c.l.b16 %v3178
      %v3314 = vunpack.c.l.b16 %v3179
      %v3315 = vunpack.c.l.b16 %v3180
      %v3316 = vunpack.c.l.b16 %v3181
      %v3317 = vunpack.c.l.b16 %v3182
      %v3318 = vunpack.c.l.b16 %v3183
      %v3319 = vunpack.c.l.b16 %v3184
      %v3320 = vunpack.c.l.b16 %v3185
      %v3321 = vunpack.c.l.b16 %v3186
      %v3322 = vunpack.c.l.b16 %v3187
      %v3323 = vunpack.c.l.b16 %v3188
      %v3324 = vunpack.c.l.b16 %v3189
      %v3325 = vunpack.c.l.b16 %v3190
      %v3326 = vunpack.c.l.b16 %v3191
      %v3327 = vunpack.c.l.b16 %v3192
      %v3328 = vunpack.c.l.b16 %v3193
      %v3329 = vunpack.c.l.b16 %v3194
      %v3330 = vunpack.c.l.b16 %v3195
      %v3331 = vunpack.c.l.b16 %v3196
      %v3332 = vunpack.c.l.b16 %v3197
      %v3333 = vunpack.c.l.b16 %v3198
      %v3334 = vunpack.c.l.b16 %v3199
      %v3335 = vunpack.c.l.b16 %v3200
      %v3336 = vunpack.c.l.b16 %v3201
      %v3337 = vunpack.c.l.b16 %v3202
      %v3338 = vunpack.c.l.b16 %v3203
      %v3339 = vunpack.c.l.b16 %v3204
      %v3340 = vunpack.c.l.b16 %v3205
      %v3341 = vunpack.c.l.b16 %v3206
      %v3342 = vunpack.c.l.b16 %v3207
      %v3343 = vunpack.c.l.b16 %v3208
      %v3344 = vunpack.c.l.b16 %v3209
      %v3345 = vunpack.c.l.b16 %v3210
      %v3346 = vunpack.c.l.b16 %v3211
      %v3347 = vunpack.c.l.b16 %v3212
      %v3348 = vunpack.c.l.b16 %v3213
      %v3349 = vunpack.c.l.b16 %v3214
      %v3350 = vunpack.c.l.b16 %v3215
      %v3351 = vunpack.c.l.b16 %v3216
      %v3352 = vunpack.c.l.b16 %v3217
      %v3353 = vunpack.c.l.b16 %v3218
      %v3354 = vunpack.c.l.b16 %v3219
      %v3355 = vunpack.c.l.b16 %v3220
      %v3356 = vunpack.c.l.b16 %v3221
      %v3357 = vunpack.c.l.b16 %v3222
      %v3358 = vunpack.c.l.b16 %v3223
      %v3359 = vunpack.c.l.b16 %v3224
      %v3360 = vunpack.c.l.b16 %v3225
      %v3361 = vunpack.c.l.b16 %v3226
      %v3362 = vunpack.c.l.b16 %v3227
      %v3363 = vunpack.c.l.b16 %v3228
      %v3364 = vpack.c.b16 %v3301, %v3300
      %v3365 = vpack.c.b16 %v3303, %v3302
      %v3366 = vpack.c.b16 %v3305, %v3304
      %v3367 = vpack.c.b16 %v3307, %v3306
      %v3368 = vpack.c.b16 %v3309, %v3308
      %v3369 = vpack.c.b16 %v3311, %v3310
      %v3370 = vpack.c.b16 %v3313, %v3312
      %v3371 = vpack.c.b16 %v3315, %v3314
      %v3372 = vpack.c.b16 %v3317, %v3316
      %v3373 = vpack.c.b16 %v3319, %v3318
      %v3374 = vpack.c.b16 %v3321, %v3320
      %v3375 = vpack.c.b16 %v3323, %v3322
      %v3376 = vpack.c.b16 %v3325, %v3324
      %v3377 = vpack.c.b16 %v3327, %v3326
      %v3378 = vpack.c.b16 %v3329, %v3328
      %v3379 = vpack.c.b16 %v3331, %v3330
      %v3380 = vpack.c.b16 %v3333, %v3332
      %v3381 = vpack.c.b16 %v3335, %v3334
      %v3382 = vpack.c.b16 %v3337, %v3336
      %v3383 = vpack.c.b16 %v3339, %v3338
      %v3384 = vpack.c.b16 %v3341, %v3340
      %v3385 = vpack.c.b16 %v3343, %v3342
      %v3386 = vpack.c.b16 %v3345, %v3344
      %v3387 = vpack.c.b16 %v3347, %v3346
      %v3388 = vpack.c.b16 %v3349, %v3348
      %v3389 = vpack.c.b16 %v3351, %v3350
      %v3390 = vpack.c.b16 %v3353, %v3352
      %v3391 = vpack.c.b16 %v3355, %v3354
      %v3392 = vpack.c.b16 %v3357, %v3356
      %v3393 = vpack.c.b16 %v3359, %v3358
      %v3394 = vpack.c.b16 %v3361, %v3360
      %v3395 = vpack.c.b16 %v3363, %v3362
      %3428 = vmatprep.subr.bf16.mxu0 0
      %3429 = vmatpush1.bf16.msra.mxu0 %v3371
      %3430 = vmatprep.subr.bf16.mxu0 0
      %3431 = vmatpush1.bf16.msra.mxu0 %v3370
      %3432 = vmatprep.subr.bf16.mxu0 0
      %3433 = vmatpush1.bf16.msra.mxu0 %v3369
      %3434 = vmatprep.subr.bf16.mxu0 0
      %3435 = vmatpush1.bf16.msra.mxu0 %v3368
      %3436 = vmatprep.subr.bf16.mxu0 0
      %3437 = vmatpush1.bf16.msra.mxu0 %v3367
      %3438 = vmatprep.subr.bf16.mxu0 0
      %3439 = vmatpush1.bf16.msra.mxu0 %v3366
      %3440 = vmatprep.subr.bf16.mxu0 0
      %3441 = vmatpush1.bf16.msra.mxu0 %v3365
      %3442 = vmatprep.subr.bf16.mxu0 0
      %3443 = vmatpush1.bf16.msra.mxu0 %v3364
      %3444 = vmatprep.subr.bf16.mxu0 0
      %3445 = vmatpush2.bf16.msra.mxu0 %v3379
      %3446 = vmatprep.subr.bf16.mxu0 0
      %3447 = vmatpush2.bf16.msra.mxu0 %v3378
      %3448 = vmatprep.subr.bf16.mxu0 0
      %3449 = vmatpush2.bf16.msra.mxu0 %v3377
      %3450 = vmatprep.subr.bf16.mxu0 0
      %3451 = vmatpush2.bf16.msra.mxu0 %v3376
      %3452 = vmatprep.subr.bf16.mxu0 0
      %3453 = vmatpush2.bf16.msra.mxu0 %v3375
      %3454 = vmatprep.subr.bf16.mxu0 0
      %3455 = vmatpush2.bf16.msra.mxu0 %v3374
      %3456 = vmatprep.subr.bf16.mxu0 0
      %3457 = vmatpush2.bf16.msra.mxu0 %v3373
      %3458 = vmatprep.subr.bf16.mxu0 0
      %3459 = vmatpush2.bf16.msra.mxu0 %v3372
      %3460 = vmatprep.mubr.bf16.mxu0 %v3162
      %3461 = vmatmul.mubr.bf16.gmra.mxu0 %v3161
      %v3462 = vpop.f32.mrf.mxu0
      %v3463 = vadd.f32 %v3234, %v3462
      %v3464 = vpop.f32.mrf.mxu0
      %v3465 = vpop.f32.mrf.mxu0
      %v3466 = vadd.f32 %v3234, %v3465
      %v3467 = vpop.f32.mrf.mxu0
      %3468 = vdwg.mxu0
      %3469 = vmatprep.subr.bf16.mxu0 0
      %3470 = vmatpush1.bf16.msra.mxu0 %v3387
      %3471 = vmatprep.subr.bf16.mxu0 0
      %3472 = vmatpush1.bf16.msra.mxu0 %v3386
      %3473 = vmatprep.subr.bf16.mxu0 0
      %3474 = vmatpush1.bf16.msra.mxu0 %v3385
      %3475 = vmatprep.subr.bf16.mxu0 0
      %3476 = vmatpush1.bf16.msra.mxu0 %v3384
      %3477 = vmatprep.subr.bf16.mxu0 0
      %3478 = vmatpush1.bf16.msra.mxu0 %v3383
      %3479 = vmatprep.subr.bf16.mxu0 0
      %3480 = vmatpush1.bf16.msra.mxu0 %v3382
      %3481 = vmatprep.subr.bf16.mxu0 0
      %3482 = vmatpush1.bf16.msra.mxu0 %v3381
      %3483 = vmatprep.subr.bf16.mxu0 0
      %3484 = vmatpush1.bf16.msra.mxu0 %v3380
      %3485 = vmatprep.subr.bf16.mxu0 0
      %3486 = vmatpush2.bf16.msra.mxu0 %v3395
      %3487 = vmatprep.subr.bf16.mxu0 0
      %3488 = vmatpush2.bf16.msra.mxu0 %v3394
      %3489 = vmatprep.subr.bf16.mxu0 0
      %3490 = vmatpush2.bf16.msra.mxu0 %v3393
      %3491 = vmatprep.subr.bf16.mxu0 0
      %3492 = vmatpush2.bf16.msra.mxu0 %v3392
      %3493 = vmatprep.subr.bf16.mxu0 0
      %3494 = vmatpush2.bf16.msra.mxu0 %v3391
      %3495 = vmatprep.subr.bf16.mxu0 0
      %3496 = vmatpush2.bf16.msra.mxu0 %v3390
      %3497 = vmatprep.subr.bf16.mxu0 0
      %3498 = vmatpush2.bf16.msra.mxu0 %v3389
      %3499 = vmatprep.subr.bf16.mxu0 0
      %3500 = vmatpush2.bf16.msra.mxu0 %v3388
      %3501 = vmatprep.mubr.bf16.mxu0 %v3164
      %3502 = vmatmul.mubr.bf16.gmra.mxu0 %v3163
      %v3503 = vpop.f32.mrf.mxu0
      %v3504 = vadd.f32 %v3463, %v3503
      %v3505 = vpop.f32.mrf.mxu0
      %v3506 = vpop.f32.mrf.mxu0
      %v3507 = vadd.f32 %v3466, %v3506
      %v3508 = vpop.f32.mrf.mxu0
      %3509 = vdwg.mxu0
      %v3510 = vadd.f32 %v2850, %v3504
      %v3511 = vadd.f32 %v2851, %v3507
      %v3512 = vld [vmem:[%s16] sm:$0x1]
      %v3513 = vld [vmem:[%s17] sm:$0x1]
      %3514 = vadd.xlane.f32.xlu0 %v3510
      %v3515 = vpop.xlane.xlu0 %3514
      %v3516 = vsel %vm2812, %v3511, 0.0
      %3517 = vadd.xlane.f32.xlu0 %v3516
      %v3518 = vpop.xlane.xlu0 %3517
      %v3519 = vmul.f32 %v3515, %v2816
      %v3520 = vmul.f32 %v3518, %v2816
      %v3521 = vsub.f32 %v3510, %v3519
      %v3522 = vsub.f32 %v3511, %v3520
      %v3523 = vmul.f32 %v3521, %v3521
      %v3524 = vmul.f32 %v3522, %v3522
      %3525 = vadd.xlane.f32.xlu0 %v3523
      %v3526 = vpop.xlane.xlu0 %3525
      %v3527 = vsel %vm2812, %v3524, 0.0
      %3528 = vadd.xlane.f32.xlu0 %v3527
      %v3529 = vpop.xlane.xlu0 %3528
      %v3530 = vmul.f32 %v3526, %v2816
      %v3531 = vmul.f32 %v3529, %v2816
      %v3532 = vadd.f32 %v3530, 1e-05
      %v3533 = vadd.f32 %v3531, 1e-05
      %v3534 = vrsqrt.pop %v3532
      %v3535 = vrsqrt.pop %v3533
      %v3536 = vmul.f32 %v3521, %v3534
      %v3537 = vmul.f32 %v3522, %v3535
      %v3539 = vlaneseq
      %v3540 = vshrl.u32 %v3539, 7
      %v3541 = vsub.s32 0, %v3540
      %v3542 = vrot.slane %v3512, %v3541
      %v3544 = vmul.f32 %v3536, %v3542
      %v3545 = vmul.f32 %v3537, %v3542
      %v3547 = vlaneseq
      %v3548 = vshrl.u32 %v3547, 7
      %v3549 = vsub.s32 0, %v3548
      %v3550 = vrot.slane %v3513, %v3549
      %v3552 = vadd.f32 %v3544, %v3550
      %v3553 = vadd.f32 %v3545, %v3550
      %v3554 = vpack.c.bf16 %v3553, %v3552
      %s3555 = scalar_lea.vmem %s9, 1
      %v3556 = vld [vmem:[%s3555] sm:$0x1]
      %s3557 = scalar_lea.vmem %s2, 256
      %v3558 = vld [vmem:[%s3557] sm:$0xf]
      %v3559 = vld [vmem:[%s3557 + $0x4] sm:$0xf]
      %v3560 = vld [vmem:[%s3557 + $0x8] sm:$0xf]
      %v3561 = vld [vmem:[%s3557 + $0xc] sm:$0xf]
      %v3562 = vld [vmem:[%s3557 + $0x10] sm:$0xf]
      %v3563 = vld [vmem:[%s3557 + $0x14] sm:$0xf]
      %v3564 = vld [vmem:[%s3557 + $0x18] sm:$0xf]
      %v3565 = vld [vmem:[%s3557 + $0x1c] sm:$0xf]
      %v3566 = vld [vmem:[%s3557 + $0x20] sm:$0xf]
      %v3567 = vld [vmem:[%s3557 + $0x24] sm:$0xf]
      %v3568 = vld [vmem:[%s3557 + $0x28] sm:$0xf]
      %v3569 = vld [vmem:[%s3557 + $0x2c] sm:$0xf]
      %v3570 = vld [vmem:[%s3557 + $0x30] sm:$0xf]
      %v3571 = vld [vmem:[%s3557 + $0x34] sm:$0xf]
      %v3572 = vld [vmem:[%s3557 + $0x38] sm:$0xf]
      %v3573 = vld [vmem:[%s3557 + $0x3c] sm:$0xf]
      %s3574 = scalar_lea.vmem %s6, 4
      %v3575 = vld [vmem:[%s3574] sm:$0x1]
      %v3577 = vlaneseq
      %v3578 = vshrl.u32 %v3577, 7
      %v3579 = vsub.s32 0, %v3578
      %v3580 = vrot.slane %v3575, %v3579
      %v3598 = vunpack.c.l.b16 %v3558
      %v3599 = vunpack.c.l.b16 %v3559
      %v3600 = vunpack.c.l.b16 %v3560
      %v3601 = vunpack.c.l.b16 %v3561
      %v3602 = vunpack.c.l.b16 %v3562
      %v3603 = vunpack.c.l.b16 %v3563
      %v3604 = vunpack.c.l.b16 %v3564
      %v3605 = vunpack.c.l.b16 %v3565
      %v3606 = vunpack.c.l.b16 %v3566
      %v3607 = vunpack.c.l.b16 %v3567
      %v3608 = vunpack.c.l.b16 %v3568
      %v3609 = vunpack.c.l.b16 %v3569
      %v3610 = vunpack.c.l.b16 %v3570
      %v3611 = vunpack.c.l.b16 %v3571
      %v3612 = vunpack.c.l.b16 %v3572
      %v3613 = vunpack.c.l.b16 %v3573
      %v3614 = vpack.c.b16 %v3599, %v3598
      %v3615 = vpack.c.b16 %v3601, %v3600
      %v3616 = vpack.c.b16 %v3603, %v3602
      %v3617 = vpack.c.b16 %v3605, %v3604
      %v3618 = vpack.c.b16 %v3607, %v3606
      %v3619 = vpack.c.b16 %v3609, %v3608
      %v3620 = vpack.c.b16 %v3611, %v3610
      %v3621 = vpack.c.b16 %v3613, %v3612
      %3630 = vmatprep.subr.bf16.mxu0 0
      %3631 = vmatpush1.bf16.msra.mxu0 %v3621
      %3632 = vmatprep.subr.bf16.mxu0 0
      %3633 = vmatpush1.bf16.msra.mxu0 %v3620
      %3634 = vmatprep.subr.bf16.mxu0 0
      %3635 = vmatpush1.bf16.msra.mxu0 %v3619
      %3636 = vmatprep.subr.bf16.mxu0 0
      %3637 = vmatpush1.bf16.msra.mxu0 %v3618
      %3638 = vmatprep.subr.bf16.mxu0 0
      %3639 = vmatpush1.bf16.msra.mxu0 %v3617
      %3640 = vmatprep.subr.bf16.mxu0 0
      %3641 = vmatpush1.bf16.msra.mxu0 %v3616
      %3642 = vmatprep.subr.bf16.mxu0 0
      %3643 = vmatpush1.bf16.msra.mxu0 %v3615
      %3644 = vmatprep.subr.bf16.mxu0 0
      %3645 = vmatpush1.bf16.msra.mxu0 %v3614
      %3646 = vmatprep.subr.bf16.mxu0 0
      %3647 = vmatpush2.bf16.msra.mxu0 0
      %3648 = vmatprep.subr.bf16.mxu0 0
      %3649 = vmatpush2.bf16.msra.mxu0 0
      %3650 = vmatprep.subr.bf16.mxu0 0
      %3651 = vmatpush2.bf16.msra.mxu0 0
      %3652 = vmatprep.subr.bf16.mxu0 0
      %3653 = vmatpush2.bf16.msra.mxu0 0
      %3654 = vmatprep.subr.bf16.mxu0 0
      %3655 = vmatpush2.bf16.msra.mxu0 0
      %3656 = vmatprep.subr.bf16.mxu0 0
      %3657 = vmatpush2.bf16.msra.mxu0 0
      %3658 = vmatprep.subr.bf16.mxu0 0
      %3659 = vmatpush2.bf16.msra.mxu0 0
      %3660 = vmatprep.subr.bf16.mxu0 0
      %3661 = vmatpush2.bf16.msra.mxu0 0
      %3662 = vmatprep.mubr.bf16.mxu0 0
      %3663 = vmatmul.mubr.bf16.gmra.mxu0 %v3554
      %v3664 = vpop.f32.mrf.mxu0
      %v3665 = vadd.f32 %v3580, %v3664
      %v3666 = vpop.f32.mrf.mxu0
      %v3667 = vpop.f32.mrf.mxu0
      %v3668 = vadd.f32 %v3580, %v3667
      %v3669 = vpop.f32.mrf.mxu0
      %3670 = vdwg.mxu0
      %s3671 = scalar_lea.vmem %s3, 256
      %v3672 = vld [vmem:[%s3671] sm:$0xf]
      %v3673 = vld [vmem:[%s3671 + $0x4] sm:$0xf]
      %v3674 = vld [vmem:[%s3671 + $0x8] sm:$0xf]
      %v3675 = vld [vmem:[%s3671 + $0xc] sm:$0xf]
      %v3676 = vld [vmem:[%s3671 + $0x10] sm:$0xf]
      %v3677 = vld [vmem:[%s3671 + $0x14] sm:$0xf]
      %v3678 = vld [vmem:[%s3671 + $0x18] sm:$0xf]
      %v3679 = vld [vmem:[%s3671 + $0x1c] sm:$0xf]
      %v3680 = vld [vmem:[%s3671 + $0x20] sm:$0xf]
      %v3681 = vld [vmem:[%s3671 + $0x24] sm:$0xf]
      %v3682 = vld [vmem:[%s3671 + $0x28] sm:$0xf]
      %v3683 = vld [vmem:[%s3671 + $0x2c] sm:$0xf]
      %v3684 = vld [vmem:[%s3671 + $0x30] sm:$0xf]
      %v3685 = vld [vmem:[%s3671 + $0x34] sm:$0xf]
      %v3686 = vld [vmem:[%s3671 + $0x38] sm:$0xf]
      %v3687 = vld [vmem:[%s3671 + $0x3c] sm:$0xf]
      %s3688 = scalar_lea.vmem %s7, 4
      %v3689 = vld [vmem:[%s3688] sm:$0x1]
      %v3691 = vlaneseq
      %v3692 = vshrl.u32 %v3691, 7
      %v3693 = vsub.s32 0, %v3692
      %v3694 = vrot.slane %v3689, %v3693
      %v3712 = vunpack.c.l.b16 %v3672
      %v3713 = vunpack.c.l.b16 %v3673
      %v3714 = vunpack.c.l.b16 %v3674
      %v3715 = vunpack.c.l.b16 %v3675
      %v3716 = vunpack.c.l.b16 %v3676
      %v3717 = vunpack.c.l.b16 %v3677
      %v3718 = vunpack.c.l.b16 %v3678
      %v3719 = vunpack.c.l.b16 %v3679
      %v3720 = vunpack.c.l.b16 %v3680
      %v3721 = vunpack.c.l.b16 %v3681
      %v3722 = vunpack.c.l.b16 %v3682
      %v3723 = vunpack.c.l.b16 %v3683
      %v3724 = vunpack.c.l.b16 %v3684
      %v3725 = vunpack.c.l.b16 %v3685
      %v3726 = vunpack.c.l.b16 %v3686
      %v3727 = vunpack.c.l.b16 %v3687
      %v3728 = vpack.c.b16 %v3713, %v3712
      %v3729 = vpack.c.b16 %v3715, %v3714
      %v3730 = vpack.c.b16 %v3717, %v3716
      %v3731 = vpack.c.b16 %v3719, %v3718
      %v3732 = vpack.c.b16 %v3721, %v3720
      %v3733 = vpack.c.b16 %v3723, %v3722
      %v3734 = vpack.c.b16 %v3725, %v3724
      %v3735 = vpack.c.b16 %v3727, %v3726
      %3744 = vmatprep.subr.bf16.mxu0 0
      %3745 = vmatpush1.bf16.msra.mxu0 %v3735
      %3746 = vmatprep.subr.bf16.mxu0 0
      %3747 = vmatpush1.bf16.msra.mxu0 %v3734
      %3748 = vmatprep.subr.bf16.mxu0 0
      %3749 = vmatpush1.bf16.msra.mxu0 %v3733
      %3750 = vmatprep.subr.bf16.mxu0 0
      %3751 = vmatpush1.bf16.msra.mxu0 %v3732
      %3752 = vmatprep.subr.bf16.mxu0 0
      %3753 = vmatpush1.bf16.msra.mxu0 %v3731
      %3754 = vmatprep.subr.bf16.mxu0 0
      %3755 = vmatpush1.bf16.msra.mxu0 %v3730
      %3756 = vmatprep.subr.bf16.mxu0 0
      %3757 = vmatpush1.bf16.msra.mxu0 %v3729
      %3758 = vmatprep.subr.bf16.mxu0 0
      %3759 = vmatpush1.bf16.msra.mxu0 %v3728
      %3760 = vmatprep.subr.bf16.mxu0 0
      %3761 = vmatpush2.bf16.msra.mxu0 0
      %3762 = vmatprep.subr.bf16.mxu0 0
      %3763 = vmatpush2.bf16.msra.mxu0 0
      %3764 = vmatprep.subr.bf16.mxu0 0
      %3765 = vmatpush2.bf16.msra.mxu0 0
      %3766 = vmatprep.subr.bf16.mxu0 0
      %3767 = vmatpush2.bf16.msra.mxu0 0
      %3768 = vmatprep.subr.bf16.mxu0 0
      %3769 = vmatpush2.bf16.msra.mxu0 0
      %3770 = vmatprep.subr.bf16.mxu0 0
      %3771 = vmatpush2.bf16.msra.mxu0 0
      %3772 = vmatprep.subr.bf16.mxu0 0
      %3773 = vmatpush2.bf16.msra.mxu0 0
      %3774 = vmatprep.subr.bf16.mxu0 0
      %3775 = vmatpush2.bf16.msra.mxu0 0
      %3776 = vmatprep.mubr.bf16.mxu0 0
      %3777 = vmatmul.mubr.bf16.gmra.mxu0 %v3554
      %v3778 = vpop.f32.mrf.mxu0
      %v3779 = vadd.f32 %v3694, %v3778
      %v3780 = vpop.f32.mrf.mxu0
      %v3781 = vpop.f32.mrf.mxu0
      %v3782 = vadd.f32 %v3694, %v3781
      %v3783 = vpop.f32.mrf.mxu0
      %3784 = vdwg.mxu0
      %s3785 = scalar_lea.vmem %s4, 256
      %v3786 = vld [vmem:[%s3785] sm:$0xf]
      %v3787 = vld [vmem:[%s3785 + $0x4] sm:$0xf]
      %v3788 = vld [vmem:[%s3785 + $0x8] sm:$0xf]
      %v3789 = vld [vmem:[%s3785 + $0xc] sm:$0xf]
      %v3790 = vld [vmem:[%s3785 + $0x10] sm:$0xf]
      %v3791 = vld [vmem:[%s3785 + $0x14] sm:$0xf]
      %v3792 = vld [vmem:[%s3785 + $0x18] sm:$0xf]
      %v3793 = vld [vmem:[%s3785 + $0x1c] sm:$0xf]
      %v3794 = vld [vmem:[%s3785 + $0x20] sm:$0xf]
      %v3795 = vld [vmem:[%s3785 + $0x24] sm:$0xf]
      %v3796 = vld [vmem:[%s3785 + $0x28] sm:$0xf]
      %v3797 = vld [vmem:[%s3785 + $0x2c] sm:$0xf]
      %v3798 = vld [vmem:[%s3785 + $0x30] sm:$0xf]
      %v3799 = vld [vmem:[%s3785 + $0x34] sm:$0xf]
      %v3800 = vld [vmem:[%s3785 + $0x38] sm:$0xf]
      %v3801 = vld [vmem:[%s3785 + $0x3c] sm:$0xf]
      %s3802 = scalar_lea.vmem %s8, 4
      %v3803 = vld [vmem:[%s3802] sm:$0x1]
      %v3805 = vlaneseq
      %v3806 = vshrl.u32 %v3805, 7
      %v3807 = vsub.s32 0, %v3806
      %v3808 = vrot.slane %v3803, %v3807
      %v3826 = vunpack.c.l.b16 %v3786
      %v3827 = vunpack.c.l.b16 %v3787
      %v3828 = vunpack.c.l.b16 %v3788
      %v3829 = vunpack.c.l.b16 %v3789
      %v3830 = vunpack.c.l.b16 %v3790
      %v3831 = vunpack.c.l.b16 %v3791
      %v3832 = vunpack.c.l.b16 %v3792
      %v3833 = vunpack.c.l.b16 %v3793
      %v3834 = vunpack.c.l.b16 %v3794
      %v3835 = vunpack.c.l.b16 %v3795
      %v3836 = vunpack.c.l.b16 %v3796
      %v3837 = vunpack.c.l.b16 %v3797
      %v3838 = vunpack.c.l.b16 %v3798
      %v3839 = vunpack.c.l.b16 %v3799
      %v3840 = vunpack.c.l.b16 %v3800
      %v3841 = vunpack.c.l.b16 %v3801
      %v3842 = vpack.c.b16 %v3827, %v3826
      %v3843 = vpack.c.b16 %v3829, %v3828
      %v3844 = vpack.c.b16 %v3831, %v3830
      %v3845 = vpack.c.b16 %v3833, %v3832
      %v3846 = vpack.c.b16 %v3835, %v3834
      %v3847 = vpack.c.b16 %v3837, %v3836
      %v3848 = vpack.c.b16 %v3839, %v3838
      %v3849 = vpack.c.b16 %v3841, %v3840
      %3858 = vmatprep.subr.bf16.mxu0 0
      %3859 = vmatpush1.bf16.msra.mxu0 %v3849
      %3860 = vmatprep.subr.bf16.mxu0 0
      %3861 = vmatpush1.bf16.msra.mxu0 %v3848
      %3862 = vmatprep.subr.bf16.mxu0 0
      %3863 = vmatpush1.bf16.msra.mxu0 %v3847
      %3864 = vmatprep.subr.bf16.mxu0 0
      %3865 = vmatpush1.bf16.msra.mxu0 %v3846
      %3866 = vmatprep.subr.bf16.mxu0 0
      %3867 = vmatpush1.bf16.msra.mxu0 %v3845
      %3868 = vmatprep.subr.bf16.mxu0 0
      %3869 = vmatpush1.bf16.msra.mxu0 %v3844
      %3870 = vmatprep.subr.bf16.mxu0 0
      %3871 = vmatpush1.bf16.msra.mxu0 %v3843
      %3872 = vmatprep.subr.bf16.mxu0 0
      %3873 = vmatpush1.bf16.msra.mxu0 %v3842
      %3874 = vmatprep.subr.bf16.mxu0 0
      %3875 = vmatpush2.bf16.msra.mxu0 0
      %3876 = vmatprep.subr.bf16.mxu0 0
      %3877 = vmatpush2.bf16.msra.mxu0 0
      %3878 = vmatprep.subr.bf16.mxu0 0
      %3879 = vmatpush2.bf16.msra.mxu0 0
      %3880 = vmatprep.subr.bf16.mxu0 0
      %3881 = vmatpush2.bf16.msra.mxu0 0
      %3882 = vmatprep.subr.bf16.mxu0 0
      %3883 = vmatpush2.bf16.msra.mxu0 0
      %3884 = vmatprep.subr.bf16.mxu0 0
      %3885 = vmatpush2.bf16.msra.mxu0 0
      %3886 = vmatprep.subr.bf16.mxu0 0
      %3887 = vmatpush2.bf16.msra.mxu0 0
      %3888 = vmatprep.subr.bf16.mxu0 0
      %3889 = vmatpush2.bf16.msra.mxu0 0
      %3890 = vmatprep.mubr.bf16.mxu0 0
      %3891 = vmatmul.mubr.bf16.gmra.mxu0 %v3554
      %v3892 = vpop.f32.mrf.mxu0
      %v3893 = vadd.f32 %v3808, %v3892
      %v3894 = vpop.f32.mrf.mxu0
      %v3895 = vpop.f32.mrf.mxu0
      %v3896 = vadd.f32 %v3808, %v3895
      %v3897 = vpop.f32.mrf.mxu0
      %3898 = vdwg.mxu0
      %v3899 = vpack.c.bf16 %v3668, %v3665
      %v3900 = vpack.c.bf16 %v3782, %v3779
      %v3902 = vsel %vm1029, %v3899, 0
      %v3905 = vsel %vm1029, %v3900, 0
      %3907 = vmatprep.subr.bf16.mxu0 0
      %3908 = vmatpush1.bf16.xpose.msra.mxu0 0
      %3909 = vmatprep.subr.bf16.mxu0 0
      %3910 = vmatpush1.bf16.xpose.msra.mxu0 0
      %3911 = vmatprep.subr.bf16.mxu0 0
      %3912 = vmatpush1.bf16.xpose.msra.mxu0 0
      %3913 = vmatprep.subr.bf16.mxu0 0
      %3914 = vmatpush1.bf16.xpose.msra.mxu0 0
      %3915 = vmatprep.subr.bf16.mxu0 0
      %3916 = vmatpush1.bf16.xpose.msra.mxu0 0
      %3917 = vmatprep.subr.bf16.mxu0 0
      %3918 = vmatpush1.bf16.xpose.msra.mxu0 0
      %3919 = vmatprep.subr.bf16.mxu0 0
      %3920 = vmatpush1.bf16.xpose.msra.mxu0 0
      %3921 = vmatprep.subr.bf16.mxu0 0
      %3922 = vmatpush1.bf16.xpose.msra.mxu0 %v3905
      %3923 = vmatprep.subr.bf16.mxu0 0
      %3924 = vmatpush2.bf16.xpose.msra.mxu0 0
      %3925 = vmatprep.subr.bf16.mxu0 0
      %3926 = vmatpush2.bf16.xpose.msra.mxu0 0
      %3927 = vmatprep.subr.bf16.mxu0 0
      %3928 = vmatpush2.bf16.xpose.msra.mxu0 0
      %3929 = vmatprep.subr.bf16.mxu0 0
      %3930 = vmatpush2.bf16.xpose.msra.mxu0 0
      %3931 = vmatprep.subr.bf16.mxu0 0
      %3932 = vmatpush2.bf16.xpose.msra.mxu0 0
      %3933 = vmatprep.subr.bf16.mxu0 0
      %3934 = vmatpush2.bf16.xpose.msra.mxu0 0
      %3935 = vmatprep.subr.bf16.mxu0 0
      %3936 = vmatpush2.bf16.xpose.msra.mxu0 0
      %3937 = vmatprep.subr.bf16.mxu0 0
      %3938 = vmatpush2.bf16.xpose.msra.mxu0 0
      %3939 = vmatprep.mubr.bf16.mxu0 0
      %3940 = vmatmul.mubr.bf16.gmra.mxu0 %v3902
      %v3941 = vpop.f32.mrf.mxu0
      %v3942 = vadd.f32 0.0, %v3941
      %v3943 = vpop.f32.mrf.mxu0
      %v3944 = vpop.f32.mrf.mxu0
      %v3945 = vadd.f32 0.0, %v3944
      %v3946 = vpop.f32.mrf.mxu0
      %3947 = vdwg.mxu0
      %v3948 = vmul.f32 %v3942, 0.17677669
      %v3949 = vmul.f32 %v3945, 0.17677669
      %v3950 = vsel %vm1079, %v3948, -inf
      %3951 = vmax.xlane.f32.xlu0 %v3950
      %v3952 = vpop.xlane.xlu0 %3951
      %v3953 = vsel %vm1083, %v3949, -inf
      %3954 = vmax.xlane.f32.xlu0 %v3953
      %v3955 = vpop.xlane.xlu0 %3954
      %v3956 = vsub.f32 %v3948, %v3952
      %v3957 = vsub.f32 %v3949, %v3955
      %v3958 = vmul.f32 %v3956, 1.442695
      %v3959 = vpow.pop %v3958
      %v3960 = vmul.f32 %v3957, 1.442695
      %v3961 = vpow.pop %v3960
      %v3962 = vsel %vm1079, %v3959, 0.0
      %3963 = vadd.xlane.f32.xlu0 %v3962
      %v3964 = vpop.xlane.xlu0 %3963
      %v3965 = vsel %vm1083, %v3961, 0.0
      %3966 = vadd.xlane.f32.xlu0 %v3965
      %v3967 = vpop.xlane.xlu0 %3966
      %v3968 = vrcp.pop %v3964
      %v3969 = vrcp.pop %v3967
      %v3970 = vmul.f32 %v3959, %v3968
      %v3971 = vmul.f32 %v3961, %v3969
      %v3972 = vpack.c.bf16 %v3971, %v3970
      %v3973 = vpack.c.bf16 %v3896, %v3893
      %v3975 = vsel %vm1079, %v3972, 0
      %v3978 = vsel %vm1108, %v3973, 0
      %3980 = vmatprep.subr.bf16.mxu0 0
      %3981 = vmatpush1.bf16.msra.mxu0 0
      %3982 = vmatprep.subr.bf16.mxu0 0
      %3983 = vmatpush1.bf16.msra.mxu0 0
      %3984 = vmatprep.subr.bf16.mxu0 0
      %3985 = vmatpush1.bf16.msra.mxu0 0
      %3986 = vmatprep.subr.bf16.mxu0 0
      %3987 = vmatpush1.bf16.msra.mxu0 0
      %3988 = vmatprep.subr.bf16.mxu0 0
      %3989 = vmatpush1.bf16.msra.mxu0 0
      %3990 = vmatprep.subr.bf16.mxu0 0
      %3991 = vmatpush1.bf16.msra.mxu0 0
      %3992 = vmatprep.subr.bf16.mxu0 0
      %3993 = vmatpush1.bf16.msra.mxu0 0
      %3994 = vmatprep.subr.bf16.mxu0 0
      %3995 = vmatpush1.bf16.msra.mxu0 %v3978
      %3996 = vmatprep.subr.bf16.mxu0 0
      %3997 = vmatpush2.bf16.msra.mxu0 0
      %3998 = vmatprep.subr.bf16.mxu0 0
      %3999 = vmatpush2.bf16.msra.mxu0 0
      %4000 = vmatprep.subr.bf16.mxu0 0
      %4001 = vmatpush2.bf16.msra.mxu0 0
      %4002 = vmatprep.subr.bf16.mxu0 0
      %4003 = vmatpush2.bf16.msra.mxu0 0
      %4004 = vmatprep.subr.bf16.mxu0 0
      %4005 = vmatpush2.bf16.msra.mxu0 0
      %4006 = vmatprep.subr.bf16.mxu0 0
      %4007 = vmatpush2.bf16.msra.mxu0 0
      %4008 = vmatprep.subr.bf16.mxu0 0
      %4009 = vmatpush2.bf16.msra.mxu0 0
      %4010 = vmatprep.subr.bf16.mxu0 0
      %4011 = vmatpush2.bf16.msra.mxu0 0
      %4012 = vmatprep.mubr.bf16.mxu0 0
      %4013 = vmatmul.mubr.bf16.gmra.mxu0 %v3975
      %v4014 = vpop.f32.mrf.mxu0
      %v4015 = vadd.f32 0.0, %v4014
      %v4016 = vpop.f32.mrf.mxu0
      %v4017 = vpop.f32.mrf.mxu0
      %v4018 = vadd.f32 0.0, %v4017
      %v4019 = vpop.f32.mrf.mxu0
      %4020 = vdwg.mxu0
      %v4021 = vpack.c.bf16 %v4018, %v4015
      %s4022 = scalar_lea.vmem %s5, 64
      %v4023 = vld [vmem:[%s4022] sm:$0xf]
      %v4024 = vld [vmem:[%s4022 + $0x4] sm:$0xf]
      %v4025 = vld [vmem:[%s4022 + $0x8] sm:$0xf]
      %v4026 = vld [vmem:[%s4022 + $0xc] sm:$0xf]
      %v4031 = vunpack.c.l.b16 %v4023
      %v4032 = vunpack.c.l.b16 %v4024
      %v4033 = vunpack.c.l.b16 %v4025
      %v4034 = vunpack.c.l.b16 %v4026
      %v4035 = vpack.c.b16 %v4032, %v4031
      %v4036 = vpack.c.b16 %v4034, %v4033
      %v4040 = vsel %vm1029, %v4021, 0
      %4042 = vmatprep.subr.bf16.mxu0 0
      %4043 = vmatpush1.bf16.msra.mxu0 0
      %4044 = vmatprep.subr.bf16.mxu0 0
      %4045 = vmatpush1.bf16.msra.mxu0 0
      %4046 = vmatprep.subr.bf16.mxu0 0
      %4047 = vmatpush1.bf16.msra.mxu0 0
      %4048 = vmatprep.subr.bf16.mxu0 0
      %4049 = vmatpush1.bf16.msra.mxu0 0
      %4050 = vmatprep.subr.bf16.mxu0 0
      %4051 = vmatpush1.bf16.msra.mxu0 0
      %4052 = vmatprep.subr.bf16.mxu0 0
      %4053 = vmatpush1.bf16.msra.mxu0 0
      %4054 = vmatprep.subr.bf16.mxu0 0
      %4055 = vmatpush1.bf16.msra.mxu0 %v4036
      %4056 = vmatprep.subr.bf16.mxu0 0
      %4057 = vmatpush1.bf16.msra.mxu0 %v4035
      %4058 = vmatprep.subr.bf16.mxu0 0
      %4059 = vmatpush2.bf16.msra.mxu0 0
      %4060 = vmatprep.subr.bf16.mxu0 0
      %4061 = vmatpush2.bf16.msra.mxu0 0
      %4062 = vmatprep.subr.bf16.mxu0 0
      %4063 = vmatpush2.bf16.msra.mxu0 0
      %4064 = vmatprep.subr.bf16.mxu0 0
      %4065 = vmatpush2.bf16.msra.mxu0 0
      %4066 = vmatprep.subr.bf16.mxu0 0
      %4067 = vmatpush2.bf16.msra.mxu0 0
      %4068 = vmatprep.subr.bf16.mxu0 0
      %4069 = vmatpush2.bf16.msra.mxu0 0
      %4070 = vmatprep.subr.bf16.mxu0 0
      %4071 = vmatpush2.bf16.msra.mxu0 0
      %4072 = vmatprep.subr.bf16.mxu0 0
      %4073 = vmatpush2.bf16.msra.mxu0 0
      %4074 = vmatprep.mubr.bf16.mxu0 0
      %4075 = vmatmul.mubr.bf16.gmra.mxu0 %v4040
      %v4076 = vpop.f32.mrf.mxu0
      %v4077 = vadd.f32 0.0, %v4076
      %v4078 = vpop.f32.mrf.mxu0
      %v4079 = vpop.f32.mrf.mxu0
      %v4080 = vadd.f32 0.0, %v4079
      %v4081 = vpop.f32.mrf.mxu0
      %4082 = vdwg.mxu0
      %v4084 = vlaneseq
      %v4085 = vshrl.u32 %v4084, 7
      %v4086 = vsub.s32 0, %v4085
      %v4087 = vrot.slane %v3556, %v4086
      %v4089 = vadd.f32 %v4087, %v4077
      %v4090 = vadd.f32 %v4087, %v4080
      %s4091 = scalar_lea.vmem %s2, 320
      %v4092 = vld [vmem:[%s4091] sm:$0xf]
      %v4093 = vld [vmem:[%s4091 + $0x4] sm:$0xf]
      %v4094 = vld [vmem:[%s4091 + $0x8] sm:$0xf]
      %v4095 = vld [vmem:[%s4091 + $0xc] sm:$0xf]
      %v4096 = vld [vmem:[%s4091 + $0x10] sm:$0xf]
      %v4097 = vld [vmem:[%s4091 + $0x14] sm:$0xf]
      %v4098 = vld [vmem:[%s4091 + $0x18] sm:$0xf]
      %v4099 = vld [vmem:[%s4091 + $0x1c] sm:$0xf]
      %v4100 = vld [vmem:[%s4091 + $0x20] sm:$0xf]
      %v4101 = vld [vmem:[%s4091 + $0x24] sm:$0xf]
      %v4102 = vld [vmem:[%s4091 + $0x28] sm:$0xf]
      %v4103 = vld [vmem:[%s4091 + $0x2c] sm:$0xf]
      %v4104 = vld [vmem:[%s4091 + $0x30] sm:$0xf]
      %v4105 = vld [vmem:[%s4091 + $0x34] sm:$0xf]
      %v4106 = vld [vmem:[%s4091 + $0x38] sm:$0xf]
      %v4107 = vld [vmem:[%s4091 + $0x3c] sm:$0xf]
      %s4108 = scalar_lea.vmem %s6, 5
      %v4109 = vld [vmem:[%s4108] sm:$0x1]
      %v4111 = vlaneseq
      %v4112 = vshrl.u32 %v4111, 7
      %v4113 = vsub.s32 0, %v4112
      %v4114 = vrot.slane %v4109, %v4113
      %v4132 = vunpack.c.l.b16 %v4092
      %v4133 = vunpack.c.l.b16 %v4093
      %v4134 = vunpack.c.l.b16 %v4094
      %v4135 = vunpack.c.l.b16 %v4095
      %v4136 = vunpack.c.l.b16 %v4096
      %v4137 = vunpack.c.l.b16 %v4097
      %v4138 = vunpack.c.l.b16 %v4098
      %v4139 = vunpack.c.l.b16 %v4099
      %v4140 = vunpack.c.l.b16 %v4100
      %v4141 = vunpack.c.l.b16 %v4101
      %v4142 = vunpack.c.l.b16 %v4102
      %v4143 = vunpack.c.l.b16 %v4103
      %v4144 = vunpack.c.l.b16 %v4104
      %v4145 = vunpack.c.l.b16 %v4105
      %v4146 = vunpack.c.l.b16 %v4106
      %v4147 = vunpack.c.l.b16 %v4107
      %v4148 = vpack.c.b16 %v4133, %v4132
      %v4149 = vpack.c.b16 %v4135, %v4134
      %v4150 = vpack.c.b16 %v4137, %v4136
      %v4151 = vpack.c.b16 %v4139, %v4138
      %v4152 = vpack.c.b16 %v4141, %v4140
      %v4153 = vpack.c.b16 %v4143, %v4142
      %v4154 = vpack.c.b16 %v4145, %v4144
      %v4155 = vpack.c.b16 %v4147, %v4146
      %4164 = vmatprep.subr.bf16.mxu0 0
      %4165 = vmatpush1.bf16.msra.mxu0 %v4155
      %4166 = vmatprep.subr.bf16.mxu0 0
      %4167 = vmatpush1.bf16.msra.mxu0 %v4154
      %4168 = vmatprep.subr.bf16.mxu0 0
      %4169 = vmatpush1.bf16.msra.mxu0 %v4153
      %4170 = vmatprep.subr.bf16.mxu0 0
      %4171 = vmatpush1.bf16.msra.mxu0 %v4152
      %4172 = vmatprep.subr.bf16.mxu0 0
      %4173 = vmatpush1.bf16.msra.mxu0 %v4151
      %4174 = vmatprep.subr.bf16.mxu0 0
      %4175 = vmatpush1.bf16.msra.mxu0 %v4150
      %4176 = vmatprep.subr.bf16.mxu0 0
      %4177 = vmatpush1.bf16.msra.mxu0 %v4149
      %4178 = vmatprep.subr.bf16.mxu0 0
      %4179 = vmatpush1.bf16.msra.mxu0 %v4148
      %4180 = vmatprep.subr.bf16.mxu0 0
      %4181 = vmatpush2.bf16.msra.mxu0 0
      %4182 = vmatprep.subr.bf16.mxu0 0
      %4183 = vmatpush2.bf16.msra.mxu0 0
      %4184 = vmatprep.subr.bf16.mxu0 0
      %4185 = vmatpush2.bf16.msra.mxu0 0
      %4186 = vmatprep.subr.bf16.mxu0 0
      %4187 = vmatpush2.bf16.msra.mxu0 0
      %4188 = vmatprep.subr.bf16.mxu0 0
      %4189 = vmatpush2.bf16.msra.mxu0 0
      %4190 = vmatprep.subr.bf16.mxu0 0
      %4191 = vmatpush2.bf16.msra.mxu0 0
      %4192 = vmatprep.subr.bf16.mxu0 0
      %4193 = vmatpush2.bf16.msra.mxu0 0
      %4194 = vmatprep.subr.bf16.mxu0 0
      %4195 = vmatpush2.bf16.msra.mxu0 0
      %4196 = vmatprep.mubr.bf16.mxu0 0
      %4197 = vmatmul.mubr.bf16.gmra.mxu0 %v3554
      %v4198 = vpop.f32.mrf.mxu0
      %v4199 = vadd.f32 %v4114, %v4198
      %v4200 = vpop.f32.mrf.mxu0
      %v4201 = vpop.f32.mrf.mxu0
      %v4202 = vadd.f32 %v4114, %v4201
      %v4203 = vpop.f32.mrf.mxu0
      %4204 = vdwg.mxu0
      %s4205 = scalar_lea.vmem %s3, 320
      %v4206 = vld [vmem:[%s4205] sm:$0xf]
      %v4207 = vld [vmem:[%s4205 + $0x4] sm:$0xf]
      %v4208 = vld [vmem:[%s4205 + $0x8] sm:$0xf]
      %v4209 = vld [vmem:[%s4205 + $0xc] sm:$0xf]
      %v4210 = vld [vmem:[%s4205 + $0x10] sm:$0xf]
      %v4211 = vld [vmem:[%s4205 + $0x14] sm:$0xf]
      %v4212 = vld [vmem:[%s4205 + $0x18] sm:$0xf]
      %v4213 = vld [vmem:[%s4205 + $0x1c] sm:$0xf]
      %v4214 = vld [vmem:[%s4205 + $0x20] sm:$0xf]
      %v4215 = vld [vmem:[%s4205 + $0x24] sm:$0xf]
      %v4216 = vld [vmem:[%s4205 + $0x28] sm:$0xf]
      %v4217 = vld [vmem:[%s4205 + $0x2c] sm:$0xf]
      %v4218 = vld [vmem:[%s4205 + $0x30] sm:$0xf]
      %v4219 = vld [vmem:[%s4205 + $0x34] sm:$0xf]
      %v4220 = vld [vmem:[%s4205 + $0x38] sm:$0xf]
      %v4221 = vld [vmem:[%s4205 + $0x3c] sm:$0xf]
      %s4222 = scalar_lea.vmem %s7, 5
      %v4223 = vld [vmem:[%s4222] sm:$0x1]
      %v4225 = vlaneseq
      %v4226 = vshrl.u32 %v4225, 7
      %v4227 = vsub.s32 0, %v4226
      %v4228 = vrot.slane %v4223, %v4227
      %v4246 = vunpack.c.l.b16 %v4206
      %v4247 = vunpack.c.l.b16 %v4207
      %v4248 = vunpack.c.l.b16 %v4208
      %v4249 = vunpack.c.l.b16 %v4209
      %v4250 = vunpack.c.l.b16 %v4210
      %v4251 = vunpack.c.l.b16 %v4211
      %v4252 = vunpack.c.l.b16 %v4212
      %v4253 = vunpack.c.l.b16 %v4213
      %v4254 = vunpack.c.l.b16 %v4214
      %v4255 = vunpack.c.l.b16 %v4215
      %v4256 = vunpack.c.l.b16 %v4216
      %v4257 = vunpack.c.l.b16 %v4217
      %v4258 = vunpack.c.l.b16 %v4218
      %v4259 = vunpack.c.l.b16 %v4219
      %v4260 = vunpack.c.l.b16 %v4220
      %v4261 = vunpack.c.l.b16 %v4221
      %v4262 = vpack.c.b16 %v4247, %v4246
      %v4263 = vpack.c.b16 %v4249, %v4248
      %v4264 = vpack.c.b16 %v4251, %v4250
      %v4265 = vpack.c.b16 %v4253, %v4252
      %v4266 = vpack.c.b16 %v4255, %v4254
      %v4267 = vpack.c.b16 %v4257, %v4256
      %v4268 = vpack.c.b16 %v4259, %v4258
      %v4269 = vpack.c.b16 %v4261, %v4260
      %4278 = vmatprep.subr.bf16.mxu0 0
      %4279 = vmatpush1.bf16.msra.mxu0 %v4269
      %4280 = vmatprep.subr.bf16.mxu0 0
      %4281 = vmatpush1.bf16.msra.mxu0 %v4268
      %4282 = vmatprep.subr.bf16.mxu0 0
      %4283 = vmatpush1.bf16.msra.mxu0 %v4267
      %4284 = vmatprep.subr.bf16.mxu0 0
      %4285 = vmatpush1.bf16.msra.mxu0 %v4266
      %4286 = vmatprep.subr.bf16.mxu0 0
      %4287 = vmatpush1.bf16.msra.mxu0 %v4265
      %4288 = vmatprep.subr.bf16.mxu0 0
      %4289 = vmatpush1.bf16.msra.mxu0 %v4264
      %4290 = vmatprep.subr.bf16.mxu0 0
      %4291 = vmatpush1.bf16.msra.mxu0 %v4263
      %4292 = vmatprep.subr.bf16.mxu0 0
      %4293 = vmatpush1.bf16.msra.mxu0 %v4262
      %4294 = vmatprep.subr.bf16.mxu0 0
      %4295 = vmatpush2.bf16.msra.mxu0 0
      %4296 = vmatprep.subr.bf16.mxu0 0
      %4297 = vmatpush2.bf16.msra.mxu0 0
      %4298 = vmatprep.subr.bf16.mxu0 0
      %4299 = vmatpush2.bf16.msra.mxu0 0
      %4300 = vmatprep.subr.bf16.mxu0 0
      %4301 = vmatpush2.bf16.msra.mxu0 0
      %4302 = vmatprep.subr.bf16.mxu0 0
      %4303 = vmatpush2.bf16.msra.mxu0 0
      %4304 = vmatprep.subr.bf16.mxu0 0
      %4305 = vmatpush2.bf16.msra.mxu0 0
      %4306 = vmatprep.subr.bf16.mxu0 0
      %4307 = vmatpush2.bf16.msra.mxu0 0
      %4308 = vmatprep.subr.bf16.mxu0 0
      %4309 = vmatpush2.bf16.msra.mxu0 0
      %4310 = vmatprep.mubr.bf16.mxu0 0
      %4311 = vmatmul.mubr.bf16.gmra.mxu0 %v3554
      %v4312 = vpop.f32.mrf.mxu0
      %v4313 = vadd.f32 %v4228, %v4312
      %v4314 = vpop.f32.mrf.mxu0
      %v4315 = vpop.f32.mrf.mxu0
      %v4316 = vadd.f32 %v4228, %v4315
      %v4317 = vpop.f32.mrf.mxu0
      %4318 = vdwg.mxu0
      %s4319 = scalar_lea.vmem %s4, 320
      %v4320 = vld [vmem:[%s4319] sm:$0xf]
      %v4321 = vld [vmem:[%s4319 + $0x4] sm:$0xf]
      %v4322 = vld [vmem:[%s4319 + $0x8] sm:$0xf]
      %v4323 = vld [vmem:[%s4319 + $0xc] sm:$0xf]
      %v4324 = vld [vmem:[%s4319 + $0x10] sm:$0xf]
      %v4325 = vld [vmem:[%s4319 + $0x14] sm:$0xf]
      %v4326 = vld [vmem:[%s4319 + $0x18] sm:$0xf]
      %v4327 = vld [vmem:[%s4319 + $0x1c] sm:$0xf]
      %v4328 = vld [vmem:[%s4319 + $0x20] sm:$0xf]
      %v4329 = vld [vmem:[%s4319 + $0x24] sm:$0xf]
      %v4330 = vld [vmem:[%s4319 + $0x28] sm:$0xf]
      %v4331 = vld [vmem:[%s4319 + $0x2c] sm:$0xf]
      %v4332 = vld [vmem:[%s4319 + $0x30] sm:$0xf]
      %v4333 = vld [vmem:[%s4319 + $0x34] sm:$0xf]
      %v4334 = vld [vmem:[%s4319 + $0x38] sm:$0xf]
      %v4335 = vld [vmem:[%s4319 + $0x3c] sm:$0xf]
      %s4336 = scalar_lea.vmem %s8, 5
      %v4337 = vld [vmem:[%s4336] sm:$0x1]
      %v4339 = vlaneseq
      %v4340 = vshrl.u32 %v4339, 7
      %v4341 = vsub.s32 0, %v4340
      %v4342 = vrot.slane %v4337, %v4341
      %v4360 = vunpack.c.l.b16 %v4320
      %v4361 = vunpack.c.l.b16 %v4321
      %v4362 = vunpack.c.l.b16 %v4322
      %v4363 = vunpack.c.l.b16 %v4323
      %v4364 = vunpack.c.l.b16 %v4324
      %v4365 = vunpack.c.l.b16 %v4325
      %v4366 = vunpack.c.l.b16 %v4326
      %v4367 = vunpack.c.l.b16 %v4327
      %v4368 = vunpack.c.l.b16 %v4328
      %v4369 = vunpack.c.l.b16 %v4329
      %v4370 = vunpack.c.l.b16 %v4330
      %v4371 = vunpack.c.l.b16 %v4331
      %v4372 = vunpack.c.l.b16 %v4332
      %v4373 = vunpack.c.l.b16 %v4333
      %v4374 = vunpack.c.l.b16 %v4334
      %v4375 = vunpack.c.l.b16 %v4335
      %v4376 = vpack.c.b16 %v4361, %v4360
      %v4377 = vpack.c.b16 %v4363, %v4362
      %v4378 = vpack.c.b16 %v4365, %v4364
      %v4379 = vpack.c.b16 %v4367, %v4366
      %v4380 = vpack.c.b16 %v4369, %v4368
      %v4381 = vpack.c.b16 %v4371, %v4370
      %v4382 = vpack.c.b16 %v4373, %v4372
      %v4383 = vpack.c.b16 %v4375, %v4374
      %4392 = vmatprep.subr.bf16.mxu0 0
      %4393 = vmatpush1.bf16.msra.mxu0 %v4383
      %4394 = vmatprep.subr.bf16.mxu0 0
      %4395 = vmatpush1.bf16.msra.mxu0 %v4382
      %4396 = vmatprep.subr.bf16.mxu0 0
      %4397 = vmatpush1.bf16.msra.mxu0 %v4381
      %4398 = vmatprep.subr.bf16.mxu0 0
      %4399 = vmatpush1.bf16.msra.mxu0 %v4380
      %4400 = vmatprep.subr.bf16.mxu0 0
      %4401 = vmatpush1.bf16.msra.mxu0 %v4379
      %4402 = vmatprep.subr.bf16.mxu0 0
      %4403 = vmatpush1.bf16.msra.mxu0 %v4378
      %4404 = vmatprep.subr.bf16.mxu0 0
      %4405 = vmatpush1.bf16.msra.mxu0 %v4377
      %4406 = vmatprep.subr.bf16.mxu0 0
      %4407 = vmatpush1.bf16.msra.mxu0 %v4376
      %4408 = vmatprep.subr.bf16.mxu0 0
      %4409 = vmatpush2.bf16.msra.mxu0 0
      %4410 = vmatprep.subr.bf16.mxu0 0
      %4411 = vmatpush2.bf16.msra.mxu0 0
      %4412 = vmatprep.subr.bf16.mxu0 0
      %4413 = vmatpush2.bf16.msra.mxu0 0
      %4414 = vmatprep.subr.bf16.mxu0 0
      %4415 = vmatpush2.bf16.msra.mxu0 0
      %4416 = vmatprep.subr.bf16.mxu0 0
      %4417 = vmatpush2.bf16.msra.mxu0 0
      %4418 = vmatprep.subr.bf16.mxu0 0
      %4419 = vmatpush2.bf16.msra.mxu0 0
      %4420 = vmatprep.subr.bf16.mxu0 0
      %4421 = vmatpush2.bf16.msra.mxu0 0
      %4422 = vmatprep.subr.bf16.mxu0 0
      %4423 = vmatpush2.bf16.msra.mxu0 0
      %4424 = vmatprep.mubr.bf16.mxu0 0
      %4425 = vmatmul.mubr.bf16.gmra.mxu0 %v3554
      %v4426 = vpop.f32.mrf.mxu0
      %v4427 = vadd.f32 %v4342, %v4426
      %v4428 = vpop.f32.mrf.mxu0
      %v4429 = vpop.f32.mrf.mxu0
      %v4430 = vadd.f32 %v4342, %v4429
      %v4431 = vpop.f32.mrf.mxu0
      %4432 = vdwg.mxu0
      %v4433 = vpack.c.bf16 %v4202, %v4199
      %v4434 = vpack.c.bf16 %v4316, %v4313
      %v4436 = vsel %vm1029, %v4433, 0
      %v4439 = vsel %vm1029, %v4434, 0
      %4441 = vmatprep.subr.bf16.mxu0 0
      %4442 = vmatpush1.bf16.xpose.msra.mxu0 0
      %4443 = vmatprep.subr.bf16.mxu0 0
      %4444 = vmatpush1.bf16.xpose.msra.mxu0 0
      %4445 = vmatprep.subr.bf16.mxu0 0
      %4446 = vmatpush1.bf16.xpose.msra.mxu0 0
      %4447 = vmatprep.subr.bf16.mxu0 0
      %4448 = vmatpush1.bf16.xpose.msra.mxu0 0
      %4449 = vmatprep.subr.bf16.mxu0 0
      %4450 = vmatpush1.bf16.xpose.msra.mxu0 0
      %4451 = vmatprep.subr.bf16.mxu0 0
      %4452 = vmatpush1.bf16.xpose.msra.mxu0 0
      %4453 = vmatprep.subr.bf16.mxu0 0
      %4454 = vmatpush1.bf16.xpose.msra.mxu0 0
      %4455 = vmatprep.subr.bf16.mxu0 0
      %4456 = vmatpush1.bf16.xpose.msra.mxu0 %v4439
      %4457 = vmatprep.subr.bf16.mxu0 0
      %4458 = vmatpush2.bf16.xpose.msra.mxu0 0
      %4459 = vmatprep.subr.bf16.mxu0 0
      %4460 = vmatpush2.bf16.xpose.msra.mxu0 0
      %4461 = vmatprep.subr.bf16.mxu0 0
      %4462 = vmatpush2.bf16.xpose.msra.mxu0 0
      %4463 = vmatprep.subr.bf16.mxu0 0
      %4464 = vmatpush2.bf16.xpose.msra.mxu0 0
      %4465 = vmatprep.subr.bf16.mxu0 0
      %4466 = vmatpush2.bf16.xpose.msra.mxu0 0
      %4467 = vmatprep.subr.bf16.mxu0 0
      %4468 = vmatpush2.bf16.xpose.msra.mxu0 0
      %4469 = vmatprep.subr.bf16.mxu0 0
      %4470 = vmatpush2.bf16.xpose.msra.mxu0 0
      %4471 = vmatprep.subr.bf16.mxu0 0
      %4472 = vmatpush2.bf16.xpose.msra.mxu0 0
      %4473 = vmatprep.mubr.bf16.mxu0 0
      %4474 = vmatmul.mubr.bf16.gmra.mxu0 %v4436
      %v4475 = vpop.f32.mrf.mxu0
      %v4476 = vadd.f32 0.0, %v4475
      %v4477 = vpop.f32.mrf.mxu0
      %v4478 = vpop.f32.mrf.mxu0
      %v4479 = vadd.f32 0.0, %v4478
      %v4480 = vpop.f32.mrf.mxu0
      %4481 = vdwg.mxu0
      %v4482 = vmul.f32 %v4476, 0.17677669
      %v4483 = vmul.f32 %v4479, 0.17677669
      %v4484 = vsel %vm1079, %v4482, -inf
      %4485 = vmax.xlane.f32.xlu0 %v4484
      %v4486 = vpop.xlane.xlu0 %4485
      %v4487 = vsel %vm1083, %v4483, -inf
      %4488 = vmax.xlane.f32.xlu0 %v4487
      %v4489 = vpop.xlane.xlu0 %4488
      %v4490 = vsub.f32 %v4482, %v4486
      %v4491 = vsub.f32 %v4483, %v4489
      %v4492 = vmul.f32 %v4490, 1.442695
      %v4493 = vpow.pop %v4492
      %v4494 = vmul.f32 %v4491, 1.442695
      %v4495 = vpow.pop %v4494
      %v4496 = vsel %vm1079, %v4493, 0.0
      %4497 = vadd.xlane.f32.xlu0 %v4496
      %v4498 = vpop.xlane.xlu0 %4497
      %v4499 = vsel %vm1083, %v4495, 0.0
      %4500 = vadd.xlane.f32.xlu0 %v4499
      %v4501 = vpop.xlane.xlu0 %4500
      %v4502 = vrcp.pop %v4498
      %v4503 = vrcp.pop %v4501
      %v4504 = vmul.f32 %v4493, %v4502
      %v4505 = vmul.f32 %v4495, %v4503
      %v4506 = vpack.c.bf16 %v4505, %v4504
      %v4507 = vpack.c.bf16 %v4430, %v4427
      %v4509 = vsel %vm1079, %v4506, 0
      %v4512 = vsel %vm1108, %v4507, 0
      %4514 = vmatprep.subr.bf16.mxu0 0
      %4515 = vmatpush1.bf16.msra.mxu0 0
      %4516 = vmatprep.subr.bf16.mxu0 0
      %4517 = vmatpush1.bf16.msra.mxu0 0
      %4518 = vmatprep.subr.bf16.mxu0 0
      %4519 = vmatpush1.bf16.msra.mxu0 0
      %4520 = vmatprep.subr.bf16.mxu0 0
      %4521 = vmatpush1.bf16.msra.mxu0 0
      %4522 = vmatprep.subr.bf16.mxu0 0
      %4523 = vmatpush1.bf16.msra.mxu0 0
      %4524 = vmatprep.subr.bf16.mxu0 0
      %4525 = vmatpush1.bf16.msra.mxu0 0
      %4526 = vmatprep.subr.bf16.mxu0 0
      %4527 = vmatpush1.bf16.msra.mxu0 0
      %4528 = vmatprep.subr.bf16.mxu0 0
      %4529 = vmatpush1.bf16.msra.mxu0 %v4512
      %4530 = vmatprep.subr.bf16.mxu0 0
      %4531 = vmatpush2.bf16.msra.mxu0 0
      %4532 = vmatprep.subr.bf16.mxu0 0
      %4533 = vmatpush2.bf16.msra.mxu0 0
      %4534 = vmatprep.subr.bf16.mxu0 0
      %4535 = vmatpush2.bf16.msra.mxu0 0
      %4536 = vmatprep.subr.bf16.mxu0 0
      %4537 = vmatpush2.bf16.msra.mxu0 0
      %4538 = vmatprep.subr.bf16.mxu0 0
      %4539 = vmatpush2.bf16.msra.mxu0 0
      %4540 = vmatprep.subr.bf16.mxu0 0
      %4541 = vmatpush2.bf16.msra.mxu0 0
      %4542 = vmatprep.subr.bf16.mxu0 0
      %4543 = vmatpush2.bf16.msra.mxu0 0
      %4544 = vmatprep.subr.bf16.mxu0 0
      %4545 = vmatpush2.bf16.msra.mxu0 0
      %4546 = vmatprep.mubr.bf16.mxu0 0
      %4547 = vmatmul.mubr.bf16.gmra.mxu0 %v4509
      %v4548 = vpop.f32.mrf.mxu0
      %v4549 = vadd.f32 0.0, %v4548
      %v4550 = vpop.f32.mrf.mxu0
      %v4551 = vpop.f32.mrf.mxu0
      %v4552 = vadd.f32 0.0, %v4551
      %v4553 = vpop.f32.mrf.mxu0
      %4554 = vdwg.mxu0
      %v4555 = vpack.c.bf16 %v4552, %v4549
      %s4556 = scalar_lea.vmem %s5, 80
      %v4557 = vld [vmem:[%s4556] sm:$0xf]
      %v4558 = vld [vmem:[%s4556 + $0x4] sm:$0xf]
      %v4559 = vld [vmem:[%s4556 + $0x8] sm:$0xf]
      %v4560 = vld [vmem:[%s4556 + $0xc] sm:$0xf]
      %v4565 = vunpack.c.l.b16 %v4557
      %v4566 = vunpack.c.l.b16 %v4558
      %v4567 = vunpack.c.l.b16 %v4559
      %v4568 = vunpack.c.l.b16 %v4560
      %v4569 = vpack.c.b16 %v4566, %v4565
      %v4570 = vpack.c.b16 %v4568, %v4567
      %v4574 = vsel %vm1029, %v4555, 0
      %4576 = vmatprep.subr.bf16.mxu0 0
      %4577 = vmatpush1.bf16.msra.mxu0 0
      %4578 = vmatprep.subr.bf16.mxu0 0
      %4579 = vmatpush1.bf16.msra.mxu0 0
      %4580 = vmatprep.subr.bf16.mxu0 0
      %4581 = vmatpush1.bf16.msra.mxu0 0
      %4582 = vmatprep.subr.bf16.mxu0 0
      %4583 = vmatpush1.bf16.msra.mxu0 0
      %4584 = vmatprep.subr.bf16.mxu0 0
      %4585 = vmatpush1.bf16.msra.mxu0 0
      %4586 = vmatprep.subr.bf16.mxu0 0
      %4587 = vmatpush1.bf16.msra.mxu0 0
      %4588 = vmatprep.subr.bf16.mxu0 0
      %4589 = vmatpush1.bf16.msra.mxu0 %v4570
      %4590 = vmatprep.subr.bf16.mxu0 0
      %4591 = vmatpush1.bf16.msra.mxu0 %v4569
      %4592 = vmatprep.subr.bf16.mxu0 0
      %4593 = vmatpush2.bf16.msra.mxu0 0
      %4594 = vmatprep.subr.bf16.mxu0 0
      %4595 = vmatpush2.bf16.msra.mxu0 0
      %4596 = vmatprep.subr.bf16.mxu0 0
      %4597 = vmatpush2.bf16.msra.mxu0 0
      %4598 = vmatprep.subr.bf16.mxu0 0
      %4599 = vmatpush2.bf16.msra.mxu0 0
      %4600 = vmatprep.subr.bf16.mxu0 0
      %4601 = vmatpush2.bf16.msra.mxu0 0
      %4602 = vmatprep.subr.bf16.mxu0 0
      %4603 = vmatpush2.bf16.msra.mxu0 0
      %4604 = vmatprep.subr.bf16.mxu0 0
      %4605 = vmatpush2.bf16.msra.mxu0 0
      %4606 = vmatprep.subr.bf16.mxu0 0
      %4607 = vmatpush2.bf16.msra.mxu0 0
      %4608 = vmatprep.mubr.bf16.mxu0 0
      %4609 = vmatmul.mubr.bf16.gmra.mxu0 %v4574
      %v4610 = vpop.f32.mrf.mxu0
      %v4611 = vadd.f32 0.0, %v4610
      %v4612 = vpop.f32.mrf.mxu0
      %v4613 = vpop.f32.mrf.mxu0
      %v4614 = vadd.f32 0.0, %v4613
      %v4615 = vpop.f32.mrf.mxu0
      %4616 = vdwg.mxu0
      %v4617 = vadd.f32 %v4089, %v4611
      %v4618 = vadd.f32 %v4090, %v4614
      %s4619 = scalar_lea.vmem %s2, 384
      %v4620 = vld [vmem:[%s4619] sm:$0xf]
      %v4621 = vld [vmem:[%s4619 + $0x4] sm:$0xf]
      %v4622 = vld [vmem:[%s4619 + $0x8] sm:$0xf]
      %v4623 = vld [vmem:[%s4619 + $0xc] sm:$0xf]
      %v4624 = vld [vmem:[%s4619 + $0x10] sm:$0xf]
      %v4625 = vld [vmem:[%s4619 + $0x14] sm:$0xf]
      %v4626 = vld [vmem:[%s4619 + $0x18] sm:$0xf]
      %v4627 = vld [vmem:[%s4619 + $0x1c] sm:$0xf]
      %v4628 = vld [vmem:[%s4619 + $0x20] sm:$0xf]
      %v4629 = vld [vmem:[%s4619 + $0x24] sm:$0xf]
      %v4630 = vld [vmem:[%s4619 + $0x28] sm:$0xf]
      %v4631 = vld [vmem:[%s4619 + $0x2c] sm:$0xf]
      %v4632 = vld [vmem:[%s4619 + $0x30] sm:$0xf]
      %v4633 = vld [vmem:[%s4619 + $0x34] sm:$0xf]
      %v4634 = vld [vmem:[%s4619 + $0x38] sm:$0xf]
      %v4635 = vld [vmem:[%s4619 + $0x3c] sm:$0xf]
      %s4636 = scalar_lea.vmem %s6, 6
      %v4637 = vld [vmem:[%s4636] sm:$0x1]
      %v4639 = vlaneseq
      %v4640 = vshrl.u32 %v4639, 7
      %v4641 = vsub.s32 0, %v4640
      %v4642 = vrot.slane %v4637, %v4641
      %v4660 = vunpack.c.l.b16 %v4620
      %v4661 = vunpack.c.l.b16 %v4621
      %v4662 = vunpack.c.l.b16 %v4622
      %v4663 = vunpack.c.l.b16 %v4623
      %v4664 = vunpack.c.l.b16 %v4624
      %v4665 = vunpack.c.l.b16 %v4625
      %v4666 = vunpack.c.l.b16 %v4626
      %v4667 = vunpack.c.l.b16 %v4627
      %v4668 = vunpack.c.l.b16 %v4628
      %v4669 = vunpack.c.l.b16 %v4629
      %v4670 = vunpack.c.l.b16 %v4630
      %v4671 = vunpack.c.l.b16 %v4631
      %v4672 = vunpack.c.l.b16 %v4632
      %v4673 = vunpack.c.l.b16 %v4633
      %v4674 = vunpack.c.l.b16 %v4634
      %v4675 = vunpack.c.l.b16 %v4635
      %v4676 = vpack.c.b16 %v4661, %v4660
      %v4677 = vpack.c.b16 %v4663, %v4662
      %v4678 = vpack.c.b16 %v4665, %v4664
      %v4679 = vpack.c.b16 %v4667, %v4666
      %v4680 = vpack.c.b16 %v4669, %v4668
      %v4681 = vpack.c.b16 %v4671, %v4670
      %v4682 = vpack.c.b16 %v4673, %v4672
      %v4683 = vpack.c.b16 %v4675, %v4674
      %4692 = vmatprep.subr.bf16.mxu0 0
      %4693 = vmatpush1.bf16.msra.mxu0 %v4683
      %4694 = vmatprep.subr.bf16.mxu0 0
      %4695 = vmatpush1.bf16.msra.mxu0 %v4682
      %4696 = vmatprep.subr.bf16.mxu0 0
      %4697 = vmatpush1.bf16.msra.mxu0 %v4681
      %4698 = vmatprep.subr.bf16.mxu0 0
      %4699 = vmatpush1.bf16.msra.mxu0 %v4680
      %4700 = vmatprep.subr.bf16.mxu0 0
      %4701 = vmatpush1.bf16.msra.mxu0 %v4679
      %4702 = vmatprep.subr.bf16.mxu0 0
      %4703 = vmatpush1.bf16.msra.mxu0 %v4678
      %4704 = vmatprep.subr.bf16.mxu0 0
      %4705 = vmatpush1.bf16.msra.mxu0 %v4677
      %4706 = vmatprep.subr.bf16.mxu0 0
      %4707 = vmatpush1.bf16.msra.mxu0 %v4676
      %4708 = vmatprep.subr.bf16.mxu0 0
      %4709 = vmatpush2.bf16.msra.mxu0 0
      %4710 = vmatprep.subr.bf16.mxu0 0
      %4711 = vmatpush2.bf16.msra.mxu0 0
      %4712 = vmatprep.subr.bf16.mxu0 0
      %4713 = vmatpush2.bf16.msra.mxu0 0
      %4714 = vmatprep.subr.bf16.mxu0 0
      %4715 = vmatpush2.bf16.msra.mxu0 0
      %4716 = vmatprep.subr.bf16.mxu0 0
      %4717 = vmatpush2.bf16.msra.mxu0 0
      %4718 = vmatprep.subr.bf16.mxu0 0
      %4719 = vmatpush2.bf16.msra.mxu0 0
      %4720 = vmatprep.subr.bf16.mxu0 0
      %4721 = vmatpush2.bf16.msra.mxu0 0
      %4722 = vmatprep.subr.bf16.mxu0 0
      %4723 = vmatpush2.bf16.msra.mxu0 0
      %4724 = vmatprep.mubr.bf16.mxu0 0
      %4725 = vmatmul.mubr.bf16.gmra.mxu0 %v3554
      %v4726 = vpop.f32.mrf.mxu0
      %v4727 = vadd.f32 %v4642, %v4726
      %v4728 = vpop.f32.mrf.mxu0
      %v4729 = vpop.f32.mrf.mxu0
      %v4730 = vadd.f32 %v4642, %v4729
      %v4731 = vpop.f32.mrf.mxu0
      %4732 = vdwg.mxu0
      %s4733 = scalar_lea.vmem %s3, 384
      %v4734 = vld [vmem:[%s4733] sm:$0xf]
      %v4735 = vld [vmem:[%s4733 + $0x4] sm:$0xf]
      %v4736 = vld [vmem:[%s4733 + $0x8] sm:$0xf]
      %v4737 = vld [vmem:[%s4733 + $0xc] sm:$0xf]
      %v4738 = vld [vmem:[%s4733 + $0x10] sm:$0xf]
      %v4739 = vld [vmem:[%s4733 + $0x14] sm:$0xf]
      %v4740 = vld [vmem:[%s4733 + $0x18] sm:$0xf]
      %v4741 = vld [vmem:[%s4733 + $0x1c] sm:$0xf]
      %v4742 = vld [vmem:[%s4733 + $0x20] sm:$0xf]
      %v4743 = vld [vmem:[%s4733 + $0x24] sm:$0xf]
      %v4744 = vld [vmem:[%s4733 + $0x28] sm:$0xf]
      %v4745 = vld [vmem:[%s4733 + $0x2c] sm:$0xf]
      %v4746 = vld [vmem:[%s4733 + $0x30] sm:$0xf]
      %v4747 = vld [vmem:[%s4733 + $0x34] sm:$0xf]
      %v4748 = vld [vmem:[%s4733 + $0x38] sm:$0xf]
      %v4749 = vld [vmem:[%s4733 + $0x3c] sm:$0xf]
      %s4750 = scalar_lea.vmem %s7, 6
      %v4751 = vld [vmem:[%s4750] sm:$0x1]
      %v4753 = vlaneseq
      %v4754 = vshrl.u32 %v4753, 7
      %v4755 = vsub.s32 0, %v4754
      %v4756 = vrot.slane %v4751, %v4755
      %v4774 = vunpack.c.l.b16 %v4734
      %v4775 = vunpack.c.l.b16 %v4735
      %v4776 = vunpack.c.l.b16 %v4736
      %v4777 = vunpack.c.l.b16 %v4737
      %v4778 = vunpack.c.l.b16 %v4738
      %v4779 = vunpack.c.l.b16 %v4739
      %v4780 = vunpack.c.l.b16 %v4740
      %v4781 = vunpack.c.l.b16 %v4741
      %v4782 = vunpack.c.l.b16 %v4742
      %v4783 = vunpack.c.l.b16 %v4743
      %v4784 = vunpack.c.l.b16 %v4744
      %v4785 = vunpack.c.l.b16 %v4745
      %v4786 = vunpack.c.l.b16 %v4746
      %v4787 = vunpack.c.l.b16 %v4747
      %v4788 = vunpack.c.l.b16 %v4748
      %v4789 = vunpack.c.l.b16 %v4749
      %v4790 = vpack.c.b16 %v4775, %v4774
      %v4791 = vpack.c.b16 %v4777, %v4776
      %v4792 = vpack.c.b16 %v4779, %v4778
      %v4793 = vpack.c.b16 %v4781, %v4780
      %v4794 = vpack.c.b16 %v4783, %v4782
      %v4795 = vpack.c.b16 %v4785, %v4784
      %v4796 = vpack.c.b16 %v4787, %v4786
      %v4797 = vpack.c.b16 %v4789, %v4788
      %4806 = vmatprep.subr.bf16.mxu0 0
      %4807 = vmatpush1.bf16.msra.mxu0 %v4797
      %4808 = vmatprep.subr.bf16.mxu0 0
      %4809 = vmatpush1.bf16.msra.mxu0 %v4796
      %4810 = vmatprep.subr.bf16.mxu0 0
      %4811 = vmatpush1.bf16.msra.mxu0 %v4795
      %4812 = vmatprep.subr.bf16.mxu0 0
      %4813 = vmatpush1.bf16.msra.mxu0 %v4794
      %4814 = vmatprep.subr.bf16.mxu0 0
      %4815 = vmatpush1.bf16.msra.mxu0 %v4793
      %4816 = vmatprep.subr.bf16.mxu0 0
      %4817 = vmatpush1.bf16.msra.mxu0 %v4792
      %4818 = vmatprep.subr.bf16.mxu0 0
      %4819 = vmatpush1.bf16.msra.mxu0 %v4791
      %4820 = vmatprep.subr.bf16.mxu0 0
      %4821 = vmatpush1.bf16.msra.mxu0 %v4790
      %4822 = vmatprep.subr.bf16.mxu0 0
      %4823 = vmatpush2.bf16.msra.mxu0 0
      %4824 = vmatprep.subr.bf16.mxu0 0
      %4825 = vmatpush2.bf16.msra.mxu0 0
      %4826 = vmatprep.subr.bf16.mxu0 0
      %4827 = vmatpush2.bf16.msra.mxu0 0
      %4828 = vmatprep.subr.bf16.mxu0 0
      %4829 = vmatpush2.bf16.msra.mxu0 0
      %4830 = vmatprep.subr.bf16.mxu0 0
      %4831 = vmatpush2.bf16.msra.mxu0 0
      %4832 = vmatprep.subr.bf16.mxu0 0
      %4833 = vmatpush2.bf16.msra.mxu0 0
      %4834 = vmatprep.subr.bf16.mxu0 0
      %4835 = vmatpush2.bf16.msra.mxu0 0
      %4836 = vmatprep.subr.bf16.mxu0 0
      %4837 = vmatpush2.bf16.msra.mxu0 0
      %4838 = vmatprep.mubr.bf16.mxu0 0
      %4839 = vmatmul.mubr.bf16.gmra.mxu0 %v3554
      %v4840 = vpop.f32.mrf.mxu0
      %v4841 = vadd.f32 %v4756, %v4840
      %v4842 = vpop.f32.mrf.mxu0
      %v4843 = vpop.f32.mrf.mxu0
      %v4844 = vadd.f32 %v4756, %v4843
      %v4845 = vpop.f32.mrf.mxu0
      %4846 = vdwg.mxu0
      %s4847 = scalar_lea.vmem %s4, 384
      %v4848 = vld [vmem:[%s4847] sm:$0xf]
      %v4849 = vld [vmem:[%s4847 + $0x4] sm:$0xf]
      %v4850 = vld [vmem:[%s4847 + $0x8] sm:$0xf]
      %v4851 = vld [vmem:[%s4847 + $0xc] sm:$0xf]
      %v4852 = vld [vmem:[%s4847 + $0x10] sm:$0xf]
      %v4853 = vld [vmem:[%s4847 + $0x14] sm:$0xf]
      %v4854 = vld [vmem:[%s4847 + $0x18] sm:$0xf]
      %v4855 = vld [vmem:[%s4847 + $0x1c] sm:$0xf]
      %v4856 = vld [vmem:[%s4847 + $0x20] sm:$0xf]
      %v4857 = vld [vmem:[%s4847 + $0x24] sm:$0xf]
      %v4858 = vld [vmem:[%s4847 + $0x28] sm:$0xf]
      %v4859 = vld [vmem:[%s4847 + $0x2c] sm:$0xf]
      %v4860 = vld [vmem:[%s4847 + $0x30] sm:$0xf]
      %v4861 = vld [vmem:[%s4847 + $0x34] sm:$0xf]
      %v4862 = vld [vmem:[%s4847 + $0x38] sm:$0xf]
      %v4863 = vld [vmem:[%s4847 + $0x3c] sm:$0xf]
      %s4864 = scalar_lea.vmem %s8, 6
      %v4865 = vld [vmem:[%s4864] sm:$0x1]
      %v4867 = vlaneseq
      %v4868 = vshrl.u32 %v4867, 7
      %v4869 = vsub.s32 0, %v4868
      %v4870 = vrot.slane %v4865, %v4869
      %v4888 = vunpack.c.l.b16 %v4848
      %v4889 = vunpack.c.l.b16 %v4849
      %v4890 = vunpack.c.l.b16 %v4850
      %v4891 = vunpack.c.l.b16 %v4851
      %v4892 = vunpack.c.l.b16 %v4852
      %v4893 = vunpack.c.l.b16 %v4853
      %v4894 = vunpack.c.l.b16 %v4854
      %v4895 = vunpack.c.l.b16 %v4855
      %v4896 = vunpack.c.l.b16 %v4856
      %v4897 = vunpack.c.l.b16 %v4857
      %v4898 = vunpack.c.l.b16 %v4858
      %v4899 = vunpack.c.l.b16 %v4859
      %v4900 = vunpack.c.l.b16 %v4860
      %v4901 = vunpack.c.l.b16 %v4861
      %v4902 = vunpack.c.l.b16 %v4862
      %v4903 = vunpack.c.l.b16 %v4863
      %v4904 = vpack.c.b16 %v4889, %v4888
      %v4905 = vpack.c.b16 %v4891, %v4890
      %v4906 = vpack.c.b16 %v4893, %v4892
      %v4907 = vpack.c.b16 %v4895, %v4894
      %v4908 = vpack.c.b16 %v4897, %v4896
      %v4909 = vpack.c.b16 %v4899, %v4898
      %v4910 = vpack.c.b16 %v4901, %v4900
      %v4911 = vpack.c.b16 %v4903, %v4902
      %4920 = vmatprep.subr.bf16.mxu0 0
      %4921 = vmatpush1.bf16.msra.mxu0 %v4911
      %4922 = vmatprep.subr.bf16.mxu0 0
      %4923 = vmatpush1.bf16.msra.mxu0 %v4910
      %4924 = vmatprep.subr.bf16.mxu0 0
      %4925 = vmatpush1.bf16.msra.mxu0 %v4909
      %4926 = vmatprep.subr.bf16.mxu0 0
      %4927 = vmatpush1.bf16.msra.mxu0 %v4908
      %4928 = vmatprep.subr.bf16.mxu0 0
      %4929 = vmatpush1.bf16.msra.mxu0 %v4907
      %4930 = vmatprep.subr.bf16.mxu0 0
      %4931 = vmatpush1.bf16.msra.mxu0 %v4906
      %4932 = vmatprep.subr.bf16.mxu0 0
      %4933 = vmatpush1.bf16.msra.mxu0 %v4905
      %4934 = vmatprep.subr.bf16.mxu0 0
      %4935 = vmatpush1.bf16.msra.mxu0 %v4904
      %4936 = vmatprep.subr.bf16.mxu0 0
      %4937 = vmatpush2.bf16.msra.mxu0 0
      %4938 = vmatprep.subr.bf16.mxu0 0
      %4939 = vmatpush2.bf16.msra.mxu0 0
      %4940 = vmatprep.subr.bf16.mxu0 0
      %4941 = vmatpush2.bf16.msra.mxu0 0
      %4942 = vmatprep.subr.bf16.mxu0 0
      %4943 = vmatpush2.bf16.msra.mxu0 0
      %4944 = vmatprep.subr.bf16.mxu0 0
      %4945 = vmatpush2.bf16.msra.mxu0 0
      %4946 = vmatprep.subr.bf16.mxu0 0
      %4947 = vmatpush2.bf16.msra.mxu0 0
      %4948 = vmatprep.subr.bf16.mxu0 0
      %4949 = vmatpush2.bf16.msra.mxu0 0
      %4950 = vmatprep.subr.bf16.mxu0 0
      %4951 = vmatpush2.bf16.msra.mxu0 0
      %4952 = vmatprep.mubr.bf16.mxu0 0
      %4953 = vmatmul.mubr.bf16.gmra.mxu0 %v3554
      %v4954 = vpop.f32.mrf.mxu0
      %v4955 = vadd.f32 %v4870, %v4954
      %v4956 = vpop.f32.mrf.mxu0
      %v4957 = vpop.f32.mrf.mxu0
      %v4958 = vadd.f32 %v4870, %v4957
      %v4959 = vpop.f32.mrf.mxu0
      %4960 = vdwg.mxu0
      %v4961 = vpack.c.bf16 %v4730, %v4727
      %v4962 = vpack.c.bf16 %v4844, %v4841
      %v4964 = vsel %vm1029, %v4961, 0
      %v4967 = vsel %vm1029, %v4962, 0
      %4969 = vmatprep.subr.bf16.mxu0 0
      %4970 = vmatpush1.bf16.xpose.msra.mxu0 0
      %4971 = vmatprep.subr.bf16.mxu0 0
      %4972 = vmatpush1.bf16.xpose.msra.mxu0 0
      %4973 = vmatprep.subr.bf16.mxu0 0
      %4974 = vmatpush1.bf16.xpose.msra.mxu0 0
      %4975 = vmatprep.subr.bf16.mxu0 0
      %4976 = vmatpush1.bf16.xpose.msra.mxu0 0
      %4977 = vmatprep.subr.bf16.mxu0 0
      %4978 = vmatpush1.bf16.xpose.msra.mxu0 0
      %4979 = vmatprep.subr.bf16.mxu0 0
      %4980 = vmatpush1.bf16.xpose.msra.mxu0 0
      %4981 = vmatprep.subr.bf16.mxu0 0
      %4982 = vmatpush1.bf16.xpose.msra.mxu0 0
      %4983 = vmatprep.subr.bf16.mxu0 0
      %4984 = vmatpush1.bf16.xpose.msra.mxu0 %v4967
      %4985 = vmatprep.subr.bf16.mxu0 0
      %4986 = vmatpush2.bf16.xpose.msra.mxu0 0
      %4987 = vmatprep.subr.bf16.mxu0 0
      %4988 = vmatpush2.bf16.xpose.msra.mxu0 0
      %4989 = vmatprep.subr.bf16.mxu0 0
      %4990 = vmatpush2.bf16.xpose.msra.mxu0 0
      %4991 = vmatprep.subr.bf16.mxu0 0
      %4992 = vmatpush2.bf16.xpose.msra.mxu0 0
      %4993 = vmatprep.subr.bf16.mxu0 0
      %4994 = vmatpush2.bf16.xpose.msra.mxu0 0
      %4995 = vmatprep.subr.bf16.mxu0 0
      %4996 = vmatpush2.bf16.xpose.msra.mxu0 0
      %4997 = vmatprep.subr.bf16.mxu0 0
      %4998 = vmatpush2.bf16.xpose.msra.mxu0 0
      %4999 = vmatprep.subr.bf16.mxu0 0
      %5000 = vmatpush2.bf16.xpose.msra.mxu0 0
      %5001 = vmatprep.mubr.bf16.mxu0 0
      %5002 = vmatmul.mubr.bf16.gmra.mxu0 %v4964
      %v5003 = vpop.f32.mrf.mxu0
      %v5004 = vadd.f32 0.0, %v5003
      %v5005 = vpop.f32.mrf.mxu0
      %v5006 = vpop.f32.mrf.mxu0
      %v5007 = vadd.f32 0.0, %v5006
      %v5008 = vpop.f32.mrf.mxu0
      %5009 = vdwg.mxu0
      %v5010 = vmul.f32 %v5004, 0.17677669
      %v5011 = vmul.f32 %v5007, 0.17677669
      %v5012 = vsel %vm1079, %v5010, -inf
      %5013 = vmax.xlane.f32.xlu0 %v5012
      %v5014 = vpop.xlane.xlu0 %5013
      %v5015 = vsel %vm1083, %v5011, -inf
      %5016 = vmax.xlane.f32.xlu0 %v5015
      %v5017 = vpop.xlane.xlu0 %5016
      %v5018 = vsub.f32 %v5010, %v5014
      %v5019 = vsub.f32 %v5011, %v5017
      %v5020 = vmul.f32 %v5018, 1.442695
      %v5021 = vpow.pop %v5020
      %v5022 = vmul.f32 %v5019, 1.442695
      %v5023 = vpow.pop %v5022
      %v5024 = vsel %vm1079, %v5021, 0.0
      %5025 = vadd.xlane.f32.xlu0 %v5024
      %v5026 = vpop.xlane.xlu0 %5025
      %v5027 = vsel %vm1083, %v5023, 0.0
      %5028 = vadd.xlane.f32.xlu0 %v5027
      %v5029 = vpop.xlane.xlu0 %5028
      %v5030 = vrcp.pop %v5026
      %v5031 = vrcp.pop %v5029
      %v5032 = vmul.f32 %v5021, %v5030
      %v5033 = vmul.f32 %v5023, %v5031
      %v5034 = vpack.c.bf16 %v5033, %v5032
      %v5035 = vpack.c.bf16 %v4958, %v4955
      %v5037 = vsel %vm1079, %v5034, 0
      %v5040 = vsel %vm1108, %v5035, 0
      %5042 = vmatprep.subr.bf16.mxu0 0
      %5043 = vmatpush1.bf16.msra.mxu0 0
      %5044 = vmatprep.subr.bf16.mxu0 0
      %5045 = vmatpush1.bf16.msra.mxu0 0
      %5046 = vmatprep.subr.bf16.mxu0 0
      %5047 = vmatpush1.bf16.msra.mxu0 0
      %5048 = vmatprep.subr.bf16.mxu0 0
      %5049 = vmatpush1.bf16.msra.mxu0 0
      %5050 = vmatprep.subr.bf16.mxu0 0
      %5051 = vmatpush1.bf16.msra.mxu0 0
      %5052 = vmatprep.subr.bf16.mxu0 0
      %5053 = vmatpush1.bf16.msra.mxu0 0
      %5054 = vmatprep.subr.bf16.mxu0 0
      %5055 = vmatpush1.bf16.msra.mxu0 0
      %5056 = vmatprep.subr.bf16.mxu0 0
      %5057 = vmatpush1.bf16.msra.mxu0 %v5040
      %5058 = vmatprep.subr.bf16.mxu0 0
      %5059 = vmatpush2.bf16.msra.mxu0 0
      %5060 = vmatprep.subr.bf16.mxu0 0
      %5061 = vmatpush2.bf16.msra.mxu0 0
      %5062 = vmatprep.subr.bf16.mxu0 0
      %5063 = vmatpush2.bf16.msra.mxu0 0
      %5064 = vmatprep.subr.bf16.mxu0 0
      %5065 = vmatpush2.bf16.msra.mxu0 0
      %5066 = vmatprep.subr.bf16.mxu0 0
      %5067 = vmatpush2.bf16.msra.mxu0 0
      %5068 = vmatprep.subr.bf16.mxu0 0
      %5069 = vmatpush2.bf16.msra.mxu0 0
      %5070 = vmatprep.subr.bf16.mxu0 0
      %5071 = vmatpush2.bf16.msra.mxu0 0
      %5072 = vmatprep.subr.bf16.mxu0 0
      %5073 = vmatpush2.bf16.msra.mxu0 0
      %5074 = vmatprep.mubr.bf16.mxu0 0
      %5075 = vmatmul.mubr.bf16.gmra.mxu0 %v5037
      %v5076 = vpop.f32.mrf.mxu0
      %v5077 = vadd.f32 0.0, %v5076
      %v5078 = vpop.f32.mrf.mxu0
      %v5079 = vpop.f32.mrf.mxu0
      %v5080 = vadd.f32 0.0, %v5079
      %v5081 = vpop.f32.mrf.mxu0
      %5082 = vdwg.mxu0
      %v5083 = vpack.c.bf16 %v5080, %v5077
      %s5084 = scalar_lea.vmem %s5, 96
      %v5085 = vld [vmem:[%s5084] sm:$0xf]
      %v5086 = vld [vmem:[%s5084 + $0x4] sm:$0xf]
      %v5087 = vld [vmem:[%s5084 + $0x8] sm:$0xf]
      %v5088 = vld [vmem:[%s5084 + $0xc] sm:$0xf]
      %v5093 = vunpack.c.l.b16 %v5085
      %v5094 = vunpack.c.l.b16 %v5086
      %v5095 = vunpack.c.l.b16 %v5087
      %v5096 = vunpack.c.l.b16 %v5088
      %v5097 = vpack.c.b16 %v5094, %v5093
      %v5098 = vpack.c.b16 %v5096, %v5095
      %v5102 = vsel %vm1029, %v5083, 0
      %5104 = vmatprep.subr.bf16.mxu0 0
      %5105 = vmatpush1.bf16.msra.mxu0 0
      %5106 = vmatprep.subr.bf16.mxu0 0
      %5107 = vmatpush1.bf16.msra.mxu0 0
      %5108 = vmatprep.subr.bf16.mxu0 0
      %5109 = vmatpush1.bf16.msra.mxu0 0
      %5110 = vmatprep.subr.bf16.mxu0 0
      %5111 = vmatpush1.bf16.msra.mxu0 0
      %5112 = vmatprep.subr.bf16.mxu0 0
      %5113 = vmatpush1.bf16.msra.mxu0 0
      %5114 = vmatprep.subr.bf16.mxu0 0
      %5115 = vmatpush1.bf16.msra.mxu0 0
      %5116 = vmatprep.subr.bf16.mxu0 0
      %5117 = vmatpush1.bf16.msra.mxu0 %v5098
      %5118 = vmatprep.subr.bf16.mxu0 0
      %5119 = vmatpush1.bf16.msra.mxu0 %v5097
      %5120 = vmatprep.subr.bf16.mxu0 0
      %5121 = vmatpush2.bf16.msra.mxu0 0
      %5122 = vmatprep.subr.bf16.mxu0 0
      %5123 = vmatpush2.bf16.msra.mxu0 0
      %5124 = vmatprep.subr.bf16.mxu0 0
      %5125 = vmatpush2.bf16.msra.mxu0 0
      %5126 = vmatprep.subr.bf16.mxu0 0
      %5127 = vmatpush2.bf16.msra.mxu0 0
      %5128 = vmatprep.subr.bf16.mxu0 0
      %5129 = vmatpush2.bf16.msra.mxu0 0
      %5130 = vmatprep.subr.bf16.mxu0 0
      %5131 = vmatpush2.bf16.msra.mxu0 0
      %5132 = vmatprep.subr.bf16.mxu0 0
      %5133 = vmatpush2.bf16.msra.mxu0 0
      %5134 = vmatprep.subr.bf16.mxu0 0
      %5135 = vmatpush2.bf16.msra.mxu0 0
      %5136 = vmatprep.mubr.bf16.mxu0 0
      %5137 = vmatmul.mubr.bf16.gmra.mxu0 %v5102
      %v5138 = vpop.f32.mrf.mxu0
      %v5139 = vadd.f32 0.0, %v5138
      %v5140 = vpop.f32.mrf.mxu0
      %v5141 = vpop.f32.mrf.mxu0
      %v5142 = vadd.f32 0.0, %v5141
      %v5143 = vpop.f32.mrf.mxu0
      %5144 = vdwg.mxu0
      %v5145 = vadd.f32 %v4617, %v5139
      %v5146 = vadd.f32 %v4618, %v5142
      %s5147 = scalar_lea.vmem %s2, 448
      %v5148 = vld [vmem:[%s5147] sm:$0xf]
      %v5149 = vld [vmem:[%s5147 + $0x4] sm:$0xf]
      %v5150 = vld [vmem:[%s5147 + $0x8] sm:$0xf]
      %v5151 = vld [vmem:[%s5147 + $0xc] sm:$0xf]
      %v5152 = vld [vmem:[%s5147 + $0x10] sm:$0xf]
      %v5153 = vld [vmem:[%s5147 + $0x14] sm:$0xf]
      %v5154 = vld [vmem:[%s5147 + $0x18] sm:$0xf]
      %v5155 = vld [vmem:[%s5147 + $0x1c] sm:$0xf]
      %v5156 = vld [vmem:[%s5147 + $0x20] sm:$0xf]
      %v5157 = vld [vmem:[%s5147 + $0x24] sm:$0xf]
      %v5158 = vld [vmem:[%s5147 + $0x28] sm:$0xf]
      %v5159 = vld [vmem:[%s5147 + $0x2c] sm:$0xf]
      %v5160 = vld [vmem:[%s5147 + $0x30] sm:$0xf]
      %v5161 = vld [vmem:[%s5147 + $0x34] sm:$0xf]
      %v5162 = vld [vmem:[%s5147 + $0x38] sm:$0xf]
      %v5163 = vld [vmem:[%s5147 + $0x3c] sm:$0xf]
      %s5164 = scalar_lea.vmem %s6, 7
      %v5165 = vld [vmem:[%s5164] sm:$0x1]
      %v5167 = vlaneseq
      %v5168 = vshrl.u32 %v5167, 7
      %v5169 = vsub.s32 0, %v5168
      %v5170 = vrot.slane %v5165, %v5169
      %v5188 = vunpack.c.l.b16 %v5148
      %v5189 = vunpack.c.l.b16 %v5149
      %v5190 = vunpack.c.l.b16 %v5150
      %v5191 = vunpack.c.l.b16 %v5151
      %v5192 = vunpack.c.l.b16 %v5152
      %v5193 = vunpack.c.l.b16 %v5153
      %v5194 = vunpack.c.l.b16 %v5154
      %v5195 = vunpack.c.l.b16 %v5155
      %v5196 = vunpack.c.l.b16 %v5156
      %v5197 = vunpack.c.l.b16 %v5157
      %v5198 = vunpack.c.l.b16 %v5158
      %v5199 = vunpack.c.l.b16 %v5159
      %v5200 = vunpack.c.l.b16 %v5160
      %v5201 = vunpack.c.l.b16 %v5161
      %v5202 = vunpack.c.l.b16 %v5162
      %v5203 = vunpack.c.l.b16 %v5163
      %v5204 = vpack.c.b16 %v5189, %v5188
      %v5205 = vpack.c.b16 %v5191, %v5190
      %v5206 = vpack.c.b16 %v5193, %v5192
      %v5207 = vpack.c.b16 %v5195, %v5194
      %v5208 = vpack.c.b16 %v5197, %v5196
      %v5209 = vpack.c.b16 %v5199, %v5198
      %v5210 = vpack.c.b16 %v5201, %v5200
      %v5211 = vpack.c.b16 %v5203, %v5202
      %5220 = vmatprep.subr.bf16.mxu0 0
      %5221 = vmatpush1.bf16.msra.mxu0 %v5211
      %5222 = vmatprep.subr.bf16.mxu0 0
      %5223 = vmatpush1.bf16.msra.mxu0 %v5210
      %5224 = vmatprep.subr.bf16.mxu0 0
      %5225 = vmatpush1.bf16.msra.mxu0 %v5209
      %5226 = vmatprep.subr.bf16.mxu0 0
      %5227 = vmatpush1.bf16.msra.mxu0 %v5208
      %5228 = vmatprep.subr.bf16.mxu0 0
      %5229 = vmatpush1.bf16.msra.mxu0 %v5207
      %5230 = vmatprep.subr.bf16.mxu0 0
      %5231 = vmatpush1.bf16.msra.mxu0 %v5206
      %5232 = vmatprep.subr.bf16.mxu0 0
      %5233 = vmatpush1.bf16.msra.mxu0 %v5205
      %5234 = vmatprep.subr.bf16.mxu0 0
      %5235 = vmatpush1.bf16.msra.mxu0 %v5204
      %5236 = vmatprep.subr.bf16.mxu0 0
      %5237 = vmatpush2.bf16.msra.mxu0 0
      %5238 = vmatprep.subr.bf16.mxu0 0
      %5239 = vmatpush2.bf16.msra.mxu0 0
      %5240 = vmatprep.subr.bf16.mxu0 0
      %5241 = vmatpush2.bf16.msra.mxu0 0
      %5242 = vmatprep.subr.bf16.mxu0 0
      %5243 = vmatpush2.bf16.msra.mxu0 0
      %5244 = vmatprep.subr.bf16.mxu0 0
      %5245 = vmatpush2.bf16.msra.mxu0 0
      %5246 = vmatprep.subr.bf16.mxu0 0
      %5247 = vmatpush2.bf16.msra.mxu0 0
      %5248 = vmatprep.subr.bf16.mxu0 0
      %5249 = vmatpush2.bf16.msra.mxu0 0
      %5250 = vmatprep.subr.bf16.mxu0 0
      %5251 = vmatpush2.bf16.msra.mxu0 0
      %5252 = vmatprep.mubr.bf16.mxu0 0
      %5253 = vmatmul.mubr.bf16.gmra.mxu0 %v3554
      %v5254 = vpop.f32.mrf.mxu0
      %v5255 = vadd.f32 %v5170, %v5254
      %v5256 = vpop.f32.mrf.mxu0
      %v5257 = vpop.f32.mrf.mxu0
      %v5258 = vadd.f32 %v5170, %v5257
      %v5259 = vpop.f32.mrf.mxu0
      %5260 = vdwg.mxu0
      %s5261 = scalar_lea.vmem %s3, 448
      %v5262 = vld [vmem:[%s5261] sm:$0xf]
      %v5263 = vld [vmem:[%s5261 + $0x4] sm:$0xf]
      %v5264 = vld [vmem:[%s5261 + $0x8] sm:$0xf]
      %v5265 = vld [vmem:[%s5261 + $0xc] sm:$0xf]
      %v5266 = vld [vmem:[%s5261 + $0x10] sm:$0xf]
      %v5267 = vld [vmem:[%s5261 + $0x14] sm:$0xf]
      %v5268 = vld [vmem:[%s5261 + $0x18] sm:$0xf]
      %v5269 = vld [vmem:[%s5261 + $0x1c] sm:$0xf]
      %v5270 = vld [vmem:[%s5261 + $0x20] sm:$0xf]
      %v5271 = vld [vmem:[%s5261 + $0x24] sm:$0xf]
      %v5272 = vld [vmem:[%s5261 + $0x28] sm:$0xf]
      %v5273 = vld [vmem:[%s5261 + $0x2c] sm:$0xf]
      %v5274 = vld [vmem:[%s5261 + $0x30] sm:$0xf]
      %v5275 = vld [vmem:[%s5261 + $0x34] sm:$0xf]
      %v5276 = vld [vmem:[%s5261 + $0x38] sm:$0xf]
      %v5277 = vld [vmem:[%s5261 + $0x3c] sm:$0xf]
      %s5278 = scalar_lea.vmem %s7, 7
      %v5279 = vld [vmem:[%s5278] sm:$0x1]
      %v5281 = vlaneseq
      %v5282 = vshrl.u32 %v5281, 7
      %v5283 = vsub.s32 0, %v5282
      %v5284 = vrot.slane %v5279, %v5283
      %v5302 = vunpack.c.l.b16 %v5262
      %v5303 = vunpack.c.l.b16 %v5263
      %v5304 = vunpack.c.l.b16 %v5264
      %v5305 = vunpack.c.l.b16 %v5265
      %v5306 = vunpack.c.l.b16 %v5266
      %v5307 = vunpack.c.l.b16 %v5267
      %v5308 = vunpack.c.l.b16 %v5268
      %v5309 = vunpack.c.l.b16 %v5269
      %v5310 = vunpack.c.l.b16 %v5270
      %v5311 = vunpack.c.l.b16 %v5271
      %v5312 = vunpack.c.l.b16 %v5272
      %v5313 = vunpack.c.l.b16 %v5273
      %v5314 = vunpack.c.l.b16 %v5274
      %v5315 = vunpack.c.l.b16 %v5275
      %v5316 = vunpack.c.l.b16 %v5276
      %v5317 = vunpack.c.l.b16 %v5277
      %v5318 = vpack.c.b16 %v5303, %v5302
      %v5319 = vpack.c.b16 %v5305, %v5304
      %v5320 = vpack.c.b16 %v5307, %v5306
      %v5321 = vpack.c.b16 %v5309, %v5308
      %v5322 = vpack.c.b16 %v5311, %v5310
      %v5323 = vpack.c.b16 %v5313, %v5312
      %v5324 = vpack.c.b16 %v5315, %v5314
      %v5325 = vpack.c.b16 %v5317, %v5316
      %5334 = vmatprep.subr.bf16.mxu0 0
      %5335 = vmatpush1.bf16.msra.mxu0 %v5325
      %5336 = vmatprep.subr.bf16.mxu0 0
      %5337 = vmatpush1.bf16.msra.mxu0 %v5324
      %5338 = vmatprep.subr.bf16.mxu0 0
      %5339 = vmatpush1.bf16.msra.mxu0 %v5323
      %5340 = vmatprep.subr.bf16.mxu0 0
      %5341 = vmatpush1.bf16.msra.mxu0 %v5322
      %5342 = vmatprep.subr.bf16.mxu0 0
      %5343 = vmatpush1.bf16.msra.mxu0 %v5321
      %5344 = vmatprep.subr.bf16.mxu0 0
      %5345 = vmatpush1.bf16.msra.mxu0 %v5320
      %5346 = vmatprep.subr.bf16.mxu0 0
      %5347 = vmatpush1.bf16.msra.mxu0 %v5319
      %5348 = vmatprep.subr.bf16.mxu0 0
      %5349 = vmatpush1.bf16.msra.mxu0 %v5318
      %5350 = vmatprep.subr.bf16.mxu0 0
      %5351 = vmatpush2.bf16.msra.mxu0 0
      %5352 = vmatprep.subr.bf16.mxu0 0
      %5353 = vmatpush2.bf16.msra.mxu0 0
      %5354 = vmatprep.subr.bf16.mxu0 0
      %5355 = vmatpush2.bf16.msra.mxu0 0
      %5356 = vmatprep.subr.bf16.mxu0 0
      %5357 = vmatpush2.bf16.msra.mxu0 0
      %5358 = vmatprep.subr.bf16.mxu0 0
      %5359 = vmatpush2.bf16.msra.mxu0 0
      %5360 = vmatprep.subr.bf16.mxu0 0
      %5361 = vmatpush2.bf16.msra.mxu0 0
      %5362 = vmatprep.subr.bf16.mxu0 0
      %5363 = vmatpush2.bf16.msra.mxu0 0
      %5364 = vmatprep.subr.bf16.mxu0 0
      %5365 = vmatpush2.bf16.msra.mxu0 0
      %5366 = vmatprep.mubr.bf16.mxu0 0
      %5367 = vmatmul.mubr.bf16.gmra.mxu0 %v3554
      %v5368 = vpop.f32.mrf.mxu0
      %v5369 = vadd.f32 %v5284, %v5368
      %v5370 = vpop.f32.mrf.mxu0
      %v5371 = vpop.f32.mrf.mxu0
      %v5372 = vadd.f32 %v5284, %v5371
      %v5373 = vpop.f32.mrf.mxu0
      %5374 = vdwg.mxu0
      %s5375 = scalar_lea.vmem %s4, 448
      %v5376 = vld [vmem:[%s5375] sm:$0xf]
      %v5377 = vld [vmem:[%s5375 + $0x4] sm:$0xf]
      %v5378 = vld [vmem:[%s5375 + $0x8] sm:$0xf]
      %v5379 = vld [vmem:[%s5375 + $0xc] sm:$0xf]
      %v5380 = vld [vmem:[%s5375 + $0x10] sm:$0xf]
      %v5381 = vld [vmem:[%s5375 + $0x14] sm:$0xf]
      %v5382 = vld [vmem:[%s5375 + $0x18] sm:$0xf]
      %v5383 = vld [vmem:[%s5375 + $0x1c] sm:$0xf]
      %v5384 = vld [vmem:[%s5375 + $0x20] sm:$0xf]
      %v5385 = vld [vmem:[%s5375 + $0x24] sm:$0xf]
      %v5386 = vld [vmem:[%s5375 + $0x28] sm:$0xf]
      %v5387 = vld [vmem:[%s5375 + $0x2c] sm:$0xf]
      %v5388 = vld [vmem:[%s5375 + $0x30] sm:$0xf]
      %v5389 = vld [vmem:[%s5375 + $0x34] sm:$0xf]
      %v5390 = vld [vmem:[%s5375 + $0x38] sm:$0xf]
      %v5391 = vld [vmem:[%s5375 + $0x3c] sm:$0xf]
      %s5392 = scalar_lea.vmem %s8, 7
      %v5393 = vld [vmem:[%s5392] sm:$0x1]
      %v5395 = vlaneseq
      %v5396 = vshrl.u32 %v5395, 7
      %v5397 = vsub.s32 0, %v5396
      %v5398 = vrot.slane %v5393, %v5397
      %v5416 = vunpack.c.l.b16 %v5376
      %v5417 = vunpack.c.l.b16 %v5377
      %v5418 = vunpack.c.l.b16 %v5378
      %v5419 = vunpack.c.l.b16 %v5379
      %v5420 = vunpack.c.l.b16 %v5380
      %v5421 = vunpack.c.l.b16 %v5381
      %v5422 = vunpack.c.l.b16 %v5382
      %v5423 = vunpack.c.l.b16 %v5383
      %v5424 = vunpack.c.l.b16 %v5384
      %v5425 = vunpack.c.l.b16 %v5385
      %v5426 = vunpack.c.l.b16 %v5386
      %v5427 = vunpack.c.l.b16 %v5387
      %v5428 = vunpack.c.l.b16 %v5388
      %v5429 = vunpack.c.l.b16 %v5389
      %v5430 = vunpack.c.l.b16 %v5390
      %v5431 = vunpack.c.l.b16 %v5391
      %v5432 = vpack.c.b16 %v5417, %v5416
      %v5433 = vpack.c.b16 %v5419, %v5418
      %v5434 = vpack.c.b16 %v5421, %v5420
      %v5435 = vpack.c.b16 %v5423, %v5422
      %v5436 = vpack.c.b16 %v5425, %v5424
      %v5437 = vpack.c.b16 %v5427, %v5426
      %v5438 = vpack.c.b16 %v5429, %v5428
      %v5439 = vpack.c.b16 %v5431, %v5430
      %5448 = vmatprep.subr.bf16.mxu0 0
      %5449 = vmatpush1.bf16.msra.mxu0 %v5439
      %5450 = vmatprep.subr.bf16.mxu0 0
      %5451 = vmatpush1.bf16.msra.mxu0 %v5438
      %5452 = vmatprep.subr.bf16.mxu0 0
      %5453 = vmatpush1.bf16.msra.mxu0 %v5437
      %5454 = vmatprep.subr.bf16.mxu0 0
      %5455 = vmatpush1.bf16.msra.mxu0 %v5436
      %5456 = vmatprep.subr.bf16.mxu0 0
      %5457 = vmatpush1.bf16.msra.mxu0 %v5435
      %5458 = vmatprep.subr.bf16.mxu0 0
      %5459 = vmatpush1.bf16.msra.mxu0 %v5434
      %5460 = vmatprep.subr.bf16.mxu0 0
      %5461 = vmatpush1.bf16.msra.mxu0 %v5433
      %5462 = vmatprep.subr.bf16.mxu0 0
      %5463 = vmatpush1.bf16.msra.mxu0 %v5432
      %5464 = vmatprep.subr.bf16.mxu0 0
      %5465 = vmatpush2.bf16.msra.mxu0 0
      %5466 = vmatprep.subr.bf16.mxu0 0
      %5467 = vmatpush2.bf16.msra.mxu0 0
      %5468 = vmatprep.subr.bf16.mxu0 0
      %5469 = vmatpush2.bf16.msra.mxu0 0
      %5470 = vmatprep.subr.bf16.mxu0 0
      %5471 = vmatpush2.bf16.msra.mxu0 0
      %5472 = vmatprep.subr.bf16.mxu0 0
      %5473 = vmatpush2.bf16.msra.mxu0 0
      %5474 = vmatprep.subr.bf16.mxu0 0
      %5475 = vmatpush2.bf16.msra.mxu0 0
      %5476 = vmatprep.subr.bf16.mxu0 0
      %5477 = vmatpush2.bf16.msra.mxu0 0
      %5478 = vmatprep.subr.bf16.mxu0 0
      %5479 = vmatpush2.bf16.msra.mxu0 0
      %5480 = vmatprep.mubr.bf16.mxu0 0
      %5481 = vmatmul.mubr.bf16.gmra.mxu0 %v3554
      %v5482 = vpop.f32.mrf.mxu0
      %v5483 = vadd.f32 %v5398, %v5482
      %v5484 = vpop.f32.mrf.mxu0
      %v5485 = vpop.f32.mrf.mxu0
      %v5486 = vadd.f32 %v5398, %v5485
      %v5487 = vpop.f32.mrf.mxu0
      %5488 = vdwg.mxu0
      %v5489 = vpack.c.bf16 %v5258, %v5255
      %v5490 = vpack.c.bf16 %v5372, %v5369
      %v5492 = vsel %vm1029, %v5489, 0
      %v5495 = vsel %vm1029, %v5490, 0
      %5497 = vmatprep.subr.bf16.mxu0 0
      %5498 = vmatpush1.bf16.xpose.msra.mxu0 0
      %5499 = vmatprep.subr.bf16.mxu0 0
      %5500 = vmatpush1.bf16.xpose.msra.mxu0 0
      %5501 = vmatprep.subr.bf16.mxu0 0
      %5502 = vmatpush1.bf16.xpose.msra.mxu0 0
      %5503 = vmatprep.subr.bf16.mxu0 0
      %5504 = vmatpush1.bf16.xpose.msra.mxu0 0
      %5505 = vmatprep.subr.bf16.mxu0 0
      %5506 = vmatpush1.bf16.xpose.msra.mxu0 0
      %5507 = vmatprep.subr.bf16.mxu0 0
      %5508 = vmatpush1.bf16.xpose.msra.mxu0 0
      %5509 = vmatprep.subr.bf16.mxu0 0
      %5510 = vmatpush1.bf16.xpose.msra.mxu0 0
      %5511 = vmatprep.subr.bf16.mxu0 0
      %5512 = vmatpush1.bf16.xpose.msra.mxu0 %v5495
      %5513 = vmatprep.subr.bf16.mxu0 0
      %5514 = vmatpush2.bf16.xpose.msra.mxu0 0
      %5515 = vmatprep.subr.bf16.mxu0 0
      %5516 = vmatpush2.bf16.xpose.msra.mxu0 0
      %5517 = vmatprep.subr.bf16.mxu0 0
      %5518 = vmatpush2.bf16.xpose.msra.mxu0 0
      %5519 = vmatprep.subr.bf16.mxu0 0
      %5520 = vmatpush2.bf16.xpose.msra.mxu0 0
      %5521 = vmatprep.subr.bf16.mxu0 0
      %5522 = vmatpush2.bf16.xpose.msra.mxu0 0
      %5523 = vmatprep.subr.bf16.mxu0 0
      %5524 = vmatpush2.bf16.xpose.msra.mxu0 0
      %5525 = vmatprep.subr.bf16.mxu0 0
      %5526 = vmatpush2.bf16.xpose.msra.mxu0 0
      %5527 = vmatprep.subr.bf16.mxu0 0
      %5528 = vmatpush2.bf16.xpose.msra.mxu0 0
      %5529 = vmatprep.mubr.bf16.mxu0 0
      %5530 = vmatmul.mubr.bf16.gmra.mxu0 %v5492
      %v5531 = vpop.f32.mrf.mxu0
      %v5532 = vadd.f32 0.0, %v5531
      %v5533 = vpop.f32.mrf.mxu0
      %v5534 = vpop.f32.mrf.mxu0
      %v5535 = vadd.f32 0.0, %v5534
      %v5536 = vpop.f32.mrf.mxu0
      %5537 = vdwg.mxu0
      %v5538 = vmul.f32 %v5532, 0.17677669
      %v5539 = vmul.f32 %v5535, 0.17677669
      %v5540 = vsel %vm1079, %v5538, -inf
      %5541 = vmax.xlane.f32.xlu0 %v5540
      %v5542 = vpop.xlane.xlu0 %5541
      %v5543 = vsel %vm1083, %v5539, -inf
      %5544 = vmax.xlane.f32.xlu0 %v5543
      %v5545 = vpop.xlane.xlu0 %5544
      %v5546 = vsub.f32 %v5538, %v5542
      %v5547 = vsub.f32 %v5539, %v5545
      %v5548 = vmul.f32 %v5546, 1.442695
      %v5549 = vpow.pop %v5548
      %v5550 = vmul.f32 %v5547, 1.442695
      %v5551 = vpow.pop %v5550
      %v5552 = vsel %vm1079, %v5549, 0.0
      %5553 = vadd.xlane.f32.xlu0 %v5552
      %v5554 = vpop.xlane.xlu0 %5553
      %v5555 = vsel %vm1083, %v5551, 0.0
      %5556 = vadd.xlane.f32.xlu0 %v5555
      %v5557 = vpop.xlane.xlu0 %5556
      %v5558 = vrcp.pop %v5554
      %v5559 = vrcp.pop %v5557
      %v5560 = vmul.f32 %v5549, %v5558
      %v5561 = vmul.f32 %v5551, %v5559
      %v5562 = vpack.c.bf16 %v5561, %v5560
      %v5563 = vpack.c.bf16 %v5486, %v5483
      %v5565 = vsel %vm1079, %v5562, 0
      %v5568 = vsel %vm1108, %v5563, 0
      %5570 = vmatprep.subr.bf16.mxu0 0
      %5571 = vmatpush1.bf16.msra.mxu0 0
      %5572 = vmatprep.subr.bf16.mxu0 0
      %5573 = vmatpush1.bf16.msra.mxu0 0
      %5574 = vmatprep.subr.bf16.mxu0 0
      %5575 = vmatpush1.bf16.msra.mxu0 0
      %5576 = vmatprep.subr.bf16.mxu0 0
      %5577 = vmatpush1.bf16.msra.mxu0 0
      %5578 = vmatprep.subr.bf16.mxu0 0
      %5579 = vmatpush1.bf16.msra.mxu0 0
      %5580 = vmatprep.subr.bf16.mxu0 0
      %5581 = vmatpush1.bf16.msra.mxu0 0
      %5582 = vmatprep.subr.bf16.mxu0 0
      %5583 = vmatpush1.bf16.msra.mxu0 0
      %5584 = vmatprep.subr.bf16.mxu0 0
      %5585 = vmatpush1.bf16.msra.mxu0 %v5568
      %5586 = vmatprep.subr.bf16.mxu0 0
      %5587 = vmatpush2.bf16.msra.mxu0 0
      %5588 = vmatprep.subr.bf16.mxu0 0
      %5589 = vmatpush2.bf16.msra.mxu0 0
      %5590 = vmatprep.subr.bf16.mxu0 0
      %5591 = vmatpush2.bf16.msra.mxu0 0
      %5592 = vmatprep.subr.bf16.mxu0 0
      %5593 = vmatpush2.bf16.msra.mxu0 0
      %5594 = vmatprep.subr.bf16.mxu0 0
      %5595 = vmatpush2.bf16.msra.mxu0 0
      %5596 = vmatprep.subr.bf16.mxu0 0
      %5597 = vmatpush2.bf16.msra.mxu0 0
      %5598 = vmatprep.subr.bf16.mxu0 0
      %5599 = vmatpush2.bf16.msra.mxu0 0
      %5600 = vmatprep.subr.bf16.mxu0 0
      %5601 = vmatpush2.bf16.msra.mxu0 0
      %5602 = vmatprep.mubr.bf16.mxu0 0
      %5603 = vmatmul.mubr.bf16.gmra.mxu0 %v5565
      %v5604 = vpop.f32.mrf.mxu0
      %v5605 = vadd.f32 0.0, %v5604
      %v5606 = vpop.f32.mrf.mxu0
      %v5607 = vpop.f32.mrf.mxu0
      %v5608 = vadd.f32 0.0, %v5607
      %v5609 = vpop.f32.mrf.mxu0
      %5610 = vdwg.mxu0
      %v5611 = vpack.c.bf16 %v5608, %v5605
      %s5612 = scalar_lea.vmem %s5, 112
      %v5613 = vld [vmem:[%s5612] sm:$0xf]
      %v5614 = vld [vmem:[%s5612 + $0x4] sm:$0xf]
      %v5615 = vld [vmem:[%s5612 + $0x8] sm:$0xf]
      %v5616 = vld [vmem:[%s5612 + $0xc] sm:$0xf]
      %v5621 = vunpack.c.l.b16 %v5613
      %v5622 = vunpack.c.l.b16 %v5614
      %v5623 = vunpack.c.l.b16 %v5615
      %v5624 = vunpack.c.l.b16 %v5616
      %v5625 = vpack.c.b16 %v5622, %v5621
      %v5626 = vpack.c.b16 %v5624, %v5623
      %v5630 = vsel %vm1029, %v5611, 0
      %5632 = vmatprep.subr.bf16.mxu0 0
      %5633 = vmatpush1.bf16.msra.mxu0 0
      %5634 = vmatprep.subr.bf16.mxu0 0
      %5635 = vmatpush1.bf16.msra.mxu0 0
      %5636 = vmatprep.subr.bf16.mxu0 0
      %5637 = vmatpush1.bf16.msra.mxu0 0
      %5638 = vmatprep.subr.bf16.mxu0 0
      %5639 = vmatpush1.bf16.msra.mxu0 0
      %5640 = vmatprep.subr.bf16.mxu0 0
      %5641 = vmatpush1.bf16.msra.mxu0 0
      %5642 = vmatprep.subr.bf16.mxu0 0
      %5643 = vmatpush1.bf16.msra.mxu0 0
      %5644 = vmatprep.subr.bf16.mxu0 0
      %5645 = vmatpush1.bf16.msra.mxu0 %v5626
      %5646 = vmatprep.subr.bf16.mxu0 0
      %5647 = vmatpush1.bf16.msra.mxu0 %v5625
      %5648 = vmatprep.subr.bf16.mxu0 0
      %5649 = vmatpush2.bf16.msra.mxu0 0
      %5650 = vmatprep.subr.bf16.mxu0 0
      %5651 = vmatpush2.bf16.msra.mxu0 0
      %5652 = vmatprep.subr.bf16.mxu0 0
      %5653 = vmatpush2.bf16.msra.mxu0 0
      %5654 = vmatprep.subr.bf16.mxu0 0
      %5655 = vmatpush2.bf16.msra.mxu0 0
      %5656 = vmatprep.subr.bf16.mxu0 0
      %5657 = vmatpush2.bf16.msra.mxu0 0
      %5658 = vmatprep.subr.bf16.mxu0 0
      %5659 = vmatpush2.bf16.msra.mxu0 0
      %5660 = vmatprep.subr.bf16.mxu0 0
      %5661 = vmatpush2.bf16.msra.mxu0 0
      %5662 = vmatprep.subr.bf16.mxu0 0
      %5663 = vmatpush2.bf16.msra.mxu0 0
      %5664 = vmatprep.mubr.bf16.mxu0 0
      %5665 = vmatmul.mubr.bf16.gmra.mxu0 %v5630
      %v5666 = vpop.f32.mrf.mxu0
      %v5667 = vadd.f32 0.0, %v5666
      %v5668 = vpop.f32.mrf.mxu0
      %v5669 = vpop.f32.mrf.mxu0
      %v5670 = vadd.f32 0.0, %v5669
      %v5671 = vpop.f32.mrf.mxu0
      %5672 = vdwg.mxu0
      %v5673 = vadd.f32 %v5145, %v5667
      %v5674 = vadd.f32 %v5146, %v5670
      %v5675 = vadd.f32 %v3552, %v5673
      %v5676 = vadd.f32 %v3553, %v5674
      %s5677 = scalar_lea.vmem %s10, 1
      %v5678 = vld [vmem:[%s5677] sm:$0x1]
      %s5679 = scalar_lea.vmem %s11, 1
      %v5680 = vld [vmem:[%s5679] sm:$0x1]
      %5681 = vadd.xlane.f32.xlu0 %v5675
      %v5682 = vpop.xlane.xlu0 %5681
      %v5683 = vsel %vm2812, %v5676, 0.0
      %5684 = vadd.xlane.f32.xlu0 %v5683
      %v5685 = vpop.xlane.xlu0 %5684
      %v5686 = vmul.f32 %v5682, %v2816
      %v5687 = vmul.f32 %v5685, %v2816
      %v5688 = vsub.f32 %v5675, %v5686
      %v5689 = vsub.f32 %v5676, %v5687
      %v5690 = vmul.f32 %v5688, %v5688
      %v5691 = vmul.f32 %v5689, %v5689
      %5692 = vadd.xlane.f32.xlu0 %v5690
      %v5693 = vpop.xlane.xlu0 %5692
      %v5694 = vsel %vm2812, %v5691, 0.0
      %5695 = vadd.xlane.f32.xlu0 %v5694
      %v5696 = vpop.xlane.xlu0 %5695
      %v5697 = vmul.f32 %v5693, %v2816
      %v5698 = vmul.f32 %v5696, %v2816
      %v5699 = vadd.f32 %v5697, 1e-05
      %v5700 = vadd.f32 %v5698, 1e-05
      %v5701 = vrsqrt.pop %v5699
      %v5702 = vrsqrt.pop %v5700
      %v5703 = vmul.f32 %v5688, %v5701
      %v5704 = vmul.f32 %v5689, %v5702
      %v5706 = vlaneseq
      %v5707 = vshrl.u32 %v5706, 7
      %v5708 = vsub.s32 0, %v5707
      %v5709 = vrot.slane %v5678, %v5708
      %v5711 = vmul.f32 %v5703, %v5709
      %v5712 = vmul.f32 %v5704, %v5709
      %v5714 = vlaneseq
      %v5715 = vshrl.u32 %v5714, 7
      %v5716 = vsub.s32 0, %v5715
      %v5717 = vrot.slane %v5680, %v5716
      %v5719 = vadd.f32 %v5711, %v5717
      %v5720 = vadd.f32 %v5712, %v5717
      %v5721 = vpack.c.bf16 %v5720, %v5719
      %s5722 = scalar_lea.vmem %s12, 256
      %v5723 = vld [vmem:[%s5722] sm:$0xff]
      %v5724 = vld [vmem:[%s5722 + $0x8] sm:$0xff]
      %v5725 = vld [vmem:[%s5722 + $0x10] sm:$0xff]
      %v5726 = vld [vmem:[%s5722 + $0x18] sm:$0xff]
      %v5727 = vld [vmem:[%s5722 + $0x20] sm:$0xff]
      %v5728 = vld [vmem:[%s5722 + $0x28] sm:$0xff]
      %v5729 = vld [vmem:[%s5722 + $0x30] sm:$0xff]
      %v5730 = vld [vmem:[%s5722 + $0x38] sm:$0xff]
      %v5731 = vld [vmem:[%s5722 + $0x40] sm:$0xff]
      %v5732 = vld [vmem:[%s5722 + $0x48] sm:$0xff]
      %v5733 = vld [vmem:[%s5722 + $0x50] sm:$0xff]
      %v5734 = vld [vmem:[%s5722 + $0x58] sm:$0xff]
      %v5735 = vld [vmem:[%s5722 + $0x60] sm:$0xff]
      %v5736 = vld [vmem:[%s5722 + $0x68] sm:$0xff]
      %v5737 = vld [vmem:[%s5722 + $0x70] sm:$0xff]
      %v5738 = vld [vmem:[%s5722 + $0x78] sm:$0xff]
      %v5739 = vld [vmem:[%s5722 + $0x80] sm:$0xff]
      %v5740 = vld [vmem:[%s5722 + $0x88] sm:$0xff]
      %v5741 = vld [vmem:[%s5722 + $0x90] sm:$0xff]
      %v5742 = vld [vmem:[%s5722 + $0x98] sm:$0xff]
      %v5743 = vld [vmem:[%s5722 + $0xa0] sm:$0xff]
      %v5744 = vld [vmem:[%s5722 + $0xa8] sm:$0xff]
      %v5745 = vld [vmem:[%s5722 + $0xb0] sm:$0xff]
      %v5746 = vld [vmem:[%s5722 + $0xb8] sm:$0xff]
      %v5747 = vld [vmem:[%s5722 + $0xc0] sm:$0xff]
      %v5748 = vld [vmem:[%s5722 + $0xc8] sm:$0xff]
      %v5749 = vld [vmem:[%s5722 + $0xd0] sm:$0xff]
      %v5750 = vld [vmem:[%s5722 + $0xd8] sm:$0xff]
      %v5751 = vld [vmem:[%s5722 + $0xe0] sm:$0xff]
      %v5752 = vld [vmem:[%s5722 + $0xe8] sm:$0xff]
      %v5753 = vld [vmem:[%s5722 + $0xf0] sm:$0xff]
      %v5754 = vld [vmem:[%s5722 + $0xf8] sm:$0xff]
      %s5755 = scalar_lea.vmem %s13, 4
      %v5756 = vld [vmem:[%s5755] sm:$0xf]
      %v5758 = vlaneseq
      %v5759 = vshrl.u32 %v5758, 7
      %v5760 = vsub.s32 0, %v5759
      %v5761 = vrot.slane %v5756, %v5760
      %v5762 = vlaneseq
      %v5763 = vshrl.u32 %v5762, 7
      %v5764 = vsub.s32 1, %v5763
      %v5765 = vrot.slane %v5756, %v5764
      %v5766 = vlaneseq
      %v5767 = vshrl.u32 %v5766, 7
      %v5768 = vsub.s32 2, %v5767
      %v5769 = vrot.slane %v5756, %v5768
      %v5770 = vlaneseq
      %v5771 = vshrl.u32 %v5770, 7
      %v5772 = vsub.s32 3, %v5771
      %v5773 = vrot.slane %v5756, %v5772
      %v5810 = vunpack.c.l.b16 %v5723
      %v5811 = vunpack.c.h.b16 %v5723
      %v5812 = vunpack.c.l.b16 %v5724
      %v5813 = vunpack.c.h.b16 %v5724
      %v5814 = vunpack.c.l.b16 %v5725
      %v5815 = vunpack.c.h.b16 %v5725
      %v5816 = vunpack.c.l.b16 %v5726
      %v5817 = vunpack.c.h.b16 %v5726
      %v5818 = vunpack.c.l.b16 %v5727
      %v5819 = vunpack.c.h.b16 %v5727
      %v5820 = vunpack.c.l.b16 %v5728
      %v5821 = vunpack.c.h.b16 %v5728
      %v5822 = vunpack.c.l.b16 %v5729
      %v5823 = vunpack.c.h.b16 %v5729
      %v5824 = vunpack.c.l.b16 %v5730
      %v5825 = vunpack.c.h.b16 %v5730
      %v5826 = vunpack.c.l.b16 %v5731
      %v5827 = vunpack.c.h.b16 %v5731
      %v5828 = vunpack.c.l.b16 %v5732
      %v5829 = vunpack.c.h.b16 %v5732
      %v5830 = vunpack.c.l.b16 %v5733
      %v5831 = vunpack.c.h.b16 %v5733
      %v5832 = vunpack.c.l.b16 %v5734
      %v5833 = vunpack.c.h.b16 %v5734
      %v5834 = vunpack.c.l.b16 %v5735
      %v5835 = vunpack.c.h.b16 %v5735
      %v5836 = vunpack.c.l.b16 %v5736
      %v5837 = vunpack.c.h.b16 %v5736
      %v5838 = vunpack.c.l.b16 %v5737
      %v5839 = vunpack.c.h.b16 %v5737
      %v5840 = vunpack.c.l.b16 %v5738
      %v5841 = vunpack.c.h.b16 %v5738
      %v5842 = vunpack.c.l.b16 %v5739
      %v5843 = vunpack.c.h.b16 %v5739
      %v5844 = vunpack.c.l.b16 %v5740
      %v5845 = vunpack.c.h.b16 %v5740
      %v5846 = vunpack.c.l.b16 %v5741
      %v5847 = vunpack.c.h.b16 %v5741
      %v5848 = vunpack.c.l.b16 %v5742
      %v5849 = vunpack.c.h.b16 %v5742
      %v5850 = vunpack.c.l.b16 %v5743
      %v5851 = vunpack.c.h.b16 %v5743
      %v5852 = vunpack.c.l.b16 %v5744
      %v5853 = vunpack.c.h.b16 %v5744
      %v5854 = vunpack.c.l.b16 %v5745
      %v5855 = vunpack.c.h.b16 %v5745
      %v5856 = vunpack.c.l.b16 %v5746
      %v5857 = vunpack.c.h.b16 %v5746
      %v5858 = vunpack.c.l.b16 %v5747
      %v5859 = vunpack.c.h.b16 %v5747
      %v5860 = vunpack.c.l.b16 %v5748
      %v5861 = vunpack.c.h.b16 %v5748
      %v5862 = vunpack.c.l.b16 %v5749
      %v5863 = vunpack.c.h.b16 %v5749
      %v5864 = vunpack.c.l.b16 %v5750
      %v5865 = vunpack.c.h.b16 %v5750
      %v5866 = vunpack.c.l.b16 %v5751
      %v5867 = vunpack.c.h.b16 %v5751
      %v5868 = vunpack.c.l.b16 %v5752
      %v5869 = vunpack.c.h.b16 %v5752
      %v5870 = vunpack.c.l.b16 %v5753
      %v5871 = vunpack.c.h.b16 %v5753
      %v5872 = vunpack.c.l.b16 %v5754
      %v5873 = vunpack.c.h.b16 %v5754
      %v5874 = vpack.c.b16 %v5814, %v5810
      %v5875 = vpack.c.b16 %v5815, %v5811
      %v5876 = vpack.c.b16 %v5816, %v5812
      %v5877 = vpack.c.b16 %v5817, %v5813
      %v5878 = vpack.c.b16 %v5822, %v5818
      %v5879 = vpack.c.b16 %v5823, %v5819
      %v5880 = vpack.c.b16 %v5824, %v5820
      %v5881 = vpack.c.b16 %v5825, %v5821
      %v5882 = vpack.c.b16 %v5830, %v5826
      %v5883 = vpack.c.b16 %v5831, %v5827
      %v5884 = vpack.c.b16 %v5832, %v5828
      %v5885 = vpack.c.b16 %v5833, %v5829
      %v5886 = vpack.c.b16 %v5838, %v5834
      %v5887 = vpack.c.b16 %v5839, %v5835
      %v5888 = vpack.c.b16 %v5840, %v5836
      %v5889 = vpack.c.b16 %v5841, %v5837
      %v5890 = vpack.c.b16 %v5846, %v5842
      %v5891 = vpack.c.b16 %v5847, %v5843
      %v5892 = vpack.c.b16 %v5848, %v5844
      %v5893 = vpack.c.b16 %v5849, %v5845
      %v5894 = vpack.c.b16 %v5854, %v5850
      %v5895 = vpack.c.b16 %v5855, %v5851
      %v5896 = vpack.c.b16 %v5856, %v5852
      %v5897 = vpack.c.b16 %v5857, %v5853
      %v5898 = vpack.c.b16 %v5862, %v5858
      %v5899 = vpack.c.b16 %v5863, %v5859
      %v5900 = vpack.c.b16 %v5864, %v5860
      %v5901 = vpack.c.b16 %v5865, %v5861
      %v5902 = vpack.c.b16 %v5870, %v5866
      %v5903 = vpack.c.b16 %v5871, %v5867
      %v5904 = vpack.c.b16 %v5872, %v5868
      %v5905 = vpack.c.b16 %v5873, %v5869
      %5938 = vmatprep.subr.bf16.mxu0 %v5903
      %5939 = vmatpush1.bf16.msra.mxu0 %v5902
      %5940 = vmatprep.subr.bf16.mxu0 %v5899
      %5941 = vmatpush1.bf16.msra.mxu0 %v5898
      %5942 = vmatprep.subr.bf16.mxu0 %v5895
      %5943 = vmatpush1.bf16.msra.mxu0 %v5894
      %5944 = vmatprep.subr.bf16.mxu0 %v5891
      %5945 = vmatpush1.bf16.msra.mxu0 %v5890
      %5946 = vmatprep.subr.bf16.mxu0 %v5887
      %5947 = vmatpush1.bf16.msra.mxu0 %v5886
      %5948 = vmatprep.subr.bf16.mxu0 %v5883
      %5949 = vmatpush1.bf16.msra.mxu0 %v5882
      %5950 = vmatprep.subr.bf16.mxu0 %v5879
      %5951 = vmatpush1.bf16.msra.mxu0 %v5878
      %5952 = vmatprep.subr.bf16.mxu0 %v5875
      %5953 = vmatpush1.bf16.msra.mxu0 %v5874
      %5954 = vmatprep.subr.bf16.mxu0 0
      %5955 = vmatpush2.bf16.msra.mxu0 0
      %5956 = vmatprep.subr.bf16.mxu0 0
      %5957 = vmatpush2.bf16.msra.mxu0 0
      %5958 = vmatprep.subr.bf16.mxu0 0
      %5959 = vmatpush2.bf16.msra.mxu0 0
      %5960 = vmatprep.subr.bf16.mxu0 0
      %5961 = vmatpush2.bf16.msra.mxu0 0
      %5962 = vmatprep.subr.bf16.mxu0 0
      %5963 = vmatpush2.bf16.msra.mxu0 0
      %5964 = vmatprep.subr.bf16.mxu0 0
      %5965 = vmatpush2.bf16.msra.mxu0 0
      %5966 = vmatprep.subr.bf16.mxu0 0
      %5967 = vmatpush2.bf16.msra.mxu0 0
      %5968 = vmatprep.subr.bf16.mxu0 0
      %5969 = vmatpush2.bf16.msra.mxu0 0
      %5970 = vmatprep.mubr.bf16.mxu0 0
      %5971 = vmatmul.mubr.bf16.gmra.mxu0 %v5721
      %v5972 = vpop.f32.mrf.mxu0
      %v5973 = vadd.f32 %v5761, %v5972
      %v5974 = vpop.f32.mrf.mxu0
      %v5975 = vadd.f32 %v5765, %v5974
      %v5976 = vpop.f32.mrf.mxu0
      %v5977 = vadd.f32 %v5761, %v5976
      %v5978 = vpop.f32.mrf.mxu0
      %v5979 = vadd.f32 %v5765, %v5978
      %5980 = vdwg.mxu0
      %5981 = vmatprep.subr.bf16.mxu0 %v5905
      %5982 = vmatpush1.bf16.msra.mxu0 %v5904
      %5983 = vmatprep.subr.bf16.mxu0 %v5901
      %5984 = vmatpush1.bf16.msra.mxu0 %v5900
      %5985 = vmatprep.subr.bf16.mxu0 %v5897
      %5986 = vmatpush1.bf16.msra.mxu0 %v5896
      %5987 = vmatprep.subr.bf16.mxu0 %v5893
      %5988 = vmatpush1.bf16.msra.mxu0 %v5892
      %5989 = vmatprep.subr.bf16.mxu0 %v5889
      %5990 = vmatpush1.bf16.msra.mxu0 %v5888
      %5991 = vmatprep.subr.bf16.mxu0 %v5885
      %5992 = vmatpush1.bf16.msra.mxu0 %v5884
      %5993 = vmatprep.subr.bf16.mxu0 %v5881
      %5994 = vmatpush1.bf16.msra.mxu0 %v5880
      %5995 = vmatprep.subr.bf16.mxu0 %v5877
      %5996 = vmatpush1.bf16.msra.mxu0 %v5876
      %5997 = vmatprep.subr.bf16.mxu0 0
      %5998 = vmatpush2.bf16.msra.mxu0 0
      %5999 = vmatprep.subr.bf16.mxu0 0
      %6000 = vmatpush2.bf16.msra.mxu0 0
      %6001 = vmatprep.subr.bf16.mxu0 0
      %6002 = vmatpush2.bf16.msra.mxu0 0
      %6003 = vmatprep.subr.bf16.mxu0 0
      %6004 = vmatpush2.bf16.msra.mxu0 0
      %6005 = vmatprep.subr.bf16.mxu0 0
      %6006 = vmatpush2.bf16.msra.mxu0 0
      %6007 = vmatprep.subr.bf16.mxu0 0
      %6008 = vmatpush2.bf16.msra.mxu0 0
      %6009 = vmatprep.subr.bf16.mxu0 0
      %6010 = vmatpush2.bf16.msra.mxu0 0
      %6011 = vmatprep.subr.bf16.mxu0 0
      %6012 = vmatpush2.bf16.msra.mxu0 0
      %6013 = vmatprep.mubr.bf16.mxu0 0
      %6014 = vmatmul.mubr.bf16.gmra.mxu0 %v5721
      %v6015 = vpop.f32.mrf.mxu0
      %v6016 = vadd.f32 %v5769, %v6015
      %v6017 = vpop.f32.mrf.mxu0
      %v6018 = vadd.f32 %v5773, %v6017
      %v6019 = vpop.f32.mrf.mxu0
      %v6020 = vadd.f32 %v5769, %v6019
      %v6021 = vpop.f32.mrf.mxu0
      %v6022 = vadd.f32 %v5773, %v6021
      %6023 = vdwg.mxu0
      %v6024 = vmax.f32 %v5973, 0.0
      %v6025 = vmax.f32 %v5975, 0.0
      %v6026 = vmax.f32 %v6016, 0.0
      %v6027 = vmax.f32 %v6018, 0.0
      %v6028 = vmax.f32 %v5977, 0.0
      %v6029 = vmax.f32 %v5979, 0.0
      %v6030 = vmax.f32 %v6020, 0.0
      %v6031 = vmax.f32 %v6022, 0.0
      %v6032 = vpack.c.bf16 %v6028, %v6024
      %v6033 = vpack.c.bf16 %v6029, %v6025
      %v6034 = vpack.c.bf16 %v6030, %v6026
      %v6035 = vpack.c.bf16 %v6031, %v6027
      %s6036 = scalar_lea.vmem %s14, 256
      %v6037 = vld [vmem:[%s6036] sm:$0xf]
      %v6038 = vld [vmem:[%s6036 + $0x4] sm:$0xf]
      %v6039 = vld [vmem:[%s6036 + $0x8] sm:$0xf]
      %v6040 = vld [vmem:[%s6036 + $0xc] sm:$0xf]
      %v6041 = vld [vmem:[%s6036 + $0x10] sm:$0xf]
      %v6042 = vld [vmem:[%s6036 + $0x14] sm:$0xf]
      %v6043 = vld [vmem:[%s6036 + $0x18] sm:$0xf]
      %v6044 = vld [vmem:[%s6036 + $0x1c] sm:$0xf]
      %v6045 = vld [vmem:[%s6036 + $0x20] sm:$0xf]
      %v6046 = vld [vmem:[%s6036 + $0x24] sm:$0xf]
      %v6047 = vld [vmem:[%s6036 + $0x28] sm:$0xf]
      %v6048 = vld [vmem:[%s6036 + $0x2c] sm:$0xf]
      %v6049 = vld [vmem:[%s6036 + $0x30] sm:$0xf]
      %v6050 = vld [vmem:[%s6036 + $0x34] sm:$0xf]
      %v6051 = vld [vmem:[%s6036 + $0x38] sm:$0xf]
      %v6052 = vld [vmem:[%s6036 + $0x3c] sm:$0xf]
      %v6053 = vld [vmem:[%s6036 + $0x40] sm:$0xf]
      %v6054 = vld [vmem:[%s6036 + $0x44] sm:$0xf]
      %v6055 = vld [vmem:[%s6036 + $0x48] sm:$0xf]
      %v6056 = vld [vmem:[%s6036 + $0x4c] sm:$0xf]
      %v6057 = vld [vmem:[%s6036 + $0x50] sm:$0xf]
      %v6058 = vld [vmem:[%s6036 + $0x54] sm:$0xf]
      %v6059 = vld [vmem:[%s6036 + $0x58] sm:$0xf]
      %v6060 = vld [vmem:[%s6036 + $0x5c] sm:$0xf]
      %v6061 = vld [vmem:[%s6036 + $0x60] sm:$0xf]
      %v6062 = vld [vmem:[%s6036 + $0x64] sm:$0xf]
      %v6063 = vld [vmem:[%s6036 + $0x68] sm:$0xf]
      %v6064 = vld [vmem:[%s6036 + $0x6c] sm:$0xf]
      %v6065 = vld [vmem:[%s6036 + $0x70] sm:$0xf]
      %v6066 = vld [vmem:[%s6036 + $0x74] sm:$0xf]
      %v6067 = vld [vmem:[%s6036 + $0x78] sm:$0xf]
      %v6068 = vld [vmem:[%s6036 + $0x7c] sm:$0xf]
      %v6069 = vld [vmem:[%s6036 + $0x80] sm:$0xf]
      %v6070 = vld [vmem:[%s6036 + $0x84] sm:$0xf]
      %v6071 = vld [vmem:[%s6036 + $0x88] sm:$0xf]
      %v6072 = vld [vmem:[%s6036 + $0x8c] sm:$0xf]
      %v6073 = vld [vmem:[%s6036 + $0x90] sm:$0xf]
      %v6074 = vld [vmem:[%s6036 + $0x94] sm:$0xf]
      %v6075 = vld [vmem:[%s6036 + $0x98] sm:$0xf]
      %v6076 = vld [vmem:[%s6036 + $0x9c] sm:$0xf]
      %v6077 = vld [vmem:[%s6036 + $0xa0] sm:$0xf]
      %v6078 = vld [vmem:[%s6036 + $0xa4] sm:$0xf]
      %v6079 = vld [vmem:[%s6036 + $0xa8] sm:$0xf]
      %v6080 = vld [vmem:[%s6036 + $0xac] sm:$0xf]
      %v6081 = vld [vmem:[%s6036 + $0xb0] sm:$0xf]
      %v6082 = vld [vmem:[%s6036 + $0xb4] sm:$0xf]
      %v6083 = vld [vmem:[%s6036 + $0xb8] sm:$0xf]
      %v6084 = vld [vmem:[%s6036 + $0xbc] sm:$0xf]
      %v6085 = vld [vmem:[%s6036 + $0xc0] sm:$0xf]
      %v6086 = vld [vmem:[%s6036 + $0xc4] sm:$0xf]
      %v6087 = vld [vmem:[%s6036 + $0xc8] sm:$0xf]
      %v6088 = vld [vmem:[%s6036 + $0xcc] sm:$0xf]
      %v6089 = vld [vmem:[%s6036 + $0xd0] sm:$0xf]
      %v6090 = vld [vmem:[%s6036 + $0xd4] sm:$0xf]
      %v6091 = vld [vmem:[%s6036 + $0xd8] sm:$0xf]
      %v6092 = vld [vmem:[%s6036 + $0xdc] sm:$0xf]
      %v6093 = vld [vmem:[%s6036 + $0xe0] sm:$0xf]
      %v6094 = vld [vmem:[%s6036 + $0xe4] sm:$0xf]
      %v6095 = vld [vmem:[%s6036 + $0xe8] sm:$0xf]
      %v6096 = vld [vmem:[%s6036 + $0xec] sm:$0xf]
      %v6097 = vld [vmem:[%s6036 + $0xf0] sm:$0xf]
      %v6098 = vld [vmem:[%s6036 + $0xf4] sm:$0xf]
      %v6099 = vld [vmem:[%s6036 + $0xf8] sm:$0xf]
      %v6100 = vld [vmem:[%s6036 + $0xfc] sm:$0xf]
      %s6101 = scalar_lea.vmem %s15, 1
      %v6102 = vld [vmem:[%s6101] sm:$0x1]
      %v6104 = vlaneseq
      %v6105 = vshrl.u32 %v6104, 7
      %v6106 = vsub.s32 0, %v6105
      %v6107 = vrot.slane %v6102, %v6106
      %v6173 = vunpack.c.l.b16 %v6037
      %v6174 = vunpack.c.l.b16 %v6038
      %v6175 = vunpack.c.l.b16 %v6039
      %v6176 = vunpack.c.l.b16 %v6040
      %v6177 = vunpack.c.l.b16 %v6041
      %v6178 = vunpack.c.l.b16 %v6042
      %v6179 = vunpack.c.l.b16 %v6043
      %v6180 = vunpack.c.l.b16 %v6044
      %v6181 = vunpack.c.l.b16 %v6045
      %v6182 = vunpack.c.l.b16 %v6046
      %v6183 = vunpack.c.l.b16 %v6047
      %v6184 = vunpack.c.l.b16 %v6048
      %v6185 = vunpack.c.l.b16 %v6049
      %v6186 = vunpack.c.l.b16 %v6050
      %v6187 = vunpack.c.l.b16 %v6051
      %v6188 = vunpack.c.l.b16 %v6052
      %v6189 = vunpack.c.l.b16 %v6053
      %v6190 = vunpack.c.l.b16 %v6054
      %v6191 = vunpack.c.l.b16 %v6055
      %v6192 = vunpack.c.l.b16 %v6056
      %v6193 = vunpack.c.l.b16 %v6057
      %v6194 = vunpack.c.l.b16 %v6058
      %v6195 = vunpack.c.l.b16 %v6059
      %v6196 = vunpack.c.l.b16 %v6060
      %v6197 = vunpack.c.l.b16 %v6061
      %v6198 = vunpack.c.l.b16 %v6062
      %v6199 = vunpack.c.l.b16 %v6063
      %v6200 = vunpack.c.l.b16 %v6064
      %v6201 = vunpack.c.l.b16 %v6065
      %v6202 = vunpack.c.l.b16 %v6066
      %v6203 = vunpack.c.l.b16 %v6067
      %v6204 = vunpack.c.l.b16 %v6068
      %v6205 = vunpack.c.l.b16 %v6069
      %v6206 = vunpack.c.l.b16 %v6070
      %v6207 = vunpack.c.l.b16 %v6071
      %v6208 = vunpack.c.l.b16 %v6072
      %v6209 = vunpack.c.l.b16 %v6073
      %v6210 = vunpack.c.l.b16 %v6074
      %v6211 = vunpack.c.l.b16 %v6075
      %v6212 = vunpack.c.l.b16 %v6076
      %v6213 = vunpack.c.l.b16 %v6077
      %v6214 = vunpack.c.l.b16 %v6078
      %v6215 = vunpack.c.l.b16 %v6079
      %v6216 = vunpack.c.l.b16 %v6080
      %v6217 = vunpack.c.l.b16 %v6081
      %v6218 = vunpack.c.l.b16 %v6082
      %v6219 = vunpack.c.l.b16 %v6083
      %v6220 = vunpack.c.l.b16 %v6084
      %v6221 = vunpack.c.l.b16 %v6085
      %v6222 = vunpack.c.l.b16 %v6086
      %v6223 = vunpack.c.l.b16 %v6087
      %v6224 = vunpack.c.l.b16 %v6088
      %v6225 = vunpack.c.l.b16 %v6089
      %v6226 = vunpack.c.l.b16 %v6090
      %v6227 = vunpack.c.l.b16 %v6091
      %v6228 = vunpack.c.l.b16 %v6092
      %v6229 = vunpack.c.l.b16 %v6093
      %v6230 = vunpack.c.l.b16 %v6094
      %v6231 = vunpack.c.l.b16 %v6095
      %v6232 = vunpack.c.l.b16 %v6096
      %v6233 = vunpack.c.l.b16 %v6097
      %v6234 = vunpack.c.l.b16 %v6098
      %v6235 = vunpack.c.l.b16 %v6099
      %v6236 = vunpack.c.l.b16 %v6100
      %v6237 = vpack.c.b16 %v6174, %v6173
      %v6238 = vpack.c.b16 %v6176, %v6175
      %v6239 = vpack.c.b16 %v6178, %v6177
      %v6240 = vpack.c.b16 %v6180, %v6179
      %v6241 = vpack.c.b16 %v6182, %v6181
      %v6242 = vpack.c.b16 %v6184, %v6183
      %v6243 = vpack.c.b16 %v6186, %v6185
      %v6244 = vpack.c.b16 %v6188, %v6187
      %v6245 = vpack.c.b16 %v6190, %v6189
      %v6246 = vpack.c.b16 %v6192, %v6191
      %v6247 = vpack.c.b16 %v6194, %v6193
      %v6248 = vpack.c.b16 %v6196, %v6195
      %v6249 = vpack.c.b16 %v6198, %v6197
      %v6250 = vpack.c.b16 %v6200, %v6199
      %v6251 = vpack.c.b16 %v6202, %v6201
      %v6252 = vpack.c.b16 %v6204, %v6203
      %v6253 = vpack.c.b16 %v6206, %v6205
      %v6254 = vpack.c.b16 %v6208, %v6207
      %v6255 = vpack.c.b16 %v6210, %v6209
      %v6256 = vpack.c.b16 %v6212, %v6211
      %v6257 = vpack.c.b16 %v6214, %v6213
      %v6258 = vpack.c.b16 %v6216, %v6215
      %v6259 = vpack.c.b16 %v6218, %v6217
      %v6260 = vpack.c.b16 %v6220, %v6219
      %v6261 = vpack.c.b16 %v6222, %v6221
      %v6262 = vpack.c.b16 %v6224, %v6223
      %v6263 = vpack.c.b16 %v6226, %v6225
      %v6264 = vpack.c.b16 %v6228, %v6227
      %v6265 = vpack.c.b16 %v6230, %v6229
      %v6266 = vpack.c.b16 %v6232, %v6231
      %v6267 = vpack.c.b16 %v6234, %v6233
      %v6268 = vpack.c.b16 %v6236, %v6235
      %6301 = vmatprep.subr.bf16.mxu0 0
      %6302 = vmatpush1.bf16.msra.mxu0 %v6244
      %6303 = vmatprep.subr.bf16.mxu0 0
      %6304 = vmatpush1.bf16.msra.mxu0 %v6243
      %6305 = vmatprep.subr.bf16.mxu0 0
      %6306 = vmatpush1.bf16.msra.mxu0 %v6242
      %6307 = vmatprep.subr.bf16.mxu0 0
      %6308 = vmatpush1.bf16.msra.mxu0 %v6241
      %6309 = vmatprep.subr.bf16.mxu0 0
      %6310 = vmatpush1.bf16.msra.mxu0 %v6240
      %6311 = vmatprep.subr.bf16.mxu0 0
      %6312 = vmatpush1.bf16.msra.mxu0 %v6239
      %6313 = vmatprep.subr.bf16.mxu0 0
      %6314 = vmatpush1.bf16.msra.mxu0 %v6238
      %6315 = vmatprep.subr.bf16.mxu0 0
      %6316 = vmatpush1.bf16.msra.mxu0 %v6237
      %6317 = vmatprep.subr.bf16.mxu0 0
      %6318 = vmatpush2.bf16.msra.mxu0 %v6252
      %6319 = vmatprep.subr.bf16.mxu0 0
      %6320 = vmatpush2.bf16.msra.mxu0 %v6251
      %6321 = vmatprep.subr.bf16.mxu0 0
      %6322 = vmatpush2.bf16.msra.mxu0 %v6250
      %6323 = vmatprep.subr.bf16.mxu0 0
      %6324 = vmatpush2.bf16.msra.mxu0 %v6249
      %6325 = vmatprep.subr.bf16.mxu0 0
      %6326 = vmatpush2.bf16.msra.mxu0 %v6248
      %6327 = vmatprep.subr.bf16.mxu0 0
      %6328 = vmatpush2.bf16.msra.mxu0 %v6247
      %6329 = vmatprep.subr.bf16.mxu0 0
      %6330 = vmatpush2.bf16.msra.mxu0 %v6246
      %6331 = vmatprep.subr.bf16.mxu0 0
      %6332 = vmatpush2.bf16.msra.mxu0 %v6245
      %6333 = vmatprep.mubr.bf16.mxu0 %v6033
      %6334 = vmatmul.mubr.bf16.gmra.mxu0 %v6032
      %v6335 = vpop.f32.mrf.mxu0
      %v6336 = vadd.f32 %v6107, %v6335
      %v6337 = vpop.f32.mrf.mxu0
      %v6338 = vpop.f32.mrf.mxu0
      %v6339 = vadd.f32 %v6107, %v6338
      %v6340 = vpop.f32.mrf.mxu0
      %6341 = vdwg.mxu0
      %6342 = vmatprep.subr.bf16.mxu0 0
      %6343 = vmatpush1.bf16.msra.mxu0 %v6260
      %6344 = vmatprep.subr.bf16.mxu0 0
      %6345 = vmatpush1.bf16.msra.mxu0 %v6259
      %6346 = vmatprep.subr.bf16.mxu0 0
      %6347 = vmatpush1.bf16.msra.mxu0 %v6258
      %6348 = vmatprep.subr.bf16.mxu0 0
      %6349 = vmatpush1.bf16.msra.mxu0 %v6257
      %6350 = vmatprep.subr.bf16.mxu0 0
      %6351 = vmatpush1.bf16.msra.mxu0 %v6256
      %6352 = vmatprep.subr.bf16.mxu0 0
      %6353 = vmatpush1.bf16.msra.mxu0 %v6255
      %6354 = vmatprep.subr.bf16.mxu0 0
      %6355 = vmatpush1.bf16.msra.mxu0 %v6254
      %6356 = vmatprep.subr.bf16.mxu0 0
      %6357 = vmatpush1.bf16.msra.mxu0 %v6253
      %6358 = vmatprep.subr.bf16.mxu0 0
      %6359 = vmatpush2.bf16.msra.mxu0 %v6268
      %6360 = vmatprep.subr.bf16.mxu0 0
      %6361 = vmatpush2.bf16.msra.mxu0 %v6267
      %6362 = vmatprep.subr.bf16.mxu0 0
      %6363 = vmatpush2.bf16.msra.mxu0 %v6266
      %6364 = vmatprep.subr.bf16.mxu0 0
      %6365 = vmatpush2.bf16.msra.mxu0 %v6265
      %6366 = vmatprep.subr.bf16.mxu0 0
      %6367 = vmatpush2.bf16.msra.mxu0 %v6264
      %6368 = vmatprep.subr.bf16.mxu0 0
      %6369 = vmatpush2.bf16.msra.mxu0 %v6263
      %6370 = vmatprep.subr.bf16.mxu0 0
      %6371 = vmatpush2.bf16.msra.mxu0 %v6262
      %6372 = vmatprep.subr.bf16.mxu0 0
      %6373 = vmatpush2.bf16.msra.mxu0 %v6261
      %6374 = vmatprep.mubr.bf16.mxu0 %v6035
      %6375 = vmatmul.mubr.bf16.gmra.mxu0 %v6034
      %v6376 = vpop.f32.mrf.mxu0
      %v6377 = vadd.f32 %v6336, %v6376
      %v6378 = vpop.f32.mrf.mxu0
      %v6379 = vpop.f32.mrf.mxu0
      %v6380 = vadd.f32 %v6339, %v6379
      %v6381 = vpop.f32.mrf.mxu0
      %6382 = vdwg.mxu0
      %v6383 = vadd.f32 %v5719, %v6377
      %v6384 = vadd.f32 %v5720, %v6380
      %s6385 = scalar_lea.vmem %s16, 1
      %v6386 = vld [vmem:[%s6385] sm:$0x1]
      %s6387 = scalar_lea.vmem %s17, 1
      %v6388 = vld [vmem:[%s6387] sm:$0x1]
      %6389 = vadd.xlane.f32.xlu0 %v6383
      %v6390 = vpop.xlane.xlu0 %6389
      %v6391 = vsel %vm2812, %v6384, 0.0
      %6392 = vadd.xlane.f32.xlu0 %v6391
      %v6393 = vpop.xlane.xlu0 %6392
      %v6394 = vmul.f32 %v6390, %v2816
      %v6395 = vmul.f32 %v6393, %v2816
      %v6396 = vsub.f32 %v6383, %v6394
      %v6397 = vsub.f32 %v6384, %v6395
      %v6398 = vmul.f32 %v6396, %v6396
      %v6399 = vmul.f32 %v6397, %v6397
      %6400 = vadd.xlane.f32.xlu0 %v6398
      %v6401 = vpop.xlane.xlu0 %6400
      %v6402 = vsel %vm2812, %v6399, 0.0
      %6403 = vadd.xlane.f32.xlu0 %v6402
      %v6404 = vpop.xlane.xlu0 %6403
      %v6405 = vmul.f32 %v6401, %v2816
      %v6406 = vmul.f32 %v6404, %v2816
      %v6407 = vadd.f32 %v6405, 1e-05
      %v6408 = vadd.f32 %v6406, 1e-05
      %v6409 = vrsqrt.pop %v6407
      %v6410 = vrsqrt.pop %v6408
      %v6411 = vmul.f32 %v6396, %v6409
      %v6412 = vmul.f32 %v6397, %v6410
      %v6414 = vlaneseq
      %v6415 = vshrl.u32 %v6414, 7
      %v6416 = vsub.s32 0, %v6415
      %v6417 = vrot.slane %v6386, %v6416
      %v6419 = vmul.f32 %v6411, %v6417
      %v6420 = vmul.f32 %v6412, %v6417
      %v6422 = vlaneseq
      %v6423 = vshrl.u32 %v6422, 7
      %v6424 = vsub.s32 0, %v6423
      %v6425 = vrot.slane %v6388, %v6424
      %v6427 = vadd.f32 %v6419, %v6425
      %v6428 = vadd.f32 %v6420, %v6425
      %v6429 = vsel %vm2812, %v6428, 0.0
      %v6430 = vadd.f32 %v6427, %v6429
      %v6431 = vrot.slane %v6430, 4
      %v6432 = vadd.f32 %v6430, %v6431
      %v6433 = vrot.slane %v6432, 2
      %v6434 = vadd.f32 %v6432, %v6433
      %v6435 = vrot.slane %v6434, 1
      %v6436 = vadd.f32 %v6434, %v6435
      %v6437 = vrcp.pop 12.0
      %v6438 = vmul.f32 %v6436, %v6437
      %v6439 = vld [vmem:[%s18] sm:$0x1]
      %v6440 = vld [vmem:[%s19] sm:$0x1]
      %6441 = vadd.xlane.f32.xlu0 %v6438
      %v6442 = vpop.xlane.xlu0 %6441
      %v6443 = vmul.f32 %v6442, %v2816
      %v6444 = vsub.f32 %v6438, %v6443
      %v6445 = vmul.f32 %v6444, %v6444
      %6446 = vadd.xlane.f32.xlu0 %v6445
      %v6447 = vpop.xlane.xlu0 %6446
      %v6448 = vmul.f32 %v6447, %v2816
      %v6449 = vadd.f32 %v6448, 1e-05
      %v6450 = vrsqrt.pop %v6449
      %v6451 = vmul.f32 %v6444, %v6450
      %v6452 = vmul.f32 %v6451, %v6439
      %v6453 = vadd.f32 %v6452, %v6440
      %v6454 = vld [vmem:[%s20] sm:$0x1]
      %v6455 = vmul.f32 %v6453, %v6454
      %vm6456 = vcmask 1040384
      %v6457 = vsel %vm6456, %v6455, 0.0
      %6458 = vadd.xlane.f32.xlu0 %v6457
      %v6459 = vpop.xlane.xlu0 %6458
      %v6460 = vld [vmem:[#allocation2] sm:$0x1]
      %v6461 = vadd.f32 %v6459, %v6460
      %vm6462 = vcmask 0
      %6463 = vst.msk [vmem:[%s681] sm:$0x1] %vm6462, %v6461
      %p6464 = scmp.lt.s32.totalorder %s35, 5
      %s6465 = scalar_select %p6464, %s35, 5
      %s6466 = scalar_lea.vmem %s22, %s6465
      // Predicated region
      $region109: #{gaze_selector_forward.3} parent=107 // pred_check
        %p6467 = pneg %p520
      $region110: #{gaze_selector_forward.3} parent=107 // pred_check_branch
        %6469 = sbr.rel (%p6467) target = $region112
      $region111: #{gaze_selector_forward.3} parent=107 // pred_region
        _
      $region112: #{gaze_selector_forward.3} parent=107 // pred_fallthru
        _
    $region108: #{gaze_selector_forward.3} parent=5 // pred_fallthru
      _
    %p6470 = scmp.le.s32.totalorder 2, %s30
    // Predicated region
    $region113: #{gaze_selector_forward.3} parent=5 // pred_check
      %p6471 = pneg %p6470
    $region114: #{gaze_selector_forward.3} parent=5 // pred_check_branch
      %6473 = sbr.rel (%p6471) target = $region116
    $region115: #{gaze_selector_forward.3} parent=5 // pred_region
      %s6474 = ssub.s32 %s30, 2
      // Predicated region
      $region117: #{gaze_selector_forward.3} parent=115 // pred_check
        %p6475 = pneg %p526
      $region118: #{gaze_selector_forward.3} parent=115 // pred_check_branch
        %6477 = sbr.rel (%p6475) target = $region120
      $region119: #{gaze_selector_forward.3} parent=115 // pred_region
        %p6478 = scmp.lt.s32.totalorder %s36, 5
        %s6479 = scalar_select %p6478, %s36, 5
        %s6480 = scalar_lea.vmem %s22, %s6479
      $region120: #{gaze_selector_forward.3} parent=115 // pred_fallthru
        _
    $region116: #{gaze_selector_forward.3} parent=5 // pred_fallthru
      _
  $region6: #{gaze_selector_forward.3} parent=0 // loop_footer
    %s34 = sadd.s32 1, %s30
  $region7: #{gaze_selector_forward.3} parent=0 // loop_footer_branch
    %29 = sbr.rel target = $region3
  $region8: #{gaze_selector_forward.3} parent=0 // loop_exit
    _

</llo_original>
